<compile_context>
chip_gen: v7x
topology: tpu7x:2x2x1
jax: 0.10.0
libtpu: 0.0.40
codegen_flags: <defaults>
</compile_context>

<pallas_src>
import functools

import jax
import jax.numpy as jnp
from jax.experimental import pallas as pl
from jax.experimental.pallas import tpu as pltpu

EPS_BN = 1e-5
HIDDEN = 178            # nn.GRU default hidden_size in the module
HP = 256                # padded hidden size (clean (8,128) tiling; pads stay 0)
GRU_OUT = 64            # nn.Linear out_features
FCP = 128               # lane-dense padded fc output width (sliced to 64 in wrapper)
CF = 64                 # padded channel width of the DenseNet feature space (>= 56)
VMEM_LIMIT = 64 * 1024 * 1024

DENSENET_PARAMS = {
    'block_1': {'num_layers': 3, 'out_channels': 10, 'bottleneck_channels': 32, 'kernel_size': 7},
    'block_2': {'num_layers': 2, 'out_channels': 4, 'bottleneck_channels': 20, 'kernel_size': 3},
    'block_3': {'num_layers': 2, 'out_channels': 4, 'bottleneck_channels': 20, 'kernel_size': 3},
    'pooling_block_1': {'out_channels': 48, 'kernel_size': 2},
    'pooling_block_2': {'out_channels': 48, 'kernel_size': 2},
}


# ------------------------- dense block body (shared by feature kernels) ------

def _dense_block_body(feat, w1_ref, b1_ref, sc_ref, sh_ref, w2_ref, b2_ref,
                      *, nl, k, n_batch):
    """One dense block on the VMEM-resident (R, CF) activation.

    Rows are batch-stacked, time-major (row = t*N + n).  Each layer's output
    is written into its own zero column range via zero-padded weights, which
    realizes torch.cat along channels with no concatenation op.  'same' conv
    shifts are sublane rolls by (j - pad)*N rows with a border mask (exact
    zero padding); the k taps are fused into a single (R, k*cb) matmul.
    """
    R = feat.shape[0]
    cb = w1_ref.shape[2]
    pad_l = (k - 1) // 2
    row = jax.lax.broadcasted_iota(jnp.int32, (R, cb), 0)
    # precompute (shift, mask) per tap once per block (masks hoisted out of
    # the layer loop: valid iff the source time index stays inside [0, T)).
    shift_mask = []
    for j in range(k):
        dsh = (j - pad_l) * n_batch
        if dsh == 0:
            shift_mask.append((0, None))
        else:
            shift_mask.append((dsh, (row + dsh >= 0) & (row + dsh < R)))

    for i in range(nl):
        # bottleneck: ReLU -> BN (folded) -> Conv1d(k=1)
        h = jnp.maximum(feat, 0.0)
        h = jnp.dot(h, w1_ref[i], preferred_element_type=jnp.float32) + b1_ref[i]
        # conv layer: ReLU -> BN (exact scale/shift) -> Conv1d(k, 'same')
        a = jnp.maximum(h, 0.0) * sc_ref[i] + sh_ref[i]                  # (R, cb)
        taps = []
        for dsh, mask in shift_mask:
            if dsh == 0:
                taps.append(a)
            else:
                shifted = pltpu.roll(a, shift=(-dsh) % R, axis=0)        # XLU sublane roll
                taps.append(jnp.where(mask, shifted, 0.0))               # zero 'same' padding
        am = jnp.concatenate(taps, axis=1) if k > 1 else taps[0]         # (R, k*cb)
        # fused-tap conv + channel "concat" (weights are zero outside the
        # layer's output columns, which were zero in feat).
        feat = feat + jnp.dot(am, w2_ref[i], preferred_element_type=jnp.float32) + b2_ref[i]
    return feat


# ------------------------- feature kernels ------------------------------------

def _block_pool_kernel(x_ref, w1_ref, b1_ref, sc_ref, sh_ref, w2_ref, b2_ref,
                       pw_ref, pb_ref, o_ref, *, nl, k, n_batch):
    feat = _dense_block_body(x_ref[...], w1_ref, b1_ref, sc_ref, sh_ref, w2_ref, b2_ref,
                             nl=nl, k=k, n_batch=n_batch)
    # Pooling block's BN (folded) -> Conv1d(k=1).  The AvgPool1d(2) itself is a
    # free XLA reshape+mean in the wrapper (no O(R^2) pooling matrix).
    o_ref[...] = jnp.dot(feat, pw_ref[...], preferred_element_type=jnp.float32) + pb_ref[...]


def _block_proj_kernel(x_ref, w1_ref, b1_ref, sc_ref, sh_ref, w2_ref, b2_ref,
                       wif_ref, bif_ref, wib_ref, bib_ref, o_ref, *, nl, k, n_batch):
    feat = _dense_block_body(x_ref[...], w1_ref, b1_ref, sc_ref, sh_ref, w2_ref, b2_ref,
                             nl=nl, k=k, n_batch=n_batch)
    fr = jnp.maximum(feat, 0.0)                        # F.relu(dense_net(x)); Dropout=id (eval)
    # GRU input projections for both directions; b_ih and b_hh[r,z] folded in.
    o_ref[0] = jnp.dot(fr, wif_ref[...], preferred_element_type=jnp.float32) + bif_ref[...]
    o_ref[1] = jnp.dot(fr, wib_ref[...], preferred_element_type=jnp.float32) + bib_ref[...]


def _block_pool_call(x2d, blk, pool, *, nl, k, n_batch):
    rows = x2d.shape[0]
    kern = functools.partial(_block_pool_kernel, nl=nl, k=k, n_batch=n_batch)
    return pl.pallas_call(
        kern,
        out_shape=jax.ShapeDtypeStruct((rows, CF), jnp.float32),
        compiler_params=pltpu.CompilerParams(vmem_limit_bytes=VMEM_LIMIT),
    )(x2d, *blk, *pool)


def _block_proj_call(x2d, blk, wif, bif, wib, bib, *, nl, k, n_batch):
    rows = x2d.shape[0]
    kern = functools.partial(_block_proj_kernel, nl=nl, k=k, n_batch=n_batch)
    return pl.pallas_call(
        kern,
        out_shape=jax.ShapeDtypeStruct((2, rows, 3 * HP), jnp.float32),
        compiler_params=pltpu.CompilerParams(vmem_limit_bytes=VMEM_LIMIT),
    )(x2d, *blk, wif, bif, wib, bib)


# ------------------------- bidirectional GRU recurrence ----------------------

def _gru_kernel(x_ref, whh_ref, bhn_ref, wfc_ref, y_ref, h_ref, *, tb):
    # grid = (direction, time-block); direction is megacore-parallel (v7x gets
    # one direction per TensorCore), time is sequential ("arbitrary").
    rev = pl.program_id(0) == 1

    @pl.when(pl.program_id(1) == 0)
    def _():
        h_ref[...] = jnp.zeros_like(h_ref)

    whh = whh_ref[0]                       # (HP, 3*HP)   this direction's W_hh
    bhn = bhn_ref[0]                       # (1, HP)      b_hn (n-gate hidden bias)
    wfc = wfc_ref[0]                       # (HP, FCP)    this direction's half of fc

    def step(i, h):
        # backward direction walks its time block in reverse; the reversed
        # BlockSpec index_map already gave us the right block, so outputs land
        # at their natural time positions with no explicit reverse op.
        t = jnp.where(rev, tb - 1 - i, i)
        x = x_ref[0, t]                                            # (N, 3*HP)
        hd = jnp.dot(h, whh, preferred_element_type=jnp.float32)   # (N, 3*HP)
        r = jax.nn.sigmoid(x[:, :HP] + hd[:, :HP])
        z = jax.nn.sigmoid(x[:, HP:2 * HP] + hd[:, HP:2 * HP])
        n = jnp.tanh(x[:, 2 * HP:] + r * (hd[:, 2 * HP:] + bhn))   # PyTorch GRU n-gate
        h = (1.0 - z) * n + z * h
        # project to the fc half inside the recurrence: only 128 lanes go to HBM.
        y_ref[0, t] = jnp.dot(h, wfc, preferred_element_type=jnp.float32)
        return h

    h_ref[...] = jax.lax.fori_loop(0, tb, step, h_ref[...], unroll=True)


def _gru_call(x_both, whh, bhn, wfc):
    _, T, N, G3 = x_both.shape
    tb = 1
    for cand in (16, 8, 4, 2):
        if T % cand == 0:
            tb = cand
            break
    nb = T // tb

    def t_map(d, s):
        # d == 0: forward, blocks in order; d == 1: backward, blocks reversed.
        return (d, d * (nb - 1) + (1 - 2 * d) * s, 0, 0)

    grid_spec = pltpu.PrefetchScalarGridSpec(
        num_scalar_prefetch=0,
        grid=(2, nb),
        in_specs=[
            pl.BlockSpec((1, tb, N, G3), t_map),                    # x projections
            pl.BlockSpec((1, HP, G3), lambda d, s: (d, 0, 0)),      # W_hh (per dir)
            pl.BlockSpec((1, 1, HP), lambda d, s: (d, 0, 0)),       # b_hn (per dir)
            pl.BlockSpec((1, HP, FCP), lambda d, s: (d, 0, 0)),     # fc half (per dir)
        ],
        out_specs=pl.BlockSpec((1, tb, N, FCP), t_map),
        scratch_shapes=[pltpu.VMEM((N, HP), jnp.float32)],          # carried hidden state
    )
    return pl.pallas_call(
        functools.partial(_gru_kernel, tb=tb),
        out_shape=jax.ShapeDtypeStruct((2, T, N, FCP), jnp.float32),
        grid_spec=grid_spec,
        compiler_params=pltpu.CompilerParams(
            dimension_semantics=("parallel", "arbitrary"),
            vmem_limit_bytes=VMEM_LIMIT),
    )(x_both, whh, bhn, wfc)


# ------------------------- head: add halves + bias + tanh (lane-dense) -------

def _head_kernel(y_ref, b_ref, o_ref):
    o_ref[...] = jnp.tanh(y_ref[0] + y_ref[1] + b_ref[...])


def _head_call(y2d, bfc):
    rows = y2d.shape[1]
    return pl.pallas_call(
        _head_kernel,
        out_shape=jax.ShapeDtypeStruct((rows, FCP), jnp.float32),
        compiler_params=pltpu.CompilerParams(vmem_limit_bytes=VMEM_LIMIT),
    )(y2d, bfc)


# ------------------------- end-to-end forward --------------------------------

def _avg_pool_time(h2d, n_batch):
    # AvgPool1d(kernel=2, stride=2) on time-major rows: free XLA reshape+mean.
    rows, c = h2d.shape
    length = rows // n_batch
    return (h2d.reshape(length // 2, 2, n_batch, c)
            .mean(axis=1)
            .reshape((length // 2) * n_batch, c))


def crnn_forward(x_ncl, prep):
    """x_ncl: (N, in_features, L) like the PyTorch module.  Returns (N, L//4, 64)."""
    N, Cin, L0 = x_ncl.shape
    assert L0 % 4 == 0, "two AvgPool1d(kernel=2) stages require L % 4 == 0"
    T = L0 // 4
    p = DENSENET_PARAMS

    # NCL -> batch-stacked, time-major rows (row = t*N + n), channels padded to CF.
    x2d = jnp.transpose(x_ncl, (2, 0, 1)).reshape(N * L0, Cin).astype(jnp.float32)
    x2d = jnp.pad(x2d, ((0, 0), (0, CF - Cin)))

    h = _block_pool_call(x2d, prep['block1'], prep['pool1'],
                         nl=p['block_1']['num_layers'],
                         k=p['block_1']['kernel_size'], n_batch=N)
    h = _avg_pool_time(h, N)                                         # (L0/2*N, CF)
    h = _block_pool_call(h, prep['block2'], prep['pool2'],
                         nl=p['block_2']['num_layers'],
                         k=p['block_2']['kernel_size'], n_batch=N)
    h = _avg_pool_time(h, N)                                         # (T*N, CF)
    xproj = _block_proj_call(h, prep['block3'],
                             prep['wih_f'], prep['bih_f'], prep['wih_b'], prep['bih_b'],
                             nl=p['block_3']['num_layers'],
                             k=p['block_3']['kernel_size'], n_batch=N)  # (2, T*N, 3*HP)

    x_both = xproj.reshape(2, T, N, 3 * HP)                          # free reshape
    y = _gru_call(x_both, prep['whh'], prep['bhn'], prep['wfc'])     # (2, T, N, FCP)
    o = _head_call(y.reshape(2, T * N, FCP), prep['bfc'])            # (T*N, FCP)
    out = o.reshape(T, N, FCP)[:, :, :GRU_OUT]                       # free slice
    return jnp.transpose(out, (1, 0, 2))                             # (N, T, 64)


# ------------------------- parameter preparation (trace-time, plain jnp) -----

def _prep_dense_layer(lp):
    cin = lp['conv1']['w'].shape[1]
    s1 = lp['bn1']['scale'].reshape(-1)
    t1 = lp['bn1']['shift'].reshape(-1)
    w1 = lp['conv1']['w'][:, :, 0]                                   # (cb, cin)
    cb = w1.shape[0]
    W1 = jnp.zeros((CF, cb), jnp.float32).at[:cin, :].set((w1 * s1[None, :]).T)
    b1 = (lp['conv1']['b'] + w1 @ t1).reshape(1, cb)                 # BN1 folded (exact, k=1)
    sc2 = lp['bn2']['scale'].reshape(1, cb)
    sh2 = lp['bn2']['shift'].reshape(1, cb)
    w2 = lp['conv2']['w']                                            # (g, cb, k)
    g, _, k = w2.shape
    # fused-tap weight: rows [j*cb, (j+1)*cb) hold tap j, columns = new channels.
    W2 = jnp.zeros((k * cb, CF), jnp.float32)
    for j in range(k):
        W2 = W2.at[j * cb:(j + 1) * cb, cin:cin + g].set(w2[:, :, j].T)
    b2 = jnp.zeros((1, CF), jnp.float32).at[0, cin:cin + g].set(lp['conv2']['b'])
    return W1, b1, sc2, sh2, W2, b2


def _prep_dense_block(block):
    per_layer = [_prep_dense_layer(lp) for lp in block['layers']]
    return tuple(jnp.stack(arrs) for arrs in zip(*per_layer))


def _prep_pool(pp):
    w = pp['conv']['w'][:, :, 0]                                     # (cout, cin)
    cout, cin = w.shape
    s = pp['bn']['scale'].reshape(-1)
    t = pp['bn']['shift'].reshape(-1)
    W = jnp.zeros((CF, CF), jnp.float32).at[:cin, :cout].set((w * s[None, :]).T)
    b = jnp.zeros((1, CF), jnp.float32).at[0, :cout].set(pp['conv']['b'] + w @ t)
    return W, b


def _prep_gru_dir(pd):
    wih, whh = pd['w_ih'], pd['w_hh']
    bih, bhh = pd['b_ih'], pd['b_hh']
    f = wih.shape[1]
    H = HIDDEN
    Wih = jnp.zeros((CF, 3 * HP), jnp.float32)
    Bih = jnp.zeros((1, 3 * HP), jnp.float32)
    Whh = jnp.zeros((HP, 3 * HP), jnp.float32)
    for g in range(3):                                               # gates: r, z, n
        c0, r0 = g * HP, g * H
        Wih = Wih.at[:f, c0:c0 + H].set(wih[r0:r0 + H, :].T)
        Whh = Whh.at[:H, c0:c0 + H].set(whh[r0:r0 + H, :].T)
        # fold b_hh into b_ih for r and z (they just add); keep b_hn separate.
        btot = bih[r0:r0 + H] + (bhh[r0:r0 + H] if g < 2 else jnp.zeros((H,), jnp.float32))
        Bih = Bih.at[0, c0:c0 + H].set(btot)
    Bhn = jnp.zeros((1, HP), jnp.float32).at[0, :H].set(bhh[2 * H:])
    return Wih, Bih, Whh, Bhn


def prepare_crnn_params(params):
    dn = params['densenet']
    H = HIDDEN
    wih_f, bih_f, whh_f, bhn_f = _prep_gru_dir(params['gru']['fwd'])
    wih_b, bih_b, whh_b, bhn_b = _prep_gru_dir(params['gru']['bwd'])
    wfc = params['gru']['fc']['w']                                   # (64, 2H)
    wfc_f = jnp.zeros((HP, FCP), jnp.float32).at[:H, :GRU_OUT].set(wfc[:, :H].T)
    wfc_b = jnp.zeros((HP, FCP), jnp.float32).at[:H, :GRU_OUT].set(wfc[:, H:].T)
    bfc = jnp.zeros((1, FCP), jnp.float32).at[0, :GRU_OUT].set(params['gru']['fc']['b'])
    return {
        'block1': _prep_dense_block(dn['block1']),
        'pool1': _prep_pool(dn['pool1']),
        'block2': _prep_dense_block(dn['block2']),
        'pool2': _prep_pool(dn['pool2']),
        'block3': _prep_dense_block(dn['block3']),
        'wih_f': wih_f, 'bih_f': bih_f, 'wih_b': wih_b, 'bih_b': bih_b,
        'whh': jnp.stack([whh_f, whh_b]),
        'bhn': jnp.stack([bhn_f, bhn_b]),
        'wfc': jnp.stack([wfc_f, wfc_b]),
        'bfc': bfc,
    }


# ------------------------- raw parameter init (mirrors the PyTorch module) ---

def init_bn(key, c):
    k1, k2, k3, k4 = jax.random.split(key, 4)
    gamma = 1.0 + 0.1 * jax.random.normal(k1, (c,))
    beta = 0.1 * jax.random.normal(k2, (c,))
    mean = 0.1 * jax.random.normal(k3, (c,))
    var = 1.0 + 0.1 * jax.random.uniform(k4, (c,))
    scale = gamma / jnp.sqrt(var + EPS_BN)
    shift = beta - mean * scale
    return {"scale": scale.reshape(1, c).astype(jnp.float32),
            "shift": shift.reshape(1, c).astype(jnp.float32)}


def init_conv(key, cin, cout, k):
    k1, k2 = jax.random.split(key)
    return {"w": (0.1 * jax.random.normal(k1, (cout, cin, k))).astype(jnp.float32),
            "b": (0.05 * jax.random.normal(k2, (cout,))).astype(jnp.float32)}


def init_linear(key, fin, fout):
    k1, k2 = jax.random.split(key)
    return {"w": (0.1 * jax.random.normal(k1, (fout, fin))).astype(jnp.float32),
            "b": (0.05 * jax.random.normal(k2, (fout,))).astype(jnp.float32)}


def init_dense_layer(key, cin, cout, bneck, k):
    k1, k2, k3, k4 = jax.random.split(key, 4)
    return {"bn1": init_bn(k1, cin),
            "conv1": init_conv(k2, cin, bneck, 1),
            "bn2": init_bn(k3, bneck),
            "conv2": init_conv(k4, bneck, cout, k)}


def init_dense_block(key, num_layers, cin, cout, bneck, k):
    keys = jax.random.split(key, num_layers)
    layers, c = [], cin
    for i in range(num_layers):
        layers.append(init_dense_layer(keys[i], c, cout, bneck, k))
        c += cout
    return {"layers": layers, "out_channels": c}


def init_pooling_block(key, cin, cout):
    k1, k2 = jax.random.split(key)
    return {"bn": init_bn(k1, cin), "conv": init_conv(k2, cin, cout, 1)}


def init_gru(key, in_features, hidden, out_features):
    kf, kb, kfc = jax.random.split(key, 3)

    def dir_params(k):
        k1, k2, k3, k4 = jax.random.split(k, 4)
        return {"w_ih": (0.1 * jax.random.normal(k1, (3 * hidden, in_features))).astype(jnp.float32),
                "w_hh": (0.1 * jax.random.normal(k2, (3 * hidden, hidden))).astype(jnp.float32),
                "b_ih": (0.05 * jax.random.normal(k3, (3 * hidden,))).astype(jnp.float32),
                "b_hh": (0.05 * jax.random.normal(k4, (3 * hidden,))).astype(jnp.float32)}

    return {"fwd": dir_params(kf), "bwd": dir_params(kb),
            "fc": init_linear(kfc, 2 * hidden, out_features)}


def init_crnn_params(key, in_features):
    p = DENSENET_PARAMS
    kb1, kp1, kb2, kp2, kb3, kg = jax.random.split(key, 6)
    block1 = init_dense_block(kb1, p['block_1']['num_layers'], in_features,
                              p['block_1']['out_channels'],
                              p['block_1']['bottleneck_channels'],
                              p['block_1']['kernel_size'])
    pool1 = init_pooling_block(kp1, block1["out_channels"], p['pooling_block_1']['out_channels'])
    block2 = init_dense_block(kb2, p['block_2']['num_layers'],
                              p['pooling_block_1']['out_channels'],
                              p['block_2']['out_channels'],
                              p['block_2']['bottleneck_channels'],
                              p['block_2']['kernel_size'])
    pool2 = init_pooling_block(kp2, block2["out_channels"], p['pooling_block_2']['out_channels'])
    block3 = init_dense_block(kb3, p['block_3']['num_layers'],
                              p['pooling_block_2']['out_channels'],
                              p['block_3']['out_channels'],
                              p['block_3']['bottleneck_channels'],
                              p['block_3']['kernel_size'])
    densenet_out = block3["out_channels"]                             # 56
    gru = init_gru(kg, densenet_out, HIDDEN, GRU_OUT)
    return {"densenet": {"block1": block1, "pool1": pool1,
                         "block2": block2, "pool2": pool2,
                         "block3": block3},
            "gru": gru}


# ------------------------- main ----------------------------------------------

if __name__ == "__main__":
    root = jax.random.PRNGKey(0)
    kparams, kx = jax.random.split(root)

    in_features = 4
    N, L = 2, 32                      # seq shrinks 4x through the two pooling blocks

    params = init_crnn_params(kparams, in_features)
    prep = prepare_crnn_params(params)
    x = jax.random.normal(kx, (N, in_features, L), dtype=jnp.float32)  # NCL, like PyTorch

    fwd = jax.jit(crnn_forward)
    out = jax.block_until_ready(fwd(x, prep))

    assert out.shape == (N, L // 4, GRU_OUT), out.shape
    assert bool(jnp.all(jnp.isfinite(out)))
    print("KERNEL_OK")
</pallas_src>

<mosaic_0001>
module attributes {stable_mosaic.version = 11 : i64} {
  func.func @_block_pool_kernel(%arg0: memref<32x64xf32, #tpu.memory_space<vmem>>, %arg1: memref<2x64x20xf32, #tpu.memory_space<vmem>>, %arg2: memref<2x1x20xf32, #tpu.memory_space<vmem>>, %arg3: memref<2x1x20xf32, #tpu.memory_space<vmem>>, %arg4: memref<2x1x20xf32, #tpu.memory_space<vmem>>, %arg5: memref<2x60x64xf32, #tpu.memory_space<vmem>>, %arg6: memref<2x1x64xf32, #tpu.memory_space<vmem>>, %arg7: memref<64x64xf32, #tpu.memory_space<vmem>>, %arg8: memref<1x64xf32, #tpu.memory_space<vmem>>, %arg9: memref<32x64xf32, #tpu.memory_space<vmem>>) attributes {dimension_semantics = [], scalar_prefetch = 0 : i64, scratch_operands = 0 : i64, tpu.core_type = #tpu.core_type<tc>} {
    %c0 = arith.constant 0 : index
    %c0_0 = arith.constant 0 : index
    %0 = vector.load %arg0[%c0, %c0_0] : memref<32x64xf32, #tpu.memory_space<vmem>>, vector<32x64xf32>
    %1 = tpu.iota {dimensions = array<i32: 0>} : vector<32x20xi32>
    %c-2_i32 = arith.constant -2 : i32
    %2 = vector.broadcast %c-2_i32 : i32 to vector<32x20xi32>
    %3 = arith.addi %1, %2 : vector<32x20xi32>
    %c0_i32 = arith.constant 0 : i32
    %4 = vector.broadcast %c0_i32 : i32 to vector<32x20xi32>
    %5 = arith.cmpi sge, %3, %4 : vector<32x20xi32>
    %c-2_i32_1 = arith.constant -2 : i32
    %6 = vector.broadcast %c-2_i32_1 : i32 to vector<32x20xi32>
    %7 = arith.addi %1, %6 : vector<32x20xi32>
    %c32_i32 = arith.constant 32 : i32
    %8 = vector.broadcast %c32_i32 : i32 to vector<32x20xi32>
    %9 = arith.cmpi slt, %7, %8 : vector<32x20xi32>
    %10 = arith.andi %5, %9 : vector<32x20xi1>
    %c2_i32 = arith.constant 2 : i32
    %11 = vector.broadcast %c2_i32 : i32 to vector<32x20xi32>
    %12 = arith.addi %1, %11 : vector<32x20xi32>
    %c0_i32_2 = arith.constant 0 : i32
    %13 = vector.broadcast %c0_i32_2 : i32 to vector<32x20xi32>
    %14 = arith.cmpi sge, %12, %13 : vector<32x20xi32>
    %c2_i32_3 = arith.constant 2 : i32
    %15 = vector.broadcast %c2_i32_3 : i32 to vector<32x20xi32>
    %16 = arith.addi %1, %15 : vector<32x20xi32>
    %c32_i32_4 = arith.constant 32 : i32
    %17 = vector.broadcast %c32_i32_4 : i32 to vector<32x20xi32>
    %18 = arith.cmpi slt, %16, %17 : vector<32x20xi32>
    %19 = arith.andi %14, %18 : vector<32x20xi1>
    %cst = arith.constant 0.000000e+00 : f32
    %20 = vector.broadcast %cst : f32 to vector<32x64xf32>
    %21 = arith.maximumf %0, %20 : vector<32x64xf32>
    %c0_5 = arith.constant 0 : index
    %c0_6 = arith.constant 0 : index
    %c0_7 = arith.constant 0 : index
    %22 = vector.load %arg1[%c0_5, %c0_6, %c0_7] : memref<2x64x20xf32, #tpu.memory_space<vmem>>, vector<1x64x20xf32>
    %23 = vector.shape_cast %22 : vector<1x64x20xf32> to vector<64x20xf32>
    %cst_8 = arith.constant dense<0.000000e+00> : vector<32x20xf32>
    %24 = tpu.matmul %21, %23, %cst_8 {dimension_numbers = #tpu.dot_dimension_numbers<[1], [0], [0], [1], [0, 0, 1, 1], [], []>} : vector<32x64xf32>, vector<64x20xf32>, vector<32x20xf32> -> vector<32x20xf32>
    %c0_9 = arith.constant 0 : index
    %c0_10 = arith.constant 0 : index
    %c0_11 = arith.constant 0 : index
    %25 = vector.load %arg2[%c0_9, %c0_10, %c0_11] : memref<2x1x20xf32, #tpu.memory_space<vmem>>, vector<1x1x20xf32>
    %26 = vector.shape_cast %25 : vector<1x1x20xf32> to vector<1x20xf32>
    %27 = vector.broadcast %26 : vector<1x20xf32> to vector<32x20xf32>
    %28 = arith.addf %24, %27 : vector<32x20xf32>
    %cst_12 = arith.constant 0.000000e+00 : f32
    %29 = vector.broadcast %cst_12 : f32 to vector<32x20xf32>
    %30 = arith.maximumf %28, %29 : vector<32x20xf32>
    %c0_13 = arith.constant 0 : index
    %c0_14 = arith.constant 0 : index
    %c0_15 = arith.constant 0 : index
    %31 = vector.load %arg3[%c0_13, %c0_14, %c0_15] : memref<2x1x20xf32, #tpu.memory_space<vmem>>, vector<1x1x20xf32>
    %32 = vector.shape_cast %31 : vector<1x1x20xf32> to vector<1x20xf32>
    %33 = vector.broadcast %32 : vector<1x20xf32> to vector<32x20xf32>
    %34 = arith.mulf %30, %33 : vector<32x20xf32>
    %c0_16 = arith.constant 0 : index
    %c0_17 = arith.constant 0 : index
    %c0_18 = arith.constant 0 : index
    %35 = vector.load %arg4[%c0_16, %c0_17, %c0_18] : memref<2x1x20xf32, #tpu.memory_space<vmem>>, vector<1x1x20xf32>
    %36 = vector.shape_cast %35 : vector<1x1x20xf32> to vector<1x20xf32>
    %37 = vector.broadcast %36 : vector<1x20xf32> to vector<32x20xf32>
    %38 = arith.addf %34, %37 : vector<32x20xf32>
    %c2_i32_19 = arith.constant 2 : i32
    %39 = tpu.dynamic_rotate %38 by %c2_i32_19 dim 0 : vector<32x20xf32>, i32 -> vector<32x20xf32>
    %cst_20 = arith.constant 0.000000e+00 : f32
    %40 = vector.broadcast %cst_20 : f32 to vector<32x20xf32>
    %41 = arith.select %10, %39, %40 : vector<32x20xi1>, vector<32x20xf32>
    %c30_i32 = arith.constant 30 : i32
    %42 = tpu.dynamic_rotate %38 by %c30_i32 dim 0 : vector<32x20xf32>, i32 -> vector<32x20xf32>
    %cst_21 = arith.constant 0.000000e+00 : f32
    %43 = vector.broadcast %cst_21 : f32 to vector<32x20xf32>
    %44 = arith.select %19, %42, %43 : vector<32x20xi1>, vector<32x20xf32>
    %45 = tpu.concatenate %41, %38, %44 in 1 : vector<32x20xf32>, vector<32x20xf32>, vector<32x20xf32> -> vector<32x60xf32>
    %c0_22 = arith.constant 0 : index
    %c0_23 = arith.constant 0 : index
    %c0_24 = arith.constant 0 : index
    %46 = vector.load %arg5[%c0_22, %c0_23, %c0_24] : memref<2x60x64xf32, #tpu.memory_space<vmem>>, vector<1x60x64xf32>
    %47 = vector.shape_cast %46 : vector<1x60x64xf32> to vector<60x64xf32>
    %cst_25 = arith.constant dense<0.000000e+00> : vector<32x64xf32>
    %48 = tpu.matmul %45, %47, %cst_25 {dimension_numbers = #tpu.dot_dimension_numbers<[1], [0], [0], [1], [0, 0, 1, 1], [], []>} : vector<32x60xf32>, vector<60x64xf32>, vector<32x64xf32> -> vector<32x64xf32>
    %49 = arith.addf %0, %48 : vector<32x64xf32>
    %c0_26 = arith.constant 0 : index
    %c0_27 = arith.constant 0 : index
    %c0_28 = arith.constant 0 : index
    %50 = vector.load %arg6[%c0_26, %c0_27, %c0_28] : memref<2x1x64xf32, #tpu.memory_space<vmem>>, vector<1x1x64xf32>
    %51 = vector.shape_cast %50 : vector<1x1x64xf32> to vector<1x64xf32>
    %52 = vector.broadcast %51 : vector<1x64xf32> to vector<32x64xf32>
    %53 = arith.addf %49, %52 : vector<32x64xf32>
    %cst_29 = arith.constant 0.000000e+00 : f32
    %54 = vector.broadcast %cst_29 : f32 to vector<32x64xf32>
    %55 = arith.maximumf %53, %54 : vector<32x64xf32>
    %c1 = arith.constant 1 : index
    %c0_30 = arith.constant 0 : index
    %c0_31 = arith.constant 0 : index
    %56 = vector.load %arg1[%c1, %c0_30, %c0_31] : memref<2x64x20xf32, #tpu.memory_space<vmem>>, vector<1x64x20xf32>
    %57 = vector.shape_cast %56 : vector<1x64x20xf32> to vector<64x20xf32>
    %cst_32 = arith.constant dense<0.000000e+00> : vector<32x20xf32>
    %58 = tpu.matmul %55, %57, %cst_32 {dimension_numbers = #tpu.dot_dimension_numbers<[1], [0], [0], [1], [0, 0, 1, 1], [], []>} : vector<32x64xf32>, vector<64x20xf32>, vector<32x20xf32> -> vector<32x20xf32>
    %c1_33 = arith.constant 1 : index
    %c0_34 = arith.constant 0 : index
    %c0_35 = arith.constant 0 : index
    %59 = vector.load %arg2[%c1_33, %c0_34, %c0_35] : memref<2x1x20xf32, #tpu.memory_space<vmem>>, vector<1x1x20xf32>
    %60 = vector.shape_cast %59 : vector<1x1x20xf32> to vector<1x20xf32>
    %61 = vector.broadcast %60 : vector<1x20xf32> to vector<32x20xf32>
    %62 = arith.addf %58, %61 : vector<32x20xf32>
    %cst_36 = arith.constant 0.000000e+00 : f32
    %63 = vector.broadcast %cst_36 : f32 to vector<32x20xf32>
    %64 = arith.maximumf %62, %63 : vector<32x20xf32>
    %c1_37 = arith.constant 1 : index
    %c0_38 = arith.constant 0 : index
    %c0_39 = arith.constant 0 : index
    %65 = vector.load %arg3[%c1_37, %c0_38, %c0_39] : memref<2x1x20xf32, #tpu.memory_space<vmem>>, vector<1x1x20xf32>
    %66 = vector.shape_cast %65 : vector<1x1x20xf32> to vector<1x20xf32>
    %67 = vector.broadcast %66 : vector<1x20xf32> to vector<32x20xf32>
    %68 = arith.mulf %64, %67 : vector<32x20xf32>
    %c1_40 = arith.constant 1 : index
    %c0_41 = arith.constant 0 : index
    %c0_42 = arith.constant 0 : index
    %69 = vector.load %arg4[%c1_40, %c0_41, %c0_42] : memref<2x1x20xf32, #tpu.memory_space<vmem>>, vector<1x1x20xf32>
    %70 = vector.shape_cast %69 : vector<1x1x20xf32> to vector<1x20xf32>
    %71 = vector.broadcast %70 : vector<1x20xf32> to vector<32x20xf32>
    %72 = arith.addf %68, %71 : vector<32x20xf32>
    %c2_i32_43 = arith.constant 2 : i32
    %73 = tpu.dynamic_rotate %72 by %c2_i32_43 dim 0 : vector<32x20xf32>, i32 -> vector<32x20xf32>
    %cst_44 = arith.constant 0.000000e+00 : f32
    %74 = vector.broadcast %cst_44 : f32 to vector<32x20xf32>
    %75 = arith.select %10, %73, %74 : vector<32x20xi1>, vector<32x20xf32>
    %c30_i32_45 = arith.constant 30 : i32
    %76 = tpu.dynamic_rotate %72 by %c30_i32_45 dim 0 : vector<32x20xf32>, i32 -> vector<32x20xf32>
    %cst_46 = arith.constant 0.000000e+00 : f32
    %77 = vector.broadcast %cst_46 : f32 to vector<32x20xf32>
    %78 = arith.select %19, %76, %77 : vector<32x20xi1>, vector<32x20xf32>
    %79 = tpu.concatenate %75, %72, %78 in 1 : vector<32x20xf32>, vector<32x20xf32>, vector<32x20xf32> -> vector<32x60xf32>
    %c1_47 = arith.constant 1 : index
    %c0_48 = arith.constant 0 : index
    %c0_49 = arith.constant 0 : index
    %80 = vector.load %arg5[%c1_47, %c0_48, %c0_49] : memref<2x60x64xf32, #tpu.memory_space<vmem>>, vector<1x60x64xf32>
    %81 = vector.shape_cast %80 : vector<1x60x64xf32> to vector<60x64xf32>
    %cst_50 = arith.constant dense<0.000000e+00> : vector<32x64xf32>
    %82 = tpu.matmul %79, %81, %cst_50 {dimension_numbers = #tpu.dot_dimension_numbers<[1], [0], [0], [1], [0, 0, 1, 1], [], []>} : vector<32x60xf32>, vector<60x64xf32>, vector<32x64xf32> -> vector<32x64xf32>
    %83 = arith.addf %53, %82 : vector<32x64xf32>
    %c1_51 = arith.constant 1 : index
    %c0_52 = arith.constant 0 : index
    %c0_53 = arith.constant 0 : index
    %84 = vector.load %arg6[%c1_51, %c0_52, %c0_53] : memref<2x1x64xf32, #tpu.memory_space<vmem>>, vector<1x1x64xf32>
    %85 = vector.shape_cast %84 : vector<1x1x64xf32> to vector<1x64xf32>
    %86 = vector.broadcast %85 : vector<1x64xf32> to vector<32x64xf32>
    %87 = arith.addf %83, %86 : vector<32x64xf32>
    %c0_54 = arith.constant 0 : index
    %c0_55 = arith.constant 0 : index
    %88 = vector.load %arg7[%c0_54, %c0_55] : memref<64x64xf32, #tpu.memory_space<vmem>>, vector<64x64xf32>
    %cst_56 = arith.constant dense<0.000000e+00> : vector<32x64xf32>
    %89 = tpu.matmul %87, %88, %cst_56 {dimension_numbers = #tpu.dot_dimension_numbers<[1], [0], [0], [1], [0, 0, 1, 1], [], []>} : vector<32x64xf32>, vector<64x64xf32>, vector<32x64xf32> -> vector<32x64xf32>
    %c0_57 = arith.constant 0 : index
    %c0_58 = arith.constant 0 : index
    %90 = vector.load %arg8[%c0_57, %c0_58] : memref<1x64xf32, #tpu.memory_space<vmem>>, vector<1x64xf32>
    %91 = vector.broadcast %90 : vector<1x64xf32> to vector<32x64xf32>
    %92 = arith.addf %89, %91 : vector<32x64xf32>
    %c0_59 = arith.constant 0 : index
    %c0_60 = arith.constant 0 : index
    %93 = vector.load %arg9[%c0_59, %c0_60] : memref<32x64xf32, #tpu.memory_space<vmem>>, vector<32x64xf32>
    tpu.vector_store %arg9[%c0_59, %c0_60], %92 {strides = array<i32>} : memref<32x64xf32, #tpu.memory_space<vmem>>, vector<32x64xf32>,
    return
  }
}

module attributes {stable_mosaic.version = 11 : i64} {
  func.func @_block_pool_kernel(%arg0: memref<64x64xf32, #tpu.memory_space<vmem>>, %arg1: memref<3x64x32xf32, #tpu.memory_space<vmem>>, %arg2: memref<3x1x32xf32, #tpu.memory_space<vmem>>, %arg3: memref<3x1x32xf32, #tpu.memory_space<vmem>>, %arg4: memref<3x1x32xf32, #tpu.memory_space<vmem>>, %arg5: memref<3x224x64xf32, #tpu.memory_space<vmem>>, %arg6: memref<3x1x64xf32, #tpu.memory_space<vmem>>, %arg7: memref<64x64xf32, #tpu.memory_space<vmem>>, %arg8: memref<1x64xf32, #tpu.memory_space<vmem>>, %arg9: memref<64x64xf32, #tpu.memory_space<vmem>>) attributes {dimension_semantics = [], scalar_prefetch = 0 : i64, scratch_operands = 0 : i64, tpu.core_type = #tpu.core_type<tc>} {
    %c0 = arith.constant 0 : index
    %c0_0 = arith.constant 0 : index
    %0 = vector.load %arg0[%c0, %c0_0] : memref<64x64xf32, #tpu.memory_space<vmem>>, vector<64x64xf32>
    %1 = tpu.iota {dimensions = array<i32: 0>} : vector<64x32xi32>
    %c-6_i32 = arith.constant -6 : i32
    %2 = vector.broadcast %c-6_i32 : i32 to vector<64x32xi32>
    %3 = arith.addi %1, %2 : vector<64x32xi32>
    %c0_i32 = arith.constant 0 : i32
    %4 = vector.broadcast %c0_i32 : i32 to vector<64x32xi32>
    %5 = arith.cmpi sge, %3, %4 : vector<64x32xi32>
    %c-6_i32_1 = arith.constant -6 : i32
    %6 = vector.broadcast %c-6_i32_1 : i32 to vector<64x32xi32>
    %7 = arith.addi %1, %6 : vector<64x32xi32>
    %c64_i32 = arith.constant 64 : i32
    %8 = vector.broadcast %c64_i32 : i32 to vector<64x32xi32>
    %9 = arith.cmpi slt, %7, %8 : vector<64x32xi32>
    %10 = arith.andi %5, %9 : vector<64x32xi1>
    %c-4_i32 = arith.constant -4 : i32
    %11 = vector.broadcast %c-4_i32 : i32 to vector<64x32xi32>
    %12 = arith.addi %1, %11 : vector<64x32xi32>
    %c0_i32_2 = arith.constant 0 : i32
    %13 = vector.broadcast %c0_i32_2 : i32 to vector<64x32xi32>
    %14 = arith.cmpi sge, %12, %13 : vector<64x32xi32>
    %c-4_i32_3 = arith.constant -4 : i32
    %15 = vector.broadcast %c-4_i32_3 : i32 to vector<64x32xi32>
    %16 = arith.addi %1, %15 : vector<64x32xi32>
    %c64_i32_4 = arith.constant 64 : i32
    %17 = vector.broadcast %c64_i32_4 : i32 to vector<64x32xi32>
    %18 = arith.cmpi slt, %16, %17 : vector<64x32xi32>
    %19 = arith.andi %14, %18 : vector<64x32xi1>
    %c-2_i32 = arith.constant -2 : i32
    %20 = vector.broadcast %c-2_i32 : i32 to vector<64x32xi32>
    %21 = arith.addi %1, %20 : vector<64x32xi32>
    %c0_i32_5 = arith.constant 0 : i32
    %22 = vector.broadcast %c0_i32_5 : i32 to vector<64x32xi32>
    %23 = arith.cmpi sge, %21, %22 : vector<64x32xi32>
    %c-2_i32_6 = arith.constant -2 : i32
    %24 = vector.broadcast %c-2_i32_6 : i32 to vector<64x32xi32>
    %25 = arith.addi %1, %24 : vector<64x32xi32>
    %c64_i32_7 = arith.constant 64 : i32
    %26 = vector.broadcast %c64_i32_7 : i32 to vector<64x32xi32>
    %27 = arith.cmpi slt, %25, %26 : vector<64x32xi32>
    %28 = arith.andi %23, %27 : vector<64x32xi1>
    %c2_i32 = arith.constant 2 : i32
    %29 = vector.broadcast %c2_i32 : i32 to vector<64x32xi32>
    %30 = arith.addi %1, %29 : vector<64x32xi32>
    %c0_i32_8 = arith.constant 0 : i32
    %31 = vector.broadcast %c0_i32_8 : i32 to vector<64x32xi32>
    %32 = arith.cmpi sge, %30, %31 : vector<64x32xi32>
    %c2_i32_9 = arith.constant 2 : i32
    %33 = vector.broadcast %c2_i32_9 : i32 to vector<64x32xi32>
    %34 = arith.addi %1, %33 : vector<64x32xi32>
    %c64_i32_10 = arith.constant 64 : i32
    %35 = vector.broadcast %c64_i32_10 : i32 to vector<64x32xi32>
    %36 = arith.cmpi slt, %34, %35 : vector<64x32xi32>
    %37 = arith.andi %32, %36 : vector<64x32xi1>
    %c4_i32 = arith.constant 4 : i32
    %38 = vector.broadcast %c4_i32 : i32 to vector<64x32xi32>
    %39 = arith.addi %1, %38 : vector<64x32xi32>
    %c0_i32_11 = arith.constant 0 : i32
    %40 = vector.broadcast %c0_i32_11 : i32 to vector<64x32xi32>
    %41 = arith.cmpi sge, %39, %40 : vector<64x32xi32>
    %c4_i32_12 = arith.constant 4 : i32
    %42 = vector.broadcast %c4_i32_12 : i32 to vector<64x32xi32>
    %43 = arith.addi %1, %42 : vector<64x32xi32>
    %c64_i32_13 = arith.constant 64 : i32
    %44 = vector.broadcast %c64_i32_13 : i32 to vector<64x32xi32>
    %45 = arith.cmpi slt, %43, %44 : vector<64x32xi32>
    %46 = arith.andi %41, %45 : vector<64x32xi1>
    %c6_i32 = arith.constant 6 : i32
    %47 = vector.broadcast %c6_i32 : i32 to vector<64x32xi32>
    %48 = arith.addi %1, %47 : vector<64x32xi32>
    %c0_i32_14 = arith.constant 0 : i32
    %49 = vector.broadcast %c0_i32_14 : i32 to vector<64x32xi32>
    %50 = arith.cmpi sge, %48, %49 : vector<64x32xi32>
    %c6_i32_15 = arith.constant 6 : i32
    %51 = vector.broadcast %c6_i32_15 : i32 to vector<64x32xi32>
    %52 = arith.addi %1, %51 : vector<64x32xi32>
    %c64_i32_16 = arith.constant 64 : i32
    %53 = vector.broadcast %c64_i32_16 : i32 to vector<64x32xi32>
    %54 = arith.cmpi slt, %52, %53 : vector<64x32xi32>
    %55 = arith.andi %50, %54 : vector<64x32xi1>
    %cst = arith.constant 0.000000e+00 : f32
    %56 = vector.broadcast %cst : f32 to vector<64x64xf32>
    %57 = arith.maximumf %0, %56 : vector<64x64xf32>
    %c0_17 = arith.constant 0 : index
    %c0_18 = arith.constant 0 : index
    %c0_19 = arith.constant 0 : index
    %58 = vector.load %arg1[%c0_17, %c0_18, %c0_19] : memref<3x64x32xf32, #tpu.memory_space<vmem>>, vector<1x64x32xf32>
    %59 = vector.shape_cast %58 : vector<1x64x32xf32> to vector<64x32xf32>
    %cst_20 = arith.constant dense<0.000000e+00> : vector<64x32xf32>
    %60 = tpu.matmul %57, %59, %cst_20 {dimension_numbers = #tpu.dot_dimension_numbers<[1], [0], [0], [1], [0, 0, 1, 1], [], []>} : vector<64x64xf32>, vector<64x32xf32>, vector<64x32xf32> -> vector<64x32xf32>
    %c0_21 = arith.constant 0 : index
    %c0_22 = arith.constant 0 : index
    %c0_23 = arith.constant 0 : index
    %61 = vector.load %arg2[%c0_21, %c0_22, %c0_23] : memref<3x1x32xf32, #tpu.memory_space<vmem>>, vector<1x1x32xf32>
    %62 = vector.shape_cast %61 : vector<1x1x32xf32> to vector<1x32xf32>
    %63 = vector.broadcast %62 : vector<1x32xf32> to vector<64x32xf32>
    %64 = arith.addf %60, %63 : vector<64x32xf32>
    %cst_24 = arith.constant 0.000000e+00 : f32
    %65 = vector.broadcast %cst_24 : f32 to vector<64x32xf32>
    %66 = arith.maximumf %64, %65 : vector<64x32xf32>
    %c0_25 = arith.constant 0 : index
    %c0_26 = arith.constant 0 : index
    %c0_27 = arith.constant 0 : index
    %67 = vector.load %arg3[%c0_25, %c0_26, %c0_27] : memref<3x1x32xf32, #tpu.memory_space<vmem>>, vector<1x1x32xf32>
    %68 = vector.shape_cast %67 : vector<1x1x32xf32> to vector<1x32xf32>
    %69 = vector.broadcast %68 : vector<1x32xf32> to vector<64x32xf32>
    %70 = arith.mulf %66, %69 : vector<64x32xf32>
    %c0_28 = arith.constant 0 : index
    %c0_29 = arith.constant 0 : index
    %c0_30 = arith.constant 0 : index
    %71 = vector.load %arg4[%c0_28, %c0_29, %c0_30] : memref<3x1x32xf32, #tpu.memory_space<vmem>>, vector<1x1x32xf32>
    %72 = vector.shape_cast %71 : vector<1x1x32xf32> to vector<1x32xf32>
    %73 = vector.broadcast %72 : vector<1x32xf32> to vector<64x32xf32>
    %74 = arith.addf %70, %73 : vector<64x32xf32>
    %c6_i32_31 = arith.constant 6 : i32
    %75 = tpu.dynamic_rotate %74 by %c6_i32_31 dim 0 : vector<64x32xf32>, i32 -> vector<64x32xf32>
    %cst_32 = arith.constant 0.000000e+00 : f32
    %76 = vector.broadcast %cst_32 : f32 to vector<64x32xf32>
    %77 = arith.select %10, %75, %76 : vector<64x32xi1>, vector<64x32xf32>
    %c4_i32_33 = arith.constant 4 : i32
    %78 = tpu.dynamic_rotate %74 by %c4_i32_33 dim 0 : vector<64x32xf32>, i32 -> vector<64x32xf32>
    %cst_34 = arith.constant 0.000000e+00 : f32
    %79 = vector.broadcast %cst_34 : f32 to vector<64x32xf32>
    %80 = arith.select %19, %78, %79 : vector<64x32xi1>, vector<64x32xf32>
    %c2_i32_35 = arith.constant 2 : i32
    %81 = tpu.dynamic_rotate %74 by %c2_i32_35 dim 0 : vector<64x32xf32>, i32 -> vector<64x32xf32>
    %cst_36 = arith.constant 0.000000e+00 : f32
    %82 = vector.broadcast %cst_36 : f32 to vector<64x32xf32>
    %83 = arith.select %28, %81, %82 : vector<64x32xi1>, vector<64x32xf32>
    %c62_i32 = arith.constant 62 : i32
    %84 = tpu.dynamic_rotate %74 by %c62_i32 dim 0 : vector<64x32xf32>, i32 -> vector<64x32xf32>
    %cst_37 = arith.constant 0.000000e+00 : f32
    %85 = vector.broadcast %cst_37 : f32 to vector<64x32xf32>
    %86 = arith.select %37, %84, %85 : vector<64x32xi1>, vector<64x32xf32>
    %c60_i32 = arith.constant 60 : i32
    %87 = tpu.dynamic_rotate %74 by %c60_i32 dim 0 : vector<64x32xf32>, i32 -> vector<64x32xf32>
    %cst_38 = arith.constant 0.000000e+00 : f32
    %88 = vector.broadcast %cst_38 : f32 to vector<64x32xf32>
    %89 = arith.select %46, %87, %88 : vector<64x32xi1>, vector<64x32xf32>
    %c58_i32 = arith.constant 58 : i32
    %90 = tpu.dynamic_rotate %74 by %c58_i32 dim 0 : vector<64x32xf32>, i32 -> vector<64x32xf32>
    %cst_39 = arith.constant 0.000000e+00 : f32
    %91 = vector.broadcast %cst_39 : f32 to vector<64x32xf32>
    %92 = arith.select %55, %90, %91 : vector<64x32xi1>, vector<64x32xf32>
    %93 = tpu.concatenate %77, %80, %83, %74, %86, %89, %92 in 1 : vector<64x32xf32>, vector<64x32xf32>, vector<64x32xf32>, vector<64x32xf32>, vector<64x32xf32>, vector<64x32xf32>, vector<64x32xf32> -> vector<64x224xf32>
    %c0_40 = arith.constant 0 : index
    %c0_41 = arith.constant 0 : index
    %c0_42 = arith.constant 0 : index
    %94 = vector.load %arg5[%c0_40, %c0_41, %c0_42] : memref<3x224x64xf32, #tpu.memory_space<vmem>>, vector<1x224x64xf32>
    %95 = vector.shape_cast %94 : vector<1x224x64xf32> to vector<224x64xf32>
    %cst_43 = arith.constant dense<0.000000e+00> : vector<64x64xf32>
    %96 = tpu.matmul %93, %95, %cst_43 {dimension_numbers = #tpu.dot_dimension_numbers<[1], [0], [0], [1], [0, 0, 1, 1], [], []>} : vector<64x224xf32>, vector<224x64xf32>, vector<64x64xf32> -> vector<64x64xf32>
    %97 = arith.addf %0, %96 : vector<64x64xf32>
    %c0_44 = arith.constant 0 : index
    %c0_45 = arith.constant 0 : index
    %c0_46 = arith.constant 0 : index
    %98 = vector.load %arg6[%c0_44, %c0_45, %c0_46] : memref<3x1x64xf32, #tpu.memory_space<vmem>>, vector<1x1x64xf32>
    %99 = vector.shape_cast %98 : vector<1x1x64xf32> to vector<1x64xf32>
    %100 = vector.broadcast %99 : vector<1x64xf32> to vector<64x64xf32>
    %101 = arith.addf %97, %100 : vector<64x64xf32>
    %cst_47 = arith.constant 0.000000e+00 : f32
    %102 = vector.broadcast %cst_47 : f32 to vector<64x64xf32>
    %103 = arith.maximumf %101, %102 : vector<64x64xf32>
    %c1 = arith.constant 1 : index
    %c0_48 = arith.constant 0 : index
    %c0_49 = arith.constant 0 : index
    %104 = vector.load %arg1[%c1, %c0_48, %c0_49] : memref<3x64x32xf32, #tpu.memory_space<vmem>>, vector<1x64x32xf32>
    %105 = vector.shape_cast %104 : vector<1x64x32xf32> to vector<64x32xf32>
    %cst_50 = arith.constant dense<0.000000e+00> : vector<64x32xf32>
    %106 = tpu.matmul %103, %105, %cst_50 {dimension_numbers = #tpu.dot_dimension_numbers<[1], [0], [0], [1], [0, 0, 1, 1], [], []>} : vector<64x64xf32>, vector<64x32xf32>, vector<64x32xf32> -> vector<64x32xf32>
    %c1_51 = arith.constant 1 : index
    %c0_52 = arith.constant 0 : index
    %c0_53 = arith.constant 0 : index
    %107 = vector.load %arg2[%c1_51, %c0_52, %c0_53] : memref<3x1x32xf32, #tpu.memory_space<vmem>>, vector<1x1x32xf32>
    %108 = vector.shape_cast %107 : vector<1x1x32xf32> to vector<1x32xf32>
    %109 = vector.broadcast %108 : vector<1x32xf32> to vector<64x32xf32>
    %110 = arith.addf %106, %109 : vector<64x32xf32>
    %cst_54 = arith.constant 0.000000e+00 : f32
    %111 = vector.broadcast %cst_54 : f32 to vector<64x32xf32>
    %112 = arith.maximumf %110, %111 : vector<64x32xf32>
    %c1_55 = arith.constant 1 : index
    %c0_56 = arith.constant 0 : index
    %c0_57 = arith.constant 0 : index
    %113 = vector.load %arg3[%c1_55, %c0_56, %c0_57] : memref<3x1x32xf32, #tpu.memory_space<vmem>>, vector<1x1x32xf32>
    %114 = vector.shape_cast %113 : vector<1x1x32xf32> to vector<1x32xf32>
    %115 = vector.broadcast %114 : vector<1x32xf32> to vector<64x32xf32>
    %116 = arith.mulf %112, %115 : vector<64x32xf32>
    %c1_58 = arith.constant 1 : index
    %c0_59 = arith.constant 0 : index
    %c0_60 = arith.constant 0 : index
    %117 = vector.load %arg4[%c1_58, %c0_59, %c0_60] : memref<3x1x32xf32, #tpu.memory_space<vmem>>, vector<1x1x32xf32>
    %118 = vector.shape_cast %117 : vector<1x1x32xf32> to vector<1x32xf32>
    %119 = vector.broadcast %118 : vector<1x32xf32> to vector<64x32xf32>
    %120 = arith.addf %116, %119 : vector<64x32xf32>
    %c6_i32_61 = arith.constant 6 : i32
    %121 = tpu.dynamic_rotate %120 by %c6_i32_61 dim 0 : vector<64x32xf32>, i32 -> vector<64x32xf32>
    %cst_62 = arith.constant 0.000000e+00 : f32
    %122 = vector.broadcast %cst_62 : f32 to vector<64x32xf32>
    %123 = arith.select %10, %121, %122 : vector<64x32xi1>, vector<64x32xf32>
    %c4_i32_63 = arith.constant 4 : i32
    %124 = tpu.dynamic_rotate %120 by %c4_i32_63 dim 0 : vector<64x32xf32>, i32 -> vector<64x32xf32>
    %cst_64 = arith.constant 0.000000e+00 : f32
    %125 = vector.broadcast %cst_64 : f32 to vector<64x32xf32>
    %126 = arith.select %19, %124, %125 : vector<64x32xi1>, vector<64x32xf32>
    %c2_i32_65 = arith.constant 2 : i32
    %127 = tpu.dynamic_rotate %120 by %c2_i32_65 dim 0 : vector<64x32xf32>, i32 -> vector<64x32xf32>
    %cst_66 = arith.constant 0.000000e+00 : f32
    %128 = vector.broadcast %cst_66 : f32 to vector<64x32xf32>
    %129 = arith.select %28, %127, %128 : vector<64x32xi1>, vector<64x32xf32>
    %c62_i32_67 = arith.constant 62 : i32
    %130 = tpu.dynamic_rotate %120 by %c62_i32_67 dim 0 : vector<64x32xf32>, i32 -> vector<64x32xf32>
    %cst_68 = arith.constant 0.000000e+00 : f32
    %131 = vector.broadcast %cst_68 : f32 to vector<64x32xf32>
    %132 = arith.select %37, %130, %131 : vector<64x32xi1>, vector<64x32xf32>
    %c60_i32_69 = arith.constant 60 : i32
    %133 = tpu.dynamic_rotate %120 by %c60_i32_69 dim 0 : vector<64x32xf32>, i32 -> vector<64x32xf32>
    %cst_70 = arith.constant 0.000000e+00 : f32
    %134 = vector.broadcast %cst_70 : f32 to vector<64x32xf32>
    %135 = arith.select %46, %133, %134 : vector<64x32xi1>, vector<64x32xf32>
    %c58_i32_71 = arith.constant 58 : i32
    %136 = tpu.dynamic_rotate %120 by %c58_i32_71 dim 0 : vector<64x32xf32>, i32 -> vector<64x32xf32>
    %cst_72 = arith.constant 0.000000e+00 : f32
    %137 = vector.broadcast %cst_72 : f32 to vector<64x32xf32>
    %138 = arith.select %55, %136, %137 : vector<64x32xi1>, vector<64x32xf32>
    %139 = tpu.concatenate %123, %126, %129, %120, %132, %135, %138 in 1 : vector<64x32xf32>, vector<64x32xf32>, vector<64x32xf32>, vector<64x32xf32>, vector<64x32xf32>, vector<64x32xf32>, vector<64x32xf32> -> vector<64x224xf32>
    %c1_73 = arith.constant 1 : index
    %c0_74 = arith.constant 0 : index
    %c0_75 = arith.constant 0 : index
    %140 = vector.load %arg5[%c1_73, %c0_74, %c0_75] : memref<3x224x64xf32, #tpu.memory_space<vmem>>, vector<1x224x64xf32>
    %141 = vector.shape_cast %140 : vector<1x224x64xf32> to vector<224x64xf32>
    %cst_76 = arith.constant dense<0.000000e+00> : vector<64x64xf32>
    %142 = tpu.matmul %139, %141, %cst_76 {dimension_numbers = #tpu.dot_dimension_numbers<[1], [0], [0], [1], [0, 0, 1, 1], [], []>} : vector<64x224xf32>, vector<224x64xf32>, vector<64x64xf32> -> vector<64x64xf32>
    %143 = arith.addf %101, %142 : vector<64x64xf32>
    %c1_77 = arith.constant 1 : index
    %c0_78 = arith.constant 0 : index
    %c0_79 = arith.constant 0 : index
    %144 = vector.load %arg6[%c1_77, %c0_78, %c0_79] : memref<3x1x64xf32, #tpu.memory_space<vmem>>, vector<1x1x64xf32>
    %145 = vector.shape_cast %144 : vector<1x1x64xf32> to vector<1x64xf32>
    %146 = vector.broadcast %145 : vector<1x64xf32> to vector<64x64xf32>
    %147 = arith.addf %143, %146 : vector<64x64xf32>
    %cst_80 = arith.constant 0.000000e+00 : f32
    %148 = vector.broadcast %cst_80 : f32 to vector<64x64xf32>
    %149 = arith.maximumf %147, %148 : vector<64x64xf32>
    %c2 = arith.constant 2 : index
    %c0_81 = arith.constant 0 : index
    %c0_82 = arith.constant 0 : index
    %150 = vector.load %arg1[%c2, %c0_81, %c0_82] : memref<3x64x32xf32, #tpu.memory_space<vmem>>, vector<1x64x32xf32>
    %151 = vector.shape_cast %150 : vector<1x64x32xf32> to vector<64x32xf32>
    %cst_83 = arith.constant dense<0.000000e+00> : vector<64x32xf32>
    %152 = tpu.matmul %149, %151, %cst_83 {dimension_numbers = #tpu.dot_dimension_numbers<[1], [0], [0], [1], [0, 0, 1, 1], [], []>} : vector<64x64xf32>, vector<64x32xf32>, vector<64x32xf32> -> vector<64x32xf32>
    %c2_84 = arith.constant 2 : index
    %c0_85 = arith.constant 0 : index
    %c0_86 = arith.constant 0 : index
    %153 = vector.load %arg2[%c2_84, %c0_85, %c0_86] : memref<3x1x32xf32, #tpu.memory_space<vmem>>, vector<1x1x32xf32>
    %154 = vector.shape_cast %153 : vector<1x1x32xf32> to vector<1x32xf32>
    %155 = vector.broadcast %154 : vector<1x32xf32> to vector<64x32xf32>
    %156 = arith.addf %152, %155 : vector<64x32xf32>
    %cst_87 = arith.constant 0.000000e+00 : f32
    %157 = vector.broadcast %cst_87 : f32 to vector<64x32xf32>
    %158 = arith.maximumf %156, %157 : vector<64x32xf32>
    %c2_88 = arith.constant 2 : index
    %c0_89 = arith.constant 0 : index
    %c0_90 = arith.constant 0 : index
    %159 = vector.load %arg3[%c2_88, %c0_89, %c0_90] : memref<3x1x32xf32, #tpu.memory_space<vmem>>, vector<1x1x32xf32>
    %160 = vector.shape_cast %159 : vector<1x1x32xf32> to vector<1x32xf32>
    %161 = vector.broadcast %160 : vector<1x32xf32> to vector<64x32xf32>
    %162 = arith.mulf %158, %161 : vector<64x32xf32>
    %c2_91 = arith.constant 2 : index
    %c0_92 = arith.constant 0 : index
    %c0_93 = arith.constant 0 : index
    %163 = vector.load %arg4[%c2_91, %c0_92, %c0_93] : memref<3x1x32xf32, #tpu.memory_space<vmem>>, vector<1x1x32xf32>
    %164 = vector.shape_cast %163 : vector<1x1x32xf32> to vector<1x32xf32>
    %165 = vector.broadcast %164 : vector<1x32xf32> to vector<64x32xf32>
    %166 = arith.addf %162, %165 : vector<64x32xf32>
    %c6_i32_94 = arith.constant 6 : i32
    %167 = tpu.dynamic_rotate %166 by %c6_i32_94 dim 0 : vector<64x32xf32>, i32 -> vector<64x32xf32>
    %cst_95 = arith.constant 0.000000e+00 : f32
    %168 = vector.broadcast %cst_95 : f32 to vector<64x32xf32>
    %169 = arith.select %10, %167, %168 : vector<64x32xi1>, vector<64x32xf32>
    %c4_i32_96 = arith.constant 4 : i32
    %170 = tpu.dynamic_rotate %166 by %c4_i32_96 dim 0 : vector<64x32xf32>, i32 -> vector<64x32xf32>
    %cst_97 = arith.constant 0.000000e+00 : f32
    %171 = vector.broadcast %cst_97 : f32 to vector<64x32xf32>
    %172 = arith.select %19, %170, %171 : vector<64x32xi1>, vector<64x32xf32>
    %c2_i32_98 = arith.constant 2 : i32
    %173 = tpu.dynamic_rotate %166 by %c2_i32_98 dim 0 : vector<64x32xf32>, i32 -> vector<64x32xf32>
    %cst_99 = arith.constant 0.000000e+00 : f32
    %174 = vector.broadcast %cst_99 : f32 to vector<64x32xf32>
    %175 = arith.select %28, %173, %174 : vector<64x32xi1>, vector<64x32xf32>
    %c62_i32_100 = arith.constant 62 : i32
    %176 = tpu.dynamic_rotate %166 by %c62_i32_100 dim 0 : vector<64x32xf32>, i32 -> vector<64x32xf32>
    %cst_101 = arith.constant 0.000000e+00 : f32
    %177 = vector.broadcast %cst_101 : f32 to vector<64x32xf32>
    %178 = arith.select %37, %176, %177 : vector<64x32xi1>, vector<64x32xf32>
    %c60_i32_102 = arith.constant 60 : i32
    %179 = tpu.dynamic_rotate %166 by %c60_i32_102 dim 0 : vector<64x32xf32>, i32 -> vector<64x32xf32>
    %cst_103 = arith.constant 0.000000e+00 : f32
    %180 = vector.broadcast %cst_103 : f32 to vector<64x32xf32>
    %181 = arith.select %46, %179, %180 : vector<64x32xi1>, vector<64x32xf32>
    %c58_i32_104 = arith.constant 58 : i32
    %182 = tpu.dynamic_rotate %166 by %c58_i32_104 dim 0 : vector<64x32xf32>, i32 -> vector<64x32xf32>
    %cst_105 = arith.constant 0.000000e+00 : f32
    %183 = vector.broadcast %cst_105 : f32 to vector<64x32xf32>
    %184 = arith.select %55, %182, %183 : vector<64x32xi1>, vector<64x32xf32>
    %185 = tpu.concatenate %169, %172, %175, %166, %178, %181, %184 in 1 : vector<64x32xf32>, vector<64x32xf32>, vector<64x32xf32>, vector<64x32xf32>, vector<64x32xf32>, vector<64x32xf32>, vector<64x32xf32> -> vector<64x224xf32>
    %c2_106 = arith.constant 2 : index
    %c0_107 = arith.constant 0 : index
    %c0_108 = arith.constant 0 : index
    %186 = vector.load %arg5[%c2_106, %c0_107, %c0_108] : memref<3x224x64xf32, #tpu.memory_space<vmem>>, vector<1x224x64xf32>
    %187 = vector.shape_cast %186 : vector<1x224x64xf32> to vector<224x64xf32>
    %cst_109 = arith.constant dense<0.000000e+00> : vector<64x64xf32>
    %188 = tpu.matmul %185, %187, %cst_109 {dimension_numbers = #tpu.dot_dimension_numbers<[1], [0], [0], [1], [0, 0, 1, 1], [], []>} : vector<64x224xf32>, vector<224x64xf32>, vector<64x64xf32> -> vector<64x64xf32>
    %189 = arith.addf %147, %188 : vector<64x64xf32>
    %c2_110 = arith.constant 2 : index
    %c0_111 = arith.constant 0 : index
    %c0_112 = arith.constant 0 : index
    %190 = vector.load %arg6[%c2_110, %c0_111, %c0_112] : memref<3x1x64xf32, #tpu.memory_space<vmem>>, vector<1x1x64xf32>
    %191 = vector.shape_cast %190 : vector<1x1x64xf32> to vector<1x64xf32>
    %192 = vector.broadcast %191 : vector<1x64xf32> to vector<64x64xf32>
    %193 = arith.addf %189, %192 : vector<64x64xf32>
    %c0_113 = arith.constant 0 : index
    %c0_114 = arith.constant 0 : index
    %194 = vector.load %arg7[%c0_113, %c0_114] : memref<64x64xf32, #tpu.memory_space<vmem>>, vector<64x64xf32>
    %cst_115 = arith.constant dense<0.000000e+00> : vector<64x64xf32>
    %195 = tpu.matmul %193, %194, %cst_115 {dimension_numbers = #tpu.dot_dimension_numbers<[1], [0], [0], [1], [0, 0, 1, 1], [], []>} : vector<64x64xf32>, vector<64x64xf32>, vector<64x64xf32> -> vector<64x64xf32>
    %c0_116 = arith.constant 0 : index
    %c0_117 = arith.constant 0 : index
    %196 = vector.load %arg8[%c0_116, %c0_117] : memref<1x64xf32, #tpu.memory_space<vmem>>, vector<1x64xf32>
    %197 = vector.broadcast %196 : vector<1x64xf32> to vector<64x64xf32>
    %198 = arith.addf %195, %197 : vector<64x64xf32>
    %c0_118 = arith.constant 0 : index
    %c0_119 = arith.constant 0 : index
    %199 = vector.load %arg9[%c0_118, %c0_119] : memref<64x64xf32, #tpu.memory_space<vmem>>, vector<64x64xf32>
    tpu.vector_store %arg9[%c0_118, %c0_119], %198 {strides = array<i32>} : memref<64x64xf32, #tpu.memory_space<vmem>>, vector<64x64xf32>,
    return
  }
}

module attributes {stable_mosaic.version = 11 : i64} {
  func.func @_block_proj_kernel(%arg0: memref<16x64xf32, #tpu.memory_space<vmem>>, %arg1: memref<2x64x20xf32, #tpu.memory_space<vmem>>, %arg2: memref<2x1x20xf32, #tpu.memory_space<vmem>>, %arg3: memref<2x1x20xf32, #tpu.memory_space<vmem>>, %arg4: memref<2x1x20xf32, #tpu.memory_space<vmem>>, %arg5: memref<2x60x64xf32, #tpu.memory_space<vmem>>, %arg6: memref<2x1x64xf32, #tpu.memory_space<vmem>>, %arg7: memref<64x768xf32, #tpu.memory_space<vmem>>, %arg8: memref<1x768xf32, #tpu.memory_space<vmem>>, %arg9: memref<64x768xf32, #tpu.memory_space<vmem>>, %arg10: memref<1x768xf32, #tpu.memory_space<vmem>>, %arg11: memref<2x16x768xf32, #tpu.memory_space<vmem>>) attributes {dimension_semantics = [], scalar_prefetch = 0 : i64, scratch_operands = 0 : i64, tpu.core_type = #tpu.core_type<tc>} {
    %c0 = arith.constant 0 : index
    %c0_0 = arith.constant 0 : index
    %0 = vector.load %arg0[%c0, %c0_0] : memref<16x64xf32, #tpu.memory_space<vmem>>, vector<16x64xf32>
    %1 = tpu.iota {dimensions = array<i32: 0>} : vector<16x20xi32>
    %c-2_i32 = arith.constant -2 : i32
    %2 = vector.broadcast %c-2_i32 : i32 to vector<16x20xi32>
    %3 = arith.addi %1, %2 : vector<16x20xi32>
    %c0_i32 = arith.constant 0 : i32
    %4 = vector.broadcast %c0_i32 : i32 to vector<16x20xi32>
    %5 = arith.cmpi sge, %3, %4 : vector<16x20xi32>
    %c-2_i32_1 = arith.constant -2 : i32
    %6 = vector.broadcast %c-2_i32_1 : i32 to vector<16x20xi32>
    %7 = arith.addi %1, %6 : vector<16x20xi32>
    %c16_i32 = arith.constant 16 : i32
    %8 = vector.broadcast %c16_i32 : i32 to vector<16x20xi32>
    %9 = arith.cmpi slt, %7, %8 : vector<16x20xi32>
    %10 = arith.andi %5, %9 : vector<16x20xi1>
    %c2_i32 = arith.constant 2 : i32
    %11 = vector.broadcast %c2_i32 : i32 to vector<16x20xi32>
    %12 = arith.addi %1, %11 : vector<16x20xi32>
    %c0_i32_2 = arith.constant 0 : i32
    %13 = vector.broadcast %c0_i32_2 : i32 to vector<16x20xi32>
    %14 = arith.cmpi sge, %12, %13 : vector<16x20xi32>
    %c2_i32_3 = arith.constant 2 : i32
    %15 = vector.broadcast %c2_i32_3 : i32 to vector<16x20xi32>
    %16 = arith.addi %1, %15 : vector<16x20xi32>
    %c16_i32_4 = arith.constant 16 : i32
    %17 = vector.broadcast %c16_i32_4 : i32 to vector<16x20xi32>
    %18 = arith.cmpi slt, %16, %17 : vector<16x20xi32>
    %19 = arith.andi %14, %18 : vector<16x20xi1>
    %cst = arith.constant 0.000000e+00 : f32
    %20 = vector.broadcast %cst : f32 to vector<16x64xf32>
    %21 = arith.maximumf %0, %20 : vector<16x64xf32>
    %c0_5 = arith.constant 0 : index
    %c0_6 = arith.constant 0 : index
    %c0_7 = arith.constant 0 : index
    %22 = vector.load %arg1[%c0_5, %c0_6, %c0_7] : memref<2x64x20xf32, #tpu.memory_space<vmem>>, vector<1x64x20xf32>
    %23 = vector.shape_cast %22 : vector<1x64x20xf32> to vector<64x20xf32>
    %cst_8 = arith.constant dense<0.000000e+00> : vector<16x20xf32>
    %24 = tpu.matmul %21, %23, %cst_8 {dimension_numbers = #tpu.dot_dimension_numbers<[1], [0], [0], [1], [0, 0, 1, 1], [], []>} : vector<16x64xf32>, vector<64x20xf32>, vector<16x20xf32> -> vector<16x20xf32>
    %c0_9 = arith.constant 0 : index
    %c0_10 = arith.constant 0 : index
    %c0_11 = arith.constant 0 : index
    %25 = vector.load %arg2[%c0_9, %c0_10, %c0_11] : memref<2x1x20xf32, #tpu.memory_space<vmem>>, vector<1x1x20xf32>
    %26 = vector.shape_cast %25 : vector<1x1x20xf32> to vector<1x20xf32>
    %27 = vector.broadcast %26 : vector<1x20xf32> to vector<16x20xf32>
    %28 = arith.addf %24, %27 : vector<16x20xf32>
    %cst_12 = arith.constant 0.000000e+00 : f32
    %29 = vector.broadcast %cst_12 : f32 to vector<16x20xf32>
    %30 = arith.maximumf %28, %29 : vector<16x20xf32>
    %c0_13 = arith.constant 0 : index
    %c0_14 = arith.constant 0 : index
    %c0_15 = arith.constant 0 : index
    %31 = vector.load %arg3[%c0_13, %c0_14, %c0_15] : memref<2x1x20xf32, #tpu.memory_space<vmem>>, vector<1x1x20xf32>
    %32 = vector.shape_cast %31 : vector<1x1x20xf32> to vector<1x20xf32>
    %33 = vector.broadcast %32 : vector<1x20xf32> to vector<16x20xf32>
    %34 = arith.mulf %30, %33 : vector<16x20xf32>
    %c0_16 = arith.constant 0 : index
    %c0_17 = arith.constant 0 : index
    %c0_18 = arith.constant 0 : index
    %35 = vector.load %arg4[%c0_16, %c0_17, %c0_18] : memref<2x1x20xf32, #tpu.memory_space<vmem>>, vector<1x1x20xf32>
    %36 = vector.shape_cast %35 : vector<1x1x20xf32> to vector<1x20xf32>
    %37 = vector.broadcast %36 : vector<1x20xf32> to vector<16x20xf32>
    %38 = arith.addf %34, %37 : vector<16x20xf32>
    %c2_i32_19 = arith.constant 2 : i32
    %39 = tpu.dynamic_rotate %38 by %c2_i32_19 dim 0 : vector<16x20xf32>, i32 -> vector<16x20xf32>
    %cst_20 = arith.constant 0.000000e+00 : f32
    %40 = vector.broadcast %cst_20 : f32 to vector<16x20xf32>
    %41 = arith.select %10, %39, %40 : vector<16x20xi1>, vector<16x20xf32>
    %c14_i32 = arith.constant 14 : i32
    %42 = tpu.dynamic_rotate %38 by %c14_i32 dim 0 : vector<16x20xf32>, i32 -> vector<16x20xf32>
    %cst_21 = arith.constant 0.000000e+00 : f32
    %43 = vector.broadcast %cst_21 : f32 to vector<16x20xf32>
    %44 = arith.select %19, %42, %43 : vector<16x20xi1>, vector<16x20xf32>
    %45 = tpu.concatenate %41, %38, %44 in 1 : vector<16x20xf32>, vector<16x20xf32>, vector<16x20xf32> -> vector<16x60xf32>
    %c0_22 = arith.constant 0 : index
    %c0_23 = arith.constant 0 : index
    %c0_24 = arith.constant 0 : index
    %46 = vector.load %arg5[%c0_22, %c0_23, %c0_24] : memref<2x60x64xf32, #tpu.memory_space<vmem>>, vector<1x60x64xf32>
    %47 = vector.shape_cast %46 : vector<1x60x64xf32> to vector<60x64xf32>
    %cst_25 = arith.constant dense<0.000000e+00> : vector<16x64xf32>
    %48 = tpu.matmul %45, %47, %cst_25 {dimension_numbers = #tpu.dot_dimension_numbers<[1], [0], [0], [1], [0, 0, 1, 1], [], []>} : vector<16x60xf32>, vector<60x64xf32>, vector<16x64xf32> -> vector<16x64xf32>
    %49 = arith.addf %0, %48 : vector<16x64xf32>
    %c0_26 = arith.constant 0 : index
    %c0_27 = arith.constant 0 : index
    %c0_28 = arith.constant 0 : index
    %50 = vector.load %arg6[%c0_26, %c0_27, %c0_28] : memref<2x1x64xf32, #tpu.memory_space<vmem>>, vector<1x1x64xf32>
    %51 = vector.shape_cast %50 : vector<1x1x64xf32> to vector<1x64xf32>
    %52 = vector.broadcast %51 : vector<1x64xf32> to vector<16x64xf32>
    %53 = arith.addf %49, %52 : vector<16x64xf32>
    %cst_29 = arith.constant 0.000000e+00 : f32
    %54 = vector.broadcast %cst_29 : f32 to vector<16x64xf32>
    %55 = arith.maximumf %53, %54 : vector<16x64xf32>
    %c1 = arith.constant 1 : index
    %c0_30 = arith.constant 0 : index
    %c0_31 = arith.constant 0 : index
    %56 = vector.load %arg1[%c1, %c0_30, %c0_31] : memref<2x64x20xf32, #tpu.memory_space<vmem>>, vector<1x64x20xf32>
    %57 = vector.shape_cast %56 : vector<1x64x20xf32> to vector<64x20xf32>
    %cst_32 = arith.constant dense<0.000000e+00> : vector<16x20xf32>
    %58 = tpu.matmul %55, %57, %cst_32 {dimension_numbers = #tpu.dot_dimension_numbers<[1], [0], [0], [1], [0, 0, 1, 1], [], []>} : vector<16x64xf32>, vector<64x20xf32>, vector<16x20xf32> -> vector<16x20xf32>
    %c1_33 = arith.constant 1 : index
    %c0_34 = arith.constant 0 : index
    %c0_35 = arith.constant 0 : index
    %59 = vector.load %arg2[%c1_33, %c0_34, %c0_35] : memref<2x1x20xf32, #tpu.memory_space<vmem>>, vector<1x1x20xf32>
    %60 = vector.shape_cast %59 : vector<1x1x20xf32> to vector<1x20xf32>
    %61 = vector.broadcast %60 : vector<1x20xf32> to vector<16x20xf32>
    %62 = arith.addf %58, %61 : vector<16x20xf32>
    %cst_36 = arith.constant 0.000000e+00 : f32
    %63 = vector.broadcast %cst_36 : f32 to vector<16x20xf32>
    %64 = arith.maximumf %62, %63 : vector<16x20xf32>
    %c1_37 = arith.constant 1 : index
    %c0_38 = arith.constant 0 : index
    %c0_39 = arith.constant 0 : index
    %65 = vector.load %arg3[%c1_37, %c0_38, %c0_39] : memref<2x1x20xf32, #tpu.memory_space<vmem>>, vector<1x1x20xf32>
    %66 = vector.shape_cast %65 : vector<1x1x20xf32> to vector<1x20xf32>
    %67 = vector.broadcast %66 : vector<1x20xf32> to vector<16x20xf32>
    %68 = arith.mulf %64, %67 : vector<16x20xf32>
    %c1_40 = arith.constant 1 : index
    %c0_41 = arith.constant 0 : index
    %c0_42 = arith.constant 0 : index
    %69 = vector.load %arg4[%c1_40, %c0_41, %c0_42] : memref<2x1x20xf32, #tpu.memory_space<vmem>>, vector<1x1x20xf32>
    %70 = vector.shape_cast %69 : vector<1x1x20xf32> to vector<1x20xf32>
    %71 = vector.broadcast %70 : vector<1x20xf32> to vector<16x20xf32>
    %72 = arith.addf %68, %71 : vector<16x20xf32>
    %c2_i32_43 = arith.constant 2 : i32
    %73 = tpu.dynamic_rotate %72 by %c2_i32_43 dim 0 : vector<16x20xf32>, i32 -> vector<16x20xf32>
    %cst_44 = arith.constant 0.000000e+00 : f32
    %74 = vector.broadcast %cst_44 : f32 to vector<16x20xf32>
    %75 = arith.select %10, %73, %74 : vector<16x20xi1>, vector<16x20xf32>
    %c14_i32_45 = arith.constant 14 : i32
    %76 = tpu.dynamic_rotate %72 by %c14_i32_45 dim 0 : vector<16x20xf32>, i32 -> vector<16x20xf32>
    %cst_46 = arith.constant 0.000000e+00 : f32
    %77 = vector.broadcast %cst_46 : f32 to vector<16x20xf32>
    %78 = arith.select %19, %76, %77 : vector<16x20xi1>, vector<16x20xf32>
    %79 = tpu.concatenate %75, %72, %78 in 1 : vector<16x20xf32>, vector<16x20xf32>, vector<16x20xf32> -> vector<16x60xf32>
    %c1_47 = arith.constant 1 : index
    %c0_48 = arith.constant 0 : index
    %c0_49 = arith.constant 0 : index
    %80 = vector.load %arg5[%c1_47, %c0_48, %c0_49] : memref<2x60x64xf32, #tpu.memory_space<vmem>>, vector<1x60x64xf32>
    %81 = vector.shape_cast %80 : vector<1x60x64xf32> to vector<60x64xf32>
    %cst_50 = arith.constant dense<0.000000e+00> : vector<16x64xf32>
    %82 = tpu.matmul %79, %81, %cst_50 {dimension_numbers = #tpu.dot_dimension_numbers<[1], [0], [0], [1], [0, 0, 1, 1], [], []>} : vector<16x60xf32>, vector<60x64xf32>, vector<16x64xf32> -> vector<16x64xf32>
    %83 = arith.addf %53, %82 : vector<16x64xf32>
    %c1_51 = arith.constant 1 : index
    %c0_52 = arith.constant 0 : index
    %c0_53 = arith.constant 0 : index
    %84 = vector.load %arg6[%c1_51, %c0_52, %c0_53] : memref<2x1x64xf32, #tpu.memory_space<vmem>>, vector<1x1x64xf32>
    %85 = vector.shape_cast %84 : vector<1x1x64xf32> to vector<1x64xf32>
    %86 = vector.broadcast %85 : vector<1x64xf32> to vector<16x64xf32>
    %87 = arith.addf %83, %86 : vector<16x64xf32>
    %cst_54 = arith.constant 0.000000e+00 : f32
    %88 = vector.broadcast %cst_54 : f32 to vector<16x64xf32>
    %89 = arith.maximumf %87, %88 : vector<16x64xf32>
    %c0_55 = arith.constant 0 : index
    %c0_56 = arith.constant 0 : index
    %90 = vector.load %arg7[%c0_55, %c0_56] : memref<64x768xf32, #tpu.memory_space<vmem>>, vector<64x768xf32>
    %cst_57 = arith.constant dense<0.000000e+00> : vector<16x768xf32>
    %91 = tpu.matmul %89, %90, %cst_57 {dimension_numbers = #tpu.dot_dimension_numbers<[1], [0], [0], [1], [0, 0, 1, 1], [], []>} : vector<16x64xf32>, vector<64x768xf32>, vector<16x768xf32> -> vector<16x768xf32>
    %c0_58 = arith.constant 0 : index
    %c0_59 = arith.constant 0 : index
    %92 = vector.load %arg8[%c0_58, %c0_59] : memref<1x768xf32, #tpu.memory_space<vmem>>, vector<1x768xf32>
    %93 = vector.broadcast %92 : vector<1x768xf32> to vector<16x768xf32>
    %94 = arith.addf %91, %93 : vector<16x768xf32>
    %c0_60 = arith.constant 0 : index
    %c0_61 = arith.constant 0 : index
    %c0_62 = arith.constant 0 : index
    %95 = vector.load %arg11[%c0_60, %c0_61, %c0_62] : memref<2x16x768xf32, #tpu.memory_space<vmem>>, vector<1x16x768xf32>
    %96 = vector.shape_cast %95 : vector<1x16x768xf32> to vector<16x768xf32>
    %97 = vector.shape_cast %94 : vector<16x768xf32> to vector<1x16x768xf32>
    tpu.vector_store %arg11[%c0_60, %c0_61, %c0_62], %97 {strides = array<i32>} : memref<2x16x768xf32, #tpu.memory_space<vmem>>, vector<1x16x768xf32>,
    %c0_63 = arith.constant 0 : index
    %c0_64 = arith.constant 0 : index
    %98 = vector.load %arg9[%c0_63, %c0_64] : memref<64x768xf32, #tpu.memory_space<vmem>>, vector<64x768xf32>
    %cst_65 = arith.constant dense<0.000000e+00> : vector<16x768xf32>
    %99 = tpu.matmul %89, %98, %cst_65 {dimension_numbers = #tpu.dot_dimension_numbers<[1], [0], [0], [1], [0, 0, 1, 1], [], []>} : vector<16x64xf32>, vector<64x768xf32>, vector<16x768xf32> -> vector<16x768xf32>
    %c0_66 = arith.constant 0 : index
    %c0_67 = arith.constant 0 : index
    %100 = vector.load %arg10[%c0_66, %c0_67] : memref<1x768xf32, #tpu.memory_space<vmem>>, vector<1x768xf32>
    %101 = vector.broadcast %100 : vector<1x768xf32> to vector<16x768xf32>
    %102 = arith.addf %99, %101 : vector<16x768xf32>
    %c1_68 = arith.constant 1 : index
    %c0_69 = arith.constant 0 : index
    %c0_70 = arith.constant 0 : index
    %103 = vector.load %arg11[%c1_68, %c0_69, %c0_70] : memref<2x16x768xf32, #tpu.memory_space<vmem>>, vector<1x16x768xf32>
    %104 = vector.shape_cast %103 : vector<1x16x768xf32> to vector<16x768xf32>
    %105 = vector.shape_cast %102 : vector<16x768xf32> to vector<1x16x768xf32>
    tpu.vector_store %arg11[%c1_68, %c0_69, %c0_70], %105 {strides = array<i32>} : memref<2x16x768xf32, #tpu.memory_space<vmem>>, vector<1x16x768xf32>,
    return
  }
}

module attributes {stable_mosaic.version = 11 : i64} {
  func.func @_gru_kernel(%arg0: i32, %arg1: i32, %arg2: memref<1x8x2x768xf32, #tpu.memory_space<vmem>>, %arg3: memref<1x256x768xf32, #tpu.memory_space<vmem>>, %arg4: memref<1x1x256xf32, #tpu.memory_space<vmem>>, %arg5: memref<1x256x128xf32, #tpu.memory_space<vmem>>, %arg6: memref<1x8x2x128xf32, #tpu.memory_space<vmem>>, %arg7: memref<2x256xf32, #tpu.memory_space<vmem>>) attributes {dimension_semantics = [#tpu.dimension_semantics<parallel>, #tpu.dimension_semantics<arbitrary>], iteration_bounds = array<i64: 2, 1>, scalar_prefetch = 0 : i64, scratch_operands = 1 : i64, tpu.core_type = #tpu.core_type<tc>, window_params = [{transform_indices = @transform_0, window_bounds = array<i64: 1, 8, 2, 768>}, {transform_indices = @transform_1, window_bounds = array<i64: 1, 256, 768>}, {transform_indices = @transform_2, window_bounds = array<i64: 1, 1, 256>}, {transform_indices = @transform_3, window_bounds = array<i64: 1, 256, 128>}, {transform_indices = @transform_4, window_bounds = array<i64: 1, 8, 2, 128>}]} {
    %c1_i32 = arith.constant 1 : i32
    %0 = arith.cmpi eq, %arg0, %c1_i32 : i32
    %c0_i32 = arith.constant 0 : i32
    %1 = arith.cmpi eq, %arg1, %c0_i32 : i32
    %2 = arith.extui %1 : i1 to i32
    %c0_i32_0 = arith.constant 0 : i32
    %3 = arith.cmpi ne, %2, %c0_i32_0 : i32
    scf.if %3 {
      %cst_110 = arith.constant 0.000000e+00 : f32
      %324 = vector.broadcast %cst_110 : f32 to vector<2x256xf32>
      %c0_111 = arith.constant 0 : index
      %c0_112 = arith.constant 0 : index
      %325 = vector.load %arg7[%c0_111, %c0_112] : memref<2x256xf32, #tpu.memory_space<vmem>>, vector<2x256xf32>
      tpu.vector_store %arg7[%c0_111, %c0_112], %324 {strides = array<i32>} : memref<2x256xf32, #tpu.memory_space<vmem>>, vector<2x256xf32>,
    } else {
    }
    %c0 = arith.constant 0 : index
    %c0_1 = arith.constant 0 : index
    %c0_2 = arith.constant 0 : index
    %4 = vector.load %arg3[%c0, %c0_1, %c0_2] : memref<1x256x768xf32, #tpu.memory_space<vmem>>, vector<1x256x768xf32>
    %5 = vector.shape_cast %4 : vector<1x256x768xf32> to vector<256x768xf32>
    %c0_3 = arith.constant 0 : index
    %c0_4 = arith.constant 0 : index
    %c0_5 = arith.constant 0 : index
    %6 = vector.load %arg4[%c0_3, %c0_4, %c0_5] : memref<1x1x256xf32, #tpu.memory_space<vmem>>, vector<1x1x256xf32>
    %7 = vector.shape_cast %6 : vector<1x1x256xf32> to vector<1x256xf32>
    %c0_6 = arith.constant 0 : index
    %c0_7 = arith.constant 0 : index
    %c0_8 = arith.constant 0 : index
    %8 = vector.load %arg5[%c0_6, %c0_7, %c0_8] : memref<1x256x128xf32, #tpu.memory_space<vmem>>, vector<1x256x128xf32>
    %9 = vector.shape_cast %8 : vector<1x256x128xf32> to vector<256x128xf32>
    %c0_9 = arith.constant 0 : index
    %c0_10 = arith.constant 0 : index
    %10 = vector.load %arg7[%c0_9, %c0_10] : memref<2x256xf32, #tpu.memory_space<vmem>>, vector<2x256xf32>
    %c0_i32_11 = arith.constant 0 : i32
    %c7_i32 = arith.constant 7 : i32
    %11 = arith.subi %c7_i32, %c0_i32_11 : i32
    %12 = arith.select %0, %11, %c0_i32_11 : i32
    %c0_12 = arith.constant 0 : index
    %13 = arith.index_cast %12 : i32 to index
    %c0_13 = arith.constant 0 : index
    %c0_14 = arith.constant 0 : index
    %14 = vector.load %arg2[%c0_12, %13, %c0_13, %c0_14] : memref<1x8x2x768xf32, #tpu.memory_space<vmem>>, vector<1x1x2x768xf32>
    %15 = vector.shape_cast %14 : vector<1x1x2x768xf32> to vector<2x768xf32>
    %cst = arith.constant dense<0.000000e+00> : vector<2x768xf32>
    %16 = tpu.matmul %10, %5, %cst {dimension_numbers = #tpu.dot_dimension_numbers<[1], [0], [0], [1], [0, 0, 1, 1], [], []>} : vector<2x256xf32>, vector<256x768xf32>, vector<2x768xf32> -> vector<2x768xf32>
    %17 = vector.extract_strided_slice %15 {offsets = [0, 0], sizes = [2, 256], strides = [1, 1]} : vector<2x768xf32> to vector<2x256xf32>
    %18 = vector.extract_strided_slice %16 {offsets = [0, 0], sizes = [2, 256], strides = [1, 1]} : vector<2x768xf32> to vector<2x256xf32>
    %19 = arith.addf %17, %18 : vector<2x256xf32>
    %20 = arith.negf %19 : vector<2x256xf32>
    %21 = math.exp %20 : vector<2x256xf32>
    %cst_15 = arith.constant 1.000000e+00 : f32
    %22 = vector.broadcast %cst_15 : f32 to vector<2x256xf32>
    %23 = arith.addf %22, %21 : vector<2x256xf32>
    %24 = arith.divf %22, %23 : vector<2x256xf32>
    %25 = vector.extract_strided_slice %15 {offsets = [0, 256], sizes = [2, 256], strides = [1, 1]} : vector<2x768xf32> to vector<2x256xf32>
    %26 = vector.extract_strided_slice %16 {offsets = [0, 256], sizes = [2, 256], strides = [1, 1]} : vector<2x768xf32> to vector<2x256xf32>
    %27 = arith.addf %25, %26 : vector<2x256xf32>
    %28 = arith.negf %27 : vector<2x256xf32>
    %29 = math.exp %28 : vector<2x256xf32>
    %cst_16 = arith.constant 1.000000e+00 : f32
    %30 = vector.broadcast %cst_16 : f32 to vector<2x256xf32>
    %31 = arith.addf %30, %29 : vector<2x256xf32>
    %32 = arith.divf %30, %31 : vector<2x256xf32>
    %33 = vector.extract_strided_slice %15 {offsets = [0, 512], sizes = [2, 256], strides = [1, 1]} : vector<2x768xf32> to vector<2x256xf32>
    %34 = vector.extract_strided_slice %16 {offsets = [0, 512], sizes = [2, 256], strides = [1, 1]} : vector<2x768xf32> to vector<2x256xf32>
    %35 = vector.broadcast %7 : vector<1x256xf32> to vector<2x256xf32>
    %36 = arith.addf %34, %35 : vector<2x256xf32>
    %37 = arith.mulf %24, %36 : vector<2x256xf32>
    %38 = arith.addf %33, %37 : vector<2x256xf32>
    %39 = math.tanh %38 : vector<2x256xf32>
    %cst_17 = arith.constant 1.000000e+00 : f32
    %40 = vector.broadcast %cst_17 : f32 to vector<2x256xf32>
    %41 = arith.subf %40, %32 : vector<2x256xf32>
    %42 = arith.mulf %41, %39 : vector<2x256xf32>
    %43 = arith.mulf %32, %10 : vector<2x256xf32>
    %44 = arith.addf %42, %43 : vector<2x256xf32>
    %cst_18 = arith.constant dense<0.000000e+00> : vector<2x128xf32>
    %45 = tpu.matmul %44, %9, %cst_18 {dimension_numbers = #tpu.dot_dimension_numbers<[1], [0], [0], [1], [0, 0, 1, 1], [], []>} : vector<2x256xf32>, vector<256x128xf32>, vector<2x128xf32> -> vector<2x128xf32>
    %c0_19 = arith.constant 0 : index
    %46 = arith.index_cast %12 : i32 to index
    %c0_20 = arith.constant 0 : index
    %c0_21 = arith.constant 0 : index
    %47 = vector.load %arg6[%c0_19, %46, %c0_20, %c0_21] : memref<1x8x2x128xf32, #tpu.memory_space<vmem>>, vector<1x1x2x128xf32>
    %48 = vector.shape_cast %47 : vector<1x1x2x128xf32> to vector<2x128xf32>
    %49 = vector.shape_cast %45 : vector<2x128xf32> to vector<1x1x2x128xf32>
    tpu.vector_store %arg6[%c0_19, %46, %c0_20, %c0_21], %49 {strides = array<i32>} : memref<1x8x2x128xf32, #tpu.memory_space<vmem>>, vector<1x1x2x128xf32>,
    %c1_i32_22 = arith.constant 1 : i32
    %c7_i32_23 = arith.constant 7 : i32
    %50 = arith.subi %c7_i32_23, %c1_i32_22 : i32
    %51 = arith.select %0, %50, %c1_i32_22 : i32
    %c0_24 = arith.constant 0 : index
    %52 = arith.index_cast %51 : i32 to index
    %c0_25 = arith.constant 0 : index
    %c0_26 = arith.constant 0 : index
    %53 = vector.load %arg2[%c0_24, %52, %c0_25, %c0_26] : memref<1x8x2x768xf32, #tpu.memory_space<vmem>>, vector<1x1x2x768xf32>
    %54 = vector.shape_cast %53 : vector<1x1x2x768xf32> to vector<2x768xf32>
    %cst_27 = arith.constant dense<0.000000e+00> : vector<2x768xf32>
    %55 = tpu.matmul %44, %5, %cst_27 {dimension_numbers = #tpu.dot_dimension_numbers<[1], [0], [0], [1], [0, 0, 1, 1], [], []>} : vector<2x256xf32>, vector<256x768xf32>, vector<2x768xf32> -> vector<2x768xf32>
    %56 = vector.extract_strided_slice %54 {offsets = [0, 0], sizes = [2, 256], strides = [1, 1]} : vector<2x768xf32> to vector<2x256xf32>
    %57 = vector.extract_strided_slice %55 {offsets = [0, 0], sizes = [2, 256], strides = [1, 1]} : vector<2x768xf32> to vector<2x256xf32>
    %58 = arith.addf %56, %57 : vector<2x256xf32>
    %59 = arith.negf %58 : vector<2x256xf32>
    %60 = math.exp %59 : vector<2x256xf32>
    %cst_28 = arith.constant 1.000000e+00 : f32
    %61 = vector.broadcast %cst_28 : f32 to vector<2x256xf32>
    %62 = arith.addf %61, %60 : vector<2x256xf32>
    %63 = arith.divf %61, %62 : vector<2x256xf32>
    %64 = vector.extract_strided_slice %54 {offsets = [0, 256], sizes = [2, 256], strides = [1, 1]} : vector<2x768xf32> to vector<2x256xf32>
    %65 = vector.extract_strided_slice %55 {offsets = [0, 256], sizes = [2, 256], strides = [1, 1]} : vector<2x768xf32> to vector<2x256xf32>
    %66 = arith.addf %64, %65 : vector<2x256xf32>
    %67 = arith.negf %66 : vector<2x256xf32>
    %68 = math.exp %67 : vector<2x256xf32>
    %cst_29 = arith.constant 1.000000e+00 : f32
    %69 = vector.broadcast %cst_29 : f32 to vector<2x256xf32>
    %70 = arith.addf %69, %68 : vector<2x256xf32>
    %71 = arith.divf %69, %70 : vector<2x256xf32>
    %72 = vector.extract_strided_slice %54 {offsets = [0, 512], sizes = [2, 256], strides = [1, 1]} : vector<2x768xf32> to vector<2x256xf32>
    %73 = vector.extract_strided_slice %55 {offsets = [0, 512], sizes = [2, 256], strides = [1, 1]} : vector<2x768xf32> to vector<2x256xf32>
    %74 = vector.broadcast %7 : vector<1x256xf32> to vector<2x256xf32>
    %75 = arith.addf %73, %74 : vector<2x256xf32>
    %76 = arith.mulf %63, %75 : vector<2x256xf32>
    %77 = arith.addf %72, %76 : vector<2x256xf32>
    %78 = math.tanh %77 : vector<2x256xf32>
    %cst_30 = arith.constant 1.000000e+00 : f32
    %79 = vector.broadcast %cst_30 : f32 to vector<2x256xf32>
    %80 = arith.subf %79, %71 : vector<2x256xf32>
    %81 = arith.mulf %80, %78 : vector<2x256xf32>
    %82 = arith.mulf %71, %44 : vector<2x256xf32>
    %83 = arith.addf %81, %82 : vector<2x256xf32>
    %cst_31 = arith.constant dense<0.000000e+00> : vector<2x128xf32>
    %84 = tpu.matmul %83, %9, %cst_31 {dimension_numbers = #tpu.dot_dimension_numbers<[1], [0], [0], [1], [0, 0, 1, 1], [], []>} : vector<2x256xf32>, vector<256x128xf32>, vector<2x128xf32> -> vector<2x128xf32>
    %c0_32 = arith.constant 0 : index
    %85 = arith.index_cast %51 : i32 to index
    %c0_33 = arith.constant 0 : index
    %c0_34 = arith.constant 0 : index
    %86 = vector.load %arg6[%c0_32, %85, %c0_33, %c0_34] : memref<1x8x2x128xf32, #tpu.memory_space<vmem>>, vector<1x1x2x128xf32>
    %87 = vector.shape_cast %86 : vector<1x1x2x128xf32> to vector<2x128xf32>
    %88 = vector.shape_cast %84 : vector<2x128xf32> to vector<1x1x2x128xf32>
    tpu.vector_store %arg6[%c0_32, %85, %c0_33, %c0_34], %88 {strides = array<i32>} : memref<1x8x2x128xf32, #tpu.memory_space<vmem>>, vector<1x1x2x128xf32>,
    %c2_i32 = arith.constant 2 : i32
    %c7_i32_35 = arith.constant 7 : i32
    %89 = arith.subi %c7_i32_35, %c2_i32 : i32
    %90 = arith.select %0, %89, %c2_i32 : i32
    %c0_36 = arith.constant 0 : index
    %91 = arith.index_cast %90 : i32 to index
    %c0_37 = arith.constant 0 : index
    %c0_38 = arith.constant 0 : index
    %92 = vector.load %arg2[%c0_36, %91, %c0_37, %c0_38] : memref<1x8x2x768xf32, #tpu.memory_space<vmem>>, vector<1x1x2x768xf32>
    %93 = vector.shape_cast %92 : vector<1x1x2x768xf32> to vector<2x768xf32>
    %cst_39 = arith.constant dense<0.000000e+00> : vector<2x768xf32>
    %94 = tpu.matmul %83, %5, %cst_39 {dimension_numbers = #tpu.dot_dimension_numbers<[1], [0], [0], [1], [0, 0, 1, 1], [], []>} : vector<2x256xf32>, vector<256x768xf32>, vector<2x768xf32> -> vector<2x768xf32>
    %95 = vector.extract_strided_slice %93 {offsets = [0, 0], sizes = [2, 256], strides = [1, 1]} : vector<2x768xf32> to vector<2x256xf32>
    %96 = vector.extract_strided_slice %94 {offsets = [0, 0], sizes = [2, 256], strides = [1, 1]} : vector<2x768xf32> to vector<2x256xf32>
    %97 = arith.addf %95, %96 : vector<2x256xf32>
    %98 = arith.negf %97 : vector<2x256xf32>
    %99 = math.exp %98 : vector<2x256xf32>
    %cst_40 = arith.constant 1.000000e+00 : f32
    %100 = vector.broadcast %cst_40 : f32 to vector<2x256xf32>
    %101 = arith.addf %100, %99 : vector<2x256xf32>
    %102 = arith.divf %100, %101 : vector<2x256xf32>
    %103 = vector.extract_strided_slice %93 {offsets = [0, 256], sizes = [2, 256], strides = [1, 1]} : vector<2x768xf32> to vector<2x256xf32>
    %104 = vector.extract_strided_slice %94 {offsets = [0, 256], sizes = [2, 256], strides = [1, 1]} : vector<2x768xf32> to vector<2x256xf32>
    %105 = arith.addf %103, %104 : vector<2x256xf32>
    %106 = arith.negf %105 : vector<2x256xf32>
    %107 = math.exp %106 : vector<2x256xf32>
    %cst_41 = arith.constant 1.000000e+00 : f32
    %108 = vector.broadcast %cst_41 : f32 to vector<2x256xf32>
    %109 = arith.addf %108, %107 : vector<2x256xf32>
    %110 = arith.divf %108, %109 : vector<2x256xf32>
    %111 = vector.extract_strided_slice %93 {offsets = [0, 512], sizes = [2, 256], strides = [1, 1]} : vector<2x768xf32> to vector<2x256xf32>
    %112 = vector.extract_strided_slice %94 {offsets = [0, 512], sizes = [2, 256], strides = [1, 1]} : vector<2x768xf32> to vector<2x256xf32>
    %113 = vector.broadcast %7 : vector<1x256xf32> to vector<2x256xf32>
    %114 = arith.addf %112, %113 : vector<2x256xf32>
    %115 = arith.mulf %102, %114 : vector<2x256xf32>
    %116 = arith.addf %111, %115 : vector<2x256xf32>
    %117 = math.tanh %116 : vector<2x256xf32>
    %cst_42 = arith.constant 1.000000e+00 : f32
    %118 = vector.broadcast %cst_42 : f32 to vector<2x256xf32>
    %119 = arith.subf %118, %110 : vector<2x256xf32>
    %120 = arith.mulf %119, %117 : vector<2x256xf32>
    %121 = arith.mulf %110, %83 : vector<2x256xf32>
    %122 = arith.addf %120, %121 : vector<2x256xf32>
    %cst_43 = arith.constant dense<0.000000e+00> : vector<2x128xf32>
    %123 = tpu.matmul %122, %9, %cst_43 {dimension_numbers = #tpu.dot_dimension_numbers<[1], [0], [0], [1], [0, 0, 1, 1], [], []>} : vector<2x256xf32>, vector<256x128xf32>, vector<2x128xf32> -> vector<2x128xf32>
    %c0_44 = arith.constant 0 : index
    %124 = arith.index_cast %90 : i32 to index
    %c0_45 = arith.constant 0 : index
    %c0_46 = arith.constant 0 : index
    %125 = vector.load %arg6[%c0_44, %124, %c0_45, %c0_46] : memref<1x8x2x128xf32, #tpu.memory_space<vmem>>, vector<1x1x2x128xf32>
    %126 = vector.shape_cast %125 : vector<1x1x2x128xf32> to vector<2x128xf32>
    %127 = vector.shape_cast %123 : vector<2x128xf32> to vector<1x1x2x128xf32>
    tpu.vector_store %arg6[%c0_44, %124, %c0_45, %c0_46], %127 {strides = array<i32>} : memref<1x8x2x128xf32, #tpu.memory_space<vmem>>, vector<1x1x2x128xf32>,
    %c3_i32 = arith.constant 3 : i32
    %c7_i32_47 = arith.constant 7 : i32
    %128 = arith.subi %c7_i32_47, %c3_i32 : i32
    %129 = arith.select %0, %128, %c3_i32 : i32
    %c0_48 = arith.constant 0 : index
    %130 = arith.index_cast %129 : i32 to index
    %c0_49 = arith.constant 0 : index
    %c0_50 = arith.constant 0 : index
    %131 = vector.load %arg2[%c0_48, %130, %c0_49, %c0_50] : memref<1x8x2x768xf32, #tpu.memory_space<vmem>>, vector<1x1x2x768xf32>
    %132 = vector.shape_cast %131 : vector<1x1x2x768xf32> to vector<2x768xf32>
    %cst_51 = arith.constant dense<0.000000e+00> : vector<2x768xf32>
    %133 = tpu.matmul %122, %5, %cst_51 {dimension_numbers = #tpu.dot_dimension_numbers<[1], [0], [0], [1], [0, 0, 1, 1], [], []>} : vector<2x256xf32>, vector<256x768xf32>, vector<2x768xf32> -> vector<2x768xf32>
    %134 = vector.extract_strided_slice %132 {offsets = [0, 0], sizes = [2, 256], strides = [1, 1]} : vector<2x768xf32> to vector<2x256xf32>
    %135 = vector.extract_strided_slice %133 {offsets = [0, 0], sizes = [2, 256], strides = [1, 1]} : vector<2x768xf32> to vector<2x256xf32>
    %136 = arith.addf %134, %135 : vector<2x256xf32>
    %137 = arith.negf %136 : vector<2x256xf32>
    %138 = math.exp %137 : vector<2x256xf32>
    %cst_52 = arith.constant 1.000000e+00 : f32
    %139 = vector.broadcast %cst_52 : f32 to vector<2x256xf32>
    %140 = arith.addf %139, %138 : vector<2x256xf32>
    %141 = arith.divf %139, %140 : vector<2x256xf32>
    %142 = vector.extract_strided_slice %132 {offsets = [0, 256], sizes = [2, 256], strides = [1, 1]} : vector<2x768xf32> to vector<2x256xf32>
    %143 = vector.extract_strided_slice %133 {offsets = [0, 256], sizes = [2, 256], strides = [1, 1]} : vector<2x768xf32> to vector<2x256xf32>
    %144 = arith.addf %142, %143 : vector<2x256xf32>
    %145 = arith.negf %144 : vector<2x256xf32>
    %146 = math.exp %145 : vector<2x256xf32>
    %cst_53 = arith.constant 1.000000e+00 : f32
    %147 = vector.broadcast %cst_53 : f32 to vector<2x256xf32>
    %148 = arith.addf %147, %146 : vector<2x256xf32>
    %149 = arith.divf %147, %148 : vector<2x256xf32>
    %150 = vector.extract_strided_slice %132 {offsets = [0, 512], sizes = [2, 256], strides = [1, 1]} : vector<2x768xf32> to vector<2x256xf32>
    %151 = vector.extract_strided_slice %133 {offsets = [0, 512], sizes = [2, 256], strides = [1, 1]} : vector<2x768xf32> to vector<2x256xf32>
    %152 = vector.broadcast %7 : vector<1x256xf32> to vector<2x256xf32>
    %153 = arith.addf %151, %152 : vector<2x256xf32>
    %154 = arith.mulf %141, %153 : vector<2x256xf32>
    %155 = arith.addf %150, %154 : vector<2x256xf32>
    %156 = math.tanh %155 : vector<2x256xf32>
    %cst_54 = arith.constant 1.000000e+00 : f32
    %157 = vector.broadcast %cst_54 : f32 to vector<2x256xf32>
    %158 = arith.subf %157, %149 : vector<2x256xf32>
    %159 = arith.mulf %158, %156 : vector<2x256xf32>
    %160 = arith.mulf %149, %122 : vector<2x256xf32>
    %161 = arith.addf %159, %160 : vector<2x256xf32>
    %cst_55 = arith.constant dense<0.000000e+00> : vector<2x128xf32>
    %162 = tpu.matmul %161, %9, %cst_55 {dimension_numbers = #tpu.dot_dimension_numbers<[1], [0], [0], [1], [0, 0, 1, 1], [], []>} : vector<2x256xf32>, vector<256x128xf32>, vector<2x128xf32> -> vector<2x128xf32>
    %c0_56 = arith.constant 0 : index
    %163 = arith.index_cast %129 : i32 to index
    %c0_57 = arith.constant 0 : index
    %c0_58 = arith.constant 0 : index
    %164 = vector.load %arg6[%c0_56, %163, %c0_57, %c0_58] : memref<1x8x2x128xf32, #tpu.memory_space<vmem>>, vector<1x1x2x128xf32>
    %165 = vector.shape_cast %164 : vector<1x1x2x128xf32> to vector<2x128xf32>
    %166 = vector.shape_cast %162 : vector<2x128xf32> to vector<1x1x2x128xf32>
    tpu.vector_store %arg6[%c0_56, %163, %c0_57, %c0_58], %166 {strides = array<i32>} : memref<1x8x2x128xf32, #tpu.memory_space<vmem>>, vector<1x1x2x128xf32>,
    %c4_i32 = arith.constant 4 : i32
    %c7_i32_59 = arith.constant 7 : i32
    %167 = arith.subi %c7_i32_59, %c4_i32 : i32
    %168 = arith.select %0, %167, %c4_i32 : i32
    %c0_60 = arith.constant 0 : index
    %169 = arith.index_cast %168 : i32 to index
    %c0_61 = arith.constant 0 : index
    %c0_62 = arith.constant 0 : index
    %170 = vector.load %arg2[%c0_60, %169, %c0_61, %c0_62] : memref<1x8x2x768xf32, #tpu.memory_space<vmem>>, vector<1x1x2x768xf32>
    %171 = vector.shape_cast %170 : vector<1x1x2x768xf32> to vector<2x768xf32>
    %cst_63 = arith.constant dense<0.000000e+00> : vector<2x768xf32>
    %172 = tpu.matmul %161, %5, %cst_63 {dimension_numbers = #tpu.dot_dimension_numbers<[1], [0], [0], [1], [0, 0, 1, 1], [], []>} : vector<2x256xf32>, vector<256x768xf32>, vector<2x768xf32> -> vector<2x768xf32>
    %173 = vector.extract_strided_slice %171 {offsets = [0, 0], sizes = [2, 256], strides = [1, 1]} : vector<2x768xf32> to vector<2x256xf32>
    %174 = vector.extract_strided_slice %172 {offsets = [0, 0], sizes = [2, 256], strides = [1, 1]} : vector<2x768xf32> to vector<2x256xf32>
    %175 = arith.addf %173, %174 : vector<2x256xf32>
    %176 = arith.negf %175 : vector<2x256xf32>
    %177 = math.exp %176 : vector<2x256xf32>
    %cst_64 = arith.constant 1.000000e+00 : f32
    %178 = vector.broadcast %cst_64 : f32 to vector<2x256xf32>
    %179 = arith.addf %178, %177 : vector<2x256xf32>
    %180 = arith.divf %178, %179 : vector<2x256xf32>
    %181 = vector.extract_strided_slice %171 {offsets = [0, 256], sizes = [2, 256], strides = [1, 1]} : vector<2x768xf32> to vector<2x256xf32>
    %182 = vector.extract_strided_slice %172 {offsets = [0, 256], sizes = [2, 256], strides = [1, 1]} : vector<2x768xf32> to vector<2x256xf32>
    %183 = arith.addf %181, %182 : vector<2x256xf32>
    %184 = arith.negf %183 : vector<2x256xf32>
    %185 = math.exp %184 : vector<2x256xf32>
    %cst_65 = arith.constant 1.000000e+00 : f32
    %186 = vector.broadcast %cst_65 : f32 to vector<2x256xf32>
    %187 = arith.addf %186, %185 : vector<2x256xf32>
    %188 = arith.divf %186, %187 : vector<2x256xf32>
    %189 = vector.extract_strided_slice %171 {offsets = [0, 512], sizes = [2, 256], strides = [1, 1]} : vector<2x768xf32> to vector<2x256xf32>
    %190 = vector.extract_strided_slice %172 {offsets = [0, 512], sizes = [2, 256], strides = [1, 1]} : vector<2x768xf32> to vector<2x256xf32>
    %191 = vector.broadcast %7 : vector<1x256xf32> to vector<2x256xf32>
    %192 = arith.addf %190, %191 : vector<2x256xf32>
    %193 = arith.mulf %180, %192 : vector<2x256xf32>
    %194 = arith.addf %189, %193 : vector<2x256xf32>
    %195 = math.tanh %194 : vector<2x256xf32>
    %cst_66 = arith.constant 1.000000e+00 : f32
    %196 = vector.broadcast %cst_66 : f32 to vector<2x256xf32>
    %197 = arith.subf %196, %188 : vector<2x256xf32>
    %198 = arith.mulf %197, %195 : vector<2x256xf32>
    %199 = arith.mulf %188, %161 : vector<2x256xf32>
    %200 = arith.addf %198, %199 : vector<2x256xf32>
    %cst_67 = arith.constant dense<0.000000e+00> : vector<2x128xf32>
    %201 = tpu.matmul %200, %9, %cst_67 {dimension_numbers = #tpu.dot_dimension_numbers<[1], [0], [0], [1], [0, 0, 1, 1], [], []>} : vector<2x256xf32>, vector<256x128xf32>, vector<2x128xf32> -> vector<2x128xf32>
    %c0_68 = arith.constant 0 : index
    %202 = arith.index_cast %168 : i32 to index
    %c0_69 = arith.constant 0 : index
    %c0_70 = arith.constant 0 : index
    %203 = vector.load %arg6[%c0_68, %202, %c0_69, %c0_70] : memref<1x8x2x128xf32, #tpu.memory_space<vmem>>, vector<1x1x2x128xf32>
    %204 = vector.shape_cast %203 : vector<1x1x2x128xf32> to vector<2x128xf32>
    %205 = vector.shape_cast %201 : vector<2x128xf32> to vector<1x1x2x128xf32>
    tpu.vector_store %arg6[%c0_68, %202, %c0_69, %c0_70], %205 {strides = array<i32>} : memref<1x8x2x128xf32, #tpu.memory_space<vmem>>, vector<1x1x2x128xf32>,
    %c5_i32 = arith.constant 5 : i32
    %c7_i32_71 = arith.constant 7 : i32
    %206 = arith.subi %c7_i32_71, %c5_i32 : i32
    %207 = arith.select %0, %206, %c5_i32 : i32
    %c0_72 = arith.constant 0 : index
    %208 = arith.index_cast %207 : i32 to index
    %c0_73 = arith.constant 0 : index
    %c0_74 = arith.constant 0 : index
    %209 = vector.load %arg2[%c0_72, %208, %c0_73, %c0_74] : memref<1x8x2x768xf32, #tpu.memory_space<vmem>>, vector<1x1x2x768xf32>
    %210 = vector.shape_cast %209 : vector<1x1x2x768xf32> to vector<2x768xf32>
    %cst_75 = arith.constant dense<0.000000e+00> : vector<2x768xf32>
    %211 = tpu.matmul %200, %5, %cst_75 {dimension_numbers = #tpu.dot_dimension_numbers<[1], [0], [0], [1], [0, 0, 1, 1], [], []>} : vector<2x256xf32>, vector<256x768xf32>, vector<2x768xf32> -> vector<2x768xf32>
    %212 = vector.extract_strided_slice %210 {offsets = [0, 0], sizes = [2, 256], strides = [1, 1]} : vector<2x768xf32> to vector<2x256xf32>
    %213 = vector.extract_strided_slice %211 {offsets = [0, 0], sizes = [2, 256], strides = [1, 1]} : vector<2x768xf32> to vector<2x256xf32>
    %214 = arith.addf %212, %213 : vector<2x256xf32>
    %215 = arith.negf %214 : vector<2x256xf32>
    %216 = math.exp %215 : vector<2x256xf32>
    %cst_76 = arith.constant 1.000000e+00 : f32
    %217 = vector.broadcast %cst_76 : f32 to vector<2x256xf32>
    %218 = arith.addf %217, %216 : vector<2x256xf32>
    %219 = arith.divf %217, %218 : vector<2x256xf32>
    %220 = vector.extract_strided_slice %210 {offsets = [0, 256], sizes = [2, 256], strides = [1, 1]} : vector<2x768xf32> to vector<2x256xf32>
    %221 = vector.extract_strided_slice %211 {offsets = [0, 256], sizes = [2, 256], strides = [1, 1]} : vector<2x768xf32> to vector<2x256xf32>
    %222 = arith.addf %220, %221 : vector<2x256xf32>
    %223 = arith.negf %222 : vector<2x256xf32>
    %224 = math.exp %223 : vector<2x256xf32>
    %cst_77 = arith.constant 1.000000e+00 : f32
    %225 = vector.broadcast %cst_77 : f32 to vector<2x256xf32>
    %226 = arith.addf %225, %224 : vector<2x256xf32>
    %227 = arith.divf %225, %226 : vector<2x256xf32>
    %228 = vector.extract_strided_slice %210 {offsets = [0, 512], sizes = [2, 256], strides = [1, 1]} : vector<2x768xf32> to vector<2x256xf32>
    %229 = vector.extract_strided_slice %211 {offsets = [0, 512], sizes = [2, 256], strides = [1, 1]} : vector<2x768xf32> to vector<2x256xf32>
    %230 = vector.broadcast %7 : vector<1x256xf32> to vector<2x256xf32>
    %231 = arith.addf %229, %230 : vector<2x256xf32>
    %232 = arith.mulf %219, %231 : vector<2x256xf32>
    %233 = arith.addf %228, %232 : vector<2x256xf32>
    %234 = math.tanh %233 : vector<2x256xf32>
    %cst_78 = arith.constant 1.000000e+00 : f32
    %235 = vector.broadcast %cst_78 : f32 to vector<2x256xf32>
    %236 = arith.subf %235, %227 : vector<2x256xf32>
    %237 = arith.mulf %236, %234 : vector<2x256xf32>
    %238 = arith.mulf %227, %200 : vector<2x256xf32>
    %239 = arith.addf %237, %238 : vector<2x256xf32>
    %cst_79 = arith.constant dense<0.000000e+00> : vector<2x128xf32>
    %240 = tpu.matmul %239, %9, %cst_79 {dimension_numbers = #tpu.dot_dimension_numbers<[1], [0], [0], [1], [0, 0, 1, 1], [], []>} : vector<2x256xf32>, vector<256x128xf32>, vector<2x128xf32> -> vector<2x128xf32>
    %c0_80 = arith.constant 0 : index
    %241 = arith.index_cast %207 : i32 to index
    %c0_81 = arith.constant 0 : index
    %c0_82 = arith.constant 0 : index
    %242 = vector.load %arg6[%c0_80, %241, %c0_81, %c0_82] : memref<1x8x2x128xf32, #tpu.memory_space<vmem>>, vector<1x1x2x128xf32>
    %243 = vector.shape_cast %242 : vector<1x1x2x128xf32> to vector<2x128xf32>
    %244 = vector.shape_cast %240 : vector<2x128xf32> to vector<1x1x2x128xf32>
    tpu.vector_store %arg6[%c0_80, %241, %c0_81, %c0_82], %244 {strides = array<i32>} : memref<1x8x2x128xf32, #tpu.memory_space<vmem>>, vector<1x1x2x128xf32>,
    %c6_i32 = arith.constant 6 : i32
    %c7_i32_83 = arith.constant 7 : i32
    %245 = arith.subi %c7_i32_83, %c6_i32 : i32
    %246 = arith.select %0, %245, %c6_i32 : i32
    %c0_84 = arith.constant 0 : index
    %247 = arith.index_cast %246 : i32 to index
    %c0_85 = arith.constant 0 : index
    %c0_86 = arith.constant 0 : index
    %248 = vector.load %arg2[%c0_84, %247, %c0_85, %c0_86] : memref<1x8x2x768xf32, #tpu.memory_space<vmem>>, vector<1x1x2x768xf32>
    %249 = vector.shape_cast %248 : vector<1x1x2x768xf32> to vector<2x768xf32>
    %cst_87 = arith.constant dense<0.000000e+00> : vector<2x768xf32>
    %250 = tpu.matmul %239, %5, %cst_87 {dimension_numbers = #tpu.dot_dimension_numbers<[1], [0], [0], [1], [0, 0, 1, 1], [], []>} : vector<2x256xf32>, vector<256x768xf32>, vector<2x768xf32> -> vector<2x768xf32>
    %251 = vector.extract_strided_slice %249 {offsets = [0, 0], sizes = [2, 256], strides = [1, 1]} : vector<2x768xf32> to vector<2x256xf32>
    %252 = vector.extract_strided_slice %250 {offsets = [0, 0], sizes = [2, 256], strides = [1, 1]} : vector<2x768xf32> to vector<2x256xf32>
    %253 = arith.addf %251, %252 : vector<2x256xf32>
    %254 = arith.negf %253 : vector<2x256xf32>
    %255 = math.exp %254 : vector<2x256xf32>
    %cst_88 = arith.constant 1.000000e+00 : f32
    %256 = vector.broadcast %cst_88 : f32 to vector<2x256xf32>
    %257 = arith.addf %256, %255 : vector<2x256xf32>
    %258 = arith.divf %256, %257 : vector<2x256xf32>
    %259 = vector.extract_strided_slice %249 {offsets = [0, 256], sizes = [2, 256], strides = [1, 1]} : vector<2x768xf32> to vector<2x256xf32>
    %260 = vector.extract_strided_slice %250 {offsets = [0, 256], sizes = [2, 256], strides = [1, 1]} : vector<2x768xf32> to vector<2x256xf32>
    %261 = arith.addf %259, %260 : vector<2x256xf32>
    %262 = arith.negf %261 : vector<2x256xf32>
    %263 = math.exp %262 : vector<2x256xf32>
    %cst_89 = arith.constant 1.000000e+00 : f32
    %264 = vector.broadcast %cst_89 : f32 to vector<2x256xf32>
    %265 = arith.addf %264, %263 : vector<2x256xf32>
    %266 = arith.divf %264, %265 : vector<2x256xf32>
    %267 = vector.extract_strided_slice %249 {offsets = [0, 512], sizes = [2, 256], strides = [1, 1]} : vector<2x768xf32> to vector<2x256xf32>
    %268 = vector.extract_strided_slice %250 {offsets = [0, 512], sizes = [2, 256], strides = [1, 1]} : vector<2x768xf32> to vector<2x256xf32>
    %269 = vector.broadcast %7 : vector<1x256xf32> to vector<2x256xf32>
    %270 = arith.addf %268, %269 : vector<2x256xf32>
    %271 = arith.mulf %258, %270 : vector<2x256xf32>
    %272 = arith.addf %267, %271 : vector<2x256xf32>
    %273 = math.tanh %272 : vector<2x256xf32>
    %cst_90 = arith.constant 1.000000e+00 : f32
    %274 = vector.broadcast %cst_90 : f32 to vector<2x256xf32>
    %275 = arith.subf %274, %266 : vector<2x256xf32>
    %276 = arith.mulf %275, %273 : vector<2x256xf32>
    %277 = arith.mulf %266, %239 : vector<2x256xf32>
    %278 = arith.addf %276, %277 : vector<2x256xf32>
    %cst_91 = arith.constant dense<0.000000e+00> : vector<2x128xf32>
    %279 = tpu.matmul %278, %9, %cst_91 {dimension_numbers = #tpu.dot_dimension_numbers<[1], [0], [0], [1], [0, 0, 1, 1], [], []>} : vector<2x256xf32>, vector<256x128xf32>, vector<2x128xf32> -> vector<2x128xf32>
    %c0_92 = arith.constant 0 : index
    %280 = arith.index_cast %246 : i32 to index
    %c0_93 = arith.constant 0 : index
    %c0_94 = arith.constant 0 : index
    %281 = vector.load %arg6[%c0_92, %280, %c0_93, %c0_94] : memref<1x8x2x128xf32, #tpu.memory_space<vmem>>, vector<1x1x2x128xf32>
    %282 = vector.shape_cast %281 : vector<1x1x2x128xf32> to vector<2x128xf32>
    %283 = vector.shape_cast %279 : vector<2x128xf32> to vector<1x1x2x128xf32>
    tpu.vector_store %arg6[%c0_92, %280, %c0_93, %c0_94], %283 {strides = array<i32>} : memref<1x8x2x128xf32, #tpu.memory_space<vmem>>, vector<1x1x2x128xf32>,
    %c7_i32_95 = arith.constant 7 : i32
    %c7_i32_96 = arith.constant 7 : i32
    %284 = arith.subi %c7_i32_96, %c7_i32_95 : i32
    %285 = arith.select %0, %284, %c7_i32_95 : i32
    %c0_97 = arith.constant 0 : index
    %286 = arith.index_cast %285 : i32 to index
    %c0_98 = arith.constant 0 : index
    %c0_99 = arith.constant 0 : index
    %287 = vector.load %arg2[%c0_97, %286, %c0_98, %c0_99] : memref<1x8x2x768xf32, #tpu.memory_space<vmem>>, vector<1x1x2x768xf32>
    %288 = vector.shape_cast %287 : vector<1x1x2x768xf32> to vector<2x768xf32>
    %cst_100 = arith.constant dense<0.000000e+00> : vector<2x768xf32>
    %289 = tpu.matmul %278, %5, %cst_100 {dimension_numbers = #tpu.dot_dimension_numbers<[1], [0], [0], [1], [0, 0, 1, 1], [], []>} : vector<2x256xf32>, vector<256x768xf32>, vector<2x768xf32> -> vector<2x768xf32>
    %290 = vector.extract_strided_slice %288 {offsets = [0, 0], sizes = [2, 256], strides = [1, 1]} : vector<2x768xf32> to vector<2x256xf32>
    %291 = vector.extract_strided_slice %289 {offsets = [0, 0], sizes = [2, 256], strides = [1, 1]} : vector<2x768xf32> to vector<2x256xf32>
    %292 = arith.addf %290, %291 : vector<2x256xf32>
    %293 = arith.negf %292 : vector<2x256xf32>
    %294 = math.exp %293 : vector<2x256xf32>
    %cst_101 = arith.constant 1.000000e+00 : f32
    %295 = vector.broadcast %cst_101 : f32 to vector<2x256xf32>
    %296 = arith.addf %295, %294 : vector<2x256xf32>
    %297 = arith.divf %295, %296 : vector<2x256xf32>
    %298 = vector.extract_strided_slice %288 {offsets = [0, 256], sizes = [2, 256], strides = [1, 1]} : vector<2x768xf32> to vector<2x256xf32>
    %299 = vector.extract_strided_slice %289 {offsets = [0, 256], sizes = [2, 256], strides = [1, 1]} : vector<2x768xf32> to vector<2x256xf32>
    %300 = arith.addf %298, %299 : vector<2x256xf32>
    %301 = arith.negf %300 : vector<2x256xf32>
    %302 = math.exp %301 : vector<2x256xf32>
    %cst_102 = arith.constant 1.000000e+00 : f32
    %303 = vector.broadcast %cst_102 : f32 to vector<2x256xf32>
    %304 = arith.addf %303, %302 : vector<2x256xf32>
    %305 = arith.divf %303, %304 : vector<2x256xf32>
    %306 = vector.extract_strided_slice %288 {offsets = [0, 512], sizes = [2, 256], strides = [1, 1]} : vector<2x768xf32> to vector<2x256xf32>
    %307 = vector.extract_strided_slice %289 {offsets = [0, 512], sizes = [2, 256], strides = [1, 1]} : vector<2x768xf32> to vector<2x256xf32>
    %308 = vector.broadcast %7 : vector<1x256xf32> to vector<2x256xf32>
    %309 = arith.addf %307, %308 : vector<2x256xf32>
    %310 = arith.mulf %297, %309 : vector<2x256xf32>
    %311 = arith.addf %306, %310 : vector<2x256xf32>
    %312 = math.tanh %311 : vector<2x256xf32>
    %cst_103 = arith.constant 1.000000e+00 : f32
    %313 = vector.broadcast %cst_103 : f32 to vector<2x256xf32>
    %314 = arith.subf %313, %305 : vector<2x256xf32>
    %315 = arith.mulf %314, %312 : vector<2x256xf32>
    %316 = arith.mulf %305, %278 : vector<2x256xf32>
    %317 = arith.addf %315, %316 : vector<2x256xf32>
    %cst_104 = arith.constant dense<0.000000e+00> : vector<2x128xf32>
    %318 = tpu.matmul %317, %9, %cst_104 {dimension_numbers = #tpu.dot_dimension_numbers<[1], [0], [0], [1], [0, 0, 1, 1], [], []>} : vector<2x256xf32>, vector<256x128xf32>, vector<2x128xf32> -> vector<2x128xf32>
    %c0_105 = arith.constant 0 : index
    %319 = arith.index_cast %285 : i32 to index
    %c0_106 = arith.constant 0 : index
    %c0_107 = arith.constant 0 : index
    %320 = vector.load %arg6[%c0_105, %319, %c0_106, %c0_107] : memref<1x8x2x128xf32, #tpu.memory_space<vmem>>, vector<1x1x2x128xf32>
    %321 = vector.shape_cast %320 : vector<1x1x2x128xf32> to vector<2x128xf32>
    %322 = vector.shape_cast %318 : vector<2x128xf32> to vector<1x1x2x128xf32>
    tpu.vector_store %arg6[%c0_105, %319, %c0_106, %c0_107], %322 {strides = array<i32>} : memref<1x8x2x128xf32, #tpu.memory_space<vmem>>, vector<1x1x2x128xf32>,
    %c8_i32 = arith.constant 8 : i32
    %c0_108 = arith.constant 0 : index
    %c0_109 = arith.constant 0 : index
    %323 = vector.load %arg7[%c0_108, %c0_109] : memref<2x256xf32, #tpu.memory_space<vmem>>, vector<2x256xf32>
    tpu.vector_store %arg7[%c0_108, %c0_109], %317 {strides = array<i32>} : memref<2x256xf32, #tpu.memory_space<vmem>>, vector<2x256xf32>,
    return
  }
  func.func @transform_0(%arg0: i32, %arg1: i32) -> (i32, i32, i32, i32) {
    %c0_i32 = arith.constant 0 : i32
    %0 = arith.muli %arg0, %c0_i32 : i32
    %c2_i32 = arith.constant 2 : i32
    %1 = arith.muli %c2_i32, %arg0 : i32
    %c1_i32 = arith.constant 1 : i32
    %2 = arith.subi %c1_i32, %1 : i32
    %3 = arith.muli %2, %arg1 : i32
    %4 = arith.addi %0, %3 : i32
    %c0_i32_0 = arith.constant 0 : i32
    %c0_i32_1 = arith.constant 0 : i32
    %c0_i32_2 = arith.constant 0 : i32
    return %arg0, %4, %c0_i32_0, %c0_i32_1 : i32, i32, i32, i32
  }
  func.func @transform_1(%arg0: i32, %arg1: i32) -> (i32, i32, i32) {
    %c0_i32 = arith.constant 0 : i32
    %c0_i32_0 = arith.constant 0 : i32
    %c0_i32_1 = arith.constant 0 : i32
    return %arg0, %c0_i32, %c0_i32_0 : i32, i32, i32
  }
  func.func @transform_2(%arg0: i32, %arg1: i32) -> (i32, i32, i32) {
    %c0_i32 = arith.constant 0 : i32
    %c0_i32_0 = arith.constant 0 : i32
    %c0_i32_1 = arith.constant 0 : i32
    return %arg0, %c0_i32, %c0_i32_0 : i32, i32, i32
  }
  func.func @transform_3(%arg0: i32, %arg1: i32) -> (i32, i32, i32) {
    %c0_i32 = arith.constant 0 : i32
    %c0_i32_0 = arith.constant 0 : i32
    %c0_i32_1 = arith.constant 0 : i32
    return %arg0, %c0_i32, %c0_i32_0 : i32, i32, i32
  }
  func.func @transform_4(%arg0: i32, %arg1: i32) -> (i32, i32, i32, i32) {
    %c0_i32 = arith.constant 0 : i32
    %0 = arith.muli %arg0, %c0_i32 : i32
    %c2_i32 = arith.constant 2 : i32
    %1 = arith.muli %c2_i32, %arg0 : i32
    %c1_i32 = arith.constant 1 : i32
    %2 = arith.subi %c1_i32, %1 : i32
    %3 = arith.muli %2, %arg1 : i32
    %4 = arith.addi %0, %3 : i32
    %c0_i32_0 = arith.constant 0 : i32
    %c0_i32_1 = arith.constant 0 : i32
    %c0_i32_2 = arith.constant 0 : i32
    return %arg0, %4, %c0_i32_0, %c0_i32_1 : i32, i32, i32, i32
  }
}

module attributes {stable_mosaic.version = 11 : i64} {
  func.func @_head_kernel(%arg0: memref<2x16x128xf32, #tpu.memory_space<vmem>>, %arg1: memref<1x128xf32, #tpu.memory_space<vmem>>, %arg2: memref<16x128xf32, #tpu.memory_space<vmem>>) attributes {dimension_semantics = [], scalar_prefetch = 0 : i64, scratch_operands = 0 : i64, tpu.core_type = #tpu.core_type<tc>} {
    %c0 = arith.constant 0 : index
    %c0_0 = arith.constant 0 : index
    %c0_1 = arith.constant 0 : index
    %0 = vector.load %arg0[%c0, %c0_0, %c0_1] : memref<2x16x128xf32, #tpu.memory_space<vmem>>, vector<1x16x128xf32>
    %1 = vector.shape_cast %0 : vector<1x16x128xf32> to vector<16x128xf32>
    %c1 = arith.constant 1 : index
    %c0_2 = arith.constant 0 : index
    %c0_3 = arith.constant 0 : index
    %2 = vector.load %arg0[%c1, %c0_2, %c0_3] : memref<2x16x128xf32, #tpu.memory_space<vmem>>, vector<1x16x128xf32>
    %3 = vector.shape_cast %2 : vector<1x16x128xf32> to vector<16x128xf32>
    %4 = arith.addf %1, %3 : vector<16x128xf32>
    %c0_4 = arith.constant 0 : index
    %c0_5 = arith.constant 0 : index
    %5 = vector.load %arg1[%c0_4, %c0_5] : memref<1x128xf32, #tpu.memory_space<vmem>>, vector<1x128xf32>
    %6 = vector.broadcast %5 : vector<1x128xf32> to vector<16x128xf32>
    %7 = arith.addf %4, %6 : vector<16x128xf32>
    %8 = math.tanh %7 : vector<16x128xf32>
    %c0_6 = arith.constant 0 : index
    %c0_7 = arith.constant 0 : index
    %9 = vector.load %arg2[%c0_6, %c0_7] : memref<16x128xf32, #tpu.memory_space<vmem>>, vector<16x128xf32>
    tpu.vector_store %arg2[%c0_6, %c0_7], %8 {strides = array<i32>} : memref<16x128xf32, #tpu.memory_space<vmem>>, vector<16x128xf32>,
    return
  }
}

</mosaic_0001>

<llo_original>
// kernel: crnn_forward.6
$region0: #{crnn_forward.6}
  #allocation0 [shape = 'u32[]', space=smem, size = 0x4, offset = 0x4, fixed_abs, tag = 'smem constant byte address 0x4 - core index']
  #allocation1 [shape = 'u32[144,128]{1,0:T(1,128)}', space=vmem, size = 0x12000, scoped, tag = 'internal scratch']
  %s0 = inlined_call_operand.hbm [shape: f32[32,64], index: 0, kind: input, shape index: {}]
  %s1 = inlined_call_operand.hbm [shape: f32[2,64,20], index: 1, kind: input, shape index: {}]
  %s2 = inlined_call_operand.hbm [shape: f32[2,1,20], index: 2, kind: input, shape index: {}]
  %s3 = inlined_call_operand.hbm [shape: f32[2,1,20], index: 3, kind: input, shape index: {}]
  %s4 = inlined_call_operand.hbm [shape: f32[2,1,20], index: 4, kind: input, shape index: {}]
  %s5 = inlined_call_operand.hbm [shape: f32[2,60,64], index: 5, kind: input, shape index: {}]
  %s6 = inlined_call_operand.hbm [shape: f32[2,1,64], index: 6, kind: input, shape index: {}]
  %s7 = inlined_call_operand.hbm [shape: f32[64,64], index: 7, kind: input, shape index: {}]
  %s8 = inlined_call_operand.hbm [shape: f32[1,64], index: 8, kind: input, shape index: {}]
  %s9 = inlined_call_operand.hbm [shape: f32[32,64], index: 9, kind: output, shape index: {}]
  %s10 = sld [smem:[#allocation0]]
  $region82: #{crnn_forward.6} parent=0
    _
  %s12 = ssub.s32 1, %s10
  %s13 = scalar_select 0, %s12, %s10
  $region1: #{crnn_forward.6} parent=0
    #allocation2 [shape = 'u8[16384]{0}', space=vmem, size = 0x4000, scoped, tag = 'input window, operand 0, single buffered']
    #allocation3 [shape = 's32[1]{0}', space=sflag, size = 0x4, scoped, tag = 'scoped memory for crnn_forward.6']
    #allocation4 [shape = 's32[1]{0}', space=sflag, size = 0x4, scoped, tag = 'scoped memory for crnn_forward.6']
    #allocation5 [shape = 'u8[65536]{0}', space=vmem, size = 0x10000, scoped, tag = 'input window, operand 1, single buffered']
    #allocation6 [shape = 's32[1]{0}', space=sflag, size = 0x4, scoped, tag = 'scoped memory for crnn_forward.6']
    #allocation7 [shape = 'u8[1024]{0}', space=vmem, size = 0x400, scoped, tag = 'input window, operand 2, single buffered']
    #allocation8 [shape = 'u8[1024]{0}', space=vmem, size = 0x400, scoped, tag = 'input window, operand 3, single buffered']
    #allocation9 [shape = 's32[1]{0}', space=sflag, size = 0x4, scoped, tag = 'scoped memory for crnn_forward.6']
    #allocation10 [shape = 'u8[1024]{0}', space=vmem, size = 0x400, scoped, tag = 'input window, operand 4, single buffered']
    #allocation11 [shape = 'u8[65536]{0}', space=vmem, size = 0x10000, scoped, tag = 'input window, operand 5, single buffered']
    #allocation12 [shape = 's32[1]{0}', space=sflag, size = 0x4, scoped, tag = 'scoped memory for crnn_forward.6']
    #allocation13 [shape = 'u8[1024]{0}', space=vmem, size = 0x400, scoped, tag = 'input window, operand 6, single buffered']
    #allocation14 [shape = 'u8[32768]{0}', space=vmem, size = 0x8000, scoped, tag = 'input window, operand 7, single buffered']
    #allocation15 [shape = 's32[1]{0}', space=sflag, size = 0x4, scoped, tag = 'scoped memory for crnn_forward.6']
    #allocation16 [shape = 'u8[512]{0}', space=vmem, size = 0x400, scoped, tag = 'input window, operand 8, single buffered']
    #allocation17 [shape = 'u8[16384]{0}', space=vmem, size = 0x4000, scoped, tag = 'output window, operand 0, single buffered']
    %14 = vsyncpa [#allocation3], 0
    %15 = vsyncpa [#allocation6], 0
    %16 = vsyncpa [#allocation9], 0
    %17 = vsyncpa [#allocation12], 0
    %18 = vsyncpa [#allocation15], 0
    %19 = vsyncpa [#allocation4], 0
    // Predicated region
    $region2: #{crnn_forward.6} parent=1 // pred_check
      _
    $region3: #{crnn_forward.6} parent=1 // pred_check_branch
      %21 = sbr.rel (0) target = $region5
    $region4: #{crnn_forward.6} parent=1 // pred_region
      %s23 = ssub.s32 512, 512
      %24 = vsyncadd [#allocation3], %s23
      %s25 = sshll.u32 [#allocation2], 4
      %s26 = int_to_ptr.vmem [resolvable:$true] %s25
      %31 = dma.hbm_to_vmem [thread:$0]  %s0, 512, %s26, [#allocation3], 128, 128, 8
    $region5: #{crnn_forward.6} parent=1 // pred_fallthru
      _
    // Predicated region
    $region6: #{crnn_forward.6} parent=1 // pred_check
      _
    $region7: #{crnn_forward.6} parent=1 // pred_check_branch
      %33 = sbr.rel (0) target = $region9
    $region8: #{crnn_forward.6} parent=1 // pred_region
      %s35 = ssub.s32 2048, 2048
      %36 = vsyncadd [#allocation6], %s35
      %s37 = sshll.u32 [#allocation5], 4
      %s38 = int_to_ptr.vmem [resolvable:$true] %s37
      %43 = dma.hbm_to_vmem [thread:$0]  %s1, 2048, %s38, [#allocation6], 128, 128, 8
    $region9: #{crnn_forward.6} parent=1 // pred_fallthru
      _
    // Predicated region
    $region10: #{crnn_forward.6} parent=1 // pred_check
      _
    $region11: #{crnn_forward.6} parent=1 // pred_check_branch
      %45 = sbr.rel (0) target = $region13
    $region12: #{crnn_forward.6} parent=1 // pred_region
      %s47 = ssub.s32 32, 32
      %48 = vsyncadd [#allocation6], %s47
      %s49 = sshll.u32 [#allocation7], 4
      %s50 = int_to_ptr.vmem [resolvable:$true] %s49
      %55 = dma.hbm_to_vmem [thread:$0]  %s2, 32, %s50, [#allocation6], 16, 16, 1
    $region13: #{crnn_forward.6} parent=1 // pred_fallthru
      _
    // Predicated region
    $region14: #{crnn_forward.6} parent=1 // pred_check
      _
    $region15: #{crnn_forward.6} parent=1 // pred_check_branch
      %57 = sbr.rel (0) target = $region17
    $region16: #{crnn_forward.6} parent=1 // pred_region
      %s59 = ssub.s32 32, 32
      %60 = vsyncadd [#allocation9], %s59
      %s61 = sshll.u32 [#allocation8], 4
      %s62 = int_to_ptr.vmem [resolvable:$true] %s61
      %67 = dma.hbm_to_vmem [thread:$0]  %s3, 32, %s62, [#allocation9], 16, 16, 1
    $region17: #{crnn_forward.6} parent=1 // pred_fallthru
      _
    // Predicated region
    $region18: #{crnn_forward.6} parent=1 // pred_check
      _
    $region19: #{crnn_forward.6} parent=1 // pred_check_branch
      %69 = sbr.rel (0) target = $region21
    $region20: #{crnn_forward.6} parent=1 // pred_region
      %s71 = ssub.s32 32, 32
      %72 = vsyncadd [#allocation9], %s71
      %s73 = sshll.u32 [#allocation10], 4
      %s74 = int_to_ptr.vmem [resolvable:$true] %s73
      %79 = dma.hbm_to_vmem [thread:$0]  %s4, 32, %s74, [#allocation9], 16, 16, 1
    $region21: #{crnn_forward.6} parent=1 // pred_fallthru
      _
    // Predicated region
    $region22: #{crnn_forward.6} parent=1 // pred_check
      _
    $region23: #{crnn_forward.6} parent=1 // pred_check_branch
      %81 = sbr.rel (0) target = $region25
    $region24: #{crnn_forward.6} parent=1 // pred_region
      %s83 = ssub.s32 2048, 2048
      %84 = vsyncadd [#allocation12], %s83
      %s85 = sshll.u32 [#allocation11], 4
      %s86 = int_to_ptr.vmem [resolvable:$true] %s85
      %91 = dma.hbm_to_vmem [thread:$0]  %s5, 2048, %s86, [#allocation12], 128, 128, 8
    $region25: #{crnn_forward.6} parent=1 // pred_fallthru
      _
    // Predicated region
    $region26: #{crnn_forward.6} parent=1 // pred_check
      _
    $region27: #{crnn_forward.6} parent=1 // pred_check_branch
      %93 = sbr.rel (0) target = $region29
    $region28: #{crnn_forward.6} parent=1 // pred_region
      %s95 = ssub.s32 32, 32
      %96 = vsyncadd [#allocation12], %s95
      %s97 = sshll.u32 [#allocation13], 4
      %s98 = int_to_ptr.vmem [resolvable:$true] %s97
      %103 = dma.hbm_to_vmem [thread:$0]  %s6, 32, %s98, [#allocation12], 16, 16, 1
    $region29: #{crnn_forward.6} parent=1 // pred_fallthru
      _
    // Predicated region
    $region30: #{crnn_forward.6} parent=1 // pred_check
      _
    $region31: #{crnn_forward.6} parent=1 // pred_check_branch
      %105 = sbr.rel (0) target = $region33
    $region32: #{crnn_forward.6} parent=1 // pred_region
      %s107 = ssub.s32 1024, 1024
      %108 = vsyncadd [#allocation15], %s107
      %s109 = sshll.u32 [#allocation14], 4
      %s110 = int_to_ptr.vmem [resolvable:$true] %s109
      %115 = dma.hbm_to_vmem [thread:$0]  %s7, 1024, %s110, [#allocation15], 128, 128, 8
    $region33: #{crnn_forward.6} parent=1 // pred_fallthru
      _
    // Predicated region
    $region34: #{crnn_forward.6} parent=1 // pred_check
      _
    $region35: #{crnn_forward.6} parent=1 // pred_check_branch
      %117 = sbr.rel (0) target = $region37
    $region36: #{crnn_forward.6} parent=1 // pred_region
      %s119 = ssub.s32 16, 16
      %120 = vsyncadd [#allocation15], %s119
      %s122 = sshll.u32 [#allocation16], 4
      %s123 = int_to_ptr.vmem [resolvable:$true] %s122
      %125 = dma.hbm_to_vmem [thread:$0]  %s8, 16, %s123, [#allocation15]
    $region37: #{crnn_forward.6} parent=1 // pred_fallthru
      _
    // Predicated region
    $region38: #{crnn_forward.6} parent=1 // pred_check
      _
    $region39: #{crnn_forward.6} parent=1 // pred_check_branch
      %127 = sbr.rel (0) target = $region41
    $region40: #{crnn_forward.6} parent=1 // pred_region
      %128 = dma.done [#allocation3], 512
    $region41: #{crnn_forward.6} parent=1 // pred_fallthru
      _
    // Predicated region
    $region42: #{crnn_forward.6} parent=1 // pred_check
      _
    $region43: #{crnn_forward.6} parent=1 // pred_check_branch
      %130 = sbr.rel (0) target = $region45
    $region44: #{crnn_forward.6} parent=1 // pred_region
      %131 = dma.done [#allocation6], 2048
    $region45: #{crnn_forward.6} parent=1 // pred_fallthru
      _
    // Predicated region
    $region46: #{crnn_forward.6} parent=1 // pred_check
      _
    $region47: #{crnn_forward.6} parent=1 // pred_check_branch
      %133 = sbr.rel (0) target = $region49
    $region48: #{crnn_forward.6} parent=1 // pred_region
      %134 = dma.done [#allocation6], 32
    $region49: #{crnn_forward.6} parent=1 // pred_fallthru
      _
    // Predicated region
    $region50: #{crnn_forward.6} parent=1 // pred_check
      _
    $region51: #{crnn_forward.6} parent=1 // pred_check_branch
      %136 = sbr.rel (0) target = $region53
    $region52: #{crnn_forward.6} parent=1 // pred_region
      %137 = dma.done [#allocation9], 32
    $region53: #{crnn_forward.6} parent=1 // pred_fallthru
      _
    // Predicated region
    $region54: #{crnn_forward.6} parent=1 // pred_check
      _
    $region55: #{crnn_forward.6} parent=1 // pred_check_branch
      %139 = sbr.rel (0) target = $region57
    $region56: #{crnn_forward.6} parent=1 // pred_region
      %140 = dma.done [#allocation9], 32
    $region57: #{crnn_forward.6} parent=1 // pred_fallthru
      _
    // Predicated region
    $region58: #{crnn_forward.6} parent=1 // pred_check
      _
    $region59: #{crnn_forward.6} parent=1 // pred_check_branch
      %142 = sbr.rel (0) target = $region61
    $region60: #{crnn_forward.6} parent=1 // pred_region
      %143 = dma.done [#allocation12], 2048
    $region61: #{crnn_forward.6} parent=1 // pred_fallthru
      _
    // Predicated region
    $region62: #{crnn_forward.6} parent=1 // pred_check
      _
    $region63: #{crnn_forward.6} parent=1 // pred_check_branch
      %145 = sbr.rel (0) target = $region65
    $region64: #{crnn_forward.6} parent=1 // pred_region
      %146 = dma.done [#allocation12], 32
    $region65: #{crnn_forward.6} parent=1 // pred_fallthru
      _
    // Predicated region
    $region66: #{crnn_forward.6} parent=1 // pred_check
      _
    $region67: #{crnn_forward.6} parent=1 // pred_check_branch
      %148 = sbr.rel (0) target = $region69
    $region68: #{crnn_forward.6} parent=1 // pred_region
      %149 = dma.done [#allocation15], 1024
    $region69: #{crnn_forward.6} parent=1 // pred_fallthru
      _
    // Predicated region
    $region70: #{crnn_forward.6} parent=1 // pred_check
      _
    $region71: #{crnn_forward.6} parent=1 // pred_check_branch
      %151 = sbr.rel (0) target = $region73
    $region72: #{crnn_forward.6} parent=1 // pred_region
      %152 = dma.done [#allocation15], 16
    $region73: #{crnn_forward.6} parent=1 // pred_fallthru
      _
    %v153 = vld [vmem:[#allocation2] sm:$0xff]
    %v154 = vld [vmem:[#allocation2 + $0x8] sm:$0xff]
    %v155 = vld [vmem:[#allocation2 + $0x10] sm:$0xff]
    %v156 = vld [vmem:[#allocation2 + $0x18] sm:$0xff]
    %v157 = vlaneseq
    %v158 = vshrl.u32 %v157, 7
    %v159 = vadd.s32 %v158, 8
    %v160 = vadd.s32 %v158, 16
    %v161 = vadd.s32 %v158, 24
    %v162 = vadd.s32 %v158, 4294967294
    %v163 = vadd.s32 %v159, 4294967294
    %v164 = vadd.s32 %v160, 4294967294
    %v165 = vadd.s32 %v161, 4294967294
    %vm166 = vcmp.ge.s32.totalorder %v162, 0
    %vm167 = vcmp.ge.s32.totalorder %v163, 0
    %vm168 = vcmp.ge.s32.totalorder %v164, 0
    %vm169 = vcmp.ge.s32.totalorder %v165, 0
    %vm170 = vcmp.lt.s32.totalorder %v162, 32
    %vm171 = vcmp.lt.s32.totalorder %v163, 32
    %vm172 = vcmp.lt.s32.totalorder %v164, 32
    %vm173 = vcmp.lt.s32.totalorder %v165, 32
    %vm174 = vmand %vm166, %vm170
    %vm175 = vmand %vm167, %vm171
    %vm176 = vmand %vm168, %vm172
    %vm177 = vmand %vm169, %vm173
    %v178 = vadd.s32 %v158, 2
    %v179 = vadd.s32 %v159, 2
    %v180 = vadd.s32 %v160, 2
    %v181 = vadd.s32 %v161, 2
    %vm182 = vcmp.ge.s32.totalorder %v178, 0
    %vm183 = vcmp.ge.s32.totalorder %v179, 0
    %vm184 = vcmp.ge.s32.totalorder %v180, 0
    %vm185 = vcmp.ge.s32.totalorder %v181, 0
    %vm186 = vcmp.lt.s32.totalorder %v178, 32
    %vm187 = vcmp.lt.s32.totalorder %v179, 32
    %vm188 = vcmp.lt.s32.totalorder %v180, 32
    %vm189 = vcmp.lt.s32.totalorder %v181, 32
    %vm190 = vmand %vm182, %vm186
    %vm191 = vmand %vm183, %vm187
    %vm192 = vmand %vm184, %vm188
    %vm193 = vmand %vm185, %vm189
    %v194 = vmax.f32 %v153, 0.0
    %v195 = vmax.f32 %v154, 0.0
    %v196 = vmax.f32 %v155, 0.0
    %v197 = vmax.f32 %v156, 0.0
    %v198 = vld [vmem:[#allocation5] sm:$0xff]
    %v199 = vld [vmem:[#allocation5 + $0x8] sm:$0xff]
    %v200 = vld [vmem:[#allocation5 + $0x10] sm:$0xff]
    %v201 = vld [vmem:[#allocation5 + $0x18] sm:$0xff]
    %v202 = vld [vmem:[#allocation5 + $0x20] sm:$0xff]
    %v203 = vld [vmem:[#allocation5 + $0x28] sm:$0xff]
    %v204 = vld [vmem:[#allocation5 + $0x30] sm:$0xff]
    %v205 = vld [vmem:[#allocation5 + $0x38] sm:$0xff]
    %v206 = vld [vmem:[#allocation7] sm:$0x1]
    %v208 = vlaneseq
    %v209 = vshrl.u32 %v208, 7
    %v210 = vsub.s32 0, %v209
    %v211 = vrot.slane %v206, %v210
    %vm213 = vcmask 523264
    %v215 = vsel %vm213, %v194, 0
    %v218 = vsel %vm213, %v195, 0
    %v221 = vsel %vm213, %v196, 0
    %v224 = vsel %vm213, %v197, 0
    %226 = vmatprep.subr.mxu0 0.0
    %227 = vmatpush1.msra.mxu0 %v198
    %228 = vmatprep.subr.mxu0 0.0
    %229 = vmatpush1.msra.mxu0 %v199
    %230 = vmatprep.subr.mxu0 0.0
    %231 = vmatpush1.msra.mxu0 %v200
    %232 = vmatprep.subr.mxu0 0.0
    %233 = vmatpush1.msra.mxu0 %v201
    %234 = vmatprep.subr.mxu0 0.0
    %235 = vmatpush1.msra.mxu0 %v202
    %236 = vmatprep.subr.mxu0 0.0
    %237 = vmatpush1.msra.mxu0 %v203
    %238 = vmatprep.subr.mxu0 0.0
    %239 = vmatpush1.msra.mxu0 %v204
    %240 = vmatprep.subr.mxu0 0.0
    %241 = vmatpush1.msra.mxu0 %v205
    %242 = vmatprep.subr.mxu0 0.0
    %243 = vmatpush1.msra.mxu0 0.0
    %244 = vmatprep.subr.mxu0 0.0
    %245 = vmatpush1.msra.mxu0 0.0
    %246 = vmatprep.subr.mxu0 0.0
    %247 = vmatpush1.msra.mxu0 0.0
    %248 = vmatprep.subr.mxu0 0.0
    %249 = vmatpush1.msra.mxu0 0.0
    %250 = vmatprep.subr.mxu0 0.0
    %251 = vmatpush1.msra.mxu0 0.0
    %252 = vmatprep.subr.mxu0 0.0
    %253 = vmatpush1.msra.mxu0 0.0
    %254 = vmatprep.subr.mxu0 0.0
    %255 = vmatpush1.msra.mxu0 0.0
    %256 = vmatprep.subr.mxu0 0.0
    %257 = vmatpush1.msra.mxu0 0.0
    %258 = vmatprep.subr.mxu0 0.0
    %259 = vmatpush1.msra.mxu0 0.0
    %260 = vmatprep.subr.mxu0 0.0
    %261 = vmatpush1.msra.mxu0 0.0
    %262 = vmatprep.subr.mxu0 0.0
    %263 = vmatpush1.msra.mxu0 0.0
    %264 = vmatprep.subr.mxu0 0.0
    %265 = vmatpush1.msra.mxu0 0.0
    %266 = vmatprep.subr.mxu0 0.0
    %267 = vmatpush1.msra.mxu0 0.0
    %268 = vmatprep.subr.mxu0 0.0
    %269 = vmatpush1.msra.mxu0 0.0
    %270 = vmatprep.subr.mxu0 0.0
    %271 = vmatpush1.msra.mxu0 0.0
    %272 = vmatprep.subr.mxu0 0.0
    %273 = vmatpush1.msra.mxu0 0.0
    %274 = vmatprep.subr.mxu0 0.0
    %275 = vmatpush1.msra.mxu0 0.0
    %276 = vmatprep.subr.mxu0 0.0
    %277 = vmatpush1.msra.mxu0 0.0
    %278 = vmatprep.subr.mxu0 0.0
    %279 = vmatpush1.msra.mxu0 0.0
    %280 = vmatprep.subr.mxu0 0.0
    %281 = vmatpush1.msra.mxu0 0.0
    %282 = vmatprep.subr.mxu0 0.0
    %283 = vmatpush1.msra.mxu0 0.0
    %284 = vmatprep.subr.mxu0 0.0
    %285 = vmatpush1.msra.mxu0 0.0
    %286 = vmatprep.subr.mxu0 0.0
    %287 = vmatpush1.msra.mxu0 0.0
    %288 = vmatprep.subr.mxu0 0.0
    %289 = vmatpush1.msra.mxu0 0.0
    %290 = vmatprep.mubr.f32.mxu0 0.0
    %291 = vmatmul.mubr.f32.gmra.mrb[0].mxu0 %v215
    %v292 = vpop.f32.mrb[0].mxu0
    %v293 = vadd.f32 %v211, %v292
    %v294 = vpop.f32.mrb[0].mxu0
    %295 = vmatprep.mubr.f32.mxu0 0.0
    %296 = vmatmul.mubr.f32.gmra.mrb[0].mxu0 %v218
    %v297 = vpop.f32.mrb[0].mxu0
    %v298 = vadd.f32 %v211, %v297
    %v299 = vpop.f32.mrb[0].mxu0
    %300 = vmatprep.mubr.f32.mxu0 0.0
    %301 = vmatmul.mubr.f32.gmra.mrb[0].mxu0 %v221
    %v302 = vpop.f32.mrb[0].mxu0
    %v303 = vadd.f32 %v211, %v302
    %v304 = vpop.f32.mrb[0].mxu0
    %305 = vmatprep.mubr.f32.mxu0 0.0
    %306 = vmatmul.mubr.f32.gmra.mrb[0].mxu0 %v224
    %v307 = vpop.f32.mrb[0].mxu0
    %v308 = vadd.f32 %v211, %v307
    %v309 = vpop.f32.mrb[0].mxu0
    %310 = vdwg.mxu0
    %v311 = vmax.f32 %v293, 0.0
    %v312 = vmax.f32 %v298, 0.0
    %v313 = vmax.f32 %v303, 0.0
    %v314 = vmax.f32 %v308, 0.0
    %v315 = vld [vmem:[#allocation8] sm:$0x1]
    %v317 = vlaneseq
    %v318 = vshrl.u32 %v317, 7
    %v319 = vsub.s32 0, %v318
    %v320 = vrot.slane %v315, %v319
    %v322 = vmul.f32 %v311, %v320
    %v323 = vmul.f32 %v312, %v320
    %v324 = vmul.f32 %v313, %v320
    %v325 = vmul.f32 %v314, %v320
    %v326 = vld [vmem:[#allocation10] sm:$0x1]
    %v328 = vlaneseq
    %v329 = vshrl.u32 %v328, 7
    %v330 = vsub.s32 0, %v329
    %v331 = vrot.slane %v326, %v330
    %v333 = vadd.f32 %v322, %v331
    %v334 = vadd.f32 %v323, %v331
    %v335 = vadd.f32 %v324, %v331
    %v336 = vadd.f32 %v325, %v331
    %v337 = vrot.slane %v333, 6
    %v338 = vrot.slane %v334, 6
    %v339 = vrot.slane %v335, 6
    %v340 = vrot.slane %v336, 6
    %vm341 = vcmp.lt.s32.totalorder %v158, 2
    %v342 = vsel %vm341, %v339, %v340
    %v343 = vsel %vm341, %v338, %v339
    %v344 = vsel %vm341, %v337, %v338
    %v345 = vsel %vm341, %v340, %v337
    %v346 = vsel %vm174, %v345, 0.0
    %v347 = vsel %vm175, %v344, 0.0
    %v348 = vsel %vm176, %v343, 0.0
    %v349 = vsel %vm177, %v342, 0.0
    %v350 = vrot.slane %v333, 2
    %v351 = vrot.slane %v334, 2
    %v352 = vrot.slane %v335, 2
    %v353 = vrot.slane %v336, 2
    %vm354 = vcmp.lt.s32.totalorder %v158, 6
    %v355 = vsel %vm354, %v352, %v353
    %v356 = vsel %vm354, %v351, %v352
    %v357 = vsel %vm354, %v350, %v351
    %v358 = vsel %vm354, %v353, %v350
    %v359 = vsel %vm190, %v357, 0.0
    %v360 = vsel %vm191, %v356, 0.0
    %v361 = vsel %vm192, %v355, 0.0
    %v362 = vsel %vm193, %v358, 0.0
    %367 = vrot.lane.b32.xlu0 %v333, 20
    %v368 = vpop.permute.xlu0 %367
    %369 = vrot.lane.b32.xlu0 %v334, 20
    %v370 = vpop.permute.xlu0 %369
    %371 = vrot.lane.b32.xlu0 %v335, 20
    %v372 = vpop.permute.xlu0 %371
    %373 = vrot.lane.b32.xlu0 %v336, 20
    %v374 = vpop.permute.xlu0 %373
    %383 = vrot.lane.b32.xlu0 %v359, 40
    %v384 = vpop.permute.xlu0 %383
    %385 = vrot.lane.b32.xlu0 %v360, 40
    %v386 = vpop.permute.xlu0 %385
    %387 = vrot.lane.b32.xlu0 %v361, 40
    %v388 = vpop.permute.xlu0 %387
    %389 = vrot.lane.b32.xlu0 %v362, 40
    %v390 = vpop.permute.xlu0 %389
    %vm395 = vcmask 162816
    %v396 = vsel %vm395, %v346, %v368
    %v397 = vsel %vm395, %v347, %v370
    %v398 = vsel %vm395, %v348, %v372
    %v399 = vsel %vm395, %v349, %v374
    %vm400 = vcmask 326656
    %v401 = vsel %vm400, %v396, %v384
    %v402 = vsel %vm400, %v397, %v386
    %v403 = vsel %vm400, %v398, %v388
    %v404 = vsel %vm400, %v399, %v390
    %v405 = vld [vmem:[#allocation11] sm:$0xff]
    %v406 = vld [vmem:[#allocation11 + $0x8] sm:$0xff]
    %v407 = vld [vmem:[#allocation11 + $0x10] sm:$0xff]
    %v408 = vld [vmem:[#allocation11 + $0x18] sm:$0xff]
    %v409 = vld [vmem:[#allocation11 + $0x20] sm:$0xff]
    %v410 = vld [vmem:[#allocation11 + $0x28] sm:$0xff]
    %v411 = vld [vmem:[#allocation11 + $0x30] sm:$0xff]
    %v412 = vld [vmem:[#allocation11 + $0x38] sm:$0xf]
    %vm413 = vcmask 490496
    %v415 = vsel %vm413, %v401, 0
    %v418 = vsel %vm413, %v402, 0
    %v421 = vsel %vm413, %v403, 0
    %v424 = vsel %vm413, %v404, 0
    %vm426 = vcmask 1043456
    %v428 = vsel %vm426, %v412, 0
    %430 = vmatprep.subr.mxu0 0.0
    %431 = vmatpush1.msra.mxu0 %v405
    %432 = vmatprep.subr.mxu0 0.0
    %433 = vmatpush1.msra.mxu0 %v406
    %434 = vmatprep.subr.mxu0 0.0
    %435 = vmatpush1.msra.mxu0 %v407
    %436 = vmatprep.subr.mxu0 0.0
    %437 = vmatpush1.msra.mxu0 %v408
    %438 = vmatprep.subr.mxu0 0.0
    %439 = vmatpush1.msra.mxu0 %v409
    %440 = vmatprep.subr.mxu0 0.0
    %441 = vmatpush1.msra.mxu0 %v410
    %442 = vmatprep.subr.mxu0 0.0
    %443 = vmatpush1.msra.mxu0 %v411
    %444 = vmatprep.subr.mxu0 0.0
    %445 = vmatpush1.msra.mxu0 %v428
    %446 = vmatprep.subr.mxu0 0.0
    %447 = vmatpush1.msra.mxu0 0.0
    %448 = vmatprep.subr.mxu0 0.0
    %449 = vmatpush1.msra.mxu0 0.0
    %450 = vmatprep.subr.mxu0 0.0
    %451 = vmatpush1.msra.mxu0 0.0
    %452 = vmatprep.subr.mxu0 0.0
    %453 = vmatpush1.msra.mxu0 0.0
    %454 = vmatprep.subr.mxu0 0.0
    %455 = vmatpush1.msra.mxu0 0.0
    %456 = vmatprep.subr.mxu0 0.0
    %457 = vmatpush1.msra.mxu0 0.0
    %458 = vmatprep.subr.mxu0 0.0
    %459 = vmatpush1.msra.mxu0 0.0
    %460 = vmatprep.subr.mxu0 0.0
    %461 = vmatpush1.msra.mxu0 0.0
    %462 = vmatprep.subr.mxu0 0.0
    %463 = vmatpush1.msra.mxu0 0.0
    %464 = vmatprep.subr.mxu0 0.0
    %465 = vmatpush1.msra.mxu0 0.0
    %466 = vmatprep.subr.mxu0 0.0
    %467 = vmatpush1.msra.mxu0 0.0
    %468 = vmatprep.subr.mxu0 0.0
    %469 = vmatpush1.msra.mxu0 0.0
    %470 = vmatprep.subr.mxu0 0.0
    %471 = vmatpush1.msra.mxu0 0.0
    %472 = vmatprep.subr.mxu0 0.0
    %473 = vmatpush1.msra.mxu0 0.0
    %474 = vmatprep.subr.mxu0 0.0
    %475 = vmatpush1.msra.mxu0 0.0
    %476 = vmatprep.subr.mxu0 0.0
    %477 = vmatpush1.msra.mxu0 0.0
    %478 = vmatprep.subr.mxu0 0.0
    %479 = vmatpush1.msra.mxu0 0.0
    %480 = vmatprep.subr.mxu0 0.0
    %481 = vmatpush1.msra.mxu0 0.0
    %482 = vmatprep.subr.mxu0 0.0
    %483 = vmatpush1.msra.mxu0 0.0
    %484 = vmatprep.subr.mxu0 0.0
    %485 = vmatpush1.msra.mxu0 0.0
    %486 = vmatprep.subr.mxu0 0.0
    %487 = vmatpush1.msra.mxu0 0.0
    %488 = vmatprep.subr.mxu0 0.0
    %489 = vmatpush1.msra.mxu0 0.0
    %490 = vmatprep.subr.mxu0 0.0
    %491 = vmatpush1.msra.mxu0 0.0
    %492 = vmatprep.subr.mxu0 0.0
    %493 = vmatpush1.msra.mxu0 0.0
    %494 = vmatprep.mubr.f32.mxu0 0.0
    %495 = vmatmul.mubr.f32.gmra.mrb[0].mxu0 %v415
    %v496 = vpop.f32.mrb[0].mxu0
    %v497 = vadd.f32 0.0, %v496
    %v498 = vpop.f32.mrb[0].mxu0
    %499 = vmatprep.mubr.f32.mxu0 0.0
    %500 = vmatmul.mubr.f32.gmra.mrb[0].mxu0 %v418
    %v501 = vpop.f32.mrb[0].mxu0
    %v502 = vadd.f32 0.0, %v501
    %v503 = vpop.f32.mrb[0].mxu0
    %504 = vmatprep.mubr.f32.mxu0 0.0
    %505 = vmatmul.mubr.f32.gmra.mrb[0].mxu0 %v421
    %v506 = vpop.f32.mrb[0].mxu0
    %v507 = vadd.f32 0.0, %v506
    %v508 = vpop.f32.mrb[0].mxu0
    %509 = vmatprep.mubr.f32.mxu0 0.0
    %510 = vmatmul.mubr.f32.gmra.mrb[0].mxu0 %v424
    %v511 = vpop.f32.mrb[0].mxu0
    %v512 = vadd.f32 0.0, %v511
    %v513 = vpop.f32.mrb[0].mxu0
    %514 = vdwg.mxu0
    %v515 = vadd.f32 %v153, %v497
    %v516 = vadd.f32 %v154, %v502
    %v517 = vadd.f32 %v155, %v507
    %v518 = vadd.f32 %v156, %v512
    %v519 = vld [vmem:[#allocation13] sm:$0x1]
    %v521 = vlaneseq
    %v522 = vshrl.u32 %v521, 7
    %v523 = vsub.s32 0, %v522
    %v524 = vrot.slane %v519, %v523
    %v526 = vadd.f32 %v515, %v524
    %v527 = vadd.f32 %v516, %v524
    %v528 = vadd.f32 %v517, %v524
    %v529 = vadd.f32 %v518, %v524
    %v530 = vmax.f32 %v526, 0.0
    %v531 = vmax.f32 %v527, 0.0
    %v532 = vmax.f32 %v528, 0.0
    %v533 = vmax.f32 %v529, 0.0
    %s534 = scalar_lea.vmem [#allocation5], 64
    %v535 = vld [vmem:[%s534] sm:$0xff]
    %v536 = vld [vmem:[%s534 + $0x8] sm:$0xff]
    %v537 = vld [vmem:[%s534 + $0x10] sm:$0xff]
    %v538 = vld [vmem:[%s534 + $0x18] sm:$0xff]
    %v539 = vld [vmem:[%s534 + $0x20] sm:$0xff]
    %v540 = vld [vmem:[%s534 + $0x28] sm:$0xff]
    %v541 = vld [vmem:[%s534 + $0x30] sm:$0xff]
    %v542 = vld [vmem:[%s534 + $0x38] sm:$0xff]
    %s543 = scalar_lea.vmem [#allocation7], 1
    %v544 = vld [vmem:[%s543] sm:$0x1]
    %v546 = vlaneseq
    %v547 = vshrl.u32 %v546, 7
    %v548 = vsub.s32 0, %v547
    %v549 = vrot.slane %v544, %v548
    %v552 = vsel %vm213, %v530, 0
    %v555 = vsel %vm213, %v531, 0
    %v558 = vsel %vm213, %v532, 0
    %v561 = vsel %vm213, %v533, 0
    %563 = vmatprep.subr.mxu0 0.0
    %564 = vmatpush1.msra.mxu0 %v535
    %565 = vmatprep.subr.mxu0 0.0
    %566 = vmatpush1.msra.mxu0 %v536
    %567 = vmatprep.subr.mxu0 0.0
    %568 = vmatpush1.msra.mxu0 %v537
    %569 = vmatprep.subr.mxu0 0.0
    %570 = vmatpush1.msra.mxu0 %v538
    %571 = vmatprep.subr.mxu0 0.0
    %572 = vmatpush1.msra.mxu0 %v539
    %573 = vmatprep.subr.mxu0 0.0
    %574 = vmatpush1.msra.mxu0 %v540
    %575 = vmatprep.subr.mxu0 0.0
    %576 = vmatpush1.msra.mxu0 %v541
    %577 = vmatprep.subr.mxu0 0.0
    %578 = vmatpush1.msra.mxu0 %v542
    %579 = vmatprep.subr.mxu0 0.0
    %580 = vmatpush1.msra.mxu0 0.0
    %581 = vmatprep.subr.mxu0 0.0
    %582 = vmatpush1.msra.mxu0 0.0
    %583 = vmatprep.subr.mxu0 0.0
    %584 = vmatpush1.msra.mxu0 0.0
    %585 = vmatprep.subr.mxu0 0.0
    %586 = vmatpush1.msra.mxu0 0.0
    %587 = vmatprep.subr.mxu0 0.0
    %588 = vmatpush1.msra.mxu0 0.0
    %589 = vmatprep.subr.mxu0 0.0
    %590 = vmatpush1.msra.mxu0 0.0
    %591 = vmatprep.subr.mxu0 0.0
    %592 = vmatpush1.msra.mxu0 0.0
    %593 = vmatprep.subr.mxu0 0.0
    %594 = vmatpush1.msra.mxu0 0.0
    %595 = vmatprep.subr.mxu0 0.0
    %596 = vmatpush1.msra.mxu0 0.0
    %597 = vmatprep.subr.mxu0 0.0
    %598 = vmatpush1.msra.mxu0 0.0
    %599 = vmatprep.subr.mxu0 0.0
    %600 = vmatpush1.msra.mxu0 0.0
    %601 = vmatprep.subr.mxu0 0.0
    %602 = vmatpush1.msra.mxu0 0.0
    %603 = vmatprep.subr.mxu0 0.0
    %604 = vmatpush1.msra.mxu0 0.0
    %605 = vmatprep.subr.mxu0 0.0
    %606 = vmatpush1.msra.mxu0 0.0
    %607 = vmatprep.subr.mxu0 0.0
    %608 = vmatpush1.msra.mxu0 0.0
    %609 = vmatprep.subr.mxu0 0.0
    %610 = vmatpush1.msra.mxu0 0.0
    %611 = vmatprep.subr.mxu0 0.0
    %612 = vmatpush1.msra.mxu0 0.0
    %613 = vmatprep.subr.mxu0 0.0
    %614 = vmatpush1.msra.mxu0 0.0
    %615 = vmatprep.subr.mxu0 0.0
    %616 = vmatpush1.msra.mxu0 0.0
    %617 = vmatprep.subr.mxu0 0.0
    %618 = vmatpush1.msra.mxu0 0.0
    %619 = vmatprep.subr.mxu0 0.0
    %620 = vmatpush1.msra.mxu0 0.0
    %621 = vmatprep.subr.mxu0 0.0
    %622 = vmatpush1.msra.mxu0 0.0
    %623 = vmatprep.subr.mxu0 0.0
    %624 = vmatpush1.msra.mxu0 0.0
    %625 = vmatprep.subr.mxu0 0.0
    %626 = vmatpush1.msra.mxu0 0.0
    %627 = vmatprep.mubr.f32.mxu0 0.0
    %628 = vmatmul.mubr.f32.gmra.mrb[0].mxu0 %v552
    %v629 = vpop.f32.mrb[0].mxu0
    %v630 = vadd.f32 %v549, %v629
    %v631 = vpop.f32.mrb[0].mxu0
    %632 = vmatprep.mubr.f32.mxu0 0.0
    %633 = vmatmul.mubr.f32.gmra.mrb[0].mxu0 %v555
    %v634 = vpop.f32.mrb[0].mxu0
    %v635 = vadd.f32 %v549, %v634
    %v636 = vpop.f32.mrb[0].mxu0
    %637 = vmatprep.mubr.f32.mxu0 0.0
    %638 = vmatmul.mubr.f32.gmra.mrb[0].mxu0 %v558
    %v639 = vpop.f32.mrb[0].mxu0
    %v640 = vadd.f32 %v549, %v639
    %v641 = vpop.f32.mrb[0].mxu0
    %642 = vmatprep.mubr.f32.mxu0 0.0
    %643 = vmatmul.mubr.f32.gmra.mrb[0].mxu0 %v561
    %v644 = vpop.f32.mrb[0].mxu0
    %v645 = vadd.f32 %v549, %v644
    %v646 = vpop.f32.mrb[0].mxu0
    %647 = vdwg.mxu0
    %v648 = vmax.f32 %v630, 0.0
    %v649 = vmax.f32 %v635, 0.0
    %v650 = vmax.f32 %v640, 0.0
    %v651 = vmax.f32 %v645, 0.0
    %s652 = scalar_lea.vmem [#allocation8], 1
    %v653 = vld [vmem:[%s652] sm:$0x1]
    %v655 = vlaneseq
    %v656 = vshrl.u32 %v655, 7
    %v657 = vsub.s32 0, %v656
    %v658 = vrot.slane %v653, %v657
    %v660 = vmul.f32 %v648, %v658
    %v661 = vmul.f32 %v649, %v658
    %v662 = vmul.f32 %v650, %v658
    %v663 = vmul.f32 %v651, %v658
    %s664 = scalar_lea.vmem [#allocation10], 1
    %v665 = vld [vmem:[%s664] sm:$0x1]
    %v667 = vlaneseq
    %v668 = vshrl.u32 %v667, 7
    %v669 = vsub.s32 0, %v668
    %v670 = vrot.slane %v665, %v669
    %v672 = vadd.f32 %v660, %v670
    %v673 = vadd.f32 %v661, %v670
    %v674 = vadd.f32 %v662, %v670
    %v675 = vadd.f32 %v663, %v670
    %v676 = vrot.slane %v672, 6
    %v677 = vrot.slane %v673, 6
    %v678 = vrot.slane %v674, 6
    %v679 = vrot.slane %v675, 6
    %v680 = vsel %vm341, %v678, %v679
    %v681 = vsel %vm341, %v677, %v678
    %v682 = vsel %vm341, %v676, %v677
    %v683 = vsel %vm341, %v679, %v676
    %v684 = vsel %vm174, %v683, 0.0
    %v685 = vsel %vm175, %v682, 0.0
    %v686 = vsel %vm176, %v681, 0.0
    %v687 = vsel %vm177, %v680, 0.0
    %v688 = vrot.slane %v672, 2
    %v689 = vrot.slane %v673, 2
    %v690 = vrot.slane %v674, 2
    %v691 = vrot.slane %v675, 2
    %v692 = vsel %vm354, %v690, %v691
    %v693 = vsel %vm354, %v689, %v690
    %v694 = vsel %vm354, %v688, %v689
    %v695 = vsel %vm354, %v691, %v688
    %v696 = vsel %vm190, %v694, 0.0
    %v697 = vsel %vm191, %v693, 0.0
    %v698 = vsel %vm192, %v692, 0.0
    %v699 = vsel %vm193, %v695, 0.0
    %704 = vrot.lane.b32.xlu0 %v672, 20
    %v705 = vpop.permute.xlu0 %704
    %706 = vrot.lane.b32.xlu0 %v673, 20
    %v707 = vpop.permute.xlu0 %706
    %708 = vrot.lane.b32.xlu0 %v674, 20
    %v709 = vpop.permute.xlu0 %708
    %710 = vrot.lane.b32.xlu0 %v675, 20
    %v711 = vpop.permute.xlu0 %710
    %720 = vrot.lane.b32.xlu0 %v696, 40
    %v721 = vpop.permute.xlu0 %720
    %722 = vrot.lane.b32.xlu0 %v697, 40
    %v723 = vpop.permute.xlu0 %722
    %724 = vrot.lane.b32.xlu0 %v698, 40
    %v725 = vpop.permute.xlu0 %724
    %726 = vrot.lane.b32.xlu0 %v699, 40
    %v727 = vpop.permute.xlu0 %726
    %v732 = vsel %vm395, %v684, %v705
    %v733 = vsel %vm395, %v685, %v707
    %v734 = vsel %vm395, %v686, %v709
    %v735 = vsel %vm395, %v687, %v711
    %v736 = vsel %vm400, %v732, %v721
    %v737 = vsel %vm400, %v733, %v723
    %v738 = vsel %vm400, %v734, %v725
    %v739 = vsel %vm400, %v735, %v727
    %s740 = scalar_lea.vmem [#allocation11], 64
    %v741 = vld [vmem:[%s740] sm:$0xff]
    %v742 = vld [vmem:[%s740 + $0x8] sm:$0xff]
    %v743 = vld [vmem:[%s740 + $0x10] sm:$0xff]
    %v744 = vld [vmem:[%s740 + $0x18] sm:$0xff]
    %v745 = vld [vmem:[%s740 + $0x20] sm:$0xff]
    %v746 = vld [vmem:[%s740 + $0x28] sm:$0xff]
    %v747 = vld [vmem:[%s740 + $0x30] sm:$0xff]
    %v748 = vld [vmem:[%s740 + $0x38] sm:$0xf]
    %v750 = vsel %vm413, %v736, 0
    %v753 = vsel %vm413, %v737, 0
    %v756 = vsel %vm413, %v738, 0
    %v759 = vsel %vm413, %v739, 0
    %v762 = vsel %vm426, %v748, 0
    %764 = vmatprep.subr.mxu0 0.0
    %765 = vmatpush1.msra.mxu0 %v741
    %766 = vmatprep.subr.mxu0 0.0
    %767 = vmatpush1.msra.mxu0 %v742
    %768 = vmatprep.subr.mxu0 0.0
    %769 = vmatpush1.msra.mxu0 %v743
    %770 = vmatprep.subr.mxu0 0.0
    %771 = vmatpush1.msra.mxu0 %v744
    %772 = vmatprep.subr.mxu0 0.0
    %773 = vmatpush1.msra.mxu0 %v745
    %774 = vmatprep.subr.mxu0 0.0
    %775 = vmatpush1.msra.mxu0 %v746
    %776 = vmatprep.subr.mxu0 0.0
    %777 = vmatpush1.msra.mxu0 %v747
    %778 = vmatprep.subr.mxu0 0.0
    %779 = vmatpush1.msra.mxu0 %v762
    %780 = vmatprep.subr.mxu0 0.0
    %781 = vmatpush1.msra.mxu0 0.0
    %782 = vmatprep.subr.mxu0 0.0
    %783 = vmatpush1.msra.mxu0 0.0
    %784 = vmatprep.subr.mxu0 0.0
    %785 = vmatpush1.msra.mxu0 0.0
    %786 = vmatprep.subr.mxu0 0.0
    %787 = vmatpush1.msra.mxu0 0.0
    %788 = vmatprep.subr.mxu0 0.0
    %789 = vmatpush1.msra.mxu0 0.0
    %790 = vmatprep.subr.mxu0 0.0
    %791 = vmatpush1.msra.mxu0 0.0
    %792 = vmatprep.subr.mxu0 0.0
    %793 = vmatpush1.msra.mxu0 0.0
    %794 = vmatprep.subr.mxu0 0.0
    %795 = vmatpush1.msra.mxu0 0.0
    %796 = vmatprep.subr.mxu0 0.0
    %797 = vmatpush1.msra.mxu0 0.0
    %798 = vmatprep.subr.mxu0 0.0
    %799 = vmatpush1.msra.mxu0 0.0
    %800 = vmatprep.subr.mxu0 0.0
    %801 = vmatpush1.msra.mxu0 0.0
    %802 = vmatprep.subr.mxu0 0.0
    %803 = vmatpush1.msra.mxu0 0.0
    %804 = vmatprep.subr.mxu0 0.0
    %805 = vmatpush1.msra.mxu0 0.0
    %806 = vmatprep.subr.mxu0 0.0
    %807 = vmatpush1.msra.mxu0 0.0
    %808 = vmatprep.subr.mxu0 0.0
    %809 = vmatpush1.msra.mxu0 0.0
    %810 = vmatprep.subr.mxu0 0.0
    %811 = vmatpush1.msra.mxu0 0.0
    %812 = vmatprep.subr.mxu0 0.0
    %813 = vmatpush1.msra.mxu0 0.0
    %814 = vmatprep.subr.mxu0 0.0
    %815 = vmatpush1.msra.mxu0 0.0
    %816 = vmatprep.subr.mxu0 0.0
    %817 = vmatpush1.msra.mxu0 0.0
    %818 = vmatprep.subr.mxu0 0.0
    %819 = vmatpush1.msra.mxu0 0.0
    %820 = vmatprep.subr.mxu0 0.0
    %821 = vmatpush1.msra.mxu0 0.0
    %822 = vmatprep.subr.mxu0 0.0
    %823 = vmatpush1.msra.mxu0 0.0
    %824 = vmatprep.subr.mxu0 0.0
    %825 = vmatpush1.msra.mxu0 0.0
    %826 = vmatprep.subr.mxu0 0.0
    %827 = vmatpush1.msra.mxu0 0.0
    %828 = vmatprep.mubr.f32.mxu0 0.0
    %829 = vmatmul.mubr.f32.gmra.mrb[0].mxu0 %v750
    %v830 = vpop.f32.mrb[0].mxu0
    %v831 = vadd.f32 0.0, %v830
    %v832 = vpop.f32.mrb[0].mxu0
    %833 = vmatprep.mubr.f32.mxu0 0.0
    %834 = vmatmul.mubr.f32.gmra.mrb[0].mxu0 %v753
    %v835 = vpop.f32.mrb[0].mxu0
    %v836 = vadd.f32 0.0, %v835
    %v837 = vpop.f32.mrb[0].mxu0
    %838 = vmatprep.mubr.f32.mxu0 0.0
    %839 = vmatmul.mubr.f32.gmra.mrb[0].mxu0 %v756
    %v840 = vpop.f32.mrb[0].mxu0
    %v841 = vadd.f32 0.0, %v840
    %v842 = vpop.f32.mrb[0].mxu0
    %843 = vmatprep.mubr.f32.mxu0 0.0
    %844 = vmatmul.mubr.f32.gmra.mrb[0].mxu0 %v759
    %v845 = vpop.f32.mrb[0].mxu0
    %v846 = vadd.f32 0.0, %v845
    %v847 = vpop.f32.mrb[0].mxu0
    %848 = vdwg.mxu0
    %v849 = vadd.f32 %v526, %v831
    %v850 = vadd.f32 %v527, %v836
    %v851 = vadd.f32 %v528, %v841
    %v852 = vadd.f32 %v529, %v846
    %s853 = scalar_lea.vmem [#allocation13], 1
    %v854 = vld [vmem:[%s853] sm:$0x1]
    %v856 = vlaneseq
    %v857 = vshrl.u32 %v856, 7
    %v858 = vsub.s32 0, %v857
    %v859 = vrot.slane %v854, %v858
    %v861 = vadd.f32 %v849, %v859
    %v862 = vadd.f32 %v850, %v859
    %v863 = vadd.f32 %v851, %v859
    %v864 = vadd.f32 %v852, %v859
    %v865 = vld [vmem:[#allocation14] sm:$0xff]
    %v866 = vld [vmem:[#allocation14 + $0x8] sm:$0xff]
    %v867 = vld [vmem:[#allocation14 + $0x10] sm:$0xff]
    %v868 = vld [vmem:[#allocation14 + $0x18] sm:$0xff]
    %v869 = vld [vmem:[#allocation14 + $0x20] sm:$0xff]
    %v870 = vld [vmem:[#allocation14 + $0x28] sm:$0xff]
    %v871 = vld [vmem:[#allocation14 + $0x30] sm:$0xff]
    %v872 = vld [vmem:[#allocation14 + $0x38] sm:$0xff]
    %v873 = vld [vmem:[#allocation16] sm:$0x1]
    %v875 = vlaneseq
    %v876 = vshrl.u32 %v875, 7
    %v877 = vsub.s32 0, %v876
    %v878 = vrot.slane %v873, %v877
    %v881 = vsel %vm213, %v861, 0
    %v884 = vsel %vm213, %v862, 0
    %v887 = vsel %vm213, %v863, 0
    %v890 = vsel %vm213, %v864, 0
    %892 = vmatprep.subr.mxu0 0.0
    %893 = vmatpush1.msra.mxu0 %v865
    %894 = vmatprep.subr.mxu0 0.0
    %895 = vmatpush1.msra.mxu0 %v866
    %896 = vmatprep.subr.mxu0 0.0
    %897 = vmatpush1.msra.mxu0 %v867
    %898 = vmatprep.subr.mxu0 0.0
    %899 = vmatpush1.msra.mxu0 %v868
    %900 = vmatprep.subr.mxu0 0.0
    %901 = vmatpush1.msra.mxu0 %v869
    %902 = vmatprep.subr.mxu0 0.0
    %903 = vmatpush1.msra.mxu0 %v870
    %904 = vmatprep.subr.mxu0 0.0
    %905 = vmatpush1.msra.mxu0 %v871
    %906 = vmatprep.subr.mxu0 0.0
    %907 = vmatpush1.msra.mxu0 %v872
    %908 = vmatprep.subr.mxu0 0.0
    %909 = vmatpush1.msra.mxu0 0.0
    %910 = vmatprep.subr.mxu0 0.0
    %911 = vmatpush1.msra.mxu0 0.0
    %912 = vmatprep.subr.mxu0 0.0
    %913 = vmatpush1.msra.mxu0 0.0
    %914 = vmatprep.subr.mxu0 0.0
    %915 = vmatpush1.msra.mxu0 0.0
    %916 = vmatprep.subr.mxu0 0.0
    %917 = vmatpush1.msra.mxu0 0.0
    %918 = vmatprep.subr.mxu0 0.0
    %919 = vmatpush1.msra.mxu0 0.0
    %920 = vmatprep.subr.mxu0 0.0
    %921 = vmatpush1.msra.mxu0 0.0
    %922 = vmatprep.subr.mxu0 0.0
    %923 = vmatpush1.msra.mxu0 0.0
    %924 = vmatprep.subr.mxu0 0.0
    %925 = vmatpush1.msra.mxu0 0.0
    %926 = vmatprep.subr.mxu0 0.0
    %927 = vmatpush1.msra.mxu0 0.0
    %928 = vmatprep.subr.mxu0 0.0
    %929 = vmatpush1.msra.mxu0 0.0
    %930 = vmatprep.subr.mxu0 0.0
    %931 = vmatpush1.msra.mxu0 0.0
    %932 = vmatprep.subr.mxu0 0.0
    %933 = vmatpush1.msra.mxu0 0.0
    %934 = vmatprep.subr.mxu0 0.0
    %935 = vmatpush1.msra.mxu0 0.0
    %936 = vmatprep.subr.mxu0 0.0
    %937 = vmatpush1.msra.mxu0 0.0
    %938 = vmatprep.subr.mxu0 0.0
    %939 = vmatpush1.msra.mxu0 0.0
    %940 = vmatprep.subr.mxu0 0.0
    %941 = vmatpush1.msra.mxu0 0.0
    %942 = vmatprep.subr.mxu0 0.0
    %943 = vmatpush1.msra.mxu0 0.0
    %944 = vmatprep.subr.mxu0 0.0
    %945 = vmatpush1.msra.mxu0 0.0
    %946 = vmatprep.subr.mxu0 0.0
    %947 = vmatpush1.msra.mxu0 0.0
    %948 = vmatprep.subr.mxu0 0.0
    %949 = vmatpush1.msra.mxu0 0.0
    %950 = vmatprep.subr.mxu0 0.0
    %951 = vmatpush1.msra.mxu0 0.0
    %952 = vmatprep.subr.mxu0 0.0
    %953 = vmatpush1.msra.mxu0 0.0
    %954 = vmatprep.subr.mxu0 0.0
    %955 = vmatpush1.msra.mxu0 0.0
    %956 = vmatprep.mubr.f32.mxu0 0.0
    %957 = vmatmul.mubr.f32.gmra.mrb[0].mxu0 %v881
    %v958 = vpop.f32.mrb[0].mxu0
    %v959 = vadd.f32 %v878, %v958
    %v960 = vpop.f32.mrb[0].mxu0
    %961 = vmatprep.mubr.f32.mxu0 0.0
    %962 = vmatmul.mubr.f32.gmra.mrb[0].mxu0 %v884
    %v963 = vpop.f32.mrb[0].mxu0
    %v964 = vadd.f32 %v878, %v963
    %v965 = vpop.f32.mrb[0].mxu0
    %966 = vmatprep.mubr.f32.mxu0 0.0
    %967 = vmatmul.mubr.f32.gmra.mrb[0].mxu0 %v887
    %v968 = vpop.f32.mrb[0].mxu0
    %v969 = vadd.f32 %v878, %v968
    %v970 = vpop.f32.mrb[0].mxu0
    %971 = vmatprep.mubr.f32.mxu0 0.0
    %972 = vmatmul.mubr.f32.gmra.mrb[0].mxu0 %v890
    %v973 = vpop.f32.mrb[0].mxu0
    %v974 = vadd.f32 %v878, %v973
    %v975 = vpop.f32.mrb[0].mxu0
    %976 = vdwg.mxu0
    %977 = vst.msk [vmem:[#allocation17] sm:$0xff] %vm213, %v959
    %978 = vst.msk [vmem:[#allocation17 + $0x8] sm:$0xff] %vm213, %v964
    %979 = vst.msk [vmem:[#allocation17 + $0x10] sm:$0xff] %vm213, %v969
    %980 = vst.msk [vmem:[#allocation17 + $0x18] sm:$0xff] %vm213, %v974
    // Predicated region
    $region74: #{crnn_forward.6} parent=1 // pred_check
      _
    $region75: #{crnn_forward.6} parent=1 // pred_check_branch
      %982 = sbr.rel (0) target = $region77
    $region76: #{crnn_forward.6} parent=1 // pred_region
      %s984 = ssub.s32 512, 512
      %985 = vsyncadd [#allocation4], %s984
      %s986 = sshll.u32 [#allocation17], 4
      %s987 = int_to_ptr.vmem [resolvable:$true] %s986
      %992 = dma.vmem_to_hbm [thread:$0]  %s987, 512, %s9, [#allocation4], 128, 128, 8
    $region77: #{crnn_forward.6} parent=1 // pred_fallthru
      _
    // Predicated region
    $region78: #{crnn_forward.6} parent=1 // pred_check
      _
    $region79: #{crnn_forward.6} parent=1 // pred_check_branch
      %994 = sbr.rel (0) target = $region81
    $region80: #{crnn_forward.6} parent=1 // pred_region
      %995 = dma.done [#allocation4], 512
    $region81: #{crnn_forward.6} parent=1 // pred_fallthru
      _
    %996 = vsyncpa [#allocation3], 1
    %997 = vsyncpa [#allocation6], 1
    %998 = vsyncpa [#allocation9], 1
    %999 = vsyncpa [#allocation12], 1
    %1000 = vsyncpa [#allocation15], 1
    %1001 = vsyncpa [#allocation4], 1

// kernel: crnn_forward.7
$region0: #{crnn_forward.7}
  #allocation0 [shape = 'u32[]', space=smem, size = 0x4, offset = 0x4, fixed_abs, tag = 'smem constant byte address 0x4 - core index']
  #allocation1 [shape = 'u32[144,128]{1,0:T(1,128)}', space=vmem, size = 0x12000, scoped, tag = 'internal scratch']
  %s0 = inlined_call_operand.hbm [shape: f32[16,64], index: 0, kind: input, shape index: {}]
  %s1 = inlined_call_operand.hbm [shape: f32[2,64,20], index: 1, kind: input, shape index: {}]
  %s2 = inlined_call_operand.hbm [shape: f32[2,1,20], index: 2, kind: input, shape index: {}]
  %s3 = inlined_call_operand.hbm [shape: f32[2,1,20], index: 3, kind: input, shape index: {}]
  %s4 = inlined_call_operand.hbm [shape: f32[2,1,20], index: 4, kind: input, shape index: {}]
  %s5 = inlined_call_operand.hbm [shape: f32[2,60,64], index: 5, kind: input, shape index: {}]
  %s6 = inlined_call_operand.hbm [shape: f32[2,1,64], index: 6, kind: input, shape index: {}]
  %s7 = inlined_call_operand.hbm [shape: f32[64,768], index: 7, kind: input, shape index: {}]
  %s8 = inlined_call_operand.hbm [shape: f32[1,768], index: 8, kind: input, shape index: {}]
  %s9 = inlined_call_operand.hbm [shape: f32[64,768], index: 9, kind: input, shape index: {}]
  %s10 = inlined_call_operand.hbm [shape: f32[1,768], index: 10, kind: input, shape index: {}]
  %s11 = inlined_call_operand.hbm [shape: f32[2,16,768], index: 11, kind: output, shape index: {}]
  %s12 = sld [smem:[#allocation0]]
  $region98: #{crnn_forward.7} parent=0
    _
  %s14 = ssub.s32 1, %s12
  %s15 = scalar_select 0, %s14, %s12
  $region1: #{crnn_forward.7} parent=0
    #allocation2 [shape = 'u8[8192]{0}', space=vmem, size = 0x2000, scoped, tag = 'input window, operand 0, single buffered']
    #allocation3 [shape = 's32[1]{0}', space=sflag, size = 0x4, scoped, tag = 'scoped memory for crnn_forward.7']
    #allocation4 [shape = 's32[1]{0}', space=sflag, size = 0x4, scoped, tag = 'scoped memory for crnn_forward.7']
    #allocation5 [shape = 'u8[65536]{0}', space=vmem, size = 0x10000, scoped, tag = 'input window, operand 1, single buffered']
    #allocation6 [shape = 's32[1]{0}', space=sflag, size = 0x4, scoped, tag = 'scoped memory for crnn_forward.7']
    #allocation7 [shape = 'u8[1024]{0}', space=vmem, size = 0x400, scoped, tag = 'input window, operand 2, single buffered']
    #allocation8 [shape = 'u8[1024]{0}', space=vmem, size = 0x400, scoped, tag = 'input window, operand 3, single buffered']
    #allocation9 [shape = 's32[1]{0}', space=sflag, size = 0x4, scoped, tag = 'scoped memory for crnn_forward.7']
    #allocation10 [shape = 'u8[1024]{0}', space=vmem, size = 0x400, scoped, tag = 'input window, operand 4, single buffered']
    #allocation11 [shape = 'u8[65536]{0}', space=vmem, size = 0x10000, scoped, tag = 'input window, operand 5, single buffered']
    #allocation12 [shape = 's32[1]{0}', space=sflag, size = 0x4, scoped, tag = 'scoped memory for crnn_forward.7']
    #allocation13 [shape = 'u8[1024]{0}', space=vmem, size = 0x400, scoped, tag = 'input window, operand 6, single buffered']
    #allocation14 [shape = 'u8[196608]{0}', space=vmem, size = 0x30000, scoped, tag = 'input window, operand 7, single buffered']
    #allocation15 [shape = 's32[1]{0}', space=sflag, size = 0x4, scoped, tag = 'scoped memory for crnn_forward.7']
    #allocation16 [shape = 'u8[3072]{0}', space=vmem, size = 0xc00, scoped, tag = 'input window, operand 8, single buffered']
    #allocation17 [shape = 'u8[196608]{0}', space=vmem, size = 0x30000, scoped, tag = 'input window, operand 9, single buffered']
    #allocation18 [shape = 's32[1]{0}', space=sflag, size = 0x4, scoped, tag = 'scoped memory for crnn_forward.7']
    #allocation19 [shape = 'u8[3072]{0}', space=vmem, size = 0xc00, scoped, tag = 'input window, operand 10, single buffered']
    #allocation20 [shape = 'u8[98304]{0}', space=vmem, size = 0x18000, scoped, tag = 'output window, operand 0, single buffered']
    %16 = vsyncpa [#allocation3], 0
    %17 = vsyncpa [#allocation6], 0
    %18 = vsyncpa [#allocation9], 0
    %19 = vsyncpa [#allocation12], 0
    %20 = vsyncpa [#allocation15], 0
    %21 = vsyncpa [#allocation18], 0
    %22 = vsyncpa [#allocation4], 0
    // Predicated region
    $region2: #{crnn_forward.7} parent=1 // pred_check
      _
    $region3: #{crnn_forward.7} parent=1 // pred_check_branch
      %24 = sbr.rel (0) target = $region5
    $region4: #{crnn_forward.7} parent=1 // pred_region
      %s26 = ssub.s32 256, 256
      %27 = vsyncadd [#allocation3], %s26
      %s28 = sshll.u32 [#allocation2], 4
      %s29 = int_to_ptr.vmem [resolvable:$true] %s28
      %34 = dma.hbm_to_vmem [thread:$0]  %s0, 256, %s29, [#allocation3], 128, 128, 8
    $region5: #{crnn_forward.7} parent=1 // pred_fallthru
      _
    // Predicated region
    $region6: #{crnn_forward.7} parent=1 // pred_check
      _
    $region7: #{crnn_forward.7} parent=1 // pred_check_branch
      %36 = sbr.rel (0) target = $region9
    $region8: #{crnn_forward.7} parent=1 // pred_region
      %s38 = ssub.s32 2048, 2048
      %39 = vsyncadd [#allocation6], %s38
      %s40 = sshll.u32 [#allocation5], 4
      %s41 = int_to_ptr.vmem [resolvable:$true] %s40
      %46 = dma.hbm_to_vmem [thread:$0]  %s1, 2048, %s41, [#allocation6], 128, 128, 8
    $region9: #{crnn_forward.7} parent=1 // pred_fallthru
      _
    // Predicated region
    $region10: #{crnn_forward.7} parent=1 // pred_check
      _
    $region11: #{crnn_forward.7} parent=1 // pred_check_branch
      %48 = sbr.rel (0) target = $region13
    $region12: #{crnn_forward.7} parent=1 // pred_region
      %s50 = ssub.s32 32, 32
      %51 = vsyncadd [#allocation6], %s50
      %s52 = sshll.u32 [#allocation7], 4
      %s53 = int_to_ptr.vmem [resolvable:$true] %s52
      %58 = dma.hbm_to_vmem [thread:$0]  %s2, 32, %s53, [#allocation6], 16, 16, 1
    $region13: #{crnn_forward.7} parent=1 // pred_fallthru
      _
    // Predicated region
    $region14: #{crnn_forward.7} parent=1 // pred_check
      _
    $region15: #{crnn_forward.7} parent=1 // pred_check_branch
      %60 = sbr.rel (0) target = $region17
    $region16: #{crnn_forward.7} parent=1 // pred_region
      %s62 = ssub.s32 32, 32
      %63 = vsyncadd [#allocation9], %s62
      %s64 = sshll.u32 [#allocation8], 4
      %s65 = int_to_ptr.vmem [resolvable:$true] %s64
      %70 = dma.hbm_to_vmem [thread:$0]  %s3, 32, %s65, [#allocation9], 16, 16, 1
    $region17: #{crnn_forward.7} parent=1 // pred_fallthru
      _
    // Predicated region
    $region18: #{crnn_forward.7} parent=1 // pred_check
      _
    $region19: #{crnn_forward.7} parent=1 // pred_check_branch
      %72 = sbr.rel (0) target = $region21
    $region20: #{crnn_forward.7} parent=1 // pred_region
      %s74 = ssub.s32 32, 32
      %75 = vsyncadd [#allocation9], %s74
      %s76 = sshll.u32 [#allocation10], 4
      %s77 = int_to_ptr.vmem [resolvable:$true] %s76
      %82 = dma.hbm_to_vmem [thread:$0]  %s4, 32, %s77, [#allocation9], 16, 16, 1
    $region21: #{crnn_forward.7} parent=1 // pred_fallthru
      _
    // Predicated region
    $region22: #{crnn_forward.7} parent=1 // pred_check
      _
    $region23: #{crnn_forward.7} parent=1 // pred_check_branch
      %84 = sbr.rel (0) target = $region25
    $region24: #{crnn_forward.7} parent=1 // pred_region
      %s86 = ssub.s32 2048, 2048
      %87 = vsyncadd [#allocation12], %s86
      %s88 = sshll.u32 [#allocation11], 4
      %s89 = int_to_ptr.vmem [resolvable:$true] %s88
      %94 = dma.hbm_to_vmem [thread:$0]  %s5, 2048, %s89, [#allocation12], 128, 128, 8
    $region25: #{crnn_forward.7} parent=1 // pred_fallthru
      _
    // Predicated region
    $region26: #{crnn_forward.7} parent=1 // pred_check
      _
    $region27: #{crnn_forward.7} parent=1 // pred_check_branch
      %96 = sbr.rel (0) target = $region29
    $region28: #{crnn_forward.7} parent=1 // pred_region
      %s98 = ssub.s32 32, 32
      %99 = vsyncadd [#allocation12], %s98
      %s100 = sshll.u32 [#allocation13], 4
      %s101 = int_to_ptr.vmem [resolvable:$true] %s100
      %106 = dma.hbm_to_vmem [thread:$0]  %s6, 32, %s101, [#allocation12], 16, 16, 1
    $region29: #{crnn_forward.7} parent=1 // pred_fallthru
      _
    // Predicated region
    $region30: #{crnn_forward.7} parent=1 // pred_check
      _
    $region31: #{crnn_forward.7} parent=1 // pred_check_branch
      %108 = sbr.rel (0) target = $region33
    $region32: #{crnn_forward.7} parent=1 // pred_region
      %s110 = ssub.s32 6144, 6144
      %111 = vsyncadd [#allocation15], %s110
      %s112 = sshll.u32 [#allocation14], 4
      %s113 = int_to_ptr.vmem [resolvable:$true] %s112
      %118 = dma.hbm_to_vmem [thread:$0]  %s7, 6144, %s113, [#allocation15], 768, 768, 48
    $region33: #{crnn_forward.7} parent=1 // pred_fallthru
      _
    // Predicated region
    $region34: #{crnn_forward.7} parent=1 // pred_check
      _
    $region35: #{crnn_forward.7} parent=1 // pred_check_branch
      %120 = sbr.rel (0) target = $region37
    $region36: #{crnn_forward.7} parent=1 // pred_region
      %s122 = ssub.s32 96, 96
      %123 = vsyncadd [#allocation15], %s122
      %s125 = sshll.u32 [#allocation16], 4
      %s126 = int_to_ptr.vmem [resolvable:$true] %s125
      %128 = dma.hbm_to_vmem [thread:$0]  %s8, 96, %s126, [#allocation15]
    $region37: #{crnn_forward.7} parent=1 // pred_fallthru
      _
    // Predicated region
    $region38: #{crnn_forward.7} parent=1 // pred_check
      _
    $region39: #{crnn_forward.7} parent=1 // pred_check_branch
      %130 = sbr.rel (0) target = $region41
    $region40: #{crnn_forward.7} parent=1 // pred_region
      %s132 = ssub.s32 6144, 6144
      %133 = vsyncadd [#allocation18], %s132
      %s134 = sshll.u32 [#allocation17], 4
      %s135 = int_to_ptr.vmem [resolvable:$true] %s134
      %140 = dma.hbm_to_vmem [thread:$0]  %s9, 6144, %s135, [#allocation18], 768, 768, 48
    $region41: #{crnn_forward.7} parent=1 // pred_fallthru
      _
    // Predicated region
    $region42: #{crnn_forward.7} parent=1 // pred_check
      _
    $region43: #{crnn_forward.7} parent=1 // pred_check_branch
      %142 = sbr.rel (0) target = $region45
    $region44: #{crnn_forward.7} parent=1 // pred_region
      %s144 = ssub.s32 96, 96
      %145 = vsyncadd [#allocation18], %s144
      %s147 = sshll.u32 [#allocation19], 4
      %s148 = int_to_ptr.vmem [resolvable:$true] %s147
      %150 = dma.hbm_to_vmem [thread:$0]  %s10, 96, %s148, [#allocation18]
    $region45: #{crnn_forward.7} parent=1 // pred_fallthru
      _
    // Predicated region
    $region46: #{crnn_forward.7} parent=1 // pred_check
      _
    $region47: #{crnn_forward.7} parent=1 // pred_check_branch
      %152 = sbr.rel (0) target = $region49
    $region48: #{crnn_forward.7} parent=1 // pred_region
      %153 = dma.done [#allocation3], 256
    $region49: #{crnn_forward.7} parent=1 // pred_fallthru
      _
    // Predicated region
    $region50: #{crnn_forward.7} parent=1 // pred_check
      _
    $region51: #{crnn_forward.7} parent=1 // pred_check_branch
      %155 = sbr.rel (0) target = $region53
    $region52: #{crnn_forward.7} parent=1 // pred_region
      %156 = dma.done [#allocation6], 2048
    $region53: #{crnn_forward.7} parent=1 // pred_fallthru
      _
    // Predicated region
    $region54: #{crnn_forward.7} parent=1 // pred_check
      _
    $region55: #{crnn_forward.7} parent=1 // pred_check_branch
      %158 = sbr.rel (0) target = $region57
    $region56: #{crnn_forward.7} parent=1 // pred_region
      %159 = dma.done [#allocation6], 32
    $region57: #{crnn_forward.7} parent=1 // pred_fallthru
      _
    // Predicated region
    $region58: #{crnn_forward.7} parent=1 // pred_check
      _
    $region59: #{crnn_forward.7} parent=1 // pred_check_branch
      %161 = sbr.rel (0) target = $region61
    $region60: #{crnn_forward.7} parent=1 // pred_region
      %162 = dma.done [#allocation9], 32
    $region61: #{crnn_forward.7} parent=1 // pred_fallthru
      _
    // Predicated region
    $region62: #{crnn_forward.7} parent=1 // pred_check
      _
    $region63: #{crnn_forward.7} parent=1 // pred_check_branch
      %164 = sbr.rel (0) target = $region65
    $region64: #{crnn_forward.7} parent=1 // pred_region
      %165 = dma.done [#allocation9], 32
    $region65: #{crnn_forward.7} parent=1 // pred_fallthru
      _
    // Predicated region
    $region66: #{crnn_forward.7} parent=1 // pred_check
      _
    $region67: #{crnn_forward.7} parent=1 // pred_check_branch
      %167 = sbr.rel (0) target = $region69
    $region68: #{crnn_forward.7} parent=1 // pred_region
      %168 = dma.done [#allocation12], 2048
    $region69: #{crnn_forward.7} parent=1 // pred_fallthru
      _
    // Predicated region
    $region70: #{crnn_forward.7} parent=1 // pred_check
      _
    $region71: #{crnn_forward.7} parent=1 // pred_check_branch
      %170 = sbr.rel (0) target = $region73
    $region72: #{crnn_forward.7} parent=1 // pred_region
      %171 = dma.done [#allocation12], 32
    $region73: #{crnn_forward.7} parent=1 // pred_fallthru
      _
    // Predicated region
    $region74: #{crnn_forward.7} parent=1 // pred_check
      _
    $region75: #{crnn_forward.7} parent=1 // pred_check_branch
      %173 = sbr.rel (0) target = $region77
    $region76: #{crnn_forward.7} parent=1 // pred_region
      %174 = dma.done [#allocation15], 6144
    $region77: #{crnn_forward.7} parent=1 // pred_fallthru
      _
    // Predicated region
    $region78: #{crnn_forward.7} parent=1 // pred_check
      _
    $region79: #{crnn_forward.7} parent=1 // pred_check_branch
      %176 = sbr.rel (0) target = $region81
    $region80: #{crnn_forward.7} parent=1 // pred_region
      %177 = dma.done [#allocation15], 96
    $region81: #{crnn_forward.7} parent=1 // pred_fallthru
      _
    // Predicated region
    $region82: #{crnn_forward.7} parent=1 // pred_check
      _
    $region83: #{crnn_forward.7} parent=1 // pred_check_branch
      %179 = sbr.rel (0) target = $region85
    $region84: #{crnn_forward.7} parent=1 // pred_region
      %180 = dma.done [#allocation18], 6144
    $region85: #{crnn_forward.7} parent=1 // pred_fallthru
      _
    // Predicated region
    $region86: #{crnn_forward.7} parent=1 // pred_check
      _
    $region87: #{crnn_forward.7} parent=1 // pred_check_branch
      %182 = sbr.rel (0) target = $region89
    $region88: #{crnn_forward.7} parent=1 // pred_region
      %183 = dma.done [#allocation18], 96
    $region89: #{crnn_forward.7} parent=1 // pred_fallthru
      _
    %v184 = vld [vmem:[#allocation2] sm:$0xff]
    %v185 = vld [vmem:[#allocation2 + $0x8] sm:$0xff]
    %v186 = vlaneseq
    %v187 = vshrl.u32 %v186, 7
    %v188 = vadd.s32 %v187, 8
    %v189 = vadd.s32 %v187, 4294967294
    %v190 = vadd.s32 %v188, 4294967294
    %vm191 = vcmp.ge.s32.totalorder %v189, 0
    %vm192 = vcmp.ge.s32.totalorder %v190, 0
    %vm193 = vcmp.lt.s32.totalorder %v189, 16
    %vm194 = vcmp.lt.s32.totalorder %v190, 16
    %vm195 = vmand %vm191, %vm193
    %vm196 = vmand %vm192, %vm194
    %v197 = vadd.s32 %v187, 2
    %v198 = vadd.s32 %v188, 2
    %vm199 = vcmp.ge.s32.totalorder %v197, 0
    %vm200 = vcmp.ge.s32.totalorder %v198, 0
    %vm201 = vcmp.lt.s32.totalorder %v197, 16
    %vm202 = vcmp.lt.s32.totalorder %v198, 16
    %vm203 = vmand %vm199, %vm201
    %vm204 = vmand %vm200, %vm202
    %v205 = vmax.f32 %v184, 0.0
    %v206 = vmax.f32 %v185, 0.0
    %v207 = vld [vmem:[#allocation5] sm:$0xff]
    %v208 = vld [vmem:[#allocation5 + $0x8] sm:$0xff]
    %v209 = vld [vmem:[#allocation5 + $0x10] sm:$0xff]
    %v210 = vld [vmem:[#allocation5 + $0x18] sm:$0xff]
    %v211 = vld [vmem:[#allocation5 + $0x20] sm:$0xff]
    %v212 = vld [vmem:[#allocation5 + $0x28] sm:$0xff]
    %v213 = vld [vmem:[#allocation5 + $0x30] sm:$0xff]
    %v214 = vld [vmem:[#allocation5 + $0x38] sm:$0xff]
    %v215 = vld [vmem:[#allocation7] sm:$0x1]
    %v217 = vlaneseq
    %v218 = vshrl.u32 %v217, 7
    %v219 = vsub.s32 0, %v218
    %v220 = vrot.slane %v215, %v219
    %vm222 = vcmask 523264
    %v224 = vsel %vm222, %v205, 0
    %v227 = vsel %vm222, %v206, 0
    %229 = vmatprep.subr.mxu0 0.0
    %230 = vmatpush1.msra.mxu0 %v207
    %231 = vmatprep.subr.mxu0 0.0
    %232 = vmatpush1.msra.mxu0 %v208
    %233 = vmatprep.subr.mxu0 0.0
    %234 = vmatpush1.msra.mxu0 %v209
    %235 = vmatprep.subr.mxu0 0.0
    %236 = vmatpush1.msra.mxu0 %v210
    %237 = vmatprep.subr.mxu0 0.0
    %238 = vmatpush1.msra.mxu0 %v211
    %239 = vmatprep.subr.mxu0 0.0
    %240 = vmatpush1.msra.mxu0 %v212
    %241 = vmatprep.subr.mxu0 0.0
    %242 = vmatpush1.msra.mxu0 %v213
    %243 = vmatprep.subr.mxu0 0.0
    %244 = vmatpush1.msra.mxu0 %v214
    %245 = vmatprep.subr.mxu0 0.0
    %246 = vmatpush1.msra.mxu0 0.0
    %247 = vmatprep.subr.mxu0 0.0
    %248 = vmatpush1.msra.mxu0 0.0
    %249 = vmatprep.subr.mxu0 0.0
    %250 = vmatpush1.msra.mxu0 0.0
    %251 = vmatprep.subr.mxu0 0.0
    %252 = vmatpush1.msra.mxu0 0.0
    %253 = vmatprep.subr.mxu0 0.0
    %254 = vmatpush1.msra.mxu0 0.0
    %255 = vmatprep.subr.mxu0 0.0
    %256 = vmatpush1.msra.mxu0 0.0
    %257 = vmatprep.subr.mxu0 0.0
    %258 = vmatpush1.msra.mxu0 0.0
    %259 = vmatprep.subr.mxu0 0.0
    %260 = vmatpush1.msra.mxu0 0.0
    %261 = vmatprep.subr.mxu0 0.0
    %262 = vmatpush1.msra.mxu0 0.0
    %263 = vmatprep.subr.mxu0 0.0
    %264 = vmatpush1.msra.mxu0 0.0
    %265 = vmatprep.subr.mxu0 0.0
    %266 = vmatpush1.msra.mxu0 0.0
    %267 = vmatprep.subr.mxu0 0.0
    %268 = vmatpush1.msra.mxu0 0.0
    %269 = vmatprep.subr.mxu0 0.0
    %270 = vmatpush1.msra.mxu0 0.0
    %271 = vmatprep.subr.mxu0 0.0
    %272 = vmatpush1.msra.mxu0 0.0
    %273 = vmatprep.subr.mxu0 0.0
    %274 = vmatpush1.msra.mxu0 0.0
    %275 = vmatprep.subr.mxu0 0.0
    %276 = vmatpush1.msra.mxu0 0.0
    %277 = vmatprep.subr.mxu0 0.0
    %278 = vmatpush1.msra.mxu0 0.0
    %279 = vmatprep.subr.mxu0 0.0
    %280 = vmatpush1.msra.mxu0 0.0
    %281 = vmatprep.subr.mxu0 0.0
    %282 = vmatpush1.msra.mxu0 0.0
    %283 = vmatprep.subr.mxu0 0.0
    %284 = vmatpush1.msra.mxu0 0.0
    %285 = vmatprep.subr.mxu0 0.0
    %286 = vmatpush1.msra.mxu0 0.0
    %287 = vmatprep.subr.mxu0 0.0
    %288 = vmatpush1.msra.mxu0 0.0
    %289 = vmatprep.subr.mxu0 0.0
    %290 = vmatpush1.msra.mxu0 0.0
    %291 = vmatprep.subr.mxu0 0.0
    %292 = vmatpush1.msra.mxu0 0.0
    %293 = vmatprep.mubr.f32.mxu0 0.0
    %294 = vmatmul.mubr.f32.gmra.mrb[0].mxu0 %v224
    %v295 = vpop.f32.mrb[0].mxu0
    %v296 = vadd.f32 %v220, %v295
    %v297 = vpop.f32.mrb[0].mxu0
    %298 = vmatprep.mubr.f32.mxu0 0.0
    %299 = vmatmul.mubr.f32.gmra.mrb[0].mxu0 %v227
    %v300 = vpop.f32.mrb[0].mxu0
    %v301 = vadd.f32 %v220, %v300
    %v302 = vpop.f32.mrb[0].mxu0
    %303 = vdwg.mxu0
    %v304 = vmax.f32 %v296, 0.0
    %v305 = vmax.f32 %v301, 0.0
    %v306 = vld [vmem:[#allocation8] sm:$0x1]
    %v308 = vlaneseq
    %v309 = vshrl.u32 %v308, 7
    %v310 = vsub.s32 0, %v309
    %v311 = vrot.slane %v306, %v310
    %v313 = vmul.f32 %v304, %v311
    %v314 = vmul.f32 %v305, %v311
    %v315 = vld [vmem:[#allocation10] sm:$0x1]
    %v317 = vlaneseq
    %v318 = vshrl.u32 %v317, 7
    %v319 = vsub.s32 0, %v318
    %v320 = vrot.slane %v315, %v319
    %v322 = vadd.f32 %v313, %v320
    %v323 = vadd.f32 %v314, %v320
    %v324 = vrot.slane %v322, 6
    %v325 = vrot.slane %v323, 6
    %vm326 = vcmp.lt.s32.totalorder %v187, 2
    %v327 = vsel %vm326, %v324, %v325
    %v328 = vsel %vm326, %v325, %v324
    %v329 = vsel %vm195, %v328, 0.0
    %v330 = vsel %vm196, %v327, 0.0
    %v331 = vrot.slane %v322, 2
    %v332 = vrot.slane %v323, 2
    %vm333 = vcmp.lt.s32.totalorder %v187, 6
    %v334 = vsel %vm333, %v331, %v332
    %v335 = vsel %vm333, %v332, %v331
    %v336 = vsel %vm203, %v334, 0.0
    %v337 = vsel %vm204, %v335, 0.0
    %340 = vrot.lane.b32.xlu0 %v322, 20
    %v341 = vpop.permute.xlu0 %340
    %342 = vrot.lane.b32.xlu0 %v323, 20
    %v343 = vpop.permute.xlu0 %342
    %348 = vrot.lane.b32.xlu0 %v336, 40
    %v349 = vpop.permute.xlu0 %348
    %350 = vrot.lane.b32.xlu0 %v337, 40
    %v351 = vpop.permute.xlu0 %350
    %vm354 = vcmask 162816
    %v355 = vsel %vm354, %v329, %v341
    %v356 = vsel %vm354, %v330, %v343
    %vm357 = vcmask 326656
    %v358 = vsel %vm357, %v355, %v349
    %v359 = vsel %vm357, %v356, %v351
    %v360 = vld [vmem:[#allocation11] sm:$0xff]
    %v361 = vld [vmem:[#allocation11 + $0x8] sm:$0xff]
    %v362 = vld [vmem:[#allocation11 + $0x10] sm:$0xff]
    %v363 = vld [vmem:[#allocation11 + $0x18] sm:$0xff]
    %v364 = vld [vmem:[#allocation11 + $0x20] sm:$0xff]
    %v365 = vld [vmem:[#allocation11 + $0x28] sm:$0xff]
    %v366 = vld [vmem:[#allocation11 + $0x30] sm:$0xff]
    %v367 = vld [vmem:[#allocation11 + $0x38] sm:$0xf]
    %vm368 = vcmask 490496
    %v370 = vsel %vm368, %v358, 0
    %v373 = vsel %vm368, %v359, 0
    %vm375 = vcmask 1043456
    %v377 = vsel %vm375, %v367, 0
    %379 = vmatprep.subr.mxu0 0.0
    %380 = vmatpush1.msra.mxu0 %v360
    %381 = vmatprep.subr.mxu0 0.0
    %382 = vmatpush1.msra.mxu0 %v361
    %383 = vmatprep.subr.mxu0 0.0
    %384 = vmatpush1.msra.mxu0 %v362
    %385 = vmatprep.subr.mxu0 0.0
    %386 = vmatpush1.msra.mxu0 %v363
    %387 = vmatprep.subr.mxu0 0.0
    %388 = vmatpush1.msra.mxu0 %v364
    %389 = vmatprep.subr.mxu0 0.0
    %390 = vmatpush1.msra.mxu0 %v365
    %391 = vmatprep.subr.mxu0 0.0
    %392 = vmatpush1.msra.mxu0 %v366
    %393 = vmatprep.subr.mxu0 0.0
    %394 = vmatpush1.msra.mxu0 %v377
    %395 = vmatprep.subr.mxu0 0.0
    %396 = vmatpush1.msra.mxu0 0.0
    %397 = vmatprep.subr.mxu0 0.0
    %398 = vmatpush1.msra.mxu0 0.0
    %399 = vmatprep.subr.mxu0 0.0
    %400 = vmatpush1.msra.mxu0 0.0
    %401 = vmatprep.subr.mxu0 0.0
    %402 = vmatpush1.msra.mxu0 0.0
    %403 = vmatprep.subr.mxu0 0.0
    %404 = vmatpush1.msra.mxu0 0.0
    %405 = vmatprep.subr.mxu0 0.0
    %406 = vmatpush1.msra.mxu0 0.0
    %407 = vmatprep.subr.mxu0 0.0
    %408 = vmatpush1.msra.mxu0 0.0
    %409 = vmatprep.subr.mxu0 0.0
    %410 = vmatpush1.msra.mxu0 0.0
    %411 = vmatprep.subr.mxu0 0.0
    %412 = vmatpush1.msra.mxu0 0.0
    %413 = vmatprep.subr.mxu0 0.0
    %414 = vmatpush1.msra.mxu0 0.0
    %415 = vmatprep.subr.mxu0 0.0
    %416 = vmatpush1.msra.mxu0 0.0
    %417 = vmatprep.subr.mxu0 0.0
    %418 = vmatpush1.msra.mxu0 0.0
    %419 = vmatprep.subr.mxu0 0.0
    %420 = vmatpush1.msra.mxu0 0.0
    %421 = vmatprep.subr.mxu0 0.0
    %422 = vmatpush1.msra.mxu0 0.0
    %423 = vmatprep.subr.mxu0 0.0
    %424 = vmatpush1.msra.mxu0 0.0
    %425 = vmatprep.subr.mxu0 0.0
    %426 = vmatpush1.msra.mxu0 0.0
    %427 = vmatprep.subr.mxu0 0.0
    %428 = vmatpush1.msra.mxu0 0.0
    %429 = vmatprep.subr.mxu0 0.0
    %430 = vmatpush1.msra.mxu0 0.0
    %431 = vmatprep.subr.mxu0 0.0
    %432 = vmatpush1.msra.mxu0 0.0
    %433 = vmatprep.subr.mxu0 0.0
    %434 = vmatpush1.msra.mxu0 0.0
    %435 = vmatprep.subr.mxu0 0.0
    %436 = vmatpush1.msra.mxu0 0.0
    %437 = vmatprep.subr.mxu0 0.0
    %438 = vmatpush1.msra.mxu0 0.0
    %439 = vmatprep.subr.mxu0 0.0
    %440 = vmatpush1.msra.mxu0 0.0
    %441 = vmatprep.subr.mxu0 0.0
    %442 = vmatpush1.msra.mxu0 0.0
    %443 = vmatprep.mubr.f32.mxu0 0.0
    %444 = vmatmul.mubr.f32.gmra.mrb[0].mxu0 %v370
    %v445 = vpop.f32.mrb[0].mxu0
    %v446 = vadd.f32 0.0, %v445
    %v447 = vpop.f32.mrb[0].mxu0
    %448 = vmatprep.mubr.f32.mxu0 0.0
    %449 = vmatmul.mubr.f32.gmra.mrb[0].mxu0 %v373
    %v450 = vpop.f32.mrb[0].mxu0
    %v451 = vadd.f32 0.0, %v450
    %v452 = vpop.f32.mrb[0].mxu0
    %453 = vdwg.mxu0
    %v454 = vadd.f32 %v184, %v446
    %v455 = vadd.f32 %v185, %v451
    %v456 = vld [vmem:[#allocation13] sm:$0x1]
    %v458 = vlaneseq
    %v459 = vshrl.u32 %v458, 7
    %v460 = vsub.s32 0, %v459
    %v461 = vrot.slane %v456, %v460
    %v463 = vadd.f32 %v454, %v461
    %v464 = vadd.f32 %v455, %v461
    %v465 = vmax.f32 %v463, 0.0
    %v466 = vmax.f32 %v464, 0.0
    %s467 = scalar_lea.vmem [#allocation5], 64
    %v468 = vld [vmem:[%s467] sm:$0xff]
    %v469 = vld [vmem:[%s467 + $0x8] sm:$0xff]
    %v470 = vld [vmem:[%s467 + $0x10] sm:$0xff]
    %v471 = vld [vmem:[%s467 + $0x18] sm:$0xff]
    %v472 = vld [vmem:[%s467 + $0x20] sm:$0xff]
    %v473 = vld [vmem:[%s467 + $0x28] sm:$0xff]
    %v474 = vld [vmem:[%s467 + $0x30] sm:$0xff]
    %v475 = vld [vmem:[%s467 + $0x38] sm:$0xff]
    %s476 = scalar_lea.vmem [#allocation7], 1
    %v477 = vld [vmem:[%s476] sm:$0x1]
    %v479 = vlaneseq
    %v480 = vshrl.u32 %v479, 7
    %v481 = vsub.s32 0, %v480
    %v482 = vrot.slane %v477, %v481
    %v485 = vsel %vm222, %v465, 0
    %v488 = vsel %vm222, %v466, 0
    %490 = vmatprep.subr.mxu0 0.0
    %491 = vmatpush1.msra.mxu0 %v468
    %492 = vmatprep.subr.mxu0 0.0
    %493 = vmatpush1.msra.mxu0 %v469
    %494 = vmatprep.subr.mxu0 0.0
    %495 = vmatpush1.msra.mxu0 %v470
    %496 = vmatprep.subr.mxu0 0.0
    %497 = vmatpush1.msra.mxu0 %v471
    %498 = vmatprep.subr.mxu0 0.0
    %499 = vmatpush1.msra.mxu0 %v472
    %500 = vmatprep.subr.mxu0 0.0
    %501 = vmatpush1.msra.mxu0 %v473
    %502 = vmatprep.subr.mxu0 0.0
    %503 = vmatpush1.msra.mxu0 %v474
    %504 = vmatprep.subr.mxu0 0.0
    %505 = vmatpush1.msra.mxu0 %v475
    %506 = vmatprep.subr.mxu0 0.0
    %507 = vmatpush1.msra.mxu0 0.0
    %508 = vmatprep.subr.mxu0 0.0
    %509 = vmatpush1.msra.mxu0 0.0
    %510 = vmatprep.subr.mxu0 0.0
    %511 = vmatpush1.msra.mxu0 0.0
    %512 = vmatprep.subr.mxu0 0.0
    %513 = vmatpush1.msra.mxu0 0.0
    %514 = vmatprep.subr.mxu0 0.0
    %515 = vmatpush1.msra.mxu0 0.0
    %516 = vmatprep.subr.mxu0 0.0
    %517 = vmatpush1.msra.mxu0 0.0
    %518 = vmatprep.subr.mxu0 0.0
    %519 = vmatpush1.msra.mxu0 0.0
    %520 = vmatprep.subr.mxu0 0.0
    %521 = vmatpush1.msra.mxu0 0.0
    %522 = vmatprep.subr.mxu0 0.0
    %523 = vmatpush1.msra.mxu0 0.0
    %524 = vmatprep.subr.mxu0 0.0
    %525 = vmatpush1.msra.mxu0 0.0
    %526 = vmatprep.subr.mxu0 0.0
    %527 = vmatpush1.msra.mxu0 0.0
    %528 = vmatprep.subr.mxu0 0.0
    %529 = vmatpush1.msra.mxu0 0.0
    %530 = vmatprep.subr.mxu0 0.0
    %531 = vmatpush1.msra.mxu0 0.0
    %532 = vmatprep.subr.mxu0 0.0
    %533 = vmatpush1.msra.mxu0 0.0
    %534 = vmatprep.subr.mxu0 0.0
    %535 = vmatpush1.msra.mxu0 0.0
    %536 = vmatprep.subr.mxu0 0.0
    %537 = vmatpush1.msra.mxu0 0.0
    %538 = vmatprep.subr.mxu0 0.0
    %539 = vmatpush1.msra.mxu0 0.0
    %540 = vmatprep.subr.mxu0 0.0
    %541 = vmatpush1.msra.mxu0 0.0
    %542 = vmatprep.subr.mxu0 0.0
    %543 = vmatpush1.msra.mxu0 0.0
    %544 = vmatprep.subr.mxu0 0.0
    %545 = vmatpush1.msra.mxu0 0.0
    %546 = vmatprep.subr.mxu0 0.0
    %547 = vmatpush1.msra.mxu0 0.0
    %548 = vmatprep.subr.mxu0 0.0
    %549 = vmatpush1.msra.mxu0 0.0
    %550 = vmatprep.subr.mxu0 0.0
    %551 = vmatpush1.msra.mxu0 0.0
    %552 = vmatprep.subr.mxu0 0.0
    %553 = vmatpush1.msra.mxu0 0.0
    %554 = vmatprep.mubr.f32.mxu0 0.0
    %555 = vmatmul.mubr.f32.gmra.mrb[0].mxu0 %v485
    %v556 = vpop.f32.mrb[0].mxu0
    %v557 = vadd.f32 %v482, %v556
    %v558 = vpop.f32.mrb[0].mxu0
    %559 = vmatprep.mubr.f32.mxu0 0.0
    %560 = vmatmul.mubr.f32.gmra.mrb[0].mxu0 %v488
    %v561 = vpop.f32.mrb[0].mxu0
    %v562 = vadd.f32 %v482, %v561
    %v563 = vpop.f32.mrb[0].mxu0
    %564 = vdwg.mxu0
    %v565 = vmax.f32 %v557, 0.0
    %v566 = vmax.f32 %v562, 0.0
    %s567 = scalar_lea.vmem [#allocation8], 1
    %v568 = vld [vmem:[%s567] sm:$0x1]
    %v570 = vlaneseq
    %v571 = vshrl.u32 %v570, 7
    %v572 = vsub.s32 0, %v571
    %v573 = vrot.slane %v568, %v572
    %v575 = vmul.f32 %v565, %v573
    %v576 = vmul.f32 %v566, %v573
    %s577 = scalar_lea.vmem [#allocation10], 1
    %v578 = vld [vmem:[%s577] sm:$0x1]
    %v580 = vlaneseq
    %v581 = vshrl.u32 %v580, 7
    %v582 = vsub.s32 0, %v581
    %v583 = vrot.slane %v578, %v582
    %v585 = vadd.f32 %v575, %v583
    %v586 = vadd.f32 %v576, %v583
    %v587 = vrot.slane %v585, 6
    %v588 = vrot.slane %v586, 6
    %v589 = vsel %vm326, %v587, %v588
    %v590 = vsel %vm326, %v588, %v587
    %v591 = vsel %vm195, %v590, 0.0
    %v592 = vsel %vm196, %v589, 0.0
    %v593 = vrot.slane %v585, 2
    %v594 = vrot.slane %v586, 2
    %v595 = vsel %vm333, %v593, %v594
    %v596 = vsel %vm333, %v594, %v593
    %v597 = vsel %vm203, %v595, 0.0
    %v598 = vsel %vm204, %v596, 0.0
    %601 = vrot.lane.b32.xlu0 %v585, 20
    %v602 = vpop.permute.xlu0 %601
    %603 = vrot.lane.b32.xlu0 %v586, 20
    %v604 = vpop.permute.xlu0 %603
    %609 = vrot.lane.b32.xlu0 %v597, 40
    %v610 = vpop.permute.xlu0 %609
    %611 = vrot.lane.b32.xlu0 %v598, 40
    %v612 = vpop.permute.xlu0 %611
    %v615 = vsel %vm354, %v591, %v602
    %v616 = vsel %vm354, %v592, %v604
    %v617 = vsel %vm357, %v615, %v610
    %v618 = vsel %vm357, %v616, %v612
    %s619 = scalar_lea.vmem [#allocation11], 64
    %v620 = vld [vmem:[%s619] sm:$0xff]
    %v621 = vld [vmem:[%s619 + $0x8] sm:$0xff]
    %v622 = vld [vmem:[%s619 + $0x10] sm:$0xff]
    %v623 = vld [vmem:[%s619 + $0x18] sm:$0xff]
    %v624 = vld [vmem:[%s619 + $0x20] sm:$0xff]
    %v625 = vld [vmem:[%s619 + $0x28] sm:$0xff]
    %v626 = vld [vmem:[%s619 + $0x30] sm:$0xff]
    %v627 = vld [vmem:[%s619 + $0x38] sm:$0xf]
    %v629 = vsel %vm368, %v617, 0
    %v632 = vsel %vm368, %v618, 0
    %v635 = vsel %vm375, %v627, 0
    %637 = vmatprep.subr.mxu0 0.0
    %638 = vmatpush1.msra.mxu0 %v620
    %639 = vmatprep.subr.mxu0 0.0
    %640 = vmatpush1.msra.mxu0 %v621
    %641 = vmatprep.subr.mxu0 0.0
    %642 = vmatpush1.msra.mxu0 %v622
    %643 = vmatprep.subr.mxu0 0.0
    %644 = vmatpush1.msra.mxu0 %v623
    %645 = vmatprep.subr.mxu0 0.0
    %646 = vmatpush1.msra.mxu0 %v624
    %647 = vmatprep.subr.mxu0 0.0
    %648 = vmatpush1.msra.mxu0 %v625
    %649 = vmatprep.subr.mxu0 0.0
    %650 = vmatpush1.msra.mxu0 %v626
    %651 = vmatprep.subr.mxu0 0.0
    %652 = vmatpush1.msra.mxu0 %v635
    %653 = vmatprep.subr.mxu0 0.0
    %654 = vmatpush1.msra.mxu0 0.0
    %655 = vmatprep.subr.mxu0 0.0
    %656 = vmatpush1.msra.mxu0 0.0
    %657 = vmatprep.subr.mxu0 0.0
    %658 = vmatpush1.msra.mxu0 0.0
    %659 = vmatprep.subr.mxu0 0.0
    %660 = vmatpush1.msra.mxu0 0.0
    %661 = vmatprep.subr.mxu0 0.0
    %662 = vmatpush1.msra.mxu0 0.0
    %663 = vmatprep.subr.mxu0 0.0
    %664 = vmatpush1.msra.mxu0 0.0
    %665 = vmatprep.subr.mxu0 0.0
    %666 = vmatpush1.msra.mxu0 0.0
    %667 = vmatprep.subr.mxu0 0.0
    %668 = vmatpush1.msra.mxu0 0.0
    %669 = vmatprep.subr.mxu0 0.0
    %670 = vmatpush1.msra.mxu0 0.0
    %671 = vmatprep.subr.mxu0 0.0
    %672 = vmatpush1.msra.mxu0 0.0
    %673 = vmatprep.subr.mxu0 0.0
    %674 = vmatpush1.msra.mxu0 0.0
    %675 = vmatprep.subr.mxu0 0.0
    %676 = vmatpush1.msra.mxu0 0.0
    %677 = vmatprep.subr.mxu0 0.0
    %678 = vmatpush1.msra.mxu0 0.0
    %679 = vmatprep.subr.mxu0 0.0
    %680 = vmatpush1.msra.mxu0 0.0
    %681 = vmatprep.subr.mxu0 0.0
    %682 = vmatpush1.msra.mxu0 0.0
    %683 = vmatprep.subr.mxu0 0.0
    %684 = vmatpush1.msra.mxu0 0.0
    %685 = vmatprep.subr.mxu0 0.0
    %686 = vmatpush1.msra.mxu0 0.0
    %687 = vmatprep.subr.mxu0 0.0
    %688 = vmatpush1.msra.mxu0 0.0
    %689 = vmatprep.subr.mxu0 0.0
    %690 = vmatpush1.msra.mxu0 0.0
    %691 = vmatprep.subr.mxu0 0.0
    %692 = vmatpush1.msra.mxu0 0.0
    %693 = vmatprep.subr.mxu0 0.0
    %694 = vmatpush1.msra.mxu0 0.0
    %695 = vmatprep.subr.mxu0 0.0
    %696 = vmatpush1.msra.mxu0 0.0
    %697 = vmatprep.subr.mxu0 0.0
    %698 = vmatpush1.msra.mxu0 0.0
    %699 = vmatprep.subr.mxu0 0.0
    %700 = vmatpush1.msra.mxu0 0.0
    %701 = vmatprep.mubr.f32.mxu0 0.0
    %702 = vmatmul.mubr.f32.gmra.mrb[0].mxu0 %v629
    %v703 = vpop.f32.mrb[0].mxu0
    %v704 = vadd.f32 0.0, %v703
    %v705 = vpop.f32.mrb[0].mxu0
    %706 = vmatprep.mubr.f32.mxu0 0.0
    %707 = vmatmul.mubr.f32.gmra.mrb[0].mxu0 %v632
    %v708 = vpop.f32.mrb[0].mxu0
    %v709 = vadd.f32 0.0, %v708
    %v710 = vpop.f32.mrb[0].mxu0
    %711 = vdwg.mxu0
    %v712 = vadd.f32 %v463, %v704
    %v713 = vadd.f32 %v464, %v709
    %s714 = scalar_lea.vmem [#allocation13], 1
    %v715 = vld [vmem:[%s714] sm:$0x1]
    %v717 = vlaneseq
    %v718 = vshrl.u32 %v717, 7
    %v719 = vsub.s32 0, %v718
    %v720 = vrot.slane %v715, %v719
    %v722 = vadd.f32 %v712, %v720
    %v723 = vadd.f32 %v713, %v720
    %v724 = vmax.f32 %v722, 0.0
    %v725 = vmax.f32 %v723, 0.0
    %v726 = vld [vmem:[#allocation14] sm:$0xff]
    %v727 = vld [vmem:[#allocation14 + $0x8] sm:$0xff]
    %v728 = vld [vmem:[#allocation14 + $0x10] sm:$0xff]
    %v729 = vld [vmem:[#allocation14 + $0x18] sm:$0xff]
    %v730 = vld [vmem:[#allocation14 + $0x20] sm:$0xff]
    %v731 = vld [vmem:[#allocation14 + $0x28] sm:$0xff]
    %v732 = vld [vmem:[#allocation14 + $0x30] sm:$0xff]
    %v733 = vld [vmem:[#allocation14 + $0x38] sm:$0xff]
    %v734 = vld [vmem:[#allocation14 + $0x40] sm:$0xff]
    %v735 = vld [vmem:[#allocation14 + $0x48] sm:$0xff]
    %v736 = vld [vmem:[#allocation14 + $0x50] sm:$0xff]
    %v737 = vld [vmem:[#allocation14 + $0x58] sm:$0xff]
    %v738 = vld [vmem:[#allocation14 + $0x60] sm:$0xff]
    %v739 = vld [vmem:[#allocation14 + $0x68] sm:$0xff]
    %v740 = vld [vmem:[#allocation14 + $0x70] sm:$0xff]
    %v741 = vld [vmem:[#allocation14 + $0x78] sm:$0xff]
    %v742 = vld [vmem:[#allocation14 + $0x80] sm:$0xff]
    %v743 = vld [vmem:[#allocation14 + $0x88] sm:$0xff]
    %v744 = vld [vmem:[#allocation14 + $0x90] sm:$0xff]
    %v745 = vld [vmem:[#allocation14 + $0x98] sm:$0xff]
    %v746 = vld [vmem:[#allocation14 + $0xa0] sm:$0xff]
    %v747 = vld [vmem:[#allocation14 + $0xa8] sm:$0xff]
    %v748 = vld [vmem:[#allocation14 + $0xb0] sm:$0xff]
    %v749 = vld [vmem:[#allocation14 + $0xb8] sm:$0xff]
    %v750 = vld [vmem:[#allocation14 + $0xc0] sm:$0xff]
    %v751 = vld [vmem:[#allocation14 + $0xc8] sm:$0xff]
    %v752 = vld [vmem:[#allocation14 + $0xd0] sm:$0xff]
    %v753 = vld [vmem:[#allocation14 + $0xd8] sm:$0xff]
    %v754 = vld [vmem:[#allocation14 + $0xe0] sm:$0xff]
    %v755 = vld [vmem:[#allocation14 + $0xe8] sm:$0xff]
    %v756 = vld [vmem:[#allocation14 + $0xf0] sm:$0xff]
    %v757 = vld [vmem:[#allocation14 + $0xf8] sm:$0xff]
    %v758 = vld [vmem:[#allocation14 + $0x100] sm:$0xff]
    %v759 = vld [vmem:[#allocation14 + $0x108] sm:$0xff]
    %v760 = vld [vmem:[#allocation14 + $0x110] sm:$0xff]
    %v761 = vld [vmem:[#allocation14 + $0x118] sm:$0xff]
    %v762 = vld [vmem:[#allocation14 + $0x120] sm:$0xff]
    %v763 = vld [vmem:[#allocation14 + $0x128] sm:$0xff]
    %v764 = vld [vmem:[#allocation14 + $0x130] sm:$0xff]
    %v765 = vld [vmem:[#allocation14 + $0x138] sm:$0xff]
    %v766 = vld [vmem:[#allocation14 + $0x140] sm:$0xff]
    %v767 = vld [vmem:[#allocation14 + $0x148] sm:$0xff]
    %v768 = vld [vmem:[#allocation14 + $0x150] sm:$0xff]
    %v769 = vld [vmem:[#allocation14 + $0x158] sm:$0xff]
    %v770 = vld [vmem:[#allocation14 + $0x160] sm:$0xff]
    %v771 = vld [vmem:[#allocation14 + $0x168] sm:$0xff]
    %v772 = vld [vmem:[#allocation14 + $0x170] sm:$0xff]
    %v773 = vld [vmem:[#allocation14 + $0x178] sm:$0xff]
    %v774 = vld [vmem:[#allocation16] sm:$0x3f]
    %v776 = vlaneseq
    %v777 = vshrl.u32 %v776, 7
    %v778 = vsub.s32 0, %v777
    %v779 = vrot.slane %v774, %v778
    %v780 = vlaneseq
    %v781 = vshrl.u32 %v780, 7
    %v782 = vsub.s32 1, %v781
    %v783 = vrot.slane %v774, %v782
    %v784 = vlaneseq
    %v785 = vshrl.u32 %v784, 7
    %v786 = vsub.s32 2, %v785
    %v787 = vrot.slane %v774, %v786
    %v788 = vlaneseq
    %v789 = vshrl.u32 %v788, 7
    %v790 = vsub.s32 3, %v789
    %v791 = vrot.slane %v774, %v790
    %v792 = vlaneseq
    %v793 = vshrl.u32 %v792, 7
    %v794 = vsub.s32 4, %v793
    %v795 = vrot.slane %v774, %v794
    %v796 = vlaneseq
    %v797 = vshrl.u32 %v796, 7
    %v798 = vsub.s32 5, %v797
    %v799 = vrot.slane %v774, %v798
    %v807 = vsel %vm222, %v724, 0
    %v810 = vsel %vm222, %v725, 0
    %812 = vmatprep.subr.mxu0 %v727
    %813 = vmatpush1.msra.mxu0 %v726
    %814 = vmatprep.subr.mxu0 %v733
    %815 = vmatpush1.msra.mxu0 %v732
    %816 = vmatprep.subr.mxu0 %v739
    %817 = vmatpush1.msra.mxu0 %v738
    %818 = vmatprep.subr.mxu0 %v745
    %819 = vmatpush1.msra.mxu0 %v744
    %820 = vmatprep.subr.mxu0 %v751
    %821 = vmatpush1.msra.mxu0 %v750
    %822 = vmatprep.subr.mxu0 %v757
    %823 = vmatpush1.msra.mxu0 %v756
    %824 = vmatprep.subr.mxu0 %v763
    %825 = vmatpush1.msra.mxu0 %v762
    %826 = vmatprep.subr.mxu0 %v769
    %827 = vmatpush1.msra.mxu0 %v768
    %828 = vmatprep.subr.mxu0 0.0
    %829 = vmatpush1.msra.mxu0 0.0
    %830 = vmatprep.subr.mxu0 0.0
    %831 = vmatpush1.msra.mxu0 0.0
    %832 = vmatprep.subr.mxu0 0.0
    %833 = vmatpush1.msra.mxu0 0.0
    %834 = vmatprep.subr.mxu0 0.0
    %835 = vmatpush1.msra.mxu0 0.0
    %836 = vmatprep.subr.mxu0 0.0
    %837 = vmatpush1.msra.mxu0 0.0
    %838 = vmatprep.subr.mxu0 0.0
    %839 = vmatpush1.msra.mxu0 0.0
    %840 = vmatprep.subr.mxu0 0.0
    %841 = vmatpush1.msra.mxu0 0.0
    %842 = vmatprep.subr.mxu0 0.0
    %843 = vmatpush1.msra.mxu0 0.0
    %844 = vmatprep.subr.mxu0 0.0
    %845 = vmatpush1.msra.mxu0 0.0
    %846 = vmatprep.subr.mxu0 0.0
    %847 = vmatpush1.msra.mxu0 0.0
    %848 = vmatprep.subr.mxu0 0.0
    %849 = vmatpush1.msra.mxu0 0.0
    %850 = vmatprep.subr.mxu0 0.0
    %851 = vmatpush1.msra.mxu0 0.0
    %852 = vmatprep.subr.mxu0 0.0
    %853 = vmatpush1.msra.mxu0 0.0
    %854 = vmatprep.subr.mxu0 0.0
    %855 = vmatpush1.msra.mxu0 0.0
    %856 = vmatprep.subr.mxu0 0.0
    %857 = vmatpush1.msra.mxu0 0.0
    %858 = vmatprep.subr.mxu0 0.0
    %859 = vmatpush1.msra.mxu0 0.0
    %860 = vmatprep.subr.mxu0 0.0
    %861 = vmatpush1.msra.mxu0 0.0
    %862 = vmatprep.subr.mxu0 0.0
    %863 = vmatpush1.msra.mxu0 0.0
    %864 = vmatprep.subr.mxu0 0.0
    %865 = vmatpush1.msra.mxu0 0.0
    %866 = vmatprep.subr.mxu0 0.0
    %867 = vmatpush1.msra.mxu0 0.0
    %868 = vmatprep.subr.mxu0 0.0
    %869 = vmatpush1.msra.mxu0 0.0
    %870 = vmatprep.subr.mxu0 0.0
    %871 = vmatpush1.msra.mxu0 0.0
    %872 = vmatprep.subr.mxu0 0.0
    %873 = vmatpush1.msra.mxu0 0.0
    %874 = vmatprep.subr.mxu0 0.0
    %875 = vmatpush1.msra.mxu0 0.0
    %876 = vmatprep.mubr.f32.mxu0 0.0
    %877 = vmatmul.mubr.f32.gmra.mrb[0].mxu0 %v807
    %v878 = vpop.f32.mrb[0].mxu0
    %v879 = vadd.f32 %v779, %v878
    %v880 = vpop.f32.mrb[0].mxu0
    %v881 = vadd.f32 %v783, %v880
    %882 = vmatprep.mubr.f32.mxu0 0.0
    %883 = vmatmul.mubr.f32.gmra.mrb[0].mxu0 %v810
    %v884 = vpop.f32.mrb[0].mxu0
    %v885 = vadd.f32 %v779, %v884
    %v886 = vpop.f32.mrb[0].mxu0
    %v887 = vadd.f32 %v783, %v886
    %888 = vdwg.mxu0
    %889 = vmatprep.subr.mxu0 %v729
    %890 = vmatpush1.msra.mxu0 %v728
    %891 = vmatprep.subr.mxu0 %v735
    %892 = vmatpush1.msra.mxu0 %v734
    %893 = vmatprep.subr.mxu0 %v741
    %894 = vmatpush1.msra.mxu0 %v740
    %895 = vmatprep.subr.mxu0 %v747
    %896 = vmatpush1.msra.mxu0 %v746
    %897 = vmatprep.subr.mxu0 %v753
    %898 = vmatpush1.msra.mxu0 %v752
    %899 = vmatprep.subr.mxu0 %v759
    %900 = vmatpush1.msra.mxu0 %v758
    %901 = vmatprep.subr.mxu0 %v765
    %902 = vmatpush1.msra.mxu0 %v764
    %903 = vmatprep.subr.mxu0 %v771
    %904 = vmatpush1.msra.mxu0 %v770
    %905 = vmatprep.subr.mxu0 0.0
    %906 = vmatpush1.msra.mxu0 0.0
    %907 = vmatprep.subr.mxu0 0.0
    %908 = vmatpush1.msra.mxu0 0.0
    %909 = vmatprep.subr.mxu0 0.0
    %910 = vmatpush1.msra.mxu0 0.0
    %911 = vmatprep.subr.mxu0 0.0
    %912 = vmatpush1.msra.mxu0 0.0
    %913 = vmatprep.subr.mxu0 0.0
    %914 = vmatpush1.msra.mxu0 0.0
    %915 = vmatprep.subr.mxu0 0.0
    %916 = vmatpush1.msra.mxu0 0.0
    %917 = vmatprep.subr.mxu0 0.0
    %918 = vmatpush1.msra.mxu0 0.0
    %919 = vmatprep.subr.mxu0 0.0
    %920 = vmatpush1.msra.mxu0 0.0
    %921 = vmatprep.subr.mxu0 0.0
    %922 = vmatpush1.msra.mxu0 0.0
    %923 = vmatprep.subr.mxu0 0.0
    %924 = vmatpush1.msra.mxu0 0.0
    %925 = vmatprep.subr.mxu0 0.0
    %926 = vmatpush1.msra.mxu0 0.0
    %927 = vmatprep.subr.mxu0 0.0
    %928 = vmatpush1.msra.mxu0 0.0
    %929 = vmatprep.subr.mxu0 0.0
    %930 = vmatpush1.msra.mxu0 0.0
    %931 = vmatprep.subr.mxu0 0.0
    %932 = vmatpush1.msra.mxu0 0.0
    %933 = vmatprep.subr.mxu0 0.0
    %934 = vmatpush1.msra.mxu0 0.0
    %935 = vmatprep.subr.mxu0 0.0
    %936 = vmatpush1.msra.mxu0 0.0
    %937 = vmatprep.subr.mxu0 0.0
    %938 = vmatpush1.msra.mxu0 0.0
    %939 = vmatprep.subr.mxu0 0.0
    %940 = vmatpush1.msra.mxu0 0.0
    %941 = vmatprep.subr.mxu0 0.0
    %942 = vmatpush1.msra.mxu0 0.0
    %943 = vmatprep.subr.mxu0 0.0
    %944 = vmatpush1.msra.mxu0 0.0
    %945 = vmatprep.subr.mxu0 0.0
    %946 = vmatpush1.msra.mxu0 0.0
    %947 = vmatprep.subr.mxu0 0.0
    %948 = vmatpush1.msra.mxu0 0.0
    %949 = vmatprep.subr.mxu0 0.0
    %950 = vmatpush1.msra.mxu0 0.0
    %951 = vmatprep.subr.mxu0 0.0
    %952 = vmatpush1.msra.mxu0 0.0
    %953 = vmatprep.mubr.f32.mxu0 0.0
    %954 = vmatmul.mubr.f32.gmra.mrb[0].mxu0 %v807
    %v955 = vpop.f32.mrb[0].mxu0
    %v956 = vadd.f32 %v787, %v955
    %v957 = vpop.f32.mrb[0].mxu0
    %v958 = vadd.f32 %v791, %v957
    %959 = vmatprep.mubr.f32.mxu0 0.0
    %960 = vmatmul.mubr.f32.gmra.mrb[0].mxu0 %v810
    %v961 = vpop.f32.mrb[0].mxu0
    %v962 = vadd.f32 %v787, %v961
    %v963 = vpop.f32.mrb[0].mxu0
    %v964 = vadd.f32 %v791, %v963
    %965 = vdwg.mxu0
    %966 = vmatprep.subr.mxu0 %v731
    %967 = vmatpush1.msra.mxu0 %v730
    %968 = vmatprep.subr.mxu0 %v737
    %969 = vmatpush1.msra.mxu0 %v736
    %970 = vmatprep.subr.mxu0 %v743
    %971 = vmatpush1.msra.mxu0 %v742
    %972 = vmatprep.subr.mxu0 %v749
    %973 = vmatpush1.msra.mxu0 %v748
    %974 = vmatprep.subr.mxu0 %v755
    %975 = vmatpush1.msra.mxu0 %v754
    %976 = vmatprep.subr.mxu0 %v761
    %977 = vmatpush1.msra.mxu0 %v760
    %978 = vmatprep.subr.mxu0 %v767
    %979 = vmatpush1.msra.mxu0 %v766
    %980 = vmatprep.subr.mxu0 %v773
    %981 = vmatpush1.msra.mxu0 %v772
    %982 = vmatprep.subr.mxu0 0.0
    %983 = vmatpush1.msra.mxu0 0.0
    %984 = vmatprep.subr.mxu0 0.0
    %985 = vmatpush1.msra.mxu0 0.0
    %986 = vmatprep.subr.mxu0 0.0
    %987 = vmatpush1.msra.mxu0 0.0
    %988 = vmatprep.subr.mxu0 0.0
    %989 = vmatpush1.msra.mxu0 0.0
    %990 = vmatprep.subr.mxu0 0.0
    %991 = vmatpush1.msra.mxu0 0.0
    %992 = vmatprep.subr.mxu0 0.0
    %993 = vmatpush1.msra.mxu0 0.0
    %994 = vmatprep.subr.mxu0 0.0
    %995 = vmatpush1.msra.mxu0 0.0
    %996 = vmatprep.subr.mxu0 0.0
    %997 = vmatpush1.msra.mxu0 0.0
    %998 = vmatprep.subr.mxu0 0.0
    %999 = vmatpush1.msra.mxu0 0.0
    %1000 = vmatprep.subr.mxu0 0.0
    %1001 = vmatpush1.msra.mxu0 0.0
    %1002 = vmatprep.subr.mxu0 0.0
    %1003 = vmatpush1.msra.mxu0 0.0
    %1004 = vmatprep.subr.mxu0 0.0
    %1005 = vmatpush1.msra.mxu0 0.0
    %1006 = vmatprep.subr.mxu0 0.0
    %1007 = vmatpush1.msra.mxu0 0.0
    %1008 = vmatprep.subr.mxu0 0.0
    %1009 = vmatpush1.msra.mxu0 0.0
    %1010 = vmatprep.subr.mxu0 0.0
    %1011 = vmatpush1.msra.mxu0 0.0
    %1012 = vmatprep.subr.mxu0 0.0
    %1013 = vmatpush1.msra.mxu0 0.0
    %1014 = vmatprep.subr.mxu0 0.0
    %1015 = vmatpush1.msra.mxu0 0.0
    %1016 = vmatprep.subr.mxu0 0.0
    %1017 = vmatpush1.msra.mxu0 0.0
    %1018 = vmatprep.subr.mxu0 0.0
    %1019 = vmatpush1.msra.mxu0 0.0
    %1020 = vmatprep.subr.mxu0 0.0
    %1021 = vmatpush1.msra.mxu0 0.0
    %1022 = vmatprep.subr.mxu0 0.0
    %1023 = vmatpush1.msra.mxu0 0.0
    %1024 = vmatprep.subr.mxu0 0.0
    %1025 = vmatpush1.msra.mxu0 0.0
    %1026 = vmatprep.subr.mxu0 0.0
    %1027 = vmatpush1.msra.mxu0 0.0
    %1028 = vmatprep.subr.mxu0 0.0
    %1029 = vmatpush1.msra.mxu0 0.0
    %1030 = vmatprep.mubr.f32.mxu0 0.0
    %1031 = vmatmul.mubr.f32.gmra.mrb[0].mxu0 %v807
    %v1032 = vpop.f32.mrb[0].mxu0
    %v1033 = vadd.f32 %v795, %v1032
    %v1034 = vpop.f32.mrb[0].mxu0
    %v1035 = vadd.f32 %v799, %v1034
    %1036 = vmatprep.mubr.f32.mxu0 0.0
    %1037 = vmatmul.mubr.f32.gmra.mrb[0].mxu0 %v810
    %v1038 = vpop.f32.mrb[0].mxu0
    %v1039 = vadd.f32 %v795, %v1038
    %v1040 = vpop.f32.mrb[0].mxu0
    %v1041 = vadd.f32 %v799, %v1040
    %1042 = vdwg.mxu0
    %1043 = vst [vmem:[#allocation20] sm:$0xff] %v879
    %1044 = vst [vmem:[#allocation20 + $0x8] sm:$0xff] %v881
    %1045 = vst [vmem:[#allocation20 + $0x10] sm:$0xff] %v956
    %1046 = vst [vmem:[#allocation20 + $0x18] sm:$0xff] %v958
    %1047 = vst [vmem:[#allocation20 + $0x20] sm:$0xff] %v1033
    %1048 = vst [vmem:[#allocation20 + $0x28] sm:$0xff] %v1035
    %1049 = vst [vmem:[#allocation20 + $0x30] sm:$0xff] %v885
    %1050 = vst [vmem:[#allocation20 + $0x38] sm:$0xff] %v887
    %1051 = vst [vmem:[#allocation20 + $0x40] sm:$0xff] %v962
    %1052 = vst [vmem:[#allocation20 + $0x48] sm:$0xff] %v964
    %1053 = vst [vmem:[#allocation20 + $0x50] sm:$0xff] %v1039
    %1054 = vst [vmem:[#allocation20 + $0x58] sm:$0xff] %v1041
    %v1055 = vld [vmem:[#allocation17] sm:$0xff]
    %v1056 = vld [vmem:[#allocation17 + $0x8] sm:$0xff]
    %v1057 = vld [vmem:[#allocation17 + $0x10] sm:$0xff]
    %v1058 = vld [vmem:[#allocation17 + $0x18] sm:$0xff]
    %v1059 = vld [vmem:[#allocation17 + $0x20] sm:$0xff]
    %v1060 = vld [vmem:[#allocation17 + $0x28] sm:$0xff]
    %v1061 = vld [vmem:[#allocation17 + $0x30] sm:$0xff]
    %v1062 = vld [vmem:[#allocation17 + $0x38] sm:$0xff]
    %v1063 = vld [vmem:[#allocation17 + $0x40] sm:$0xff]
    %v1064 = vld [vmem:[#allocation17 + $0x48] sm:$0xff]
    %v1065 = vld [vmem:[#allocation17 + $0x50] sm:$0xff]
    %v1066 = vld [vmem:[#allocation17 + $0x58] sm:$0xff]
    %v1067 = vld [vmem:[#allocation17 + $0x60] sm:$0xff]
    %v1068 = vld [vmem:[#allocation17 + $0x68] sm:$0xff]
    %v1069 = vld [vmem:[#allocation17 + $0x70] sm:$0xff]
    %v1070 = vld [vmem:[#allocation17 + $0x78] sm:$0xff]
    %v1071 = vld [vmem:[#allocation17 + $0x80] sm:$0xff]
    %v1072 = vld [vmem:[#allocation17 + $0x88] sm:$0xff]
    %v1073 = vld [vmem:[#allocation17 + $0x90] sm:$0xff]
    %v1074 = vld [vmem:[#allocation17 + $0x98] sm:$0xff]
    %v1075 = vld [vmem:[#allocation17 + $0xa0] sm:$0xff]
    %v1076 = vld [vmem:[#allocation17 + $0xa8] sm:$0xff]
    %v1077 = vld [vmem:[#allocation17 + $0xb0] sm:$0xff]
    %v1078 = vld [vmem:[#allocation17 + $0xb8] sm:$0xff]
    %v1079 = vld [vmem:[#allocation17 + $0xc0] sm:$0xff]
    %v1080 = vld [vmem:[#allocation17 + $0xc8] sm:$0xff]
    %v1081 = vld [vmem:[#allocation17 + $0xd0] sm:$0xff]
    %v1082 = vld [vmem:[#allocation17 + $0xd8] sm:$0xff]
    %v1083 = vld [vmem:[#allocation17 + $0xe0] sm:$0xff]
    %v1084 = vld [vmem:[#allocation17 + $0xe8] sm:$0xff]
    %v1085 = vld [vmem:[#allocation17 + $0xf0] sm:$0xff]
    %v1086 = vld [vmem:[#allocation17 + $0xf8] sm:$0xff]
    %v1087 = vld [vmem:[#allocation17 + $0x100] sm:$0xff]
    %v1088 = vld [vmem:[#allocation17 + $0x108] sm:$0xff]
    %v1089 = vld [vmem:[#allocation17 + $0x110] sm:$0xff]
    %v1090 = vld [vmem:[#allocation17 + $0x118] sm:$0xff]
    %v1091 = vld [vmem:[#allocation17 + $0x120] sm:$0xff]
    %v1092 = vld [vmem:[#allocation17 + $0x128] sm:$0xff]
    %v1093 = vld [vmem:[#allocation17 + $0x130] sm:$0xff]
    %v1094 = vld [vmem:[#allocation17 + $0x138] sm:$0xff]
    %v1095 = vld [vmem:[#allocation17 + $0x140] sm:$0xff]
    %v1096 = vld [vmem:[#allocation17 + $0x148] sm:$0xff]
    %v1097 = vld [vmem:[#allocation17 + $0x150] sm:$0xff]
    %v1098 = vld [vmem:[#allocation17 + $0x158] sm:$0xff]
    %v1099 = vld [vmem:[#allocation17 + $0x160] sm:$0xff]
    %v1100 = vld [vmem:[#allocation17 + $0x168] sm:$0xff]
    %v1101 = vld [vmem:[#allocation17 + $0x170] sm:$0xff]
    %v1102 = vld [vmem:[#allocation17 + $0x178] sm:$0xff]
    %v1103 = vld [vmem:[#allocation19] sm:$0x3f]
    %v1105 = vlaneseq
    %v1106 = vshrl.u32 %v1105, 7
    %v1107 = vsub.s32 0, %v1106
    %v1108 = vrot.slane %v1103, %v1107
    %v1109 = vlaneseq
    %v1110 = vshrl.u32 %v1109, 7
    %v1111 = vsub.s32 1, %v1110
    %v1112 = vrot.slane %v1103, %v1111
    %v1113 = vlaneseq
    %v1114 = vshrl.u32 %v1113, 7
    %v1115 = vsub.s32 2, %v1114
    %v1116 = vrot.slane %v1103, %v1115
    %v1117 = vlaneseq
    %v1118 = vshrl.u32 %v1117, 7
    %v1119 = vsub.s32 3, %v1118
    %v1120 = vrot.slane %v1103, %v1119
    %v1121 = vlaneseq
    %v1122 = vshrl.u32 %v1121, 7
    %v1123 = vsub.s32 4, %v1122
    %v1124 = vrot.slane %v1103, %v1123
    %v1125 = vlaneseq
    %v1126 = vshrl.u32 %v1125, 7
    %v1127 = vsub.s32 5, %v1126
    %v1128 = vrot.slane %v1103, %v1127
    %1135 = vmatprep.subr.mxu0 %v1056
    %1136 = vmatpush1.msra.mxu0 %v1055
    %1137 = vmatprep.subr.mxu0 %v1062
    %1138 = vmatpush1.msra.mxu0 %v1061
    %1139 = vmatprep.subr.mxu0 %v1068
    %1140 = vmatpush1.msra.mxu0 %v1067
    %1141 = vmatprep.subr.mxu0 %v1074
    %1142 = vmatpush1.msra.mxu0 %v1073
    %1143 = vmatprep.subr.mxu0 %v1080
    %1144 = vmatpush1.msra.mxu0 %v1079
    %1145 = vmatprep.subr.mxu0 %v1086
    %1146 = vmatpush1.msra.mxu0 %v1085
    %1147 = vmatprep.subr.mxu0 %v1092
    %1148 = vmatpush1.msra.mxu0 %v1091
    %1149 = vmatprep.subr.mxu0 %v1098
    %1150 = vmatpush1.msra.mxu0 %v1097
    %1151 = vmatprep.subr.mxu0 0.0
    %1152 = vmatpush1.msra.mxu0 0.0
    %1153 = vmatprep.subr.mxu0 0.0
    %1154 = vmatpush1.msra.mxu0 0.0
    %1155 = vmatprep.subr.mxu0 0.0
    %1156 = vmatpush1.msra.mxu0 0.0
    %1157 = vmatprep.subr.mxu0 0.0
    %1158 = vmatpush1.msra.mxu0 0.0
    %1159 = vmatprep.subr.mxu0 0.0
    %1160 = vmatpush1.msra.mxu0 0.0
    %1161 = vmatprep.subr.mxu0 0.0
    %1162 = vmatpush1.msra.mxu0 0.0
    %1163 = vmatprep.subr.mxu0 0.0
    %1164 = vmatpush1.msra.mxu0 0.0
    %1165 = vmatprep.subr.mxu0 0.0
    %1166 = vmatpush1.msra.mxu0 0.0
    %1167 = vmatprep.subr.mxu0 0.0
    %1168 = vmatpush1.msra.mxu0 0.0
    %1169 = vmatprep.subr.mxu0 0.0
    %1170 = vmatpush1.msra.mxu0 0.0
    %1171 = vmatprep.subr.mxu0 0.0
    %1172 = vmatpush1.msra.mxu0 0.0
    %1173 = vmatprep.subr.mxu0 0.0
    %1174 = vmatpush1.msra.mxu0 0.0
    %1175 = vmatprep.subr.mxu0 0.0
    %1176 = vmatpush1.msra.mxu0 0.0
    %1177 = vmatprep.subr.mxu0 0.0
    %1178 = vmatpush1.msra.mxu0 0.0
    %1179 = vmatprep.subr.mxu0 0.0
    %1180 = vmatpush1.msra.mxu0 0.0
    %1181 = vmatprep.subr.mxu0 0.0
    %1182 = vmatpush1.msra.mxu0 0.0
    %1183 = vmatprep.subr.mxu0 0.0
    %1184 = vmatpush1.msra.mxu0 0.0
    %1185 = vmatprep.subr.mxu0 0.0
    %1186 = vmatpush1.msra.mxu0 0.0
    %1187 = vmatprep.subr.mxu0 0.0
    %1188 = vmatpush1.msra.mxu0 0.0
    %1189 = vmatprep.subr.mxu0 0.0
    %1190 = vmatpush1.msra.mxu0 0.0
    %1191 = vmatprep.subr.mxu0 0.0
    %1192 = vmatpush1.msra.mxu0 0.0
    %1193 = vmatprep.subr.mxu0 0.0
    %1194 = vmatpush1.msra.mxu0 0.0
    %1195 = vmatprep.subr.mxu0 0.0
    %1196 = vmatpush1.msra.mxu0 0.0
    %1197 = vmatprep.subr.mxu0 0.0
    %1198 = vmatpush1.msra.mxu0 0.0
    %1199 = vmatprep.mubr.f32.mxu0 0.0
    %1200 = vmatmul.mubr.f32.gmra.mrb[0].mxu0 %v807
    %v1201 = vpop.f32.mrb[0].mxu0
    %v1202 = vadd.f32 %v1108, %v1201
    %v1203 = vpop.f32.mrb[0].mxu0
    %v1204 = vadd.f32 %v1112, %v1203
    %1205 = vmatprep.mubr.f32.mxu0 0.0
    %1206 = vmatmul.mubr.f32.gmra.mrb[0].mxu0 %v810
    %v1207 = vpop.f32.mrb[0].mxu0
    %v1208 = vadd.f32 %v1108, %v1207
    %v1209 = vpop.f32.mrb[0].mxu0
    %v1210 = vadd.f32 %v1112, %v1209
    %1211 = vdwg.mxu0
    %1212 = vmatprep.subr.mxu0 %v1058
    %1213 = vmatpush1.msra.mxu0 %v1057
    %1214 = vmatprep.subr.mxu0 %v1064
    %1215 = vmatpush1.msra.mxu0 %v1063
    %1216 = vmatprep.subr.mxu0 %v1070
    %1217 = vmatpush1.msra.mxu0 %v1069
    %1218 = vmatprep.subr.mxu0 %v1076
    %1219 = vmatpush1.msra.mxu0 %v1075
    %1220 = vmatprep.subr.mxu0 %v1082
    %1221 = vmatpush1.msra.mxu0 %v1081
    %1222 = vmatprep.subr.mxu0 %v1088
    %1223 = vmatpush1.msra.mxu0 %v1087
    %1224 = vmatprep.subr.mxu0 %v1094
    %1225 = vmatpush1.msra.mxu0 %v1093
    %1226 = vmatprep.subr.mxu0 %v1100
    %1227 = vmatpush1.msra.mxu0 %v1099
    %1228 = vmatprep.subr.mxu0 0.0
    %1229 = vmatpush1.msra.mxu0 0.0
    %1230 = vmatprep.subr.mxu0 0.0
    %1231 = vmatpush1.msra.mxu0 0.0
    %1232 = vmatprep.subr.mxu0 0.0
    %1233 = vmatpush1.msra.mxu0 0.0
    %1234 = vmatprep.subr.mxu0 0.0
    %1235 = vmatpush1.msra.mxu0 0.0
    %1236 = vmatprep.subr.mxu0 0.0
    %1237 = vmatpush1.msra.mxu0 0.0
    %1238 = vmatprep.subr.mxu0 0.0
    %1239 = vmatpush1.msra.mxu0 0.0
    %1240 = vmatprep.subr.mxu0 0.0
    %1241 = vmatpush1.msra.mxu0 0.0
    %1242 = vmatprep.subr.mxu0 0.0
    %1243 = vmatpush1.msra.mxu0 0.0
    %1244 = vmatprep.subr.mxu0 0.0
    %1245 = vmatpush1.msra.mxu0 0.0
    %1246 = vmatprep.subr.mxu0 0.0
    %1247 = vmatpush1.msra.mxu0 0.0
    %1248 = vmatprep.subr.mxu0 0.0
    %1249 = vmatpush1.msra.mxu0 0.0
    %1250 = vmatprep.subr.mxu0 0.0
    %1251 = vmatpush1.msra.mxu0 0.0
    %1252 = vmatprep.subr.mxu0 0.0
    %1253 = vmatpush1.msra.mxu0 0.0
    %1254 = vmatprep.subr.mxu0 0.0
    %1255 = vmatpush1.msra.mxu0 0.0
    %1256 = vmatprep.subr.mxu0 0.0
    %1257 = vmatpush1.msra.mxu0 0.0
    %1258 = vmatprep.subr.mxu0 0.0
    %1259 = vmatpush1.msra.mxu0 0.0
    %1260 = vmatprep.subr.mxu0 0.0
    %1261 = vmatpush1.msra.mxu0 0.0
    %1262 = vmatprep.subr.mxu0 0.0
    %1263 = vmatpush1.msra.mxu0 0.0
    %1264 = vmatprep.subr.mxu0 0.0
    %1265 = vmatpush1.msra.mxu0 0.0
    %1266 = vmatprep.subr.mxu0 0.0
    %1267 = vmatpush1.msra.mxu0 0.0
    %1268 = vmatprep.subr.mxu0 0.0
    %1269 = vmatpush1.msra.mxu0 0.0
    %1270 = vmatprep.subr.mxu0 0.0
    %1271 = vmatpush1.msra.mxu0 0.0
    %1272 = vmatprep.subr.mxu0 0.0
    %1273 = vmatpush1.msra.mxu0 0.0
    %1274 = vmatprep.subr.mxu0 0.0
    %1275 = vmatpush1.msra.mxu0 0.0
    %1276 = vmatprep.mubr.f32.mxu0 0.0
    %1277 = vmatmul.mubr.f32.gmra.mrb[0].mxu0 %v807
    %v1278 = vpop.f32.mrb[0].mxu0
    %v1279 = vadd.f32 %v1116, %v1278
    %v1280 = vpop.f32.mrb[0].mxu0
    %v1281 = vadd.f32 %v1120, %v1280
    %1282 = vmatprep.mubr.f32.mxu0 0.0
    %1283 = vmatmul.mubr.f32.gmra.mrb[0].mxu0 %v810
    %v1284 = vpop.f32.mrb[0].mxu0
    %v1285 = vadd.f32 %v1116, %v1284
    %v1286 = vpop.f32.mrb[0].mxu0
    %v1287 = vadd.f32 %v1120, %v1286
    %1288 = vdwg.mxu0
    %1289 = vmatprep.subr.mxu0 %v1060
    %1290 = vmatpush1.msra.mxu0 %v1059
    %1291 = vmatprep.subr.mxu0 %v1066
    %1292 = vmatpush1.msra.mxu0 %v1065
    %1293 = vmatprep.subr.mxu0 %v1072
    %1294 = vmatpush1.msra.mxu0 %v1071
    %1295 = vmatprep.subr.mxu0 %v1078
    %1296 = vmatpush1.msra.mxu0 %v1077
    %1297 = vmatprep.subr.mxu0 %v1084
    %1298 = vmatpush1.msra.mxu0 %v1083
    %1299 = vmatprep.subr.mxu0 %v1090
    %1300 = vmatpush1.msra.mxu0 %v1089
    %1301 = vmatprep.subr.mxu0 %v1096
    %1302 = vmatpush1.msra.mxu0 %v1095
    %1303 = vmatprep.subr.mxu0 %v1102
    %1304 = vmatpush1.msra.mxu0 %v1101
    %1305 = vmatprep.subr.mxu0 0.0
    %1306 = vmatpush1.msra.mxu0 0.0
    %1307 = vmatprep.subr.mxu0 0.0
    %1308 = vmatpush1.msra.mxu0 0.0
    %1309 = vmatprep.subr.mxu0 0.0
    %1310 = vmatpush1.msra.mxu0 0.0
    %1311 = vmatprep.subr.mxu0 0.0
    %1312 = vmatpush1.msra.mxu0 0.0
    %1313 = vmatprep.subr.mxu0 0.0
    %1314 = vmatpush1.msra.mxu0 0.0
    %1315 = vmatprep.subr.mxu0 0.0
    %1316 = vmatpush1.msra.mxu0 0.0
    %1317 = vmatprep.subr.mxu0 0.0
    %1318 = vmatpush1.msra.mxu0 0.0
    %1319 = vmatprep.subr.mxu0 0.0
    %1320 = vmatpush1.msra.mxu0 0.0
    %1321 = vmatprep.subr.mxu0 0.0
    %1322 = vmatpush1.msra.mxu0 0.0
    %1323 = vmatprep.subr.mxu0 0.0
    %1324 = vmatpush1.msra.mxu0 0.0
    %1325 = vmatprep.subr.mxu0 0.0
    %1326 = vmatpush1.msra.mxu0 0.0
    %1327 = vmatprep.subr.mxu0 0.0
    %1328 = vmatpush1.msra.mxu0 0.0
    %1329 = vmatprep.subr.mxu0 0.0
    %1330 = vmatpush1.msra.mxu0 0.0
    %1331 = vmatprep.subr.mxu0 0.0
    %1332 = vmatpush1.msra.mxu0 0.0
    %1333 = vmatprep.subr.mxu0 0.0
    %1334 = vmatpush1.msra.mxu0 0.0
    %1335 = vmatprep.subr.mxu0 0.0
    %1336 = vmatpush1.msra.mxu0 0.0
    %1337 = vmatprep.subr.mxu0 0.0
    %1338 = vmatpush1.msra.mxu0 0.0
    %1339 = vmatprep.subr.mxu0 0.0
    %1340 = vmatpush1.msra.mxu0 0.0
    %1341 = vmatprep.subr.mxu0 0.0
    %1342 = vmatpush1.msra.mxu0 0.0
    %1343 = vmatprep.subr.mxu0 0.0
    %1344 = vmatpush1.msra.mxu0 0.0
    %1345 = vmatprep.subr.mxu0 0.0
    %1346 = vmatpush1.msra.mxu0 0.0
    %1347 = vmatprep.subr.mxu0 0.0
    %1348 = vmatpush1.msra.mxu0 0.0
    %1349 = vmatprep.subr.mxu0 0.0
    %1350 = vmatpush1.msra.mxu0 0.0
    %1351 = vmatprep.subr.mxu0 0.0
    %1352 = vmatpush1.msra.mxu0 0.0
    %1353 = vmatprep.mubr.f32.mxu0 0.0
    %1354 = vmatmul.mubr.f32.gmra.mrb[0].mxu0 %v807
    %v1355 = vpop.f32.mrb[0].mxu0
    %v1356 = vadd.f32 %v1124, %v1355
    %v1357 = vpop.f32.mrb[0].mxu0
    %v1358 = vadd.f32 %v1128, %v1357
    %1359 = vmatprep.mubr.f32.mxu0 0.0
    %1360 = vmatmul.mubr.f32.gmra.mrb[0].mxu0 %v810
    %v1361 = vpop.f32.mrb[0].mxu0
    %v1362 = vadd.f32 %v1124, %v1361
    %v1363 = vpop.f32.mrb[0].mxu0
    %v1364 = vadd.f32 %v1128, %v1363
    %1365 = vdwg.mxu0
    %s1366 = scalar_lea.vmem [#allocation20], 96
    %1367 = vst [vmem:[%s1366] sm:$0xff] %v1202
    %1368 = vst [vmem:[%s1366 + $0x8] sm:$0xff] %v1204
    %1369 = vst [vmem:[%s1366 + $0x10] sm:$0xff] %v1279
    %1370 = vst [vmem:[%s1366 + $0x18] sm:$0xff] %v1281
    %1371 = vst [vmem:[%s1366 + $0x20] sm:$0xff] %v1356
    %1372 = vst [vmem:[%s1366 + $0x28] sm:$0xff] %v1358
    %1373 = vst [vmem:[%s1366 + $0x30] sm:$0xff] %v1208
    %1374 = vst [vmem:[%s1366 + $0x38] sm:$0xff] %v1210
    %1375 = vst [vmem:[%s1366 + $0x40] sm:$0xff] %v1285
    %1376 = vst [vmem:[%s1366 + $0x48] sm:$0xff] %v1287
    %1377 = vst [vmem:[%s1366 + $0x50] sm:$0xff] %v1362
    %1378 = vst [vmem:[%s1366 + $0x58] sm:$0xff] %v1364
    // Predicated region
    $region90: #{crnn_forward.7} parent=1 // pred_check
      _
    $region91: #{crnn_forward.7} parent=1 // pred_check_branch
      %1380 = sbr.rel (0) target = $region93
    $region92: #{crnn_forward.7} parent=1 // pred_region
      %s1382 = ssub.s32 3072, 3072
      %1383 = vsyncadd [#allocation4], %s1382
      %s1384 = sshll.u32 [#allocation20], 4
      %s1385 = int_to_ptr.vmem [resolvable:$true] %s1384
      %1390 = dma.vmem_to_hbm [thread:$0]  %s1385, 3072, %s11, [#allocation4], 768, 768, 48
    $region93: #{crnn_forward.7} parent=1 // pred_fallthru
      _
    // Predicated region
    $region94: #{crnn_forward.7} parent=1 // pred_check
      _
    $region95: #{crnn_forward.7} parent=1 // pred_check_branch
      %1392 = sbr.rel (0) target = $region97
    $region96: #{crnn_forward.7} parent=1 // pred_region
      %1393 = dma.done [#allocation4], 3072
    $region97: #{crnn_forward.7} parent=1 // pred_fallthru
      _
    %1394 = vsyncpa [#allocation3], 1
    %1395 = vsyncpa [#allocation6], 1
    %1396 = vsyncpa [#allocation9], 1
    %1397 = vsyncpa [#allocation12], 1
    %1398 = vsyncpa [#allocation15], 1
    %1399 = vsyncpa [#allocation18], 1
    %1400 = vsyncpa [#allocation4], 1

// kernel: crnn_forward.5
$region0: #{crnn_forward.5}
  #allocation0 [shape = 'u32[]', space=smem, size = 0x4, offset = 0x4, fixed_abs, tag = 'smem constant byte address 0x4 - core index']
  #allocation1 [shape = 'u32[144,128]{1,0:T(1,128)}', space=vmem, size = 0x12000, scoped, tag = 'internal scratch']
  %s0 = inlined_call_operand.hbm [shape: f32[64,64], index: 0, kind: input, shape index: {}]
  %s1 = inlined_call_operand.hbm [shape: f32[3,64,32], index: 1, kind: input, shape index: {}]
  %s2 = inlined_call_operand.hbm [shape: f32[3,1,32], index: 2, kind: input, shape index: {}]
  %s3 = inlined_call_operand.hbm [shape: f32[3,1,32], index: 3, kind: input, shape index: {}]
  %s4 = inlined_call_operand.hbm [shape: f32[3,1,32], index: 4, kind: input, shape index: {}]
  %s5 = inlined_call_operand.hbm [shape: f32[3,224,64], index: 5, kind: input, shape index: {}]
  %s6 = inlined_call_operand.hbm [shape: f32[3,1,64], index: 6, kind: input, shape index: {}]
  %s7 = inlined_call_operand.hbm [shape: f32[64,64], index: 7, kind: input, shape index: {}]
  %s8 = inlined_call_operand.hbm [shape: f32[1,64], index: 8, kind: input, shape index: {}]
  %s9 = inlined_call_operand.hbm [shape: f32[64,64], index: 9, kind: output, shape index: {}]
  %s10 = sld [smem:[#allocation0]]
  $region82: #{crnn_forward.5} parent=0
    _
  %s12 = ssub.s32 1, %s10
  %s13 = scalar_select 0, %s12, %s10
  $region1: #{crnn_forward.5} parent=0
    #allocation2 [shape = 'u8[32768]{0}', space=vmem, size = 0x8000, scoped, tag = 'input window, operand 0, single buffered']
    #allocation3 [shape = 's32[1]{0}', space=sflag, size = 0x4, scoped, tag = 'scoped memory for crnn_forward.5']
    #allocation4 [shape = 's32[1]{0}', space=sflag, size = 0x4, scoped, tag = 'scoped memory for crnn_forward.5']
    #allocation5 [shape = 'u8[98304]{0}', space=vmem, size = 0x18000, scoped, tag = 'input window, operand 1, single buffered']
    #allocation6 [shape = 's32[1]{0}', space=sflag, size = 0x4, scoped, tag = 'scoped memory for crnn_forward.5']
    #allocation7 [shape = 'u8[1536]{0}', space=vmem, size = 0x800, scoped, tag = 'input window, operand 2, single buffered']
    #allocation8 [shape = 'u8[1536]{0}', space=vmem, size = 0x800, scoped, tag = 'input window, operand 3, single buffered']
    #allocation9 [shape = 's32[1]{0}', space=sflag, size = 0x4, scoped, tag = 'scoped memory for crnn_forward.5']
    #allocation10 [shape = 'u8[1536]{0}', space=vmem, size = 0x800, scoped, tag = 'input window, operand 4, single buffered']
    #allocation11 [shape = 'u8[344064]{0}', space=vmem, size = 0x54000, scoped, tag = 'input window, operand 5, single buffered']
    #allocation12 [shape = 's32[1]{0}', space=sflag, size = 0x4, scoped, tag = 'scoped memory for crnn_forward.5']
    #allocation13 [shape = 'u8[1536]{0}', space=vmem, size = 0x800, scoped, tag = 'input window, operand 6, single buffered']
    #allocation14 [shape = 'u8[32768]{0}', space=vmem, size = 0x8000, scoped, tag = 'input window, operand 7, single buffered']
    #allocation15 [shape = 's32[1]{0}', space=sflag, size = 0x4, scoped, tag = 'scoped memory for crnn_forward.5']
    #allocation16 [shape = 'u8[512]{0}', space=vmem, size = 0x400, scoped, tag = 'input window, operand 8, single buffered']
    #allocation17 [shape = 'u8[32768]{0}', space=vmem, size = 0x8000, scoped, tag = 'output window, operand 0, single buffered']
    %14 = vsyncpa [#allocation3], 0
    %15 = vsyncpa [#allocation6], 0
    %16 = vsyncpa [#allocation9], 0
    %17 = vsyncpa [#allocation12], 0
    %18 = vsyncpa [#allocation15], 0
    %19 = vsyncpa [#allocation4], 0
    // Predicated region
    $region2: #{crnn_forward.5} parent=1 // pred_check
      _
    $region3: #{crnn_forward.5} parent=1 // pred_check_branch
      %21 = sbr.rel (0) target = $region5
    $region4: #{crnn_forward.5} parent=1 // pred_region
      %s23 = ssub.s32 1024, 1024
      %24 = vsyncadd [#allocation3], %s23
      %s25 = sshll.u32 [#allocation2], 4
      %s26 = int_to_ptr.vmem [resolvable:$true] %s25
      %31 = dma.hbm_to_vmem [thread:$0]  %s0, 1024, %s26, [#allocation3], 128, 128, 8
    $region5: #{crnn_forward.5} parent=1 // pred_fallthru
      _
    // Predicated region
    $region6: #{crnn_forward.5} parent=1 // pred_check
      _
    $region7: #{crnn_forward.5} parent=1 // pred_check_branch
      %33 = sbr.rel (0) target = $region9
    $region8: #{crnn_forward.5} parent=1 // pred_region
      %s35 = ssub.s32 3072, 3072
      %36 = vsyncadd [#allocation6], %s35
      %s37 = sshll.u32 [#allocation5], 4
      %s38 = int_to_ptr.vmem [resolvable:$true] %s37
      %43 = dma.hbm_to_vmem [thread:$0]  %s1, 3072, %s38, [#allocation6], 128, 128, 8
    $region9: #{crnn_forward.5} parent=1 // pred_fallthru
      _
    // Predicated region
    $region10: #{crnn_forward.5} parent=1 // pred_check
      _
    $region11: #{crnn_forward.5} parent=1 // pred_check_branch
      %45 = sbr.rel (0) target = $region13
    $region12: #{crnn_forward.5} parent=1 // pred_region
      %s47 = ssub.s32 48, 48
      %48 = vsyncadd [#allocation6], %s47
      %s49 = sshll.u32 [#allocation7], 4
      %s50 = int_to_ptr.vmem [resolvable:$true] %s49
      %55 = dma.hbm_to_vmem [thread:$0]  %s2, 48, %s50, [#allocation6], 16, 16, 1
    $region13: #{crnn_forward.5} parent=1 // pred_fallthru
      _
    // Predicated region
    $region14: #{crnn_forward.5} parent=1 // pred_check
      _
    $region15: #{crnn_forward.5} parent=1 // pred_check_branch
      %57 = sbr.rel (0) target = $region17
    $region16: #{crnn_forward.5} parent=1 // pred_region
      %s59 = ssub.s32 48, 48
      %60 = vsyncadd [#allocation9], %s59
      %s61 = sshll.u32 [#allocation8], 4
      %s62 = int_to_ptr.vmem [resolvable:$true] %s61
      %67 = dma.hbm_to_vmem [thread:$0]  %s3, 48, %s62, [#allocation9], 16, 16, 1
    $region17: #{crnn_forward.5} parent=1 // pred_fallthru
      _
    // Predicated region
    $region18: #{crnn_forward.5} parent=1 // pred_check
      _
    $region19: #{crnn_forward.5} parent=1 // pred_check_branch
      %69 = sbr.rel (0) target = $region21
    $region20: #{crnn_forward.5} parent=1 // pred_region
      %s71 = ssub.s32 48, 48
      %72 = vsyncadd [#allocation9], %s71
      %s73 = sshll.u32 [#allocation10], 4
      %s74 = int_to_ptr.vmem [resolvable:$true] %s73
      %79 = dma.hbm_to_vmem [thread:$0]  %s4, 48, %s74, [#allocation9], 16, 16, 1
    $region21: #{crnn_forward.5} parent=1 // pred_fallthru
      _
    // Predicated region
    $region22: #{crnn_forward.5} parent=1 // pred_check
      _
    $region23: #{crnn_forward.5} parent=1 // pred_check_branch
      %81 = sbr.rel (0) target = $region25
    $region24: #{crnn_forward.5} parent=1 // pred_region
      %s83 = ssub.s32 10752, 10752
      %84 = vsyncadd [#allocation12], %s83
      %s85 = sshll.u32 [#allocation11], 4
      %s86 = int_to_ptr.vmem [resolvable:$true] %s85
      %91 = dma.hbm_to_vmem [thread:$0]  %s5, 10752, %s86, [#allocation12], 128, 128, 8
    $region25: #{crnn_forward.5} parent=1 // pred_fallthru
      _
    // Predicated region
    $region26: #{crnn_forward.5} parent=1 // pred_check
      _
    $region27: #{crnn_forward.5} parent=1 // pred_check_branch
      %93 = sbr.rel (0) target = $region29
    $region28: #{crnn_forward.5} parent=1 // pred_region
      %s95 = ssub.s32 48, 48
      %96 = vsyncadd [#allocation12], %s95
      %s97 = sshll.u32 [#allocation13], 4
      %s98 = int_to_ptr.vmem [resolvable:$true] %s97
      %103 = dma.hbm_to_vmem [thread:$0]  %s6, 48, %s98, [#allocation12], 16, 16, 1
    $region29: #{crnn_forward.5} parent=1 // pred_fallthru
      _
    // Predicated region
    $region30: #{crnn_forward.5} parent=1 // pred_check
      _
    $region31: #{crnn_forward.5} parent=1 // pred_check_branch
      %105 = sbr.rel (0) target = $region33
    $region32: #{crnn_forward.5} parent=1 // pred_region
      %s107 = ssub.s32 1024, 1024
      %108 = vsyncadd [#allocation15], %s107
      %s109 = sshll.u32 [#allocation14], 4
      %s110 = int_to_ptr.vmem [resolvable:$true] %s109
      %115 = dma.hbm_to_vmem [thread:$0]  %s7, 1024, %s110, [#allocation15], 128, 128, 8
    $region33: #{crnn_forward.5} parent=1 // pred_fallthru
      _
    // Predicated region
    $region34: #{crnn_forward.5} parent=1 // pred_check
      _
    $region35: #{crnn_forward.5} parent=1 // pred_check_branch
      %117 = sbr.rel (0) target = $region37
    $region36: #{crnn_forward.5} parent=1 // pred_region
      %s119 = ssub.s32 16, 16
      %120 = vsyncadd [#allocation15], %s119
      %s122 = sshll.u32 [#allocation16], 4
      %s123 = int_to_ptr.vmem [resolvable:$true] %s122
      %125 = dma.hbm_to_vmem [thread:$0]  %s8, 16, %s123, [#allocation15]
    $region37: #{crnn_forward.5} parent=1 // pred_fallthru
      _
    // Predicated region
    $region38: #{crnn_forward.5} parent=1 // pred_check
      _
    $region39: #{crnn_forward.5} parent=1 // pred_check_branch
      %127 = sbr.rel (0) target = $region41
    $region40: #{crnn_forward.5} parent=1 // pred_region
      %128 = dma.done [#allocation3], 1024
    $region41: #{crnn_forward.5} parent=1 // pred_fallthru
      _
    // Predicated region
    $region42: #{crnn_forward.5} parent=1 // pred_check
      _
    $region43: #{crnn_forward.5} parent=1 // pred_check_branch
      %130 = sbr.rel (0) target = $region45
    $region44: #{crnn_forward.5} parent=1 // pred_region
      %131 = dma.done [#allocation6], 3072
    $region45: #{crnn_forward.5} parent=1 // pred_fallthru
      _
    // Predicated region
    $region46: #{crnn_forward.5} parent=1 // pred_check
      _
    $region47: #{crnn_forward.5} parent=1 // pred_check_branch
      %133 = sbr.rel (0) target = $region49
    $region48: #{crnn_forward.5} parent=1 // pred_region
      %134 = dma.done [#allocation6], 48
    $region49: #{crnn_forward.5} parent=1 // pred_fallthru
      _
    // Predicated region
    $region50: #{crnn_forward.5} parent=1 // pred_check
      _
    $region51: #{crnn_forward.5} parent=1 // pred_check_branch
      %136 = sbr.rel (0) target = $region53
    $region52: #{crnn_forward.5} parent=1 // pred_region
      %137 = dma.done [#allocation9], 48
    $region53: #{crnn_forward.5} parent=1 // pred_fallthru
      _
    // Predicated region
    $region54: #{crnn_forward.5} parent=1 // pred_check
      _
    $region55: #{crnn_forward.5} parent=1 // pred_check_branch
      %139 = sbr.rel (0) target = $region57
    $region56: #{crnn_forward.5} parent=1 // pred_region
      %140 = dma.done [#allocation9], 48
    $region57: #{crnn_forward.5} parent=1 // pred_fallthru
      _
    // Predicated region
    $region58: #{crnn_forward.5} parent=1 // pred_check
      _
    $region59: #{crnn_forward.5} parent=1 // pred_check_branch
      %142 = sbr.rel (0) target = $region61
    $region60: #{crnn_forward.5} parent=1 // pred_region
      %143 = dma.done [#allocation12], 10752
    $region61: #{crnn_forward.5} parent=1 // pred_fallthru
      _
    // Predicated region
    $region62: #{crnn_forward.5} parent=1 // pred_check
      _
    $region63: #{crnn_forward.5} parent=1 // pred_check_branch
      %145 = sbr.rel (0) target = $region65
    $region64: #{crnn_forward.5} parent=1 // pred_region
      %146 = dma.done [#allocation12], 48
    $region65: #{crnn_forward.5} parent=1 // pred_fallthru
      _
    // Predicated region
    $region66: #{crnn_forward.5} parent=1 // pred_check
      _
    $region67: #{crnn_forward.5} parent=1 // pred_check_branch
      %148 = sbr.rel (0) target = $region69
    $region68: #{crnn_forward.5} parent=1 // pred_region
      %149 = dma.done [#allocation15], 1024
    $region69: #{crnn_forward.5} parent=1 // pred_fallthru
      _
    // Predicated region
    $region70: #{crnn_forward.5} parent=1 // pred_check
      _
    $region71: #{crnn_forward.5} parent=1 // pred_check_branch
      %151 = sbr.rel (0) target = $region73
    $region72: #{crnn_forward.5} parent=1 // pred_region
      %152 = dma.done [#allocation15], 16
    $region73: #{crnn_forward.5} parent=1 // pred_fallthru
      _
    %v153 = vld [vmem:[#allocation2] sm:$0xff]
    %v154 = vld [vmem:[#allocation2 + $0x8] sm:$0xff]
    %v155 = vld [vmem:[#allocation2 + $0x10] sm:$0xff]
    %v156 = vld [vmem:[#allocation2 + $0x18] sm:$0xff]
    %v157 = vld [vmem:[#allocation2 + $0x20] sm:$0xff]
    %v158 = vld [vmem:[#allocation2 + $0x28] sm:$0xff]
    %v159 = vld [vmem:[#allocation2 + $0x30] sm:$0xff]
    %v160 = vld [vmem:[#allocation2 + $0x38] sm:$0xff]
    %v161 = vlaneseq
    %v162 = vshrl.u32 %v161, 7
    %v163 = vadd.s32 %v162, 8
    %v164 = vadd.s32 %v162, 16
    %v165 = vadd.s32 %v162, 24
    %v166 = vadd.s32 %v162, 32
    %v167 = vadd.s32 %v162, 40
    %v168 = vadd.s32 %v162, 48
    %v169 = vadd.s32 %v162, 56
    %v170 = vadd.s32 %v162, 4294967290
    %v171 = vadd.s32 %v163, 4294967290
    %v172 = vadd.s32 %v164, 4294967290
    %v173 = vadd.s32 %v165, 4294967290
    %v174 = vadd.s32 %v166, 4294967290
    %v175 = vadd.s32 %v167, 4294967290
    %v176 = vadd.s32 %v168, 4294967290
    %v177 = vadd.s32 %v169, 4294967290
    %vm178 = vcmp.ge.s32.totalorder %v170, 0
    %vm179 = vcmp.ge.s32.totalorder %v171, 0
    %vm180 = vcmp.ge.s32.totalorder %v172, 0
    %vm181 = vcmp.ge.s32.totalorder %v173, 0
    %vm182 = vcmp.ge.s32.totalorder %v174, 0
    %vm183 = vcmp.ge.s32.totalorder %v175, 0
    %vm184 = vcmp.ge.s32.totalorder %v176, 0
    %vm185 = vcmp.ge.s32.totalorder %v177, 0
    %vm186 = vcmp.lt.s32.totalorder %v170, 64
    %vm187 = vcmp.lt.s32.totalorder %v171, 64
    %vm188 = vcmp.lt.s32.totalorder %v172, 64
    %vm189 = vcmp.lt.s32.totalorder %v173, 64
    %vm190 = vcmp.lt.s32.totalorder %v174, 64
    %vm191 = vcmp.lt.s32.totalorder %v175, 64
    %vm192 = vcmp.lt.s32.totalorder %v176, 64
    %vm193 = vcmp.lt.s32.totalorder %v177, 64
    %vm194 = vmand %vm178, %vm186
    %vm195 = vmand %vm179, %vm187
    %vm196 = vmand %vm180, %vm188
    %vm197 = vmand %vm181, %vm189
    %vm198 = vmand %vm182, %vm190
    %vm199 = vmand %vm183, %vm191
    %vm200 = vmand %vm184, %vm192
    %vm201 = vmand %vm185, %vm193
    %v202 = vadd.s32 %v162, 4294967292
    %v203 = vadd.s32 %v163, 4294967292
    %v204 = vadd.s32 %v164, 4294967292
    %v205 = vadd.s32 %v165, 4294967292
    %v206 = vadd.s32 %v166, 4294967292
    %v207 = vadd.s32 %v167, 4294967292
    %v208 = vadd.s32 %v168, 4294967292
    %v209 = vadd.s32 %v169, 4294967292
    %vm210 = vcmp.ge.s32.totalorder %v202, 0
    %vm211 = vcmp.ge.s32.totalorder %v203, 0
    %vm212 = vcmp.ge.s32.totalorder %v204, 0
    %vm213 = vcmp.ge.s32.totalorder %v205, 0
    %vm214 = vcmp.ge.s32.totalorder %v206, 0
    %vm215 = vcmp.ge.s32.totalorder %v207, 0
    %vm216 = vcmp.ge.s32.totalorder %v208, 0
    %vm217 = vcmp.ge.s32.totalorder %v209, 0
    %vm218 = vcmp.lt.s32.totalorder %v202, 64
    %vm219 = vcmp.lt.s32.totalorder %v203, 64
    %vm220 = vcmp.lt.s32.totalorder %v204, 64
    %vm221 = vcmp.lt.s32.totalorder %v205, 64
    %vm222 = vcmp.lt.s32.totalorder %v206, 64
    %vm223 = vcmp.lt.s32.totalorder %v207, 64
    %vm224 = vcmp.lt.s32.totalorder %v208, 64
    %vm225 = vcmp.lt.s32.totalorder %v209, 64
    %vm226 = vmand %vm210, %vm218
    %vm227 = vmand %vm211, %vm219
    %vm228 = vmand %vm212, %vm220
    %vm229 = vmand %vm213, %vm221
    %vm230 = vmand %vm214, %vm222
    %vm231 = vmand %vm215, %vm223
    %vm232 = vmand %vm216, %vm224
    %vm233 = vmand %vm217, %vm225
    %v234 = vadd.s32 %v162, 4294967294
    %v235 = vadd.s32 %v163, 4294967294
    %v236 = vadd.s32 %v164, 4294967294
    %v237 = vadd.s32 %v165, 4294967294
    %v238 = vadd.s32 %v166, 4294967294
    %v239 = vadd.s32 %v167, 4294967294
    %v240 = vadd.s32 %v168, 4294967294
    %v241 = vadd.s32 %v169, 4294967294
    %vm242 = vcmp.ge.s32.totalorder %v234, 0
    %vm243 = vcmp.ge.s32.totalorder %v235, 0
    %vm244 = vcmp.ge.s32.totalorder %v236, 0
    %vm245 = vcmp.ge.s32.totalorder %v237, 0
    %vm246 = vcmp.ge.s32.totalorder %v238, 0
    %vm247 = vcmp.ge.s32.totalorder %v239, 0
    %vm248 = vcmp.ge.s32.totalorder %v240, 0
    %vm249 = vcmp.ge.s32.totalorder %v241, 0
    %vm250 = vcmp.lt.s32.totalorder %v234, 64
    %vm251 = vcmp.lt.s32.totalorder %v235, 64
    %vm252 = vcmp.lt.s32.totalorder %v236, 64
    %vm253 = vcmp.lt.s32.totalorder %v237, 64
    %vm254 = vcmp.lt.s32.totalorder %v238, 64
    %vm255 = vcmp.lt.s32.totalorder %v239, 64
    %vm256 = vcmp.lt.s32.totalorder %v240, 64
    %vm257 = vcmp.lt.s32.totalorder %v241, 64
    %vm258 = vmand %vm242, %vm250
    %vm259 = vmand %vm243, %vm251
    %vm260 = vmand %vm244, %vm252
    %vm261 = vmand %vm245, %vm253
    %vm262 = vmand %vm246, %vm254
    %vm263 = vmand %vm247, %vm255
    %vm264 = vmand %vm248, %vm256
    %vm265 = vmand %vm249, %vm257
    %v266 = vadd.s32 %v162, 2
    %v267 = vadd.s32 %v163, 2
    %v268 = vadd.s32 %v164, 2
    %v269 = vadd.s32 %v165, 2
    %v270 = vadd.s32 %v166, 2
    %v271 = vadd.s32 %v167, 2
    %v272 = vadd.s32 %v168, 2
    %v273 = vadd.s32 %v169, 2
    %vm274 = vcmp.ge.s32.totalorder %v266, 0
    %vm275 = vcmp.ge.s32.totalorder %v267, 0
    %vm276 = vcmp.ge.s32.totalorder %v268, 0
    %vm277 = vcmp.ge.s32.totalorder %v269, 0
    %vm278 = vcmp.ge.s32.totalorder %v270, 0
    %vm279 = vcmp.ge.s32.totalorder %v271, 0
    %vm280 = vcmp.ge.s32.totalorder %v272, 0
    %vm281 = vcmp.ge.s32.totalorder %v273, 0
    %vm282 = vcmp.lt.s32.totalorder %v266, 64
    %vm283 = vcmp.lt.s32.totalorder %v267, 64
    %vm284 = vcmp.lt.s32.totalorder %v268, 64
    %vm285 = vcmp.lt.s32.totalorder %v269, 64
    %vm286 = vcmp.lt.s32.totalorder %v270, 64
    %vm287 = vcmp.lt.s32.totalorder %v271, 64
    %vm288 = vcmp.lt.s32.totalorder %v272, 64
    %vm289 = vcmp.lt.s32.totalorder %v273, 64
    %vm290 = vmand %vm274, %vm282
    %vm291 = vmand %vm275, %vm283
    %vm292 = vmand %vm276, %vm284
    %vm293 = vmand %vm277, %vm285
    %vm294 = vmand %vm278, %vm286
    %vm295 = vmand %vm279, %vm287
    %vm296 = vmand %vm280, %vm288
    %vm297 = vmand %vm281, %vm289
    %v298 = vadd.s32 %v162, 4
    %v299 = vadd.s32 %v163, 4
    %v300 = vadd.s32 %v164, 4
    %v301 = vadd.s32 %v165, 4
    %v302 = vadd.s32 %v166, 4
    %v303 = vadd.s32 %v167, 4
    %v304 = vadd.s32 %v168, 4
    %v305 = vadd.s32 %v169, 4
    %vm306 = vcmp.ge.s32.totalorder %v298, 0
    %vm307 = vcmp.ge.s32.totalorder %v299, 0
    %vm308 = vcmp.ge.s32.totalorder %v300, 0
    %vm309 = vcmp.ge.s32.totalorder %v301, 0
    %vm310 = vcmp.ge.s32.totalorder %v302, 0
    %vm311 = vcmp.ge.s32.totalorder %v303, 0
    %vm312 = vcmp.ge.s32.totalorder %v304, 0
    %vm313 = vcmp.ge.s32.totalorder %v305, 0
    %vm314 = vcmp.lt.s32.totalorder %v298, 64
    %vm315 = vcmp.lt.s32.totalorder %v299, 64
    %vm316 = vcmp.lt.s32.totalorder %v300, 64
    %vm317 = vcmp.lt.s32.totalorder %v301, 64
    %vm318 = vcmp.lt.s32.totalorder %v302, 64
    %vm319 = vcmp.lt.s32.totalorder %v303, 64
    %vm320 = vcmp.lt.s32.totalorder %v304, 64
    %vm321 = vcmp.lt.s32.totalorder %v305, 64
    %vm322 = vmand %vm306, %vm314
    %vm323 = vmand %vm307, %vm315
    %vm324 = vmand %vm308, %vm316
    %vm325 = vmand %vm309, %vm317
    %vm326 = vmand %vm310, %vm318
    %vm327 = vmand %vm311, %vm319
    %vm328 = vmand %vm312, %vm320
    %vm329 = vmand %vm313, %vm321
    %v330 = vadd.s32 %v162, 6
    %v331 = vadd.s32 %v163, 6
    %v332 = vadd.s32 %v164, 6
    %v333 = vadd.s32 %v165, 6
    %v334 = vadd.s32 %v166, 6
    %v335 = vadd.s32 %v167, 6
    %v336 = vadd.s32 %v168, 6
    %v337 = vadd.s32 %v169, 6
    %vm338 = vcmp.ge.s32.totalorder %v330, 0
    %vm339 = vcmp.ge.s32.totalorder %v331, 0
    %vm340 = vcmp.ge.s32.totalorder %v332, 0
    %vm341 = vcmp.ge.s32.totalorder %v333, 0
    %vm342 = vcmp.ge.s32.totalorder %v334, 0
    %vm343 = vcmp.ge.s32.totalorder %v335, 0
    %vm344 = vcmp.ge.s32.totalorder %v336, 0
    %vm345 = vcmp.ge.s32.totalorder %v337, 0
    %vm346 = vcmp.lt.s32.totalorder %v330, 64
    %vm347 = vcmp.lt.s32.totalorder %v331, 64
    %vm348 = vcmp.lt.s32.totalorder %v332, 64
    %vm349 = vcmp.lt.s32.totalorder %v333, 64
    %vm350 = vcmp.lt.s32.totalorder %v334, 64
    %vm351 = vcmp.lt.s32.totalorder %v335, 64
    %vm352 = vcmp.lt.s32.totalorder %v336, 64
    %vm353 = vcmp.lt.s32.totalorder %v337, 64
    %vm354 = vmand %vm338, %vm346
    %vm355 = vmand %vm339, %vm347
    %vm356 = vmand %vm340, %vm348
    %vm357 = vmand %vm341, %vm349
    %vm358 = vmand %vm342, %vm350
    %vm359 = vmand %vm343, %vm351
    %vm360 = vmand %vm344, %vm352
    %vm361 = vmand %vm345, %vm353
    %v362 = vmax.f32 %v153, 0.0
    %v363 = vmax.f32 %v154, 0.0
    %v364 = vmax.f32 %v155, 0.0
    %v365 = vmax.f32 %v156, 0.0
    %v366 = vmax.f32 %v157, 0.0
    %v367 = vmax.f32 %v158, 0.0
    %v368 = vmax.f32 %v159, 0.0
    %v369 = vmax.f32 %v160, 0.0
    %v370 = vld [vmem:[#allocation5] sm:$0xff]
    %v371 = vld [vmem:[#allocation5 + $0x8] sm:$0xff]
    %v372 = vld [vmem:[#allocation5 + $0x10] sm:$0xff]
    %v373 = vld [vmem:[#allocation5 + $0x18] sm:$0xff]
    %v374 = vld [vmem:[#allocation5 + $0x20] sm:$0xff]
    %v375 = vld [vmem:[#allocation5 + $0x28] sm:$0xff]
    %v376 = vld [vmem:[#allocation5 + $0x30] sm:$0xff]
    %v377 = vld [vmem:[#allocation5 + $0x38] sm:$0xff]
    %v378 = vld [vmem:[#allocation7] sm:$0x1]
    %v380 = vlaneseq
    %v381 = vshrl.u32 %v380, 7
    %v382 = vsub.s32 0, %v381
    %v383 = vrot.slane %v378, %v382
    %vm385 = vcmask 523264
    %v387 = vsel %vm385, %v362, 0
    %v390 = vsel %vm385, %v363, 0
    %v393 = vsel %vm385, %v364, 0
    %v396 = vsel %vm385, %v365, 0
    %v399 = vsel %vm385, %v366, 0
    %v402 = vsel %vm385, %v367, 0
    %v405 = vsel %vm385, %v368, 0
    %v408 = vsel %vm385, %v369, 0
    %410 = vmatprep.subr.mxu0 0.0
    %411 = vmatpush1.msra.mxu0 %v370
    %412 = vmatprep.subr.mxu0 0.0
    %413 = vmatpush1.msra.mxu0 %v371
    %414 = vmatprep.subr.mxu0 0.0
    %415 = vmatpush1.msra.mxu0 %v372
    %416 = vmatprep.subr.mxu0 0.0
    %417 = vmatpush1.msra.mxu0 %v373
    %418 = vmatprep.subr.mxu0 0.0
    %419 = vmatpush1.msra.mxu0 %v374
    %420 = vmatprep.subr.mxu0 0.0
    %421 = vmatpush1.msra.mxu0 %v375
    %422 = vmatprep.subr.mxu0 0.0
    %423 = vmatpush1.msra.mxu0 %v376
    %424 = vmatprep.subr.mxu0 0.0
    %425 = vmatpush1.msra.mxu0 %v377
    %426 = vmatprep.subr.mxu0 0.0
    %427 = vmatpush1.msra.mxu0 0.0
    %428 = vmatprep.subr.mxu0 0.0
    %429 = vmatpush1.msra.mxu0 0.0
    %430 = vmatprep.subr.mxu0 0.0
    %431 = vmatpush1.msra.mxu0 0.0
    %432 = vmatprep.subr.mxu0 0.0
    %433 = vmatpush1.msra.mxu0 0.0
    %434 = vmatprep.subr.mxu0 0.0
    %435 = vmatpush1.msra.mxu0 0.0
    %436 = vmatprep.subr.mxu0 0.0
    %437 = vmatpush1.msra.mxu0 0.0
    %438 = vmatprep.subr.mxu0 0.0
    %439 = vmatpush1.msra.mxu0 0.0
    %440 = vmatprep.subr.mxu0 0.0
    %441 = vmatpush1.msra.mxu0 0.0
    %442 = vmatprep.subr.mxu0 0.0
    %443 = vmatpush1.msra.mxu0 0.0
    %444 = vmatprep.subr.mxu0 0.0
    %445 = vmatpush1.msra.mxu0 0.0
    %446 = vmatprep.subr.mxu0 0.0
    %447 = vmatpush1.msra.mxu0 0.0
    %448 = vmatprep.subr.mxu0 0.0
    %449 = vmatpush1.msra.mxu0 0.0
    %450 = vmatprep.subr.mxu0 0.0
    %451 = vmatpush1.msra.mxu0 0.0
    %452 = vmatprep.subr.mxu0 0.0
    %453 = vmatpush1.msra.mxu0 0.0
    %454 = vmatprep.subr.mxu0 0.0
    %455 = vmatpush1.msra.mxu0 0.0
    %456 = vmatprep.subr.mxu0 0.0
    %457 = vmatpush1.msra.mxu0 0.0
    %458 = vmatprep.subr.mxu0 0.0
    %459 = vmatpush1.msra.mxu0 0.0
    %460 = vmatprep.subr.mxu0 0.0
    %461 = vmatpush1.msra.mxu0 0.0
    %462 = vmatprep.subr.mxu0 0.0
    %463 = vmatpush1.msra.mxu0 0.0
    %464 = vmatprep.subr.mxu0 0.0
    %465 = vmatpush1.msra.mxu0 0.0
    %466 = vmatprep.subr.mxu0 0.0
    %467 = vmatpush1.msra.mxu0 0.0
    %468 = vmatprep.subr.mxu0 0.0
    %469 = vmatpush1.msra.mxu0 0.0
    %470 = vmatprep.subr.mxu0 0.0
    %471 = vmatpush1.msra.mxu0 0.0
    %472 = vmatprep.subr.mxu0 0.0
    %473 = vmatpush1.msra.mxu0 0.0
    %474 = vmatprep.mubr.f32.mxu0 0.0
    %475 = vmatmul.mubr.f32.gmra.mrb[0].mxu0 %v387
    %v476 = vpop.f32.mrb[0].mxu0
    %v477 = vadd.f32 %v383, %v476
    %v478 = vpop.f32.mrb[0].mxu0
    %479 = vmatprep.mubr.f32.mxu0 0.0
    %480 = vmatmul.mubr.f32.gmra.mrb[0].mxu0 %v390
    %v481 = vpop.f32.mrb[0].mxu0
    %v482 = vadd.f32 %v383, %v481
    %v483 = vpop.f32.mrb[0].mxu0
    %484 = vmatprep.mubr.f32.mxu0 0.0
    %485 = vmatmul.mubr.f32.gmra.mrb[0].mxu0 %v393
    %v486 = vpop.f32.mrb[0].mxu0
    %v487 = vadd.f32 %v383, %v486
    %v488 = vpop.f32.mrb[0].mxu0
    %489 = vmatprep.mubr.f32.mxu0 0.0
    %490 = vmatmul.mubr.f32.gmra.mrb[0].mxu0 %v396
    %v491 = vpop.f32.mrb[0].mxu0
    %v492 = vadd.f32 %v383, %v491
    %v493 = vpop.f32.mrb[0].mxu0
    %494 = vmatprep.mubr.f32.mxu0 0.0
    %495 = vmatmul.mubr.f32.gmra.mrb[0].mxu0 %v399
    %v496 = vpop.f32.mrb[0].mxu0
    %v497 = vadd.f32 %v383, %v496
    %v498 = vpop.f32.mrb[0].mxu0
    %499 = vmatprep.mubr.f32.mxu0 0.0
    %500 = vmatmul.mubr.f32.gmra.mrb[0].mxu0 %v402
    %v501 = vpop.f32.mrb[0].mxu0
    %v502 = vadd.f32 %v383, %v501
    %v503 = vpop.f32.mrb[0].mxu0
    %504 = vmatprep.mubr.f32.mxu0 0.0
    %505 = vmatmul.mubr.f32.gmra.mrb[0].mxu0 %v405
    %v506 = vpop.f32.mrb[0].mxu0
    %v507 = vadd.f32 %v383, %v506
    %v508 = vpop.f32.mrb[0].mxu0
    %509 = vmatprep.mubr.f32.mxu0 0.0
    %510 = vmatmul.mubr.f32.gmra.mrb[0].mxu0 %v408
    %v511 = vpop.f32.mrb[0].mxu0
    %v512 = vadd.f32 %v383, %v511
    %v513 = vpop.f32.mrb[0].mxu0
    %514 = vdwg.mxu0
    %v515 = vmax.f32 %v477, 0.0
    %v516 = vmax.f32 %v482, 0.0
    %v517 = vmax.f32 %v487, 0.0
    %v518 = vmax.f32 %v492, 0.0
    %v519 = vmax.f32 %v497, 0.0
    %v520 = vmax.f32 %v502, 0.0
    %v521 = vmax.f32 %v507, 0.0
    %v522 = vmax.f32 %v512, 0.0
    %v523 = vld [vmem:[#allocation8] sm:$0x1]
    %v525 = vlaneseq
    %v526 = vshrl.u32 %v525, 7
    %v527 = vsub.s32 0, %v526
    %v528 = vrot.slane %v523, %v527
    %v530 = vmul.f32 %v515, %v528
    %v531 = vmul.f32 %v516, %v528
    %v532 = vmul.f32 %v517, %v528
    %v533 = vmul.f32 %v518, %v528
    %v534 = vmul.f32 %v519, %v528
    %v535 = vmul.f32 %v520, %v528
    %v536 = vmul.f32 %v521, %v528
    %v537 = vmul.f32 %v522, %v528
    %v538 = vld [vmem:[#allocation10] sm:$0x1]
    %v540 = vlaneseq
    %v541 = vshrl.u32 %v540, 7
    %v542 = vsub.s32 0, %v541
    %v543 = vrot.slane %v538, %v542
    %v545 = vadd.f32 %v530, %v543
    %v546 = vadd.f32 %v531, %v543
    %v547 = vadd.f32 %v532, %v543
    %v548 = vadd.f32 %v533, %v543
    %v549 = vadd.f32 %v534, %v543
    %v550 = vadd.f32 %v535, %v543
    %v551 = vadd.f32 %v536, %v543
    %v552 = vadd.f32 %v537, %v543
    %v553 = vrot.slane %v545, 2
    %v554 = vrot.slane %v546, 2
    %v555 = vrot.slane %v547, 2
    %v556 = vrot.slane %v548, 2
    %v557 = vrot.slane %v549, 2
    %v558 = vrot.slane %v550, 2
    %v559 = vrot.slane %v551, 2
    %v560 = vrot.slane %v552, 2
    %vm561 = vcmp.lt.s32.totalorder %v162, 6
    %v562 = vsel %vm561, %v559, %v560
    %v563 = vsel %vm561, %v558, %v559
    %v564 = vsel %vm561, %v557, %v558
    %v565 = vsel %vm561, %v556, %v557
    %v566 = vsel %vm561, %v555, %v556
    %v567 = vsel %vm561, %v554, %v555
    %v568 = vsel %vm561, %v553, %v554
    %v569 = vsel %vm561, %v560, %v553
    %v570 = vsel %vm194, %v569, 0.0
    %v571 = vsel %vm195, %v568, 0.0
    %v572 = vsel %vm196, %v567, 0.0
    %v573 = vsel %vm197, %v566, 0.0
    %v574 = vsel %vm198, %v565, 0.0
    %v575 = vsel %vm199, %v564, 0.0
    %v576 = vsel %vm200, %v563, 0.0
    %v577 = vsel %vm201, %v562, 0.0
    %v578 = vrot.slane %v545, 4
    %v579 = vrot.slane %v546, 4
    %v580 = vrot.slane %v547, 4
    %v581 = vrot.slane %v548, 4
    %v582 = vrot.slane %v549, 4
    %v583 = vrot.slane %v550, 4
    %v584 = vrot.slane %v551, 4
    %v585 = vrot.slane %v552, 4
    %vm586 = vcmp.lt.s32.totalorder %v162, 4
    %v587 = vsel %vm586, %v584, %v585
    %v588 = vsel %vm586, %v583, %v584
    %v589 = vsel %vm586, %v582, %v583
    %v590 = vsel %vm586, %v581, %v582
    %v591 = vsel %vm586, %v580, %v581
    %v592 = vsel %vm586, %v579, %v580
    %v593 = vsel %vm586, %v578, %v579
    %v594 = vsel %vm586, %v585, %v578
    %v595 = vsel %vm226, %v594, 0.0
    %v596 = vsel %vm227, %v593, 0.0
    %v597 = vsel %vm228, %v592, 0.0
    %v598 = vsel %vm229, %v591, 0.0
    %v599 = vsel %vm230, %v590, 0.0
    %v600 = vsel %vm231, %v589, 0.0
    %v601 = vsel %vm232, %v588, 0.0
    %v602 = vsel %vm233, %v587, 0.0
    %v603 = vrot.slane %v545, 6
    %v604 = vrot.slane %v546, 6
    %v605 = vrot.slane %v547, 6
    %v606 = vrot.slane %v548, 6
    %v607 = vrot.slane %v549, 6
    %v608 = vrot.slane %v550, 6
    %v609 = vrot.slane %v551, 6
    %v610 = vrot.slane %v552, 6
    %vm611 = vcmp.lt.s32.totalorder %v162, 2
    %v612 = vsel %vm611, %v609, %v610
    %v613 = vsel %vm611, %v608, %v609
    %v614 = vsel %vm611, %v607, %v608
    %v615 = vsel %vm611, %v606, %v607
    %v616 = vsel %vm611, %v605, %v606
    %v617 = vsel %vm611, %v604, %v605
    %v618 = vsel %vm611, %v603, %v604
    %v619 = vsel %vm611, %v610, %v603
    %v620 = vsel %vm258, %v619, 0.0
    %v621 = vsel %vm259, %v618, 0.0
    %v622 = vsel %vm260, %v617, 0.0
    %v623 = vsel %vm261, %v616, 0.0
    %v624 = vsel %vm262, %v615, 0.0
    %v625 = vsel %vm263, %v614, 0.0
    %v626 = vsel %vm264, %v613, 0.0
    %v627 = vsel %vm265, %v612, 0.0
    %v628 = vsel %vm290, %v568, 0.0
    %v629 = vsel %vm291, %v567, 0.0
    %v630 = vsel %vm292, %v566, 0.0
    %v631 = vsel %vm293, %v565, 0.0
    %v632 = vsel %vm294, %v564, 0.0
    %v633 = vsel %vm295, %v563, 0.0
    %v634 = vsel %vm296, %v562, 0.0
    %v635 = vsel %vm297, %v569, 0.0
    %v636 = vsel %vm322, %v593, 0.0
    %v637 = vsel %vm323, %v592, 0.0
    %v638 = vsel %vm324, %v591, 0.0
    %v639 = vsel %vm325, %v590, 0.0
    %v640 = vsel %vm326, %v589, 0.0
    %v641 = vsel %vm327, %v588, 0.0
    %v642 = vsel %vm328, %v587, 0.0
    %v643 = vsel %vm329, %v594, 0.0
    %v644 = vsel %vm354, %v618, 0.0
    %v645 = vsel %vm355, %v617, 0.0
    %v646 = vsel %vm356, %v616, 0.0
    %v647 = vsel %vm357, %v615, 0.0
    %v648 = vsel %vm358, %v614, 0.0
    %v649 = vsel %vm359, %v613, 0.0
    %v650 = vsel %vm360, %v612, 0.0
    %v651 = vsel %vm361, %v619, 0.0
    %660 = vrot.lane.b32.xlu0 %v595, 32
    %v661 = vpop.permute.xlu0 %660
    %662 = vrot.lane.b32.xlu0 %v596, 32
    %v663 = vpop.permute.xlu0 %662
    %664 = vrot.lane.b32.xlu0 %v597, 32
    %v665 = vpop.permute.xlu0 %664
    %666 = vrot.lane.b32.xlu0 %v598, 32
    %v667 = vpop.permute.xlu0 %666
    %668 = vrot.lane.b32.xlu0 %v599, 32
    %v669 = vpop.permute.xlu0 %668
    %670 = vrot.lane.b32.xlu0 %v600, 32
    %v671 = vpop.permute.xlu0 %670
    %672 = vrot.lane.b32.xlu0 %v601, 32
    %v673 = vpop.permute.xlu0 %672
    %674 = vrot.lane.b32.xlu0 %v602, 32
    %v675 = vpop.permute.xlu0 %674
    %692 = vrot.lane.b32.xlu0 %v620, 64
    %v693 = vpop.permute.xlu0 %692
    %694 = vrot.lane.b32.xlu0 %v621, 64
    %v695 = vpop.permute.xlu0 %694
    %696 = vrot.lane.b32.xlu0 %v622, 64
    %v697 = vpop.permute.xlu0 %696
    %698 = vrot.lane.b32.xlu0 %v623, 64
    %v699 = vpop.permute.xlu0 %698
    %700 = vrot.lane.b32.xlu0 %v624, 64
    %v701 = vpop.permute.xlu0 %700
    %702 = vrot.lane.b32.xlu0 %v625, 64
    %v703 = vpop.permute.xlu0 %702
    %704 = vrot.lane.b32.xlu0 %v626, 64
    %v705 = vpop.permute.xlu0 %704
    %706 = vrot.lane.b32.xlu0 %v627, 64
    %v707 = vpop.permute.xlu0 %706
    %724 = vrot.lane.b32.xlu0 %v545, 96
    %v725 = vpop.permute.xlu0 %724
    %726 = vrot.lane.b32.xlu0 %v546, 96
    %v727 = vpop.permute.xlu0 %726
    %728 = vrot.lane.b32.xlu0 %v547, 96
    %v729 = vpop.permute.xlu0 %728
    %730 = vrot.lane.b32.xlu0 %v548, 96
    %v731 = vpop.permute.xlu0 %730
    %732 = vrot.lane.b32.xlu0 %v549, 96
    %v733 = vpop.permute.xlu0 %732
    %734 = vrot.lane.b32.xlu0 %v550, 96
    %v735 = vpop.permute.xlu0 %734
    %736 = vrot.lane.b32.xlu0 %v551, 96
    %v737 = vpop.permute.xlu0 %736
    %738 = vrot.lane.b32.xlu0 %v552, 96
    %v739 = vpop.permute.xlu0 %738
    %756 = vrot.lane.b32.xlu0 %v636, 32
    %v757 = vpop.permute.xlu0 %756
    %758 = vrot.lane.b32.xlu0 %v637, 32
    %v759 = vpop.permute.xlu0 %758
    %760 = vrot.lane.b32.xlu0 %v638, 32
    %v761 = vpop.permute.xlu0 %760
    %762 = vrot.lane.b32.xlu0 %v639, 32
    %v763 = vpop.permute.xlu0 %762
    %764 = vrot.lane.b32.xlu0 %v640, 32
    %v765 = vpop.permute.xlu0 %764
    %766 = vrot.lane.b32.xlu0 %v641, 32
    %v767 = vpop.permute.xlu0 %766
    %768 = vrot.lane.b32.xlu0 %v642, 32
    %v769 = vpop.permute.xlu0 %768
    %770 = vrot.lane.b32.xlu0 %v643, 32
    %v771 = vpop.permute.xlu0 %770
    %788 = vrot.lane.b32.xlu0 %v644, 64
    %v789 = vpop.permute.xlu0 %788
    %790 = vrot.lane.b32.xlu0 %v645, 64
    %v791 = vpop.permute.xlu0 %790
    %792 = vrot.lane.b32.xlu0 %v646, 64
    %v793 = vpop.permute.xlu0 %792
    %794 = vrot.lane.b32.xlu0 %v647, 64
    %v795 = vpop.permute.xlu0 %794
    %796 = vrot.lane.b32.xlu0 %v648, 64
    %v797 = vpop.permute.xlu0 %796
    %798 = vrot.lane.b32.xlu0 %v649, 64
    %v799 = vpop.permute.xlu0 %798
    %800 = vrot.lane.b32.xlu0 %v650, 64
    %v801 = vpop.permute.xlu0 %800
    %802 = vrot.lane.b32.xlu0 %v651, 64
    %v803 = vpop.permute.xlu0 %802
    %vm812 = vcmask 261120
    %v813 = vsel %vm812, %v570, %v661
    %v814 = vsel %vm812, %v571, %v663
    %v815 = vsel %vm812, %v572, %v665
    %v816 = vsel %vm812, %v573, %v667
    %v817 = vsel %vm812, %v574, %v669
    %v818 = vsel %vm812, %v575, %v671
    %v819 = vsel %vm812, %v576, %v673
    %v820 = vsel %vm812, %v577, %v675
    %v821 = vsel %vm385, %v813, %v693
    %v822 = vsel %vm385, %v814, %v695
    %v823 = vsel %vm385, %v815, %v697
    %v824 = vsel %vm385, %v816, %v699
    %v825 = vsel %vm385, %v817, %v701
    %v826 = vsel %vm385, %v818, %v703
    %v827 = vsel %vm385, %v819, %v705
    %v828 = vsel %vm385, %v820, %v707
    %vm829 = vcmask 785408
    %v830 = vsel %vm829, %v821, %v725
    %v831 = vsel %vm829, %v822, %v727
    %v832 = vsel %vm829, %v823, %v729
    %v833 = vsel %vm829, %v824, %v731
    %v834 = vsel %vm829, %v825, %v733
    %v835 = vsel %vm829, %v826, %v735
    %v836 = vsel %vm829, %v827, %v737
    %v837 = vsel %vm829, %v828, %v739
    %v838 = vsel %vm812, %v628, %v757
    %v839 = vsel %vm812, %v629, %v759
    %v840 = vsel %vm812, %v630, %v761
    %v841 = vsel %vm812, %v631, %v763
    %v842 = vsel %vm812, %v632, %v765
    %v843 = vsel %vm812, %v633, %v767
    %v844 = vsel %vm812, %v634, %v769
    %v845 = vsel %vm812, %v635, %v771
    %v846 = vsel %vm385, %v838, %v789
    %v847 = vsel %vm385, %v839, %v791
    %v848 = vsel %vm385, %v840, %v793
    %v849 = vsel %vm385, %v841, %v795
    %v850 = vsel %vm385, %v842, %v797
    %v851 = vsel %vm385, %v843, %v799
    %v852 = vsel %vm385, %v844, %v801
    %v853 = vsel %vm385, %v845, %v803
    %v854 = vld [vmem:[#allocation11] sm:$0xff]
    %v855 = vld [vmem:[#allocation11 + $0x8] sm:$0xff]
    %v856 = vld [vmem:[#allocation11 + $0x10] sm:$0xff]
    %v857 = vld [vmem:[#allocation11 + $0x18] sm:$0xff]
    %v858 = vld [vmem:[#allocation11 + $0x20] sm:$0xff]
    %v859 = vld [vmem:[#allocation11 + $0x28] sm:$0xff]
    %v860 = vld [vmem:[#allocation11 + $0x30] sm:$0xff]
    %v861 = vld [vmem:[#allocation11 + $0x38] sm:$0xff]
    %v862 = vld [vmem:[#allocation11 + $0x40] sm:$0xff]
    %v863 = vld [vmem:[#allocation11 + $0x48] sm:$0xff]
    %v864 = vld [vmem:[#allocation11 + $0x50] sm:$0xff]
    %v865 = vld [vmem:[#allocation11 + $0x58] sm:$0xff]
    %v866 = vld [vmem:[#allocation11 + $0x60] sm:$0xff]
    %v867 = vld [vmem:[#allocation11 + $0x68] sm:$0xff]
    %v868 = vld [vmem:[#allocation11 + $0x70] sm:$0xff]
    %v869 = vld [vmem:[#allocation11 + $0x78] sm:$0xff]
    %v870 = vld [vmem:[#allocation11 + $0x80] sm:$0xff]
    %v871 = vld [vmem:[#allocation11 + $0x88] sm:$0xff]
    %v872 = vld [vmem:[#allocation11 + $0x90] sm:$0xff]
    %v873 = vld [vmem:[#allocation11 + $0x98] sm:$0xff]
    %v874 = vld [vmem:[#allocation11 + $0xa0] sm:$0xff]
    %v875 = vld [vmem:[#allocation11 + $0xa8] sm:$0xff]
    %v876 = vld [vmem:[#allocation11 + $0xb0] sm:$0xff]
    %v877 = vld [vmem:[#allocation11 + $0xb8] sm:$0xff]
    %v878 = vld [vmem:[#allocation11 + $0xc0] sm:$0xff]
    %v879 = vld [vmem:[#allocation11 + $0xc8] sm:$0xff]
    %v880 = vld [vmem:[#allocation11 + $0xd0] sm:$0xff]
    %v881 = vld [vmem:[#allocation11 + $0xd8] sm:$0xff]
    %v883 = vsel %vm829, %v846, 0
    %v886 = vsel %vm829, %v847, 0
    %v889 = vsel %vm829, %v848, 0
    %v892 = vsel %vm829, %v849, 0
    %v895 = vsel %vm829, %v850, 0
    %v898 = vsel %vm829, %v851, 0
    %v901 = vsel %vm829, %v852, 0
    %v904 = vsel %vm829, %v853, 0
    %906 = vmatprep.subr.mxu0 0.0
    %907 = vmatpush1.msra.mxu0 %v854
    %908 = vmatprep.subr.mxu0 0.0
    %909 = vmatpush1.msra.mxu0 %v855
    %910 = vmatprep.subr.mxu0 0.0
    %911 = vmatpush1.msra.mxu0 %v856
    %912 = vmatprep.subr.mxu0 0.0
    %913 = vmatpush1.msra.mxu0 %v857
    %914 = vmatprep.subr.mxu0 0.0
    %915 = vmatpush1.msra.mxu0 %v858
    %916 = vmatprep.subr.mxu0 0.0
    %917 = vmatpush1.msra.mxu0 %v859
    %918 = vmatprep.subr.mxu0 0.0
    %919 = vmatpush1.msra.mxu0 %v860
    %920 = vmatprep.subr.mxu0 0.0
    %921 = vmatpush1.msra.mxu0 %v861
    %922 = vmatprep.subr.mxu0 0.0
    %923 = vmatpush1.msra.mxu0 %v862
    %924 = vmatprep.subr.mxu0 0.0
    %925 = vmatpush1.msra.mxu0 %v863
    %926 = vmatprep.subr.mxu0 0.0
    %927 = vmatpush1.msra.mxu0 %v864
    %928 = vmatprep.subr.mxu0 0.0
    %929 = vmatpush1.msra.mxu0 %v865
    %930 = vmatprep.subr.mxu0 0.0
    %931 = vmatpush1.msra.mxu0 %v866
    %932 = vmatprep.subr.mxu0 0.0
    %933 = vmatpush1.msra.mxu0 %v867
    %934 = vmatprep.subr.mxu0 0.0
    %935 = vmatpush1.msra.mxu0 %v868
    %936 = vmatprep.subr.mxu0 0.0
    %937 = vmatpush1.msra.mxu0 %v869
    %938 = vmatprep.subr.mxu0 0.0
    %939 = vmatpush1.msra.mxu0 %v870
    %940 = vmatprep.subr.mxu0 0.0
    %941 = vmatpush1.msra.mxu0 %v871
    %942 = vmatprep.subr.mxu0 0.0
    %943 = vmatpush1.msra.mxu0 %v872
    %944 = vmatprep.subr.mxu0 0.0
    %945 = vmatpush1.msra.mxu0 %v873
    %946 = vmatprep.subr.mxu0 0.0
    %947 = vmatpush1.msra.mxu0 %v874
    %948 = vmatprep.subr.mxu0 0.0
    %949 = vmatpush1.msra.mxu0 %v875
    %950 = vmatprep.subr.mxu0 0.0
    %951 = vmatpush1.msra.mxu0 %v876
    %952 = vmatprep.subr.mxu0 0.0
    %953 = vmatpush1.msra.mxu0 %v877
    %954 = vmatprep.subr.mxu0 0.0
    %955 = vmatpush1.msra.mxu0 %v878
    %956 = vmatprep.subr.mxu0 0.0
    %957 = vmatpush1.msra.mxu0 %v879
    %958 = vmatprep.subr.mxu0 0.0
    %959 = vmatpush1.msra.mxu0 %v880
    %960 = vmatprep.subr.mxu0 0.0
    %961 = vmatpush1.msra.mxu0 %v881
    %962 = vmatprep.subr.mxu0 0.0
    %963 = vmatpush1.msra.mxu0 0.0
    %964 = vmatprep.subr.mxu0 0.0
    %965 = vmatpush1.msra.mxu0 0.0
    %966 = vmatprep.subr.mxu0 0.0
    %967 = vmatpush1.msra.mxu0 0.0
    %968 = vmatprep.subr.mxu0 0.0
    %969 = vmatpush1.msra.mxu0 0.0
    %970 = vmatprep.mubr.f32.mxu0 %v883
    %971 = vmatmul.mubr.f32.gmra.mrb[0].mxu0 %v830
    %v972 = vpop.f32.mrb[0].mxu0
    %v973 = vadd.f32 0.0, %v972
    %v974 = vpop.f32.mrb[0].mxu0
    %975 = vmatprep.mubr.f32.mxu0 %v886
    %976 = vmatmul.mubr.f32.gmra.mrb[0].mxu0 %v831
    %v977 = vpop.f32.mrb[0].mxu0
    %v978 = vadd.f32 0.0, %v977
    %v979 = vpop.f32.mrb[0].mxu0
    %980 = vmatprep.mubr.f32.mxu0 %v889
    %981 = vmatmul.mubr.f32.gmra.mrb[0].mxu0 %v832
    %v982 = vpop.f32.mrb[0].mxu0
    %v983 = vadd.f32 0.0, %v982
    %v984 = vpop.f32.mrb[0].mxu0
    %985 = vmatprep.mubr.f32.mxu0 %v892
    %986 = vmatmul.mubr.f32.gmra.mrb[0].mxu0 %v833
    %v987 = vpop.f32.mrb[0].mxu0
    %v988 = vadd.f32 0.0, %v987
    %v989 = vpop.f32.mrb[0].mxu0
    %990 = vmatprep.mubr.f32.mxu0 %v895
    %991 = vmatmul.mubr.f32.gmra.mrb[0].mxu0 %v834
    %v992 = vpop.f32.mrb[0].mxu0
    %v993 = vadd.f32 0.0, %v992
    %v994 = vpop.f32.mrb[0].mxu0
    %995 = vmatprep.mubr.f32.mxu0 %v898
    %996 = vmatmul.mubr.f32.gmra.mrb[0].mxu0 %v835
    %v997 = vpop.f32.mrb[0].mxu0
    %v998 = vadd.f32 0.0, %v997
    %v999 = vpop.f32.mrb[0].mxu0
    %1000 = vmatprep.mubr.f32.mxu0 %v901
    %1001 = vmatmul.mubr.f32.gmra.mrb[0].mxu0 %v836
    %v1002 = vpop.f32.mrb[0].mxu0
    %v1003 = vadd.f32 0.0, %v1002
    %v1004 = vpop.f32.mrb[0].mxu0
    %1005 = vmatprep.mubr.f32.mxu0 %v904
    %1006 = vmatmul.mubr.f32.gmra.mrb[0].mxu0 %v837
    %v1007 = vpop.f32.mrb[0].mxu0
    %v1008 = vadd.f32 0.0, %v1007
    %v1009 = vpop.f32.mrb[0].mxu0
    %1010 = vdwg.mxu0
    %v1011 = vadd.f32 %v153, %v973
    %v1012 = vadd.f32 %v154, %v978
    %v1013 = vadd.f32 %v155, %v983
    %v1014 = vadd.f32 %v156, %v988
    %v1015 = vadd.f32 %v157, %v993
    %v1016 = vadd.f32 %v158, %v998
    %v1017 = vadd.f32 %v159, %v1003
    %v1018 = vadd.f32 %v160, %v1008
    %v1019 = vld [vmem:[#allocation13] sm:$0x1]
    %v1021 = vlaneseq
    %v1022 = vshrl.u32 %v1021, 7
    %v1023 = vsub.s32 0, %v1022
    %v1024 = vrot.slane %v1019, %v1023
    %v1026 = vadd.f32 %v1011, %v1024
    %v1027 = vadd.f32 %v1012, %v1024
    %v1028 = vadd.f32 %v1013, %v1024
    %v1029 = vadd.f32 %v1014, %v1024
    %v1030 = vadd.f32 %v1015, %v1024
    %v1031 = vadd.f32 %v1016, %v1024
    %v1032 = vadd.f32 %v1017, %v1024
    %v1033 = vadd.f32 %v1018, %v1024
    %v1034 = vmax.f32 %v1026, 0.0
    %v1035 = vmax.f32 %v1027, 0.0
    %v1036 = vmax.f32 %v1028, 0.0
    %v1037 = vmax.f32 %v1029, 0.0
    %v1038 = vmax.f32 %v1030, 0.0
    %v1039 = vmax.f32 %v1031, 0.0
    %v1040 = vmax.f32 %v1032, 0.0
    %v1041 = vmax.f32 %v1033, 0.0
    %s1042 = scalar_lea.vmem [#allocation5], 64
    %v1043 = vld [vmem:[%s1042] sm:$0xff]
    %v1044 = vld [vmem:[%s1042 + $0x8] sm:$0xff]
    %v1045 = vld [vmem:[%s1042 + $0x10] sm:$0xff]
    %v1046 = vld [vmem:[%s1042 + $0x18] sm:$0xff]
    %v1047 = vld [vmem:[%s1042 + $0x20] sm:$0xff]
    %v1048 = vld [vmem:[%s1042 + $0x28] sm:$0xff]
    %v1049 = vld [vmem:[%s1042 + $0x30] sm:$0xff]
    %v1050 = vld [vmem:[%s1042 + $0x38] sm:$0xff]
    %s1051 = scalar_lea.vmem [#allocation7], 1
    %v1052 = vld [vmem:[%s1051] sm:$0x1]
    %v1054 = vlaneseq
    %v1055 = vshrl.u32 %v1054, 7
    %v1056 = vsub.s32 0, %v1055
    %v1057 = vrot.slane %v1052, %v1056
    %v1060 = vsel %vm385, %v1034, 0
    %v1063 = vsel %vm385, %v1035, 0
    %v1066 = vsel %vm385, %v1036, 0
    %v1069 = vsel %vm385, %v1037, 0
    %v1072 = vsel %vm385, %v1038, 0
    %v1075 = vsel %vm385, %v1039, 0
    %v1078 = vsel %vm385, %v1040, 0
    %v1081 = vsel %vm385, %v1041, 0
    %1083 = vmatprep.subr.mxu0 0.0
    %1084 = vmatpush1.msra.mxu0 %v1043
    %1085 = vmatprep.subr.mxu0 0.0
    %1086 = vmatpush1.msra.mxu0 %v1044
    %1087 = vmatprep.subr.mxu0 0.0
    %1088 = vmatpush1.msra.mxu0 %v1045
    %1089 = vmatprep.subr.mxu0 0.0
    %1090 = vmatpush1.msra.mxu0 %v1046
    %1091 = vmatprep.subr.mxu0 0.0
    %1092 = vmatpush1.msra.mxu0 %v1047
    %1093 = vmatprep.subr.mxu0 0.0
    %1094 = vmatpush1.msra.mxu0 %v1048
    %1095 = vmatprep.subr.mxu0 0.0
    %1096 = vmatpush1.msra.mxu0 %v1049
    %1097 = vmatprep.subr.mxu0 0.0
    %1098 = vmatpush1.msra.mxu0 %v1050
    %1099 = vmatprep.subr.mxu0 0.0
    %1100 = vmatpush1.msra.mxu0 0.0
    %1101 = vmatprep.subr.mxu0 0.0
    %1102 = vmatpush1.msra.mxu0 0.0
    %1103 = vmatprep.subr.mxu0 0.0
    %1104 = vmatpush1.msra.mxu0 0.0
    %1105 = vmatprep.subr.mxu0 0.0
    %1106 = vmatpush1.msra.mxu0 0.0
    %1107 = vmatprep.subr.mxu0 0.0
    %1108 = vmatpush1.msra.mxu0 0.0
    %1109 = vmatprep.subr.mxu0 0.0
    %1110 = vmatpush1.msra.mxu0 0.0
    %1111 = vmatprep.subr.mxu0 0.0
    %1112 = vmatpush1.msra.mxu0 0.0
    %1113 = vmatprep.subr.mxu0 0.0
    %1114 = vmatpush1.msra.mxu0 0.0
    %1115 = vmatprep.subr.mxu0 0.0
    %1116 = vmatpush1.msra.mxu0 0.0
    %1117 = vmatprep.subr.mxu0 0.0
    %1118 = vmatpush1.msra.mxu0 0.0
    %1119 = vmatprep.subr.mxu0 0.0
    %1120 = vmatpush1.msra.mxu0 0.0
    %1121 = vmatprep.subr.mxu0 0.0
    %1122 = vmatpush1.msra.mxu0 0.0
    %1123 = vmatprep.subr.mxu0 0.0
    %1124 = vmatpush1.msra.mxu0 0.0
    %1125 = vmatprep.subr.mxu0 0.0
    %1126 = vmatpush1.msra.mxu0 0.0
    %1127 = vmatprep.subr.mxu0 0.0
    %1128 = vmatpush1.msra.mxu0 0.0
    %1129 = vmatprep.subr.mxu0 0.0
    %1130 = vmatpush1.msra.mxu0 0.0
    %1131 = vmatprep.subr.mxu0 0.0
    %1132 = vmatpush1.msra.mxu0 0.0
    %1133 = vmatprep.subr.mxu0 0.0
    %1134 = vmatpush1.msra.mxu0 0.0
    %1135 = vmatprep.subr.mxu0 0.0
    %1136 = vmatpush1.msra.mxu0 0.0
    %1137 = vmatprep.subr.mxu0 0.0
    %1138 = vmatpush1.msra.mxu0 0.0
    %1139 = vmatprep.subr.mxu0 0.0
    %1140 = vmatpush1.msra.mxu0 0.0
    %1141 = vmatprep.subr.mxu0 0.0
    %1142 = vmatpush1.msra.mxu0 0.0
    %1143 = vmatprep.subr.mxu0 0.0
    %1144 = vmatpush1.msra.mxu0 0.0
    %1145 = vmatprep.subr.mxu0 0.0
    %1146 = vmatpush1.msra.mxu0 0.0
    %1147 = vmatprep.mubr.f32.mxu0 0.0
    %1148 = vmatmul.mubr.f32.gmra.mrb[0].mxu0 %v1060
    %v1149 = vpop.f32.mrb[0].mxu0
    %v1150 = vadd.f32 %v1057, %v1149
    %v1151 = vpop.f32.mrb[0].mxu0
    %1152 = vmatprep.mubr.f32.mxu0 0.0
    %1153 = vmatmul.mubr.f32.gmra.mrb[0].mxu0 %v1063
    %v1154 = vpop.f32.mrb[0].mxu0
    %v1155 = vadd.f32 %v1057, %v1154
    %v1156 = vpop.f32.mrb[0].mxu0
    %1157 = vmatprep.mubr.f32.mxu0 0.0
    %1158 = vmatmul.mubr.f32.gmra.mrb[0].mxu0 %v1066
    %v1159 = vpop.f32.mrb[0].mxu0
    %v1160 = vadd.f32 %v1057, %v1159
    %v1161 = vpop.f32.mrb[0].mxu0
    %1162 = vmatprep.mubr.f32.mxu0 0.0
    %1163 = vmatmul.mubr.f32.gmra.mrb[0].mxu0 %v1069
    %v1164 = vpop.f32.mrb[0].mxu0
    %v1165 = vadd.f32 %v1057, %v1164
    %v1166 = vpop.f32.mrb[0].mxu0
    %1167 = vmatprep.mubr.f32.mxu0 0.0
    %1168 = vmatmul.mubr.f32.gmra.mrb[0].mxu0 %v1072
    %v1169 = vpop.f32.mrb[0].mxu0
    %v1170 = vadd.f32 %v1057, %v1169
    %v1171 = vpop.f32.mrb[0].mxu0
    %1172 = vmatprep.mubr.f32.mxu0 0.0
    %1173 = vmatmul.mubr.f32.gmra.mrb[0].mxu0 %v1075
    %v1174 = vpop.f32.mrb[0].mxu0
    %v1175 = vadd.f32 %v1057, %v1174
    %v1176 = vpop.f32.mrb[0].mxu0
    %1177 = vmatprep.mubr.f32.mxu0 0.0
    %1178 = vmatmul.mubr.f32.gmra.mrb[0].mxu0 %v1078
    %v1179 = vpop.f32.mrb[0].mxu0
    %v1180 = vadd.f32 %v1057, %v1179
    %v1181 = vpop.f32.mrb[0].mxu0
    %1182 = vmatprep.mubr.f32.mxu0 0.0
    %1183 = vmatmul.mubr.f32.gmra.mrb[0].mxu0 %v1081
    %v1184 = vpop.f32.mrb[0].mxu0
    %v1185 = vadd.f32 %v1057, %v1184
    %v1186 = vpop.f32.mrb[0].mxu0
    %1187 = vdwg.mxu0
    %v1188 = vmax.f32 %v1150, 0.0
    %v1189 = vmax.f32 %v1155, 0.0
    %v1190 = vmax.f32 %v1160, 0.0
    %v1191 = vmax.f32 %v1165, 0.0
    %v1192 = vmax.f32 %v1170, 0.0
    %v1193 = vmax.f32 %v1175, 0.0
    %v1194 = vmax.f32 %v1180, 0.0
    %v1195 = vmax.f32 %v1185, 0.0
    %s1196 = scalar_lea.vmem [#allocation8], 1
    %v1197 = vld [vmem:[%s1196] sm:$0x1]
    %v1199 = vlaneseq
    %v1200 = vshrl.u32 %v1199, 7
    %v1201 = vsub.s32 0, %v1200
    %v1202 = vrot.slane %v1197, %v1201
    %v1204 = vmul.f32 %v1188, %v1202
    %v1205 = vmul.f32 %v1189, %v1202
    %v1206 = vmul.f32 %v1190, %v1202
    %v1207 = vmul.f32 %v1191, %v1202
    %v1208 = vmul.f32 %v1192, %v1202
    %v1209 = vmul.f32 %v1193, %v1202
    %v1210 = vmul.f32 %v1194, %v1202
    %v1211 = vmul.f32 %v1195, %v1202
    %s1212 = scalar_lea.vmem [#allocation10], 1
    %v1213 = vld [vmem:[%s1212] sm:$0x1]
    %v1215 = vlaneseq
    %v1216 = vshrl.u32 %v1215, 7
    %v1217 = vsub.s32 0, %v1216
    %v1218 = vrot.slane %v1213, %v1217
    %v1220 = vadd.f32 %v1204, %v1218
    %v1221 = vadd.f32 %v1205, %v1218
    %v1222 = vadd.f32 %v1206, %v1218
    %v1223 = vadd.f32 %v1207, %v1218
    %v1224 = vadd.f32 %v1208, %v1218
    %v1225 = vadd.f32 %v1209, %v1218
    %v1226 = vadd.f32 %v1210, %v1218
    %v1227 = vadd.f32 %v1211, %v1218
    %v1228 = vrot.slane %v1220, 2
    %v1229 = vrot.slane %v1221, 2
    %v1230 = vrot.slane %v1222, 2
    %v1231 = vrot.slane %v1223, 2
    %v1232 = vrot.slane %v1224, 2
    %v1233 = vrot.slane %v1225, 2
    %v1234 = vrot.slane %v1226, 2
    %v1235 = vrot.slane %v1227, 2
    %v1236 = vsel %vm561, %v1234, %v1235
    %v1237 = vsel %vm561, %v1233, %v1234
    %v1238 = vsel %vm561, %v1232, %v1233
    %v1239 = vsel %vm561, %v1231, %v1232
    %v1240 = vsel %vm561, %v1230, %v1231
    %v1241 = vsel %vm561, %v1229, %v1230
    %v1242 = vsel %vm561, %v1228, %v1229
    %v1243 = vsel %vm561, %v1235, %v1228
    %v1244 = vsel %vm194, %v1243, 0.0
    %v1245 = vsel %vm195, %v1242, 0.0
    %v1246 = vsel %vm196, %v1241, 0.0
    %v1247 = vsel %vm197, %v1240, 0.0
    %v1248 = vsel %vm198, %v1239, 0.0
    %v1249 = vsel %vm199, %v1238, 0.0
    %v1250 = vsel %vm200, %v1237, 0.0
    %v1251 = vsel %vm201, %v1236, 0.0
    %v1252 = vrot.slane %v1220, 4
    %v1253 = vrot.slane %v1221, 4
    %v1254 = vrot.slane %v1222, 4
    %v1255 = vrot.slane %v1223, 4
    %v1256 = vrot.slane %v1224, 4
    %v1257 = vrot.slane %v1225, 4
    %v1258 = vrot.slane %v1226, 4
    %v1259 = vrot.slane %v1227, 4
    %v1260 = vsel %vm586, %v1258, %v1259
    %v1261 = vsel %vm586, %v1257, %v1258
    %v1262 = vsel %vm586, %v1256, %v1257
    %v1263 = vsel %vm586, %v1255, %v1256
    %v1264 = vsel %vm586, %v1254, %v1255
    %v1265 = vsel %vm586, %v1253, %v1254
    %v1266 = vsel %vm586, %v1252, %v1253
    %v1267 = vsel %vm586, %v1259, %v1252
    %v1268 = vsel %vm226, %v1267, 0.0
    %v1269 = vsel %vm227, %v1266, 0.0
    %v1270 = vsel %vm228, %v1265, 0.0
    %v1271 = vsel %vm229, %v1264, 0.0
    %v1272 = vsel %vm230, %v1263, 0.0
    %v1273 = vsel %vm231, %v1262, 0.0
    %v1274 = vsel %vm232, %v1261, 0.0
    %v1275 = vsel %vm233, %v1260, 0.0
    %v1276 = vrot.slane %v1220, 6
    %v1277 = vrot.slane %v1221, 6
    %v1278 = vrot.slane %v1222, 6
    %v1279 = vrot.slane %v1223, 6
    %v1280 = vrot.slane %v1224, 6
    %v1281 = vrot.slane %v1225, 6
    %v1282 = vrot.slane %v1226, 6
    %v1283 = vrot.slane %v1227, 6
    %v1284 = vsel %vm611, %v1282, %v1283
    %v1285 = vsel %vm611, %v1281, %v1282
    %v1286 = vsel %vm611, %v1280, %v1281
    %v1287 = vsel %vm611, %v1279, %v1280
    %v1288 = vsel %vm611, %v1278, %v1279
    %v1289 = vsel %vm611, %v1277, %v1278
    %v1290 = vsel %vm611, %v1276, %v1277
    %v1291 = vsel %vm611, %v1283, %v1276
    %v1292 = vsel %vm258, %v1291, 0.0
    %v1293 = vsel %vm259, %v1290, 0.0
    %v1294 = vsel %vm260, %v1289, 0.0
    %v1295 = vsel %vm261, %v1288, 0.0
    %v1296 = vsel %vm262, %v1287, 0.0
    %v1297 = vsel %vm263, %v1286, 0.0
    %v1298 = vsel %vm264, %v1285, 0.0
    %v1299 = vsel %vm265, %v1284, 0.0
    %v1300 = vsel %vm290, %v1242, 0.0
    %v1301 = vsel %vm291, %v1241, 0.0
    %v1302 = vsel %vm292, %v1240, 0.0
    %v1303 = vsel %vm293, %v1239, 0.0
    %v1304 = vsel %vm294, %v1238, 0.0
    %v1305 = vsel %vm295, %v1237, 0.0
    %v1306 = vsel %vm296, %v1236, 0.0
    %v1307 = vsel %vm297, %v1243, 0.0
    %v1308 = vsel %vm322, %v1266, 0.0
    %v1309 = vsel %vm323, %v1265, 0.0
    %v1310 = vsel %vm324, %v1264, 0.0
    %v1311 = vsel %vm325, %v1263, 0.0
    %v1312 = vsel %vm326, %v1262, 0.0
    %v1313 = vsel %vm327, %v1261, 0.0
    %v1314 = vsel %vm328, %v1260, 0.0
    %v1315 = vsel %vm329, %v1267, 0.0
    %v1316 = vsel %vm354, %v1290, 0.0
    %v1317 = vsel %vm355, %v1289, 0.0
    %v1318 = vsel %vm356, %v1288, 0.0
    %v1319 = vsel %vm357, %v1287, 0.0
    %v1320 = vsel %vm358, %v1286, 0.0
    %v1321 = vsel %vm359, %v1285, 0.0
    %v1322 = vsel %vm360, %v1284, 0.0
    %v1323 = vsel %vm361, %v1291, 0.0
    %1332 = vrot.lane.b32.xlu0 %v1268, 32
    %v1333 = vpop.permute.xlu0 %1332
    %1334 = vrot.lane.b32.xlu0 %v1269, 32
    %v1335 = vpop.permute.xlu0 %1334
    %1336 = vrot.lane.b32.xlu0 %v1270, 32
    %v1337 = vpop.permute.xlu0 %1336
    %1338 = vrot.lane.b32.xlu0 %v1271, 32
    %v1339 = vpop.permute.xlu0 %1338
    %1340 = vrot.lane.b32.xlu0 %v1272, 32
    %v1341 = vpop.permute.xlu0 %1340
    %1342 = vrot.lane.b32.xlu0 %v1273, 32
    %v1343 = vpop.permute.xlu0 %1342
    %1344 = vrot.lane.b32.xlu0 %v1274, 32
    %v1345 = vpop.permute.xlu0 %1344
    %1346 = vrot.lane.b32.xlu0 %v1275, 32
    %v1347 = vpop.permute.xlu0 %1346
    %1364 = vrot.lane.b32.xlu0 %v1292, 64
    %v1365 = vpop.permute.xlu0 %1364
    %1366 = vrot.lane.b32.xlu0 %v1293, 64
    %v1367 = vpop.permute.xlu0 %1366
    %1368 = vrot.lane.b32.xlu0 %v1294, 64
    %v1369 = vpop.permute.xlu0 %1368
    %1370 = vrot.lane.b32.xlu0 %v1295, 64
    %v1371 = vpop.permute.xlu0 %1370
    %1372 = vrot.lane.b32.xlu0 %v1296, 64
    %v1373 = vpop.permute.xlu0 %1372
    %1374 = vrot.lane.b32.xlu0 %v1297, 64
    %v1375 = vpop.permute.xlu0 %1374
    %1376 = vrot.lane.b32.xlu0 %v1298, 64
    %v1377 = vpop.permute.xlu0 %1376
    %1378 = vrot.lane.b32.xlu0 %v1299, 64
    %v1379 = vpop.permute.xlu0 %1378
    %1396 = vrot.lane.b32.xlu0 %v1220, 96
    %v1397 = vpop.permute.xlu0 %1396
    %1398 = vrot.lane.b32.xlu0 %v1221, 96
    %v1399 = vpop.permute.xlu0 %1398
    %1400 = vrot.lane.b32.xlu0 %v1222, 96
    %v1401 = vpop.permute.xlu0 %1400
    %1402 = vrot.lane.b32.xlu0 %v1223, 96
    %v1403 = vpop.permute.xlu0 %1402
    %1404 = vrot.lane.b32.xlu0 %v1224, 96
    %v1405 = vpop.permute.xlu0 %1404
    %1406 = vrot.lane.b32.xlu0 %v1225, 96
    %v1407 = vpop.permute.xlu0 %1406
    %1408 = vrot.lane.b32.xlu0 %v1226, 96
    %v1409 = vpop.permute.xlu0 %1408
    %1410 = vrot.lane.b32.xlu0 %v1227, 96
    %v1411 = vpop.permute.xlu0 %1410
    %1428 = vrot.lane.b32.xlu0 %v1308, 32
    %v1429 = vpop.permute.xlu0 %1428
    %1430 = vrot.lane.b32.xlu0 %v1309, 32
    %v1431 = vpop.permute.xlu0 %1430
    %1432 = vrot.lane.b32.xlu0 %v1310, 32
    %v1433 = vpop.permute.xlu0 %1432
    %1434 = vrot.lane.b32.xlu0 %v1311, 32
    %v1435 = vpop.permute.xlu0 %1434
    %1436 = vrot.lane.b32.xlu0 %v1312, 32
    %v1437 = vpop.permute.xlu0 %1436
    %1438 = vrot.lane.b32.xlu0 %v1313, 32
    %v1439 = vpop.permute.xlu0 %1438
    %1440 = vrot.lane.b32.xlu0 %v1314, 32
    %v1441 = vpop.permute.xlu0 %1440
    %1442 = vrot.lane.b32.xlu0 %v1315, 32
    %v1443 = vpop.permute.xlu0 %1442
    %1460 = vrot.lane.b32.xlu0 %v1316, 64
    %v1461 = vpop.permute.xlu0 %1460
    %1462 = vrot.lane.b32.xlu0 %v1317, 64
    %v1463 = vpop.permute.xlu0 %1462
    %1464 = vrot.lane.b32.xlu0 %v1318, 64
    %v1465 = vpop.permute.xlu0 %1464
    %1466 = vrot.lane.b32.xlu0 %v1319, 64
    %v1467 = vpop.permute.xlu0 %1466
    %1468 = vrot.lane.b32.xlu0 %v1320, 64
    %v1469 = vpop.permute.xlu0 %1468
    %1470 = vrot.lane.b32.xlu0 %v1321, 64
    %v1471 = vpop.permute.xlu0 %1470
    %1472 = vrot.lane.b32.xlu0 %v1322, 64
    %v1473 = vpop.permute.xlu0 %1472
    %1474 = vrot.lane.b32.xlu0 %v1323, 64
    %v1475 = vpop.permute.xlu0 %1474
    %v1484 = vsel %vm812, %v1244, %v1333
    %v1485 = vsel %vm812, %v1245, %v1335
    %v1486 = vsel %vm812, %v1246, %v1337
    %v1487 = vsel %vm812, %v1247, %v1339
    %v1488 = vsel %vm812, %v1248, %v1341
    %v1489 = vsel %vm812, %v1249, %v1343
    %v1490 = vsel %vm812, %v1250, %v1345
    %v1491 = vsel %vm812, %v1251, %v1347
    %v1492 = vsel %vm385, %v1484, %v1365
    %v1493 = vsel %vm385, %v1485, %v1367
    %v1494 = vsel %vm385, %v1486, %v1369
    %v1495 = vsel %vm385, %v1487, %v1371
    %v1496 = vsel %vm385, %v1488, %v1373
    %v1497 = vsel %vm385, %v1489, %v1375
    %v1498 = vsel %vm385, %v1490, %v1377
    %v1499 = vsel %vm385, %v1491, %v1379
    %v1500 = vsel %vm829, %v1492, %v1397
    %v1501 = vsel %vm829, %v1493, %v1399
    %v1502 = vsel %vm829, %v1494, %v1401
    %v1503 = vsel %vm829, %v1495, %v1403
    %v1504 = vsel %vm829, %v1496, %v1405
    %v1505 = vsel %vm829, %v1497, %v1407
    %v1506 = vsel %vm829, %v1498, %v1409
    %v1507 = vsel %vm829, %v1499, %v1411
    %v1508 = vsel %vm812, %v1300, %v1429
    %v1509 = vsel %vm812, %v1301, %v1431
    %v1510 = vsel %vm812, %v1302, %v1433
    %v1511 = vsel %vm812, %v1303, %v1435
    %v1512 = vsel %vm812, %v1304, %v1437
    %v1513 = vsel %vm812, %v1305, %v1439
    %v1514 = vsel %vm812, %v1306, %v1441
    %v1515 = vsel %vm812, %v1307, %v1443
    %v1516 = vsel %vm385, %v1508, %v1461
    %v1517 = vsel %vm385, %v1509, %v1463
    %v1518 = vsel %vm385, %v1510, %v1465
    %v1519 = vsel %vm385, %v1511, %v1467
    %v1520 = vsel %vm385, %v1512, %v1469
    %v1521 = vsel %vm385, %v1513, %v1471
    %v1522 = vsel %vm385, %v1514, %v1473
    %v1523 = vsel %vm385, %v1515, %v1475
    %s1524 = scalar_lea.vmem [#allocation11], 224
    %v1525 = vld [vmem:[%s1524] sm:$0xff]
    %v1526 = vld [vmem:[%s1524 + $0x8] sm:$0xff]
    %v1527 = vld [vmem:[%s1524 + $0x10] sm:$0xff]
    %v1528 = vld [vmem:[%s1524 + $0x18] sm:$0xff]
    %v1529 = vld [vmem:[%s1524 + $0x20] sm:$0xff]
    %v1530 = vld [vmem:[%s1524 + $0x28] sm:$0xff]
    %v1531 = vld [vmem:[%s1524 + $0x30] sm:$0xff]
    %v1532 = vld [vmem:[%s1524 + $0x38] sm:$0xff]
    %v1533 = vld [vmem:[%s1524 + $0x40] sm:$0xff]
    %v1534 = vld [vmem:[%s1524 + $0x48] sm:$0xff]
    %v1535 = vld [vmem:[%s1524 + $0x50] sm:$0xff]
    %v1536 = vld [vmem:[%s1524 + $0x58] sm:$0xff]
    %v1537 = vld [vmem:[%s1524 + $0x60] sm:$0xff]
    %v1538 = vld [vmem:[%s1524 + $0x68] sm:$0xff]
    %v1539 = vld [vmem:[%s1524 + $0x70] sm:$0xff]
    %v1540 = vld [vmem:[%s1524 + $0x78] sm:$0xff]
    %v1541 = vld [vmem:[%s1524 + $0x80] sm:$0xff]
    %v1542 = vld [vmem:[%s1524 + $0x88] sm:$0xff]
    %v1543 = vld [vmem:[%s1524 + $0x90] sm:$0xff]
    %v1544 = vld [vmem:[%s1524 + $0x98] sm:$0xff]
    %v1545 = vld [vmem:[%s1524 + $0xa0] sm:$0xff]
    %v1546 = vld [vmem:[%s1524 + $0xa8] sm:$0xff]
    %v1547 = vld [vmem:[%s1524 + $0xb0] sm:$0xff]
    %v1548 = vld [vmem:[%s1524 + $0xb8] sm:$0xff]
    %v1549 = vld [vmem:[%s1524 + $0xc0] sm:$0xff]
    %v1550 = vld [vmem:[%s1524 + $0xc8] sm:$0xff]
    %v1551 = vld [vmem:[%s1524 + $0xd0] sm:$0xff]
    %v1552 = vld [vmem:[%s1524 + $0xd8] sm:$0xff]
    %v1554 = vsel %vm829, %v1516, 0
    %v1557 = vsel %vm829, %v1517, 0
    %v1560 = vsel %vm829, %v1518, 0
    %v1563 = vsel %vm829, %v1519, 0
    %v1566 = vsel %vm829, %v1520, 0
    %v1569 = vsel %vm829, %v1521, 0
    %v1572 = vsel %vm829, %v1522, 0
    %v1575 = vsel %vm829, %v1523, 0
    %1577 = vmatprep.subr.mxu0 0.0
    %1578 = vmatpush1.msra.mxu0 %v1525
    %1579 = vmatprep.subr.mxu0 0.0
    %1580 = vmatpush1.msra.mxu0 %v1526
    %1581 = vmatprep.subr.mxu0 0.0
    %1582 = vmatpush1.msra.mxu0 %v1527
    %1583 = vmatprep.subr.mxu0 0.0
    %1584 = vmatpush1.msra.mxu0 %v1528
    %1585 = vmatprep.subr.mxu0 0.0
    %1586 = vmatpush1.msra.mxu0 %v1529
    %1587 = vmatprep.subr.mxu0 0.0
    %1588 = vmatpush1.msra.mxu0 %v1530
    %1589 = vmatprep.subr.mxu0 0.0
    %1590 = vmatpush1.msra.mxu0 %v1531
    %1591 = vmatprep.subr.mxu0 0.0
    %1592 = vmatpush1.msra.mxu0 %v1532
    %1593 = vmatprep.subr.mxu0 0.0
    %1594 = vmatpush1.msra.mxu0 %v1533
    %1595 = vmatprep.subr.mxu0 0.0
    %1596 = vmatpush1.msra.mxu0 %v1534
    %1597 = vmatprep.subr.mxu0 0.0
    %1598 = vmatpush1.msra.mxu0 %v1535
    %1599 = vmatprep.subr.mxu0 0.0
    %1600 = vmatpush1.msra.mxu0 %v1536
    %1601 = vmatprep.subr.mxu0 0.0
    %1602 = vmatpush1.msra.mxu0 %v1537
    %1603 = vmatprep.subr.mxu0 0.0
    %1604 = vmatpush1.msra.mxu0 %v1538
    %1605 = vmatprep.subr.mxu0 0.0
    %1606 = vmatpush1.msra.mxu0 %v1539
    %1607 = vmatprep.subr.mxu0 0.0
    %1608 = vmatpush1.msra.mxu0 %v1540
    %1609 = vmatprep.subr.mxu0 0.0
    %1610 = vmatpush1.msra.mxu0 %v1541
    %1611 = vmatprep.subr.mxu0 0.0
    %1612 = vmatpush1.msra.mxu0 %v1542
    %1613 = vmatprep.subr.mxu0 0.0
    %1614 = vmatpush1.msra.mxu0 %v1543
    %1615 = vmatprep.subr.mxu0 0.0
    %1616 = vmatpush1.msra.mxu0 %v1544
    %1617 = vmatprep.subr.mxu0 0.0
    %1618 = vmatpush1.msra.mxu0 %v1545
    %1619 = vmatprep.subr.mxu0 0.0
    %1620 = vmatpush1.msra.mxu0 %v1546
    %1621 = vmatprep.subr.mxu0 0.0
    %1622 = vmatpush1.msra.mxu0 %v1547
    %1623 = vmatprep.subr.mxu0 0.0
    %1624 = vmatpush1.msra.mxu0 %v1548
    %1625 = vmatprep.subr.mxu0 0.0
    %1626 = vmatpush1.msra.mxu0 %v1549
    %1627 = vmatprep.subr.mxu0 0.0
    %1628 = vmatpush1.msra.mxu0 %v1550
    %1629 = vmatprep.subr.mxu0 0.0
    %1630 = vmatpush1.msra.mxu0 %v1551
    %1631 = vmatprep.subr.mxu0 0.0
    %1632 = vmatpush1.msra.mxu0 %v1552
    %1633 = vmatprep.subr.mxu0 0.0
    %1634 = vmatpush1.msra.mxu0 0.0
    %1635 = vmatprep.subr.mxu0 0.0
    %1636 = vmatpush1.msra.mxu0 0.0
    %1637 = vmatprep.subr.mxu0 0.0
    %1638 = vmatpush1.msra.mxu0 0.0
    %1639 = vmatprep.subr.mxu0 0.0
    %1640 = vmatpush1.msra.mxu0 0.0
    %1641 = vmatprep.mubr.f32.mxu0 %v1554
    %1642 = vmatmul.mubr.f32.gmra.mrb[0].mxu0 %v1500
    %v1643 = vpop.f32.mrb[0].mxu0
    %v1644 = vadd.f32 0.0, %v1643
    %v1645 = vpop.f32.mrb[0].mxu0
    %1646 = vmatprep.mubr.f32.mxu0 %v1557
    %1647 = vmatmul.mubr.f32.gmra.mrb[0].mxu0 %v1501
    %v1648 = vpop.f32.mrb[0].mxu0
    %v1649 = vadd.f32 0.0, %v1648
    %v1650 = vpop.f32.mrb[0].mxu0
    %1651 = vmatprep.mubr.f32.mxu0 %v1560
    %1652 = vmatmul.mubr.f32.gmra.mrb[0].mxu0 %v1502
    %v1653 = vpop.f32.mrb[0].mxu0
    %v1654 = vadd.f32 0.0, %v1653
    %v1655 = vpop.f32.mrb[0].mxu0
    %1656 = vmatprep.mubr.f32.mxu0 %v1563
    %1657 = vmatmul.mubr.f32.gmra.mrb[0].mxu0 %v1503
    %v1658 = vpop.f32.mrb[0].mxu0
    %v1659 = vadd.f32 0.0, %v1658
    %v1660 = vpop.f32.mrb[0].mxu0
    %1661 = vmatprep.mubr.f32.mxu0 %v1566
    %1662 = vmatmul.mubr.f32.gmra.mrb[0].mxu0 %v1504
    %v1663 = vpop.f32.mrb[0].mxu0
    %v1664 = vadd.f32 0.0, %v1663
    %v1665 = vpop.f32.mrb[0].mxu0
    %1666 = vmatprep.mubr.f32.mxu0 %v1569
    %1667 = vmatmul.mubr.f32.gmra.mrb[0].mxu0 %v1505
    %v1668 = vpop.f32.mrb[0].mxu0
    %v1669 = vadd.f32 0.0, %v1668
    %v1670 = vpop.f32.mrb[0].mxu0
    %1671 = vmatprep.mubr.f32.mxu0 %v1572
    %1672 = vmatmul.mubr.f32.gmra.mrb[0].mxu0 %v1506
    %v1673 = vpop.f32.mrb[0].mxu0
    %v1674 = vadd.f32 0.0, %v1673
    %v1675 = vpop.f32.mrb[0].mxu0
    %1676 = vmatprep.mubr.f32.mxu0 %v1575
    %1677 = vmatmul.mubr.f32.gmra.mrb[0].mxu0 %v1507
    %v1678 = vpop.f32.mrb[0].mxu0
    %v1679 = vadd.f32 0.0, %v1678
    %v1680 = vpop.f32.mrb[0].mxu0
    %1681 = vdwg.mxu0
    %v1682 = vadd.f32 %v1026, %v1644
    %v1683 = vadd.f32 %v1027, %v1649
    %v1684 = vadd.f32 %v1028, %v1654
    %v1685 = vadd.f32 %v1029, %v1659
    %v1686 = vadd.f32 %v1030, %v1664
    %v1687 = vadd.f32 %v1031, %v1669
    %v1688 = vadd.f32 %v1032, %v1674
    %v1689 = vadd.f32 %v1033, %v1679
    %s1690 = scalar_lea.vmem [#allocation13], 1
    %v1691 = vld [vmem:[%s1690] sm:$0x1]
    %v1693 = vlaneseq
    %v1694 = vshrl.u32 %v1693, 7
    %v1695 = vsub.s32 0, %v1694
    %v1696 = vrot.slane %v1691, %v1695
    %v1698 = vadd.f32 %v1682, %v1696
    %v1699 = vadd.f32 %v1683, %v1696
    %v1700 = vadd.f32 %v1684, %v1696
    %v1701 = vadd.f32 %v1685, %v1696
    %v1702 = vadd.f32 %v1686, %v1696
    %v1703 = vadd.f32 %v1687, %v1696
    %v1704 = vadd.f32 %v1688, %v1696
    %v1705 = vadd.f32 %v1689, %v1696
    %v1706 = vmax.f32 %v1698, 0.0
    %v1707 = vmax.f32 %v1699, 0.0
    %v1708 = vmax.f32 %v1700, 0.0
    %v1709 = vmax.f32 %v1701, 0.0
    %v1710 = vmax.f32 %v1702, 0.0
    %v1711 = vmax.f32 %v1703, 0.0
    %v1712 = vmax.f32 %v1704, 0.0
    %v1713 = vmax.f32 %v1705, 0.0
    %s1714 = scalar_lea.vmem [#allocation5], 128
    %v1715 = vld [vmem:[%s1714] sm:$0xff]
    %v1716 = vld [vmem:[%s1714 + $0x8] sm:$0xff]
    %v1717 = vld [vmem:[%s1714 + $0x10] sm:$0xff]
    %v1718 = vld [vmem:[%s1714 + $0x18] sm:$0xff]
    %v1719 = vld [vmem:[%s1714 + $0x20] sm:$0xff]
    %v1720 = vld [vmem:[%s1714 + $0x28] sm:$0xff]
    %v1721 = vld [vmem:[%s1714 + $0x30] sm:$0xff]
    %v1722 = vld [vmem:[%s1714 + $0x38] sm:$0xff]
    %s1723 = scalar_lea.vmem [#allocation7], 2
    %v1724 = vld [vmem:[%s1723] sm:$0x1]
    %v1726 = vlaneseq
    %v1727 = vshrl.u32 %v1726, 7
    %v1728 = vsub.s32 0, %v1727
    %v1729 = vrot.slane %v1724, %v1728
    %v1732 = vsel %vm385, %v1706, 0
    %v1735 = vsel %vm385, %v1707, 0
    %v1738 = vsel %vm385, %v1708, 0
    %v1741 = vsel %vm385, %v1709, 0
    %v1744 = vsel %vm385, %v1710, 0
    %v1747 = vsel %vm385, %v1711, 0
    %v1750 = vsel %vm385, %v1712, 0
    %v1753 = vsel %vm385, %v1713, 0
    %1755 = vmatprep.subr.mxu0 0.0
    %1756 = vmatpush1.msra.mxu0 %v1715
    %1757 = vmatprep.subr.mxu0 0.0
    %1758 = vmatpush1.msra.mxu0 %v1716
    %1759 = vmatprep.subr.mxu0 0.0
    %1760 = vmatpush1.msra.mxu0 %v1717
    %1761 = vmatprep.subr.mxu0 0.0
    %1762 = vmatpush1.msra.mxu0 %v1718
    %1763 = vmatprep.subr.mxu0 0.0
    %1764 = vmatpush1.msra.mxu0 %v1719
    %1765 = vmatprep.subr.mxu0 0.0
    %1766 = vmatpush1.msra.mxu0 %v1720
    %1767 = vmatprep.subr.mxu0 0.0
    %1768 = vmatpush1.msra.mxu0 %v1721
    %1769 = vmatprep.subr.mxu0 0.0
    %1770 = vmatpush1.msra.mxu0 %v1722
    %1771 = vmatprep.subr.mxu0 0.0
    %1772 = vmatpush1.msra.mxu0 0.0
    %1773 = vmatprep.subr.mxu0 0.0
    %1774 = vmatpush1.msra.mxu0 0.0
    %1775 = vmatprep.subr.mxu0 0.0
    %1776 = vmatpush1.msra.mxu0 0.0
    %1777 = vmatprep.subr.mxu0 0.0
    %1778 = vmatpush1.msra.mxu0 0.0
    %1779 = vmatprep.subr.mxu0 0.0
    %1780 = vmatpush1.msra.mxu0 0.0
    %1781 = vmatprep.subr.mxu0 0.0
    %1782 = vmatpush1.msra.mxu0 0.0
    %1783 = vmatprep.subr.mxu0 0.0
    %1784 = vmatpush1.msra.mxu0 0.0
    %1785 = vmatprep.subr.mxu0 0.0
    %1786 = vmatpush1.msra.mxu0 0.0
    %1787 = vmatprep.subr.mxu0 0.0
    %1788 = vmatpush1.msra.mxu0 0.0
    %1789 = vmatprep.subr.mxu0 0.0
    %1790 = vmatpush1.msra.mxu0 0.0
    %1791 = vmatprep.subr.mxu0 0.0
    %1792 = vmatpush1.msra.mxu0 0.0
    %1793 = vmatprep.subr.mxu0 0.0
    %1794 = vmatpush1.msra.mxu0 0.0
    %1795 = vmatprep.subr.mxu0 0.0
    %1796 = vmatpush1.msra.mxu0 0.0
    %1797 = vmatprep.subr.mxu0 0.0
    %1798 = vmatpush1.msra.mxu0 0.0
    %1799 = vmatprep.subr.mxu0 0.0
    %1800 = vmatpush1.msra.mxu0 0.0
    %1801 = vmatprep.subr.mxu0 0.0
    %1802 = vmatpush1.msra.mxu0 0.0
    %1803 = vmatprep.subr.mxu0 0.0
    %1804 = vmatpush1.msra.mxu0 0.0
    %1805 = vmatprep.subr.mxu0 0.0
    %1806 = vmatpush1.msra.mxu0 0.0
    %1807 = vmatprep.subr.mxu0 0.0
    %1808 = vmatpush1.msra.mxu0 0.0
    %1809 = vmatprep.subr.mxu0 0.0
    %1810 = vmatpush1.msra.mxu0 0.0
    %1811 = vmatprep.subr.mxu0 0.0
    %1812 = vmatpush1.msra.mxu0 0.0
    %1813 = vmatprep.subr.mxu0 0.0
    %1814 = vmatpush1.msra.mxu0 0.0
    %1815 = vmatprep.subr.mxu0 0.0
    %1816 = vmatpush1.msra.mxu0 0.0
    %1817 = vmatprep.subr.mxu0 0.0
    %1818 = vmatpush1.msra.mxu0 0.0
    %1819 = vmatprep.mubr.f32.mxu0 0.0
    %1820 = vmatmul.mubr.f32.gmra.mrb[0].mxu0 %v1732
    %v1821 = vpop.f32.mrb[0].mxu0
    %v1822 = vadd.f32 %v1729, %v1821
    %v1823 = vpop.f32.mrb[0].mxu0
    %1824 = vmatprep.mubr.f32.mxu0 0.0
    %1825 = vmatmul.mubr.f32.gmra.mrb[0].mxu0 %v1735
    %v1826 = vpop.f32.mrb[0].mxu0
    %v1827 = vadd.f32 %v1729, %v1826
    %v1828 = vpop.f32.mrb[0].mxu0
    %1829 = vmatprep.mubr.f32.mxu0 0.0
    %1830 = vmatmul.mubr.f32.gmra.mrb[0].mxu0 %v1738
    %v1831 = vpop.f32.mrb[0].mxu0
    %v1832 = vadd.f32 %v1729, %v1831
    %v1833 = vpop.f32.mrb[0].mxu0
    %1834 = vmatprep.mubr.f32.mxu0 0.0
    %1835 = vmatmul.mubr.f32.gmra.mrb[0].mxu0 %v1741
    %v1836 = vpop.f32.mrb[0].mxu0
    %v1837 = vadd.f32 %v1729, %v1836
    %v1838 = vpop.f32.mrb[0].mxu0
    %1839 = vmatprep.mubr.f32.mxu0 0.0
    %1840 = vmatmul.mubr.f32.gmra.mrb[0].mxu0 %v1744
    %v1841 = vpop.f32.mrb[0].mxu0
    %v1842 = vadd.f32 %v1729, %v1841
    %v1843 = vpop.f32.mrb[0].mxu0
    %1844 = vmatprep.mubr.f32.mxu0 0.0
    %1845 = vmatmul.mubr.f32.gmra.mrb[0].mxu0 %v1747
    %v1846 = vpop.f32.mrb[0].mxu0
    %v1847 = vadd.f32 %v1729, %v1846
    %v1848 = vpop.f32.mrb[0].mxu0
    %1849 = vmatprep.mubr.f32.mxu0 0.0
    %1850 = vmatmul.mubr.f32.gmra.mrb[0].mxu0 %v1750
    %v1851 = vpop.f32.mrb[0].mxu0
    %v1852 = vadd.f32 %v1729, %v1851
    %v1853 = vpop.f32.mrb[0].mxu0
    %1854 = vmatprep.mubr.f32.mxu0 0.0
    %1855 = vmatmul.mubr.f32.gmra.mrb[0].mxu0 %v1753
    %v1856 = vpop.f32.mrb[0].mxu0
    %v1857 = vadd.f32 %v1729, %v1856
    %v1858 = vpop.f32.mrb[0].mxu0
    %1859 = vdwg.mxu0
    %v1860 = vmax.f32 %v1822, 0.0
    %v1861 = vmax.f32 %v1827, 0.0
    %v1862 = vmax.f32 %v1832, 0.0
    %v1863 = vmax.f32 %v1837, 0.0
    %v1864 = vmax.f32 %v1842, 0.0
    %v1865 = vmax.f32 %v1847, 0.0
    %v1866 = vmax.f32 %v1852, 0.0
    %v1867 = vmax.f32 %v1857, 0.0
    %s1868 = scalar_lea.vmem [#allocation8], 2
    %v1869 = vld [vmem:[%s1868] sm:$0x1]
    %v1871 = vlaneseq
    %v1872 = vshrl.u32 %v1871, 7
    %v1873 = vsub.s32 0, %v1872
    %v1874 = vrot.slane %v1869, %v1873
    %v1876 = vmul.f32 %v1860, %v1874
    %v1877 = vmul.f32 %v1861, %v1874
    %v1878 = vmul.f32 %v1862, %v1874
    %v1879 = vmul.f32 %v1863, %v1874
    %v1880 = vmul.f32 %v1864, %v1874
    %v1881 = vmul.f32 %v1865, %v1874
    %v1882 = vmul.f32 %v1866, %v1874
    %v1883 = vmul.f32 %v1867, %v1874
    %s1884 = scalar_lea.vmem [#allocation10], 2
    %v1885 = vld [vmem:[%s1884] sm:$0x1]
    %v1887 = vlaneseq
    %v1888 = vshrl.u32 %v1887, 7
    %v1889 = vsub.s32 0, %v1888
    %v1890 = vrot.slane %v1885, %v1889
    %v1892 = vadd.f32 %v1876, %v1890
    %v1893 = vadd.f32 %v1877, %v1890
    %v1894 = vadd.f32 %v1878, %v1890
    %v1895 = vadd.f32 %v1879, %v1890
    %v1896 = vadd.f32 %v1880, %v1890
    %v1897 = vadd.f32 %v1881, %v1890
    %v1898 = vadd.f32 %v1882, %v1890
    %v1899 = vadd.f32 %v1883, %v1890
    %v1900 = vrot.slane %v1892, 2
    %v1901 = vrot.slane %v1893, 2
    %v1902 = vrot.slane %v1894, 2
    %v1903 = vrot.slane %v1895, 2
    %v1904 = vrot.slane %v1896, 2
    %v1905 = vrot.slane %v1897, 2
    %v1906 = vrot.slane %v1898, 2
    %v1907 = vrot.slane %v1899, 2
    %v1908 = vsel %vm561, %v1906, %v1907
    %v1909 = vsel %vm561, %v1905, %v1906
    %v1910 = vsel %vm561, %v1904, %v1905
    %v1911 = vsel %vm561, %v1903, %v1904
    %v1912 = vsel %vm561, %v1902, %v1903
    %v1913 = vsel %vm561, %v1901, %v1902
    %v1914 = vsel %vm561, %v1900, %v1901
    %v1915 = vsel %vm561, %v1907, %v1900
    %v1916 = vsel %vm194, %v1915, 0.0
    %v1917 = vsel %vm195, %v1914, 0.0
    %v1918 = vsel %vm196, %v1913, 0.0
    %v1919 = vsel %vm197, %v1912, 0.0
    %v1920 = vsel %vm198, %v1911, 0.0
    %v1921 = vsel %vm199, %v1910, 0.0
    %v1922 = vsel %vm200, %v1909, 0.0
    %v1923 = vsel %vm201, %v1908, 0.0
    %v1924 = vrot.slane %v1892, 4
    %v1925 = vrot.slane %v1893, 4
    %v1926 = vrot.slane %v1894, 4
    %v1927 = vrot.slane %v1895, 4
    %v1928 = vrot.slane %v1896, 4
    %v1929 = vrot.slane %v1897, 4
    %v1930 = vrot.slane %v1898, 4
    %v1931 = vrot.slane %v1899, 4
    %v1932 = vsel %vm586, %v1930, %v1931
    %v1933 = vsel %vm586, %v1929, %v1930
    %v1934 = vsel %vm586, %v1928, %v1929
    %v1935 = vsel %vm586, %v1927, %v1928
    %v1936 = vsel %vm586, %v1926, %v1927
    %v1937 = vsel %vm586, %v1925, %v1926
    %v1938 = vsel %vm586, %v1924, %v1925
    %v1939 = vsel %vm586, %v1931, %v1924
    %v1940 = vsel %vm226, %v1939, 0.0
    %v1941 = vsel %vm227, %v1938, 0.0
    %v1942 = vsel %vm228, %v1937, 0.0
    %v1943 = vsel %vm229, %v1936, 0.0
    %v1944 = vsel %vm230, %v1935, 0.0
    %v1945 = vsel %vm231, %v1934, 0.0
    %v1946 = vsel %vm232, %v1933, 0.0
    %v1947 = vsel %vm233, %v1932, 0.0
    %v1948 = vrot.slane %v1892, 6
    %v1949 = vrot.slane %v1893, 6
    %v1950 = vrot.slane %v1894, 6
    %v1951 = vrot.slane %v1895, 6
    %v1952 = vrot.slane %v1896, 6
    %v1953 = vrot.slane %v1897, 6
    %v1954 = vrot.slane %v1898, 6
    %v1955 = vrot.slane %v1899, 6
    %v1956 = vsel %vm611, %v1954, %v1955
    %v1957 = vsel %vm611, %v1953, %v1954
    %v1958 = vsel %vm611, %v1952, %v1953
    %v1959 = vsel %vm611, %v1951, %v1952
    %v1960 = vsel %vm611, %v1950, %v1951
    %v1961 = vsel %vm611, %v1949, %v1950
    %v1962 = vsel %vm611, %v1948, %v1949
    %v1963 = vsel %vm611, %v1955, %v1948
    %v1964 = vsel %vm258, %v1963, 0.0
    %v1965 = vsel %vm259, %v1962, 0.0
    %v1966 = vsel %vm260, %v1961, 0.0
    %v1967 = vsel %vm261, %v1960, 0.0
    %v1968 = vsel %vm262, %v1959, 0.0
    %v1969 = vsel %vm263, %v1958, 0.0
    %v1970 = vsel %vm264, %v1957, 0.0
    %v1971 = vsel %vm265, %v1956, 0.0
    %v1972 = vsel %vm290, %v1914, 0.0
    %v1973 = vsel %vm291, %v1913, 0.0
    %v1974 = vsel %vm292, %v1912, 0.0
    %v1975 = vsel %vm293, %v1911, 0.0
    %v1976 = vsel %vm294, %v1910, 0.0
    %v1977 = vsel %vm295, %v1909, 0.0
    %v1978 = vsel %vm296, %v1908, 0.0
    %v1979 = vsel %vm297, %v1915, 0.0
    %v1980 = vsel %vm322, %v1938, 0.0
    %v1981 = vsel %vm323, %v1937, 0.0
    %v1982 = vsel %vm324, %v1936, 0.0
    %v1983 = vsel %vm325, %v1935, 0.0
    %v1984 = vsel %vm326, %v1934, 0.0
    %v1985 = vsel %vm327, %v1933, 0.0
    %v1986 = vsel %vm328, %v1932, 0.0
    %v1987 = vsel %vm329, %v1939, 0.0
    %v1988 = vsel %vm354, %v1962, 0.0
    %v1989 = vsel %vm355, %v1961, 0.0
    %v1990 = vsel %vm356, %v1960, 0.0
    %v1991 = vsel %vm357, %v1959, 0.0
    %v1992 = vsel %vm358, %v1958, 0.0
    %v1993 = vsel %vm359, %v1957, 0.0
    %v1994 = vsel %vm360, %v1956, 0.0
    %v1995 = vsel %vm361, %v1963, 0.0
    %2004 = vrot.lane.b32.xlu0 %v1940, 32
    %v2005 = vpop.permute.xlu0 %2004
    %2006 = vrot.lane.b32.xlu0 %v1941, 32
    %v2007 = vpop.permute.xlu0 %2006
    %2008 = vrot.lane.b32.xlu0 %v1942, 32
    %v2009 = vpop.permute.xlu0 %2008
    %2010 = vrot.lane.b32.xlu0 %v1943, 32
    %v2011 = vpop.permute.xlu0 %2010
    %2012 = vrot.lane.b32.xlu0 %v1944, 32
    %v2013 = vpop.permute.xlu0 %2012
    %2014 = vrot.lane.b32.xlu0 %v1945, 32
    %v2015 = vpop.permute.xlu0 %2014
    %2016 = vrot.lane.b32.xlu0 %v1946, 32
    %v2017 = vpop.permute.xlu0 %2016
    %2018 = vrot.lane.b32.xlu0 %v1947, 32
    %v2019 = vpop.permute.xlu0 %2018
    %2036 = vrot.lane.b32.xlu0 %v1964, 64
    %v2037 = vpop.permute.xlu0 %2036
    %2038 = vrot.lane.b32.xlu0 %v1965, 64
    %v2039 = vpop.permute.xlu0 %2038
    %2040 = vrot.lane.b32.xlu0 %v1966, 64
    %v2041 = vpop.permute.xlu0 %2040
    %2042 = vrot.lane.b32.xlu0 %v1967, 64
    %v2043 = vpop.permute.xlu0 %2042
    %2044 = vrot.lane.b32.xlu0 %v1968, 64
    %v2045 = vpop.permute.xlu0 %2044
    %2046 = vrot.lane.b32.xlu0 %v1969, 64
    %v2047 = vpop.permute.xlu0 %2046
    %2048 = vrot.lane.b32.xlu0 %v1970, 64
    %v2049 = vpop.permute.xlu0 %2048
    %2050 = vrot.lane.b32.xlu0 %v1971, 64
    %v2051 = vpop.permute.xlu0 %2050
    %2068 = vrot.lane.b32.xlu0 %v1892, 96
    %v2069 = vpop.permute.xlu0 %2068
    %2070 = vrot.lane.b32.xlu0 %v1893, 96
    %v2071 = vpop.permute.xlu0 %2070
    %2072 = vrot.lane.b32.xlu0 %v1894, 96
    %v2073 = vpop.permute.xlu0 %2072
    %2074 = vrot.lane.b32.xlu0 %v1895, 96
    %v2075 = vpop.permute.xlu0 %2074
    %2076 = vrot.lane.b32.xlu0 %v1896, 96
    %v2077 = vpop.permute.xlu0 %2076
    %2078 = vrot.lane.b32.xlu0 %v1897, 96
    %v2079 = vpop.permute.xlu0 %2078
    %2080 = vrot.lane.b32.xlu0 %v1898, 96
    %v2081 = vpop.permute.xlu0 %2080
    %2082 = vrot.lane.b32.xlu0 %v1899, 96
    %v2083 = vpop.permute.xlu0 %2082
    %2100 = vrot.lane.b32.xlu0 %v1980, 32
    %v2101 = vpop.permute.xlu0 %2100
    %2102 = vrot.lane.b32.xlu0 %v1981, 32
    %v2103 = vpop.permute.xlu0 %2102
    %2104 = vrot.lane.b32.xlu0 %v1982, 32
    %v2105 = vpop.permute.xlu0 %2104
    %2106 = vrot.lane.b32.xlu0 %v1983, 32
    %v2107 = vpop.permute.xlu0 %2106
    %2108 = vrot.lane.b32.xlu0 %v1984, 32
    %v2109 = vpop.permute.xlu0 %2108
    %2110 = vrot.lane.b32.xlu0 %v1985, 32
    %v2111 = vpop.permute.xlu0 %2110
    %2112 = vrot.lane.b32.xlu0 %v1986, 32
    %v2113 = vpop.permute.xlu0 %2112
    %2114 = vrot.lane.b32.xlu0 %v1987, 32
    %v2115 = vpop.permute.xlu0 %2114
    %2132 = vrot.lane.b32.xlu0 %v1988, 64
    %v2133 = vpop.permute.xlu0 %2132
    %2134 = vrot.lane.b32.xlu0 %v1989, 64
    %v2135 = vpop.permute.xlu0 %2134
    %2136 = vrot.lane.b32.xlu0 %v1990, 64
    %v2137 = vpop.permute.xlu0 %2136
    %2138 = vrot.lane.b32.xlu0 %v1991, 64
    %v2139 = vpop.permute.xlu0 %2138
    %2140 = vrot.lane.b32.xlu0 %v1992, 64
    %v2141 = vpop.permute.xlu0 %2140
    %2142 = vrot.lane.b32.xlu0 %v1993, 64
    %v2143 = vpop.permute.xlu0 %2142
    %2144 = vrot.lane.b32.xlu0 %v1994, 64
    %v2145 = vpop.permute.xlu0 %2144
    %2146 = vrot.lane.b32.xlu0 %v1995, 64
    %v2147 = vpop.permute.xlu0 %2146
    %v2156 = vsel %vm812, %v1916, %v2005
    %v2157 = vsel %vm812, %v1917, %v2007
    %v2158 = vsel %vm812, %v1918, %v2009
    %v2159 = vsel %vm812, %v1919, %v2011
    %v2160 = vsel %vm812, %v1920, %v2013
    %v2161 = vsel %vm812, %v1921, %v2015
    %v2162 = vsel %vm812, %v1922, %v2017
    %v2163 = vsel %vm812, %v1923, %v2019
    %v2164 = vsel %vm385, %v2156, %v2037
    %v2165 = vsel %vm385, %v2157, %v2039
    %v2166 = vsel %vm385, %v2158, %v2041
    %v2167 = vsel %vm385, %v2159, %v2043
    %v2168 = vsel %vm385, %v2160, %v2045
    %v2169 = vsel %vm385, %v2161, %v2047
    %v2170 = vsel %vm385, %v2162, %v2049
    %v2171 = vsel %vm385, %v2163, %v2051
    %v2172 = vsel %vm829, %v2164, %v2069
    %v2173 = vsel %vm829, %v2165, %v2071
    %v2174 = vsel %vm829, %v2166, %v2073
    %v2175 = vsel %vm829, %v2167, %v2075
    %v2176 = vsel %vm829, %v2168, %v2077
    %v2177 = vsel %vm829, %v2169, %v2079
    %v2178 = vsel %vm829, %v2170, %v2081
    %v2179 = vsel %vm829, %v2171, %v2083
    %v2180 = vsel %vm812, %v1972, %v2101
    %v2181 = vsel %vm812, %v1973, %v2103
    %v2182 = vsel %vm812, %v1974, %v2105
    %v2183 = vsel %vm812, %v1975, %v2107
    %v2184 = vsel %vm812, %v1976, %v2109
    %v2185 = vsel %vm812, %v1977, %v2111
    %v2186 = vsel %vm812, %v1978, %v2113
    %v2187 = vsel %vm812, %v1979, %v2115
    %v2188 = vsel %vm385, %v2180, %v2133
    %v2189 = vsel %vm385, %v2181, %v2135
    %v2190 = vsel %vm385, %v2182, %v2137
    %v2191 = vsel %vm385, %v2183, %v2139
    %v2192 = vsel %vm385, %v2184, %v2141
    %v2193 = vsel %vm385, %v2185, %v2143
    %v2194 = vsel %vm385, %v2186, %v2145
    %v2195 = vsel %vm385, %v2187, %v2147
    %s2196 = scalar_lea.vmem [#allocation11], 448
    %v2197 = vld [vmem:[%s2196] sm:$0xff]
    %v2198 = vld [vmem:[%s2196 + $0x8] sm:$0xff]
    %v2199 = vld [vmem:[%s2196 + $0x10] sm:$0xff]
    %v2200 = vld [vmem:[%s2196 + $0x18] sm:$0xff]
    %v2201 = vld [vmem:[%s2196 + $0x20] sm:$0xff]
    %v2202 = vld [vmem:[%s2196 + $0x28] sm:$0xff]
    %v2203 = vld [vmem:[%s2196 + $0x30] sm:$0xff]
    %v2204 = vld [vmem:[%s2196 + $0x38] sm:$0xff]
    %v2205 = vld [vmem:[%s2196 + $0x40] sm:$0xff]
    %v2206 = vld [vmem:[%s2196 + $0x48] sm:$0xff]
    %v2207 = vld [vmem:[%s2196 + $0x50] sm:$0xff]
    %v2208 = vld [vmem:[%s2196 + $0x58] sm:$0xff]
    %v2209 = vld [vmem:[%s2196 + $0x60] sm:$0xff]
    %v2210 = vld [vmem:[%s2196 + $0x68] sm:$0xff]
    %v2211 = vld [vmem:[%s2196 + $0x70] sm:$0xff]
    %v2212 = vld [vmem:[%s2196 + $0x78] sm:$0xff]
    %v2213 = vld [vmem:[%s2196 + $0x80] sm:$0xff]
    %v2214 = vld [vmem:[%s2196 + $0x88] sm:$0xff]
    %v2215 = vld [vmem:[%s2196 + $0x90] sm:$0xff]
    %v2216 = vld [vmem:[%s2196 + $0x98] sm:$0xff]
    %v2217 = vld [vmem:[%s2196 + $0xa0] sm:$0xff]
    %v2218 = vld [vmem:[%s2196 + $0xa8] sm:$0xff]
    %v2219 = vld [vmem:[%s2196 + $0xb0] sm:$0xff]
    %v2220 = vld [vmem:[%s2196 + $0xb8] sm:$0xff]
    %v2221 = vld [vmem:[%s2196 + $0xc0] sm:$0xff]
    %v2222 = vld [vmem:[%s2196 + $0xc8] sm:$0xff]
    %v2223 = vld [vmem:[%s2196 + $0xd0] sm:$0xff]
    %v2224 = vld [vmem:[%s2196 + $0xd8] sm:$0xff]
    %v2226 = vsel %vm829, %v2188, 0
    %v2229 = vsel %vm829, %v2189, 0
    %v2232 = vsel %vm829, %v2190, 0
    %v2235 = vsel %vm829, %v2191, 0
    %v2238 = vsel %vm829, %v2192, 0
    %v2241 = vsel %vm829, %v2193, 0
    %v2244 = vsel %vm829, %v2194, 0
    %v2247 = vsel %vm829, %v2195, 0
    %2249 = vmatprep.subr.mxu0 0.0
    %2250 = vmatpush1.msra.mxu0 %v2197
    %2251 = vmatprep.subr.mxu0 0.0
    %2252 = vmatpush1.msra.mxu0 %v2198
    %2253 = vmatprep.subr.mxu0 0.0
    %2254 = vmatpush1.msra.mxu0 %v2199
    %2255 = vmatprep.subr.mxu0 0.0
    %2256 = vmatpush1.msra.mxu0 %v2200
    %2257 = vmatprep.subr.mxu0 0.0
    %2258 = vmatpush1.msra.mxu0 %v2201
    %2259 = vmatprep.subr.mxu0 0.0
    %2260 = vmatpush1.msra.mxu0 %v2202
    %2261 = vmatprep.subr.mxu0 0.0
    %2262 = vmatpush1.msra.mxu0 %v2203
    %2263 = vmatprep.subr.mxu0 0.0
    %2264 = vmatpush1.msra.mxu0 %v2204
    %2265 = vmatprep.subr.mxu0 0.0
    %2266 = vmatpush1.msra.mxu0 %v2205
    %2267 = vmatprep.subr.mxu0 0.0
    %2268 = vmatpush1.msra.mxu0 %v2206
    %2269 = vmatprep.subr.mxu0 0.0
    %2270 = vmatpush1.msra.mxu0 %v2207
    %2271 = vmatprep.subr.mxu0 0.0
    %2272 = vmatpush1.msra.mxu0 %v2208
    %2273 = vmatprep.subr.mxu0 0.0
    %2274 = vmatpush1.msra.mxu0 %v2209
    %2275 = vmatprep.subr.mxu0 0.0
    %2276 = vmatpush1.msra.mxu0 %v2210
    %2277 = vmatprep.subr.mxu0 0.0
    %2278 = vmatpush1.msra.mxu0 %v2211
    %2279 = vmatprep.subr.mxu0 0.0
    %2280 = vmatpush1.msra.mxu0 %v2212
    %2281 = vmatprep.subr.mxu0 0.0
    %2282 = vmatpush1.msra.mxu0 %v2213
    %2283 = vmatprep.subr.mxu0 0.0
    %2284 = vmatpush1.msra.mxu0 %v2214
    %2285 = vmatprep.subr.mxu0 0.0
    %2286 = vmatpush1.msra.mxu0 %v2215
    %2287 = vmatprep.subr.mxu0 0.0
    %2288 = vmatpush1.msra.mxu0 %v2216
    %2289 = vmatprep.subr.mxu0 0.0
    %2290 = vmatpush1.msra.mxu0 %v2217
    %2291 = vmatprep.subr.mxu0 0.0
    %2292 = vmatpush1.msra.mxu0 %v2218
    %2293 = vmatprep.subr.mxu0 0.0
    %2294 = vmatpush1.msra.mxu0 %v2219
    %2295 = vmatprep.subr.mxu0 0.0
    %2296 = vmatpush1.msra.mxu0 %v2220
    %2297 = vmatprep.subr.mxu0 0.0
    %2298 = vmatpush1.msra.mxu0 %v2221
    %2299 = vmatprep.subr.mxu0 0.0
    %2300 = vmatpush1.msra.mxu0 %v2222
    %2301 = vmatprep.subr.mxu0 0.0
    %2302 = vmatpush1.msra.mxu0 %v2223
    %2303 = vmatprep.subr.mxu0 0.0
    %2304 = vmatpush1.msra.mxu0 %v2224
    %2305 = vmatprep.subr.mxu0 0.0
    %2306 = vmatpush1.msra.mxu0 0.0
    %2307 = vmatprep.subr.mxu0 0.0
    %2308 = vmatpush1.msra.mxu0 0.0
    %2309 = vmatprep.subr.mxu0 0.0
    %2310 = vmatpush1.msra.mxu0 0.0
    %2311 = vmatprep.subr.mxu0 0.0
    %2312 = vmatpush1.msra.mxu0 0.0
    %2313 = vmatprep.mubr.f32.mxu0 %v2226
    %2314 = vmatmul.mubr.f32.gmra.mrb[0].mxu0 %v2172
    %v2315 = vpop.f32.mrb[0].mxu0
    %v2316 = vadd.f32 0.0, %v2315
    %v2317 = vpop.f32.mrb[0].mxu0
    %2318 = vmatprep.mubr.f32.mxu0 %v2229
    %2319 = vmatmul.mubr.f32.gmra.mrb[0].mxu0 %v2173
    %v2320 = vpop.f32.mrb[0].mxu0
    %v2321 = vadd.f32 0.0, %v2320
    %v2322 = vpop.f32.mrb[0].mxu0
    %2323 = vmatprep.mubr.f32.mxu0 %v2232
    %2324 = vmatmul.mubr.f32.gmra.mrb[0].mxu0 %v2174
    %v2325 = vpop.f32.mrb[0].mxu0
    %v2326 = vadd.f32 0.0, %v2325
    %v2327 = vpop.f32.mrb[0].mxu0
    %2328 = vmatprep.mubr.f32.mxu0 %v2235
    %2329 = vmatmul.mubr.f32.gmra.mrb[0].mxu0 %v2175
    %v2330 = vpop.f32.mrb[0].mxu0
    %v2331 = vadd.f32 0.0, %v2330
    %v2332 = vpop.f32.mrb[0].mxu0
    %2333 = vmatprep.mubr.f32.mxu0 %v2238
    %2334 = vmatmul.mubr.f32.gmra.mrb[0].mxu0 %v2176
    %v2335 = vpop.f32.mrb[0].mxu0
    %v2336 = vadd.f32 0.0, %v2335
    %v2337 = vpop.f32.mrb[0].mxu0
    %2338 = vmatprep.mubr.f32.mxu0 %v2241
    %2339 = vmatmul.mubr.f32.gmra.mrb[0].mxu0 %v2177
    %v2340 = vpop.f32.mrb[0].mxu0
    %v2341 = vadd.f32 0.0, %v2340
    %v2342 = vpop.f32.mrb[0].mxu0
    %2343 = vmatprep.mubr.f32.mxu0 %v2244
    %2344 = vmatmul.mubr.f32.gmra.mrb[0].mxu0 %v2178
    %v2345 = vpop.f32.mrb[0].mxu0
    %v2346 = vadd.f32 0.0, %v2345
    %v2347 = vpop.f32.mrb[0].mxu0
    %2348 = vmatprep.mubr.f32.mxu0 %v2247
    %2349 = vmatmul.mubr.f32.gmra.mrb[0].mxu0 %v2179
    %v2350 = vpop.f32.mrb[0].mxu0
    %v2351 = vadd.f32 0.0, %v2350
    %v2352 = vpop.f32.mrb[0].mxu0
    %2353 = vdwg.mxu0
    %v2354 = vadd.f32 %v1698, %v2316
    %v2355 = vadd.f32 %v1699, %v2321
    %v2356 = vadd.f32 %v1700, %v2326
    %v2357 = vadd.f32 %v1701, %v2331
    %v2358 = vadd.f32 %v1702, %v2336
    %v2359 = vadd.f32 %v1703, %v2341
    %v2360 = vadd.f32 %v1704, %v2346
    %v2361 = vadd.f32 %v1705, %v2351
    %s2362 = scalar_lea.vmem [#allocation13], 2
    %v2363 = vld [vmem:[%s2362] sm:$0x1]
    %v2365 = vlaneseq
    %v2366 = vshrl.u32 %v2365, 7
    %v2367 = vsub.s32 0, %v2366
    %v2368 = vrot.slane %v2363, %v2367
    %v2370 = vadd.f32 %v2354, %v2368
    %v2371 = vadd.f32 %v2355, %v2368
    %v2372 = vadd.f32 %v2356, %v2368
    %v2373 = vadd.f32 %v2357, %v2368
    %v2374 = vadd.f32 %v2358, %v2368
    %v2375 = vadd.f32 %v2359, %v2368
    %v2376 = vadd.f32 %v2360, %v2368
    %v2377 = vadd.f32 %v2361, %v2368
    %v2378 = vld [vmem:[#allocation14] sm:$0xff]
    %v2379 = vld [vmem:[#allocation14 + $0x8] sm:$0xff]
    %v2380 = vld [vmem:[#allocation14 + $0x10] sm:$0xff]
    %v2381 = vld [vmem:[#allocation14 + $0x18] sm:$0xff]
    %v2382 = vld [vmem:[#allocation14 + $0x20] sm:$0xff]
    %v2383 = vld [vmem:[#allocation14 + $0x28] sm:$0xff]
    %v2384 = vld [vmem:[#allocation14 + $0x30] sm:$0xff]
    %v2385 = vld [vmem:[#allocation14 + $0x38] sm:$0xff]
    %v2386 = vld [vmem:[#allocation16] sm:$0x1]
    %v2388 = vlaneseq
    %v2389 = vshrl.u32 %v2388, 7
    %v2390 = vsub.s32 0, %v2389
    %v2391 = vrot.slane %v2386, %v2390
    %v2394 = vsel %vm385, %v2370, 0
    %v2397 = vsel %vm385, %v2371, 0
    %v2400 = vsel %vm385, %v2372, 0
    %v2403 = vsel %vm385, %v2373, 0
    %v2406 = vsel %vm385, %v2374, 0
    %v2409 = vsel %vm385, %v2375, 0
    %v2412 = vsel %vm385, %v2376, 0
    %v2415 = vsel %vm385, %v2377, 0
    %2417 = vmatprep.subr.mxu0 0.0
    %2418 = vmatpush1.msra.mxu0 %v2378
    %2419 = vmatprep.subr.mxu0 0.0
    %2420 = vmatpush1.msra.mxu0 %v2379
    %2421 = vmatprep.subr.mxu0 0.0
    %2422 = vmatpush1.msra.mxu0 %v2380
    %2423 = vmatprep.subr.mxu0 0.0
    %2424 = vmatpush1.msra.mxu0 %v2381
    %2425 = vmatprep.subr.mxu0 0.0
    %2426 = vmatpush1.msra.mxu0 %v2382
    %2427 = vmatprep.subr.mxu0 0.0
    %2428 = vmatpush1.msra.mxu0 %v2383
    %2429 = vmatprep.subr.mxu0 0.0
    %2430 = vmatpush1.msra.mxu0 %v2384
    %2431 = vmatprep.subr.mxu0 0.0
    %2432 = vmatpush1.msra.mxu0 %v2385
    %2433 = vmatprep.subr.mxu0 0.0
    %2434 = vmatpush1.msra.mxu0 0.0
    %2435 = vmatprep.subr.mxu0 0.0
    %2436 = vmatpush1.msra.mxu0 0.0
    %2437 = vmatprep.subr.mxu0 0.0
    %2438 = vmatpush1.msra.mxu0 0.0
    %2439 = vmatprep.subr.mxu0 0.0
    %2440 = vmatpush1.msra.mxu0 0.0
    %2441 = vmatprep.subr.mxu0 0.0
    %2442 = vmatpush1.msra.mxu0 0.0
    %2443 = vmatprep.subr.mxu0 0.0
    %2444 = vmatpush1.msra.mxu0 0.0
    %2445 = vmatprep.subr.mxu0 0.0
    %2446 = vmatpush1.msra.mxu0 0.0
    %2447 = vmatprep.subr.mxu0 0.0
    %2448 = vmatpush1.msra.mxu0 0.0
    %2449 = vmatprep.subr.mxu0 0.0
    %2450 = vmatpush1.msra.mxu0 0.0
    %2451 = vmatprep.subr.mxu0 0.0
    %2452 = vmatpush1.msra.mxu0 0.0
    %2453 = vmatprep.subr.mxu0 0.0
    %2454 = vmatpush1.msra.mxu0 0.0
    %2455 = vmatprep.subr.mxu0 0.0
    %2456 = vmatpush1.msra.mxu0 0.0
    %2457 = vmatprep.subr.mxu0 0.0
    %2458 = vmatpush1.msra.mxu0 0.0
    %2459 = vmatprep.subr.mxu0 0.0
    %2460 = vmatpush1.msra.mxu0 0.0
    %2461 = vmatprep.subr.mxu0 0.0
    %2462 = vmatpush1.msra.mxu0 0.0
    %2463 = vmatprep.subr.mxu0 0.0
    %2464 = vmatpush1.msra.mxu0 0.0
    %2465 = vmatprep.subr.mxu0 0.0
    %2466 = vmatpush1.msra.mxu0 0.0
    %2467 = vmatprep.subr.mxu0 0.0
    %2468 = vmatpush1.msra.mxu0 0.0
    %2469 = vmatprep.subr.mxu0 0.0
    %2470 = vmatpush1.msra.mxu0 0.0
    %2471 = vmatprep.subr.mxu0 0.0
    %2472 = vmatpush1.msra.mxu0 0.0
    %2473 = vmatprep.subr.mxu0 0.0
    %2474 = vmatpush1.msra.mxu0 0.0
    %2475 = vmatprep.subr.mxu0 0.0
    %2476 = vmatpush1.msra.mxu0 0.0
    %2477 = vmatprep.subr.mxu0 0.0
    %2478 = vmatpush1.msra.mxu0 0.0
    %2479 = vmatprep.subr.mxu0 0.0
    %2480 = vmatpush1.msra.mxu0 0.0
    %2481 = vmatprep.mubr.f32.mxu0 0.0
    %2482 = vmatmul.mubr.f32.gmra.mrb[0].mxu0 %v2394
    %v2483 = vpop.f32.mrb[0].mxu0
    %v2484 = vadd.f32 %v2391, %v2483
    %v2485 = vpop.f32.mrb[0].mxu0
    %2486 = vmatprep.mubr.f32.mxu0 0.0
    %2487 = vmatmul.mubr.f32.gmra.mrb[0].mxu0 %v2397
    %v2488 = vpop.f32.mrb[0].mxu0
    %v2489 = vadd.f32 %v2391, %v2488
    %v2490 = vpop.f32.mrb[0].mxu0
    %2491 = vmatprep.mubr.f32.mxu0 0.0
    %2492 = vmatmul.mubr.f32.gmra.mrb[0].mxu0 %v2400
    %v2493 = vpop.f32.mrb[0].mxu0
    %v2494 = vadd.f32 %v2391, %v2493
    %v2495 = vpop.f32.mrb[0].mxu0
    %2496 = vmatprep.mubr.f32.mxu0 0.0
    %2497 = vmatmul.mubr.f32.gmra.mrb[0].mxu0 %v2403
    %v2498 = vpop.f32.mrb[0].mxu0
    %v2499 = vadd.f32 %v2391, %v2498
    %v2500 = vpop.f32.mrb[0].mxu0
    %2501 = vmatprep.mubr.f32.mxu0 0.0
    %2502 = vmatmul.mubr.f32.gmra.mrb[0].mxu0 %v2406
    %v2503 = vpop.f32.mrb[0].mxu0
    %v2504 = vadd.f32 %v2391, %v2503
    %v2505 = vpop.f32.mrb[0].mxu0
    %2506 = vmatprep.mubr.f32.mxu0 0.0
    %2507 = vmatmul.mubr.f32.gmra.mrb[0].mxu0 %v2409
    %v2508 = vpop.f32.mrb[0].mxu0
    %v2509 = vadd.f32 %v2391, %v2508
    %v2510 = vpop.f32.mrb[0].mxu0
    %2511 = vmatprep.mubr.f32.mxu0 0.0
    %2512 = vmatmul.mubr.f32.gmra.mrb[0].mxu0 %v2412
    %v2513 = vpop.f32.mrb[0].mxu0
    %v2514 = vadd.f32 %v2391, %v2513
    %v2515 = vpop.f32.mrb[0].mxu0
    %2516 = vmatprep.mubr.f32.mxu0 0.0
    %2517 = vmatmul.mubr.f32.gmra.mrb[0].mxu0 %v2415
    %v2518 = vpop.f32.mrb[0].mxu0
    %v2519 = vadd.f32 %v2391, %v2518
    %v2520 = vpop.f32.mrb[0].mxu0
    %2521 = vdwg.mxu0
    %2522 = vst.msk [vmem:[#allocation17] sm:$0xff] %vm385, %v2484
    %2523 = vst.msk [vmem:[#allocation17 + $0x8] sm:$0xff] %vm385, %v2489
    %2524 = vst.msk [vmem:[#allocation17 + $0x10] sm:$0xff] %vm385, %v2494
    %2525 = vst.msk [vmem:[#allocation17 + $0x18] sm:$0xff] %vm385, %v2499
    %2526 = vst.msk [vmem:[#allocation17 + $0x20] sm:$0xff] %vm385, %v2504
    %2527 = vst.msk [vmem:[#allocation17 + $0x28] sm:$0xff] %vm385, %v2509
    %2528 = vst.msk [vmem:[#allocation17 + $0x30] sm:$0xff] %vm385, %v2514
    %2529 = vst.msk [vmem:[#allocation17 + $0x38] sm:$0xff] %vm385, %v2519
    // Predicated region
    $region74: #{crnn_forward.5} parent=1 // pred_check
      _
    $region75: #{crnn_forward.5} parent=1 // pred_check_branch
      %2531 = sbr.rel (0) target = $region77
    $region76: #{crnn_forward.5} parent=1 // pred_region
      %s2533 = ssub.s32 1024, 1024
      %2534 = vsyncadd [#allocation4], %s2533
      %s2535 = sshll.u32 [#allocation17], 4
      %s2536 = int_to_ptr.vmem [resolvable:$true] %s2535
      %2541 = dma.vmem_to_hbm [thread:$0]  %s2536, 1024, %s9, [#allocation4], 128, 128, 8
    $region77: #{crnn_forward.5} parent=1 // pred_fallthru
      _
    // Predicated region
    $region78: #{crnn_forward.5} parent=1 // pred_check
      _
    $region79: #{crnn_forward.5} parent=1 // pred_check_branch
      %2543 = sbr.rel (0) target = $region81
    $region80: #{crnn_forward.5} parent=1 // pred_region
      %2544 = dma.done [#allocation4], 1024
    $region81: #{crnn_forward.5} parent=1 // pred_fallthru
      _
    %2545 = vsyncpa [#allocation3], 1
    %2546 = vsyncpa [#allocation6], 1
    %2547 = vsyncpa [#allocation9], 1
    %2548 = vsyncpa [#allocation12], 1
    %2549 = vsyncpa [#allocation15], 1
    %2550 = vsyncpa [#allocation4], 1

// kernel: crnn_forward.9
$region0: #{crnn_forward.9}
  #allocation0 [shape = 'u32[]', space=smem, size = 0x4, offset = 0x4, fixed_abs, tag = 'smem constant byte address 0x4 - core index']
  #allocation1 [shape = 'u32[144,128]{1,0:T(1,128)}', space=vmem, size = 0x12000, scoped, tag = 'internal scratch']
  %s0 = inlined_call_operand.hbm [shape: f32[2,16,128], index: 0, kind: input, shape index: {}]
  %s1 = inlined_call_operand.hbm [shape: f32[1,128], index: 1, kind: input, shape index: {}]
  %s2 = inlined_call_operand.hbm [shape: f32[16,128], index: 2, kind: output, shape index: {}]
  %s3 = sld [smem:[#allocation0]]
  $region26: #{crnn_forward.9} parent=0
    _
  %s5 = ssub.s32 1, %s3
  %s6 = scalar_select 0, %s5, %s3
  $region1: #{crnn_forward.9} parent=0
    #allocation2 [shape = 'u8[16384]{0}', space=vmem, size = 0x4000, scoped, tag = 'input window, operand 0, single buffered']
    #allocation3 [shape = 's32[1]{0}', space=sflag, size = 0x4, scoped, tag = 'scoped memory for crnn_forward.9']
    #allocation4 [shape = 's32[1]{0}', space=sflag, size = 0x4, scoped, tag = 'scoped memory for crnn_forward.9']
    #allocation5 [shape = 'u8[512]{0}', space=vmem, size = 0x400, scoped, tag = 'input window, operand 1, single buffered']
    #allocation6 [shape = 's32[1]{0}', space=sflag, size = 0x4, scoped, tag = 'scoped memory for crnn_forward.9']
    #allocation7 [shape = 'u8[8192]{0}', space=vmem, size = 0x2000, scoped, tag = 'output window, operand 0, single buffered']
    %7 = vsyncpa [#allocation3], 0
    %8 = vsyncpa [#allocation6], 0
    %9 = vsyncpa [#allocation4], 0
    // Predicated region
    $region2: #{crnn_forward.9} parent=1 // pred_check
      _
    $region3: #{crnn_forward.9} parent=1 // pred_check_branch
      %11 = sbr.rel (0) target = $region5
    $region4: #{crnn_forward.9} parent=1 // pred_region
      %s13 = ssub.s32 512, 512
      %14 = vsyncadd [#allocation3], %s13
      %s15 = sshll.u32 [#allocation2], 4
      %s16 = int_to_ptr.vmem [resolvable:$true] %s15
      %21 = dma.hbm_to_vmem [thread:$0]  %s0, 512, %s16, [#allocation3], 128, 128, 8
    $region5: #{crnn_forward.9} parent=1 // pred_fallthru
      _
    // Predicated region
    $region6: #{crnn_forward.9} parent=1 // pred_check
      _
    $region7: #{crnn_forward.9} parent=1 // pred_check_branch
      %23 = sbr.rel (0) target = $region9
    $region8: #{crnn_forward.9} parent=1 // pred_region
      %s25 = ssub.s32 16, 16
      %26 = vsyncadd [#allocation6], %s25
      %s28 = sshll.u32 [#allocation5], 4
      %s29 = int_to_ptr.vmem [resolvable:$true] %s28
      %31 = dma.hbm_to_vmem [thread:$0]  %s1, 16, %s29, [#allocation6]
    $region9: #{crnn_forward.9} parent=1 // pred_fallthru
      _
    // Predicated region
    $region10: #{crnn_forward.9} parent=1 // pred_check
      _
    $region11: #{crnn_forward.9} parent=1 // pred_check_branch
      %33 = sbr.rel (0) target = $region13
    $region12: #{crnn_forward.9} parent=1 // pred_region
      %34 = dma.done [#allocation3], 512
    $region13: #{crnn_forward.9} parent=1 // pred_fallthru
      _
    // Predicated region
    $region14: #{crnn_forward.9} parent=1 // pred_check
      _
    $region15: #{crnn_forward.9} parent=1 // pred_check_branch
      %36 = sbr.rel (0) target = $region17
    $region16: #{crnn_forward.9} parent=1 // pred_region
      %37 = dma.done [#allocation6], 16
    $region17: #{crnn_forward.9} parent=1 // pred_fallthru
      _
    %v38 = vld [vmem:[#allocation2] sm:$0xff]
    %v39 = vld [vmem:[#allocation2 + $0x8] sm:$0xff]
    %s40 = scalar_lea.vmem [#allocation2], 16
    %v41 = vld [vmem:[%s40] sm:$0xff]
    %v42 = vld [vmem:[%s40 + $0x8] sm:$0xff]
    %v43 = vadd.f32 %v38, %v41
    %v44 = vadd.f32 %v39, %v42
    %v45 = vld [vmem:[#allocation5] sm:$0x1]
    %v47 = vlaneseq
    %v48 = vshrl.u32 %v47, 7
    %v49 = vsub.s32 0, %v48
    %v50 = vrot.slane %v45, %v49
    %v52 = vadd.f32 %v43, %v50
    %v53 = vadd.f32 %v44, %v50
    %v54 = vtanh.pop %v52
    %v55 = vtanh.pop %v53
    %56 = vst [vmem:[#allocation7] sm:$0xff] %v54
    %57 = vst [vmem:[#allocation7 + $0x8] sm:$0xff] %v55
    // Predicated region
    $region18: #{crnn_forward.9} parent=1 // pred_check
      _
    $region19: #{crnn_forward.9} parent=1 // pred_check_branch
      %59 = sbr.rel (0) target = $region21
    $region20: #{crnn_forward.9} parent=1 // pred_region
      %s61 = ssub.s32 256, 256
      %62 = vsyncadd [#allocation4], %s61
      %s63 = sshll.u32 [#allocation7], 4
      %s64 = int_to_ptr.vmem [resolvable:$true] %s63
      %69 = dma.vmem_to_hbm [thread:$0]  %s64, 256, %s2, [#allocation4], 128, 128, 8
    $region21: #{crnn_forward.9} parent=1 // pred_fallthru
      _
    // Predicated region
    $region22: #{crnn_forward.9} parent=1 // pred_check
      _
    $region23: #{crnn_forward.9} parent=1 // pred_check_branch
      %71 = sbr.rel (0) target = $region25
    $region24: #{crnn_forward.9} parent=1 // pred_region
      %72 = dma.done [#allocation4], 256
    $region25: #{crnn_forward.9} parent=1 // pred_fallthru
      _
    %73 = vsyncpa [#allocation3], 1
    %74 = vsyncpa [#allocation6], 1
    %75 = vsyncpa [#allocation4], 1

// kernel: crnn_forward.8
$region0: #{crnn_forward.8}
  #allocation0 [shape = 'u32[]', space=smem, size = 0x4, offset = 0x4, fixed_abs, tag = 'smem constant byte address 0x4 - core index']
  #allocation1 [shape = 'u32[144,128]{1,0:T(1,128)}', space=vmem, size = 0x12000, scoped, tag = 'internal scratch']
  #allocation2 [shape = 'f32[2,256]{1,0:T(2,128)}', space=vmem, size = 0x800, scoped, tag = 'scratch operand']
  %s0 = inlined_call_operand.hbm [shape: f32[2,8,2,768], index: 0, kind: input, shape index: {}]
  %s1 = inlined_call_operand.hbm [shape: f32[2,256,768], index: 1, kind: input, shape index: {}]
  %s2 = inlined_call_operand.hbm [shape: f32[2,1,256], index: 2, kind: input, shape index: {}]
  %s3 = inlined_call_operand.hbm [shape: f32[2,256,128], index: 3, kind: input, shape index: {}]
  %s4 = inlined_call_operand.hbm [shape: f32[2,8,2,128], index: 4, kind: output, shape index: {}]
  %s5 = sld [smem:[#allocation0]]
  $region69: #{crnn_forward.8} parent=0
    _
  %s7 = ssub.s32 1, %s5
  %s8 = scalar_select 0, %s7, %s5
  $region1: #{crnn_forward.8} parent=0
    #allocation3 [shape = 'u8[98304]{0}', space=vmem, size = 0x18000, scoped, tag = 'input window, operand 0']
    #allocation4 [shape = 's32[2]{0}', space=sflag, size = 0x8, scoped, tag = 'scoped memory for crnn_forward.8']
    #allocation5 [shape = 's32[2]{0}', space=sflag, size = 0x8, scoped, tag = 'scoped memory for crnn_forward.8']
    #allocation6 [shape = 'u8[1572864]{0}', space=vmem, size = 0x180000, scoped, tag = 'input window, operand 1']
    #allocation7 [shape = 's32[2]{0}', space=sflag, size = 0x8, scoped, tag = 'scoped memory for crnn_forward.8']
    #allocation8 [shape = 'u8[2048]{0}', space=vmem, size = 0x800, scoped, tag = 'input window, operand 2']
    #allocation9 [shape = 'u8[262144]{0}', space=vmem, size = 0x40000, scoped, tag = 'input window, operand 3']
    #allocation10 [shape = 's32[2]{0}', space=sflag, size = 0x8, scoped, tag = 'scoped memory for crnn_forward.8']
    #allocation11 [shape = 'u8[16384]{0}', space=vmem, size = 0x4000, scoped, tag = 'output window, operand 0']
    %9 = vsyncpa [#allocation4], 0
    %s10 = scalar_lea.sflag [#allocation4], 1
    %11 = vsyncpa %s10, 0
    %12 = vsyncpa [#allocation7], 0
    %s13 = scalar_lea.sflag [#allocation7], 1
    %14 = vsyncpa %s13, 0
    %15 = vsyncpa [#allocation10], 0
    %s16 = scalar_lea.sflag [#allocation10], 1
    %17 = vsyncpa %s16, 0
    %18 = vsyncpa [#allocation5], 0
    %s19 = scalar_lea.sflag [#allocation5], 1
    %20 = vsyncpa %s19, 0
    loop: start=0, step=1, limit=4
    $region2: #{crnn_forward.8} parent=1 // loop_pre_header
      _
    $region3: #{crnn_forward.8} parent=1 // loop_header
      %s22 = sphi 0, %s26
      %p23 = scmp.ge.s32.totalorder %s22, 4
      %s29 = sphi 0, %s41
      %s30 = sphi 0, %s37
      %s31 = sphi 0, %s29
      %s32 = sphi 0, %s30
      %s33 = sphi 0, %s31
      %s34 = sphi 0, %s32
      %s52 = sphi 0, %s54
      %s55 = sphi 0, %s52
      %s56 = sphi 0, %s55
      %s72 = sphi 0, %s56
      %s78 = sphi 0, %s80
      %s81 = sphi 0, %s78
      %s82 = sphi 0, %s81
      %s98 = sphi 0, %s82
      %s104 = sphi 0, %s106
      %s107 = sphi 0, %s104
      %s108 = sphi 0, %s107
      %s124 = sphi 0, %s108
      %s130 = sphi 0, %s132
      %s133 = sphi 0, %s130
      %s134 = sphi 0, %s133
      %s150 = sphi 0, %s134
      %s164 = sphi 0, %s166
      %s167 = sphi 0, %s164
      %s168 = sphi 0, %s167
      %s184 = sphi 0, %s168
    $region4: #{crnn_forward.8} parent=1 // loop_header_branch
      %25 = sbr.rel (%p23) target = $region8
    $region5: #{crnn_forward.8} parent=1 // loop_body
      %s27 = ssub.s32 %s22, 1
      %s28 = ssub.s32 %s22, 2
      %s35 = sadd.s32 1, %s30
      %p36 = scmp.ge.s32.totalorder %s35, 1
      %s37 = scalar_select %p36, 0, %s35
      %s38 = sadd.s32 1, %s29
      %s39 = scalar_select %p36, %s38, %s29
      %p40 = scmp.ge.s32.totalorder %s39, 2
      %s41 = scalar_select %p40, 0, %s39
      %s42 = smul.u32 %s29, 2
      %s43 = ssub.s32 1, %s42
      %s44 = smul.u32 %s43, %s30
      %s45 = smul.u32 %s41, 2
      %s46 = ssub.s32 1, %s45
      %s47 = smul.u32 %s46, %s37
      %s48 = ssub.s32 %s29, %s41
      %s49 = ssub.s32 %s44, %s47
      %s50 = sor.u32 %s48, %s49
      %p51 = scmp.eq.s32.totalorder %s50, 0
      %s53 = sadd.s32 %s52, 1
      %s54 = scalar_select %p51, %s52, %s53
      %p57 = pneg %p51
      %p58 = scmp.eq.s32.totalorder %s22, 1
      %p59 = por %p57, %p58
      %p60 = scmp.ne.s32.totalorder %s52, %s55
      %p61 = scmp.eq.s32.totalorder %s22, 0
      %p62 = por %p60, %p61
      %p63 = scmp.ne.s32.totalorder %s52, %s55
      %p64 = scmp.eq.s32.totalorder %s27, 1
      %p65 = por %p63, %p64
      %p66 = scmp.ne.s32.totalorder %s55, %s56
      %p67 = scmp.eq.s32.totalorder %s27, 0
      %p68 = por %p66, %p67
      %p69 = scmp.ne.s32.totalorder %s55, %s56
      %p70 = scmp.eq.s32.totalorder %s28, 1
      %p71 = por %p69, %p70
      %p73 = scmp.ne.s32.totalorder %s56, %s72
      %p74 = scmp.eq.s32.totalorder %s28, 0
      %p75 = por %p73, %p74
      %s76 = ssub.s32 %s29, %s41
      %p77 = scmp.eq.s32.totalorder %s76, 0
      %s79 = sadd.s32 %s78, 1
      %s80 = scalar_select %p77, %s78, %s79
      %p83 = pneg %p77
      %p84 = scmp.eq.s32.totalorder %s22, 1
      %p85 = por %p83, %p84
      %p86 = scmp.ne.s32.totalorder %s78, %s81
      %p87 = scmp.eq.s32.totalorder %s22, 0
      %p88 = por %p86, %p87
      %p89 = scmp.ne.s32.totalorder %s78, %s81
      %p90 = scmp.eq.s32.totalorder %s27, 1
      %p91 = por %p89, %p90
      %p92 = scmp.ne.s32.totalorder %s81, %s82
      %p93 = scmp.eq.s32.totalorder %s27, 0
      %p94 = por %p92, %p93
      %p95 = scmp.ne.s32.totalorder %s81, %s82
      %p96 = scmp.eq.s32.totalorder %s28, 1
      %p97 = por %p95, %p96
      %p99 = scmp.ne.s32.totalorder %s82, %s98
      %p100 = scmp.eq.s32.totalorder %s28, 0
      %p101 = por %p99, %p100
      %s102 = ssub.s32 %s29, %s41
      %p103 = scmp.eq.s32.totalorder %s102, 0
      %s105 = sadd.s32 %s104, 1
      %s106 = scalar_select %p103, %s104, %s105
      %p109 = pneg %p103
      %p110 = scmp.eq.s32.totalorder %s22, 1
      %p111 = por %p109, %p110
      %p112 = scmp.ne.s32.totalorder %s104, %s107
      %p113 = scmp.eq.s32.totalorder %s22, 0
      %p114 = por %p112, %p113
      %p115 = scmp.ne.s32.totalorder %s104, %s107
      %p116 = scmp.eq.s32.totalorder %s27, 1
      %p117 = por %p115, %p116
      %p118 = scmp.ne.s32.totalorder %s107, %s108
      %p119 = scmp.eq.s32.totalorder %s27, 0
      %p120 = por %p118, %p119
      %p121 = scmp.ne.s32.totalorder %s107, %s108
      %p122 = scmp.eq.s32.totalorder %s28, 1
      %p123 = por %p121, %p122
      %p125 = scmp.ne.s32.totalorder %s108, %s124
      %p126 = scmp.eq.s32.totalorder %s28, 0
      %p127 = por %p125, %p126
      %s128 = ssub.s32 %s29, %s41
      %p129 = scmp.eq.s32.totalorder %s128, 0
      %s131 = sadd.s32 %s130, 1
      %s132 = scalar_select %p129, %s130, %s131
      %p135 = pneg %p129
      %p136 = scmp.eq.s32.totalorder %s22, 1
      %p137 = por %p135, %p136
      %p138 = scmp.ne.s32.totalorder %s130, %s133
      %p139 = scmp.eq.s32.totalorder %s22, 0
      %p140 = por %p138, %p139
      %p141 = scmp.ne.s32.totalorder %s130, %s133
      %p142 = scmp.eq.s32.totalorder %s27, 1
      %p143 = por %p141, %p142
      %p144 = scmp.ne.s32.totalorder %s133, %s134
      %p145 = scmp.eq.s32.totalorder %s27, 0
      %p146 = por %p144, %p145
      %p147 = scmp.ne.s32.totalorder %s133, %s134
      %p148 = scmp.eq.s32.totalorder %s28, 1
      %p149 = por %p147, %p148
      %p151 = scmp.ne.s32.totalorder %s134, %s150
      %p152 = scmp.eq.s32.totalorder %s28, 0
      %p153 = por %p151, %p152
      %s154 = smul.u32 %s29, 2
      %s155 = ssub.s32 1, %s154
      %s156 = smul.u32 %s155, %s30
      %s157 = smul.u32 %s41, 2
      %s158 = ssub.s32 1, %s157
      %s159 = smul.u32 %s158, %s37
      %s160 = ssub.s32 %s29, %s41
      %s161 = ssub.s32 %s156, %s159
      %s162 = sor.u32 %s160, %s161
      %p163 = scmp.eq.s32.totalorder %s162, 0
      %s165 = sadd.s32 %s164, 1
      %s166 = scalar_select %p163, %s164, %s165
      %p169 = pneg %p163
      %p170 = scmp.eq.s32.totalorder %s22, 1
      %p171 = por %p169, %p170
      %p172 = scmp.ne.s32.totalorder %s164, %s167
      %p173 = scmp.eq.s32.totalorder %s22, 0
      %p174 = por %p172, %p173
      %p175 = scmp.ne.s32.totalorder %s164, %s167
      %p176 = scmp.eq.s32.totalorder %s27, 1
      %p177 = por %p175, %p176
      %p178 = scmp.ne.s32.totalorder %s167, %s168
      %p179 = scmp.eq.s32.totalorder %s27, 0
      %p180 = por %p178, %p179
      %p181 = scmp.ne.s32.totalorder %s167, %s168
      %p182 = scmp.eq.s32.totalorder %s28, 1
      %p183 = por %p181, %p182
      %p185 = scmp.ne.s32.totalorder %s168, %s184
      %p186 = scmp.eq.s32.totalorder %s28, 0
      %p187 = por %p185, %p186
      %p188 = scmp.le.s32.totalorder 1, %s22
      %p189 = scmp.lt.s32.totalorder %s22, 3
      %p190 = pnand %p188, %p189
      %p191 = pneg %p190
      // Predicated region
      $region9: #{crnn_forward.8} parent=5 // pred_check
        _
      $region10: #{crnn_forward.8} parent=5 // pred_check_branch
        %193 = sbr.rel (%p190) target = $region12
      $region11: #{crnn_forward.8} parent=5 // pred_region
        %s194 = ssub.s32 %s22, 1
      $region12: #{crnn_forward.8} parent=5 // pred_fallthru
        _
      %p195 = scmp.lt.s32.totalorder %s22, 2
      // Predicated region
      $region13: #{crnn_forward.8} parent=5 // pred_check
        %p196 = pneg %p195
      $region14: #{crnn_forward.8} parent=5 // pred_check_branch
        %198 = sbr.rel (%p196) target = $region16
      $region15: #{crnn_forward.8} parent=5 // pred_region
        // Predicated region
        $region17: #{crnn_forward.8} parent=15 // pred_check
          %p199 = pneg %p62
        $region18: #{crnn_forward.8} parent=15 // pred_check_branch
          %201 = sbr.rel (%p199) target = $region20
        $region19: #{crnn_forward.8} parent=15 // pred_region
          %s202 = sand.u32 %s52, 1
          %s203 = scalar_lea.sflag [#allocation4], %s202
          %s204 = sand.u32 %s52, 1
          %s205 = smul.addr %s204, 96
          %s206 = scalar_lea.vmem [#allocation3], %s205
          %s207 = smul.u32 %s29, 2
          %s208 = ssub.s32 1, %s207
          %s209 = smul.u32 %s208, %s30
          %s210 = smul.u32 8, %s209
          %s212 = ssub.s32 1536, 1536
          %213 = vsyncadd %s203, %s212
          %s214 = smul.addr %s210, 6
          %s215 = smul.addr %s29, 48
          %s216 = sadd.s32 %s214, %s215
          %s217 = smul.addr %s216, 32
          %s218 = scalar_lea.hbm %s0, %s217
          %s219 = sshll.u32 %s206, 4
          %s220 = int_to_ptr.vmem [resolvable:$true] %s219
          %225 = dma.hbm_to_vmem [thread:$0]  %s218, 1536, %s220, %s203, 192, 192, 12
        $region20: #{crnn_forward.8} parent=15 // pred_fallthru
          _
        // Predicated region
        $region21: #{crnn_forward.8} parent=15 // pred_check
          %p226 = pneg %p88
        $region22: #{crnn_forward.8} parent=15 // pred_check_branch
          %228 = sbr.rel (%p226) target = $region24
        $region23: #{crnn_forward.8} parent=15 // pred_region
          %s229 = sand.u32 %s22, 1
          %s230 = scalar_lea.sflag [#allocation7], %s229
          %s231 = sand.u32 %s78, 1
          %s232 = smul.addr %s231, 1536
          %s233 = scalar_lea.vmem [#allocation6], %s232
          %s235 = ssub.s32 24576, 24576
          %236 = vsyncadd %s230, %s235
          %s237 = smul.addr %s29, 192
          %s238 = smul.addr %s237, 128
          %s239 = scalar_lea.hbm %s1, %s238
          %s240 = sshll.u32 %s233, 4
          %s241 = int_to_ptr.vmem [resolvable:$true] %s240
          %246 = dma.hbm_to_vmem [thread:$0]  %s239, 24576, %s241, %s230, 768, 768, 48
        $region24: #{crnn_forward.8} parent=15 // pred_fallthru
          _
        // Predicated region
        $region25: #{crnn_forward.8} parent=15 // pred_check
          %p247 = pneg %p114
        $region26: #{crnn_forward.8} parent=15 // pred_check_branch
          %249 = sbr.rel (%p247) target = $region28
        $region27: #{crnn_forward.8} parent=15 // pred_region
          %s250 = sand.u32 %s22, 1
          %s251 = scalar_lea.sflag [#allocation7], %s250
          %s252 = sand.u32 %s104, 1
          %s253 = smul.addr %s252, 2
          %s254 = scalar_lea.vmem [#allocation8], %s253
          %s256 = ssub.s32 32, 32
          %257 = vsyncadd %s251, %s256
          %s258 = smul.addr %s29, 2
          %s259 = smul.addr %s258, 16
          %s260 = scalar_lea.hbm %s2, %s259
          %s262 = sshll.u32 %s254, 4
          %s263 = int_to_ptr.vmem [resolvable:$true] %s262
          %265 = dma.hbm_to_vmem [thread:$0]  %s260, 32, %s263, %s251
        $region28: #{crnn_forward.8} parent=15 // pred_fallthru
          _
        // Predicated region
        $region29: #{crnn_forward.8} parent=15 // pred_check
          %p266 = pneg %p140
        $region30: #{crnn_forward.8} parent=15 // pred_check_branch
          %268 = sbr.rel (%p266) target = $region32
        $region31: #{crnn_forward.8} parent=15 // pred_region
          %s269 = sand.u32 %s130, 1
          %s270 = scalar_lea.sflag [#allocation10], %s269
          %s271 = sand.u32 %s130, 1
          %s272 = smul.addr %s271, 256
          %s273 = scalar_lea.vmem [#allocation9], %s272
          %s275 = ssub.s32 4096, 4096
          %276 = vsyncadd %s270, %s275
          %s277 = smul.addr %s29, 32
          %s278 = smul.addr %s277, 128
          %s279 = scalar_lea.hbm %s3, %s278
          %s280 = sshll.u32 %s273, 4
          %s281 = int_to_ptr.vmem [resolvable:$true] %s280
          %286 = dma.hbm_to_vmem [thread:$0]  %s279, 4096, %s281, %s270, 128, 128, 8
        $region32: #{crnn_forward.8} parent=15 // pred_fallthru
          _
      $region16: #{crnn_forward.8} parent=5 // pred_fallthru
        _
      %p287 = scmp.le.s32.totalorder 1, %s22
      %p288 = scmp.lt.s32.totalorder %s22, 3
      %p289 = pnand %p287, %p288
      %p290 = pneg %p289
      // Predicated region
      $region33: #{crnn_forward.8} parent=5 // pred_check
        _
      $region34: #{crnn_forward.8} parent=5 // pred_check_branch
        %292 = sbr.rel (%p289) target = $region36
      $region35: #{crnn_forward.8} parent=5 // pred_region
        %s293 = ssub.s32 %s22, 1
        %s294 = sand.u32 %s55, 1
        %s295 = scalar_lea.sflag [#allocation4], %s294
        %s296 = sand.u32 %s55, 1
        %s297 = smul.addr %s296, 96
        %s298 = scalar_lea.vmem [#allocation3], %s297
        // Predicated region
        $region37: #{crnn_forward.8} parent=35 // pred_check
          %p299 = pneg %p68
        $region38: #{crnn_forward.8} parent=35 // pred_check_branch
          %301 = sbr.rel (%p299) target = $region40
        $region39: #{crnn_forward.8} parent=35 // pred_region
          %302 = dma.done %s295, 1536
        $region40: #{crnn_forward.8} parent=35 // pred_fallthru
          _
        %s303 = sand.u32 %s27, 1
        %s304 = scalar_lea.sflag [#allocation7], %s303
        %s305 = sand.u32 %s81, 1
        %s306 = smul.addr %s305, 1536
        %s307 = scalar_lea.vmem [#allocation6], %s306
        // Predicated region
        $region41: #{crnn_forward.8} parent=35 // pred_check
          %p308 = pneg %p94
        $region42: #{crnn_forward.8} parent=35 // pred_check_branch
          %310 = sbr.rel (%p308) target = $region44
        $region43: #{crnn_forward.8} parent=35 // pred_region
          %311 = dma.done %s304, 24576
        $region44: #{crnn_forward.8} parent=35 // pred_fallthru
          _
        %s312 = sand.u32 %s27, 1
        %s313 = scalar_lea.sflag [#allocation7], %s312
        %s314 = sand.u32 %s107, 1
        %s315 = smul.addr %s314, 2
        %s316 = scalar_lea.vmem [#allocation8], %s315
        // Predicated region
        $region45: #{crnn_forward.8} parent=35 // pred_check
          %p317 = pneg %p120
        $region46: #{crnn_forward.8} parent=35 // pred_check_branch
          %319 = sbr.rel (%p317) target = $region48
        $region47: #{crnn_forward.8} parent=35 // pred_region
          %320 = dma.done %s313, 32
        $region48: #{crnn_forward.8} parent=35 // pred_fallthru
          _
        %s321 = sand.u32 %s133, 1
        %s322 = scalar_lea.sflag [#allocation10], %s321
        %s323 = sand.u32 %s133, 1
        %s324 = smul.addr %s323, 256
        %s325 = scalar_lea.vmem [#allocation9], %s324
        // Predicated region
        $region49: #{crnn_forward.8} parent=35 // pred_check
          %p326 = pneg %p146
        $region50: #{crnn_forward.8} parent=35 // pred_check_branch
          %328 = sbr.rel (%p326) target = $region52
        $region51: #{crnn_forward.8} parent=35 // pred_region
          %329 = dma.done %s322, 4096
        $region52: #{crnn_forward.8} parent=35 // pred_fallthru
          _
        %s330 = sand.u32 %s55, 1
        %s331 = scalar_lea.sflag [#allocation4], %s330
        %s332 = sand.u32 %s55, 1
        %s333 = smul.addr %s332, 96
        %s334 = scalar_lea.vmem [#allocation3], %s333
        %p335 = pneg %p68
        %p336 = pneg %p65
        %s337 = sand.u32 %s27, 1
        %s338 = scalar_lea.sflag [#allocation7], %s337
        %s339 = sand.u32 %s81, 1
        %s340 = smul.addr %s339, 1536
        %s341 = scalar_lea.vmem [#allocation6], %s340
        %p342 = pneg %p94
        %p343 = pneg %p91
        %s344 = sand.u32 %s27, 1
        %s345 = scalar_lea.sflag [#allocation7], %s344
        %s346 = sand.u32 %s107, 1
        %s347 = smul.addr %s346, 2
        %s348 = scalar_lea.vmem [#allocation8], %s347
        %p349 = pneg %p120
        %p350 = pneg %p117
        %s351 = sand.u32 %s133, 1
        %s352 = scalar_lea.sflag [#allocation10], %s351
        %s353 = sand.u32 %s133, 1
        %s354 = smul.addr %s353, 256
        %s355 = scalar_lea.vmem [#allocation9], %s354
        %p356 = pneg %p146
        %p357 = pneg %p143
        %p358 = pneg %p180
        %p359 = pneg %p177
        %s360 = sand.u32 %s167, 1
        %s361 = scalar_lea.sflag [#allocation5], %s360
        %s362 = sand.u32 %s167, 1
        %s363 = smul.addr %s362, 16
        %s364 = scalar_lea.vmem [#allocation11], %s363
        %s365 = smul.u32 %s31, 2
        %s366 = ssub.s32 1, %s365
        %s367 = smul.u32 %s366, %s32
        %s368 = smul.u32 8, %s367
        %s369 = smul.u32 %s31, 2
        %s370 = ssub.s32 1, %s369
        %s371 = smul.u32 %s370, %s32
        %s372 = smul.u32 8, %s371
        %p373 = scmp.eq.s32.totalorder %s31, 1
        %p374 = scmp.eq.s32.totalorder %s32, 0
        // Predicated region
        $region53: #{crnn_forward.8} parent=35 // pred_check
          %p375 = pneg %p374
        $region54: #{crnn_forward.8} parent=35 // pred_check_branch
          %377 = sbr.rel (%p375) target = $region56
        $region55: #{crnn_forward.8} parent=35 // pred_region
          %378 = vst [vmem:[#allocation2] sm:$0xf] 0.0
        $region56: #{crnn_forward.8} parent=35 // pred_fallthru
          _
        %v379 = vld [vmem:[%s307] sm:$0xff]
        %v380 = vld [vmem:[%s307 + $0x8] sm:$0xff]
        %v381 = vld [vmem:[%s307 + $0x10] sm:$0xff]
        %v382 = vld [vmem:[%s307 + $0x18] sm:$0xff]
        %v383 = vld [vmem:[%s307 + $0x20] sm:$0xff]
        %v384 = vld [vmem:[%s307 + $0x28] sm:$0xff]
        %v385 = vld [vmem:[%s307 + $0x30] sm:$0xff]
        %v386 = vld [vmem:[%s307 + $0x38] sm:$0xff]
        %v387 = vld [vmem:[%s307 + $0x40] sm:$0xff]
        %v388 = vld [vmem:[%s307 + $0x48] sm:$0xff]
        %v389 = vld [vmem:[%s307 + $0x50] sm:$0xff]
        %v390 = vld [vmem:[%s307 + $0x58] sm:$0xff]
        %v391 = vld [vmem:[%s307 + $0x60] sm:$0xff]
        %v392 = vld [vmem:[%s307 + $0x68] sm:$0xff]
        %v393 = vld [vmem:[%s307 + $0x70] sm:$0xff]
        %v394 = vld [vmem:[%s307 + $0x78] sm:$0xff]
        %v395 = vld [vmem:[%s307 + $0x80] sm:$0xff]
        %v396 = vld [vmem:[%s307 + $0x88] sm:$0xff]
        %v397 = vld [vmem:[%s307 + $0x90] sm:$0xff]
        %v398 = vld [vmem:[%s307 + $0x98] sm:$0xff]
        %v399 = vld [vmem:[%s307 + $0xa0] sm:$0xff]
        %v400 = vld [vmem:[%s307 + $0xa8] sm:$0xff]
        %v401 = vld [vmem:[%s307 + $0xb0] sm:$0xff]
        %v402 = vld [vmem:[%s307 + $0xb8] sm:$0xff]
        %v403 = vld [vmem:[%s307 + $0xc0] sm:$0xff]
        %v404 = vld [vmem:[%s307 + $0xc8] sm:$0xff]
        %v405 = vld [vmem:[%s307 + $0xd0] sm:$0xff]
        %v406 = vld [vmem:[%s307 + $0xd8] sm:$0xff]
        %v407 = vld [vmem:[%s307 + $0xe0] sm:$0xff]
        %v408 = vld [vmem:[%s307 + $0xe8] sm:$0xff]
        %v409 = vld [vmem:[%s307 + $0xf0] sm:$0xff]
        %v410 = vld [vmem:[%s307 + $0xf8] sm:$0xff]
        %v411 = vld [vmem:[%s307 + $0x100] sm:$0xff]
        %v412 = vld [vmem:[%s307 + $0x108] sm:$0xff]
        %v413 = vld [vmem:[%s307 + $0x110] sm:$0xff]
        %v414 = vld [vmem:[%s307 + $0x118] sm:$0xff]
        %v415 = vld [vmem:[%s307 + $0x120] sm:$0xff]
        %v416 = vld [vmem:[%s307 + $0x128] sm:$0xff]
        %v417 = vld [vmem:[%s307 + $0x130] sm:$0xff]
        %v418 = vld [vmem:[%s307 + $0x138] sm:$0xff]
        %v419 = vld [vmem:[%s307 + $0x140] sm:$0xff]
        %v420 = vld [vmem:[%s307 + $0x148] sm:$0xff]
        %v421 = vld [vmem:[%s307 + $0x150] sm:$0xff]
        %v422 = vld [vmem:[%s307 + $0x158] sm:$0xff]
        %v423 = vld [vmem:[%s307 + $0x160] sm:$0xff]
        %v424 = vld [vmem:[%s307 + $0x168] sm:$0xff]
        %v425 = vld [vmem:[%s307 + $0x170] sm:$0xff]
        %v426 = vld [vmem:[%s307 + $0x178] sm:$0xff]
        %v427 = vld [vmem:[%s307 + $0x180] sm:$0xff]
        %v428 = vld [vmem:[%s307 + $0x188] sm:$0xff]
        %v429 = vld [vmem:[%s307 + $0x190] sm:$0xff]
        %v430 = vld [vmem:[%s307 + $0x198] sm:$0xff]
        %v431 = vld [vmem:[%s307 + $0x1a0] sm:$0xff]
        %v432 = vld [vmem:[%s307 + $0x1a8] sm:$0xff]
        %v433 = vld [vmem:[%s307 + $0x1b0] sm:$0xff]
        %v434 = vld [vmem:[%s307 + $0x1b8] sm:$0xff]
        %v435 = vld [vmem:[%s307 + $0x1c0] sm:$0xff]
        %v436 = vld [vmem:[%s307 + $0x1c8] sm:$0xff]
        %v437 = vld [vmem:[%s307 + $0x1d0] sm:$0xff]
        %v438 = vld [vmem:[%s307 + $0x1d8] sm:$0xff]
        %v439 = vld [vmem:[%s307 + $0x1e0] sm:$0xff]
        %v440 = vld [vmem:[%s307 + $0x1e8] sm:$0xff]
        %v441 = vld [vmem:[%s307 + $0x1f0] sm:$0xff]
        %v442 = vld [vmem:[%s307 + $0x1f8] sm:$0xff]
        %v443 = vld [vmem:[%s307 + $0x200] sm:$0xff]
        %v444 = vld [vmem:[%s307 + $0x208] sm:$0xff]
        %v445 = vld [vmem:[%s307 + $0x210] sm:$0xff]
        %v446 = vld [vmem:[%s307 + $0x218] sm:$0xff]
        %v447 = vld [vmem:[%s307 + $0x220] sm:$0xff]
        %v448 = vld [vmem:[%s307 + $0x228] sm:$0xff]
        %v449 = vld [vmem:[%s307 + $0x230] sm:$0xff]
        %v450 = vld [vmem:[%s307 + $0x238] sm:$0xff]
        %v451 = vld [vmem:[%s307 + $0x240] sm:$0xff]
        %v452 = vld [vmem:[%s307 + $0x248] sm:$0xff]
        %v453 = vld [vmem:[%s307 + $0x250] sm:$0xff]
        %v454 = vld [vmem:[%s307 + $0x258] sm:$0xff]
        %v455 = vld [vmem:[%s307 + $0x260] sm:$0xff]
        %v456 = vld [vmem:[%s307 + $0x268] sm:$0xff]
        %v457 = vld [vmem:[%s307 + $0x270] sm:$0xff]
        %v458 = vld [vmem:[%s307 + $0x278] sm:$0xff]
        %v459 = vld [vmem:[%s307 + $0x280] sm:$0xff]
        %v460 = vld [vmem:[%s307 + $0x288] sm:$0xff]
        %v461 = vld [vmem:[%s307 + $0x290] sm:$0xff]
        %v462 = vld [vmem:[%s307 + $0x298] sm:$0xff]
        %v463 = vld [vmem:[%s307 + $0x2a0] sm:$0xff]
        %v464 = vld [vmem:[%s307 + $0x2a8] sm:$0xff]
        %v465 = vld [vmem:[%s307 + $0x2b0] sm:$0xff]
        %v466 = vld [vmem:[%s307 + $0x2b8] sm:$0xff]
        %v467 = vld [vmem:[%s307 + $0x2c0] sm:$0xff]
        %v468 = vld [vmem:[%s307 + $0x2c8] sm:$0xff]
        %v469 = vld [vmem:[%s307 + $0x2d0] sm:$0xff]
        %v470 = vld [vmem:[%s307 + $0x2d8] sm:$0xff]
        %v471 = vld [vmem:[%s307 + $0x2e0] sm:$0xff]
        %v472 = vld [vmem:[%s307 + $0x2e8] sm:$0xff]
        %v473 = vld [vmem:[%s307 + $0x2f0] sm:$0xff]
        %v474 = vld [vmem:[%s307 + $0x2f8] sm:$0xff]
        %v475 = vld [vmem:[%s307 + $0x300] sm:$0xff]
        %v476 = vld [vmem:[%s307 + $0x308] sm:$0xff]
        %v477 = vld [vmem:[%s307 + $0x310] sm:$0xff]
        %v478 = vld [vmem:[%s307 + $0x318] sm:$0xff]
        %v479 = vld [vmem:[%s307 + $0x320] sm:$0xff]
        %v480 = vld [vmem:[%s307 + $0x328] sm:$0xff]
        %v481 = vld [vmem:[%s307 + $0x330] sm:$0xff]
        %v482 = vld [vmem:[%s307 + $0x338] sm:$0xff]
        %v483 = vld [vmem:[%s307 + $0x340] sm:$0xff]
        %v484 = vld [vmem:[%s307 + $0x348] sm:$0xff]
        %v485 = vld [vmem:[%s307 + $0x350] sm:$0xff]
        %v486 = vld [vmem:[%s307 + $0x358] sm:$0xff]
        %v487 = vld [vmem:[%s307 + $0x360] sm:$0xff]
        %v488 = vld [vmem:[%s307 + $0x368] sm:$0xff]
        %v489 = vld [vmem:[%s307 + $0x370] sm:$0xff]
        %v490 = vld [vmem:[%s307 + $0x378] sm:$0xff]
        %v491 = vld [vmem:[%s307 + $0x380] sm:$0xff]
        %v492 = vld [vmem:[%s307 + $0x388] sm:$0xff]
        %v493 = vld [vmem:[%s307 + $0x390] sm:$0xff]
        %v494 = vld [vmem:[%s307 + $0x398] sm:$0xff]
        %v495 = vld [vmem:[%s307 + $0x3a0] sm:$0xff]
        %v496 = vld [vmem:[%s307 + $0x3a8] sm:$0xff]
        %v497 = vld [vmem:[%s307 + $0x3b0] sm:$0xff]
        %v498 = vld [vmem:[%s307 + $0x3b8] sm:$0xff]
        %v499 = vld [vmem:[%s307 + $0x3c0] sm:$0xff]
        %v500 = vld [vmem:[%s307 + $0x3c8] sm:$0xff]
        %v501 = vld [vmem:[%s307 + $0x3d0] sm:$0xff]
        %v502 = vld [vmem:[%s307 + $0x3d8] sm:$0xff]
        %v503 = vld [vmem:[%s307 + $0x3e0] sm:$0xff]
        %v504 = vld [vmem:[%s307 + $0x3e8] sm:$0xff]
        %v505 = vld [vmem:[%s307 + $0x3f0] sm:$0xff]
        %v506 = vld [vmem:[%s307 + $0x3f8] sm:$0xff]
        %v507 = vld [vmem:[%s307 + $0x400] sm:$0xff]
        %v508 = vld [vmem:[%s307 + $0x408] sm:$0xff]
        %v509 = vld [vmem:[%s307 + $0x410] sm:$0xff]
        %v510 = vld [vmem:[%s307 + $0x418] sm:$0xff]
        %v511 = vld [vmem:[%s307 + $0x420] sm:$0xff]
        %v512 = vld [vmem:[%s307 + $0x428] sm:$0xff]
        %v513 = vld [vmem:[%s307 + $0x430] sm:$0xff]
        %v514 = vld [vmem:[%s307 + $0x438] sm:$0xff]
        %v515 = vld [vmem:[%s307 + $0x440] sm:$0xff]
        %v516 = vld [vmem:[%s307 + $0x448] sm:$0xff]
        %v517 = vld [vmem:[%s307 + $0x450] sm:$0xff]
        %v518 = vld [vmem:[%s307 + $0x458] sm:$0xff]
        %v519 = vld [vmem:[%s307 + $0x460] sm:$0xff]
        %v520 = vld [vmem:[%s307 + $0x468] sm:$0xff]
        %v521 = vld [vmem:[%s307 + $0x470] sm:$0xff]
        %v522 = vld [vmem:[%s307 + $0x478] sm:$0xff]
        %v523 = vld [vmem:[%s307 + $0x480] sm:$0xff]
        %v524 = vld [vmem:[%s307 + $0x488] sm:$0xff]
        %v525 = vld [vmem:[%s307 + $0x490] sm:$0xff]
        %v526 = vld [vmem:[%s307 + $0x498] sm:$0xff]
        %v527 = vld [vmem:[%s307 + $0x4a0] sm:$0xff]
        %v528 = vld [vmem:[%s307 + $0x4a8] sm:$0xff]
        %v529 = vld [vmem:[%s307 + $0x4b0] sm:$0xff]
        %v530 = vld [vmem:[%s307 + $0x4b8] sm:$0xff]
        %v531 = vld [vmem:[%s307 + $0x4c0] sm:$0xff]
        %v532 = vld [vmem:[%s307 + $0x4c8] sm:$0xff]
        %v533 = vld [vmem:[%s307 + $0x4d0] sm:$0xff]
        %v534 = vld [vmem:[%s307 + $0x4d8] sm:$0xff]
        %v535 = vld [vmem:[%s307 + $0x4e0] sm:$0xff]
        %v536 = vld [vmem:[%s307 + $0x4e8] sm:$0xff]
        %v537 = vld [vmem:[%s307 + $0x4f0] sm:$0xff]
        %v538 = vld [vmem:[%s307 + $0x4f8] sm:$0xff]
        %v539 = vld [vmem:[%s307 + $0x500] sm:$0xff]
        %v540 = vld [vmem:[%s307 + $0x508] sm:$0xff]
        %v541 = vld [vmem:[%s307 + $0x510] sm:$0xff]
        %v542 = vld [vmem:[%s307 + $0x518] sm:$0xff]
        %v543 = vld [vmem:[%s307 + $0x520] sm:$0xff]
        %v544 = vld [vmem:[%s307 + $0x528] sm:$0xff]
        %v545 = vld [vmem:[%s307 + $0x530] sm:$0xff]
        %v546 = vld [vmem:[%s307 + $0x538] sm:$0xff]
        %v547 = vld [vmem:[%s307 + $0x540] sm:$0xff]
        %v548 = vld [vmem:[%s307 + $0x548] sm:$0xff]
        %v549 = vld [vmem:[%s307 + $0x550] sm:$0xff]
        %v550 = vld [vmem:[%s307 + $0x558] sm:$0xff]
        %v551 = vld [vmem:[%s307 + $0x560] sm:$0xff]
        %v552 = vld [vmem:[%s307 + $0x568] sm:$0xff]
        %v553 = vld [vmem:[%s307 + $0x570] sm:$0xff]
        %v554 = vld [vmem:[%s307 + $0x578] sm:$0xff]
        %v555 = vld [vmem:[%s307 + $0x580] sm:$0xff]
        %v556 = vld [vmem:[%s307 + $0x588] sm:$0xff]
        %v557 = vld [vmem:[%s307 + $0x590] sm:$0xff]
        %v558 = vld [vmem:[%s307 + $0x598] sm:$0xff]
        %v559 = vld [vmem:[%s307 + $0x5a0] sm:$0xff]
        %v560 = vld [vmem:[%s307 + $0x5a8] sm:$0xff]
        %v561 = vld [vmem:[%s307 + $0x5b0] sm:$0xff]
        %v562 = vld [vmem:[%s307 + $0x5b8] sm:$0xff]
        %v563 = vld [vmem:[%s307 + $0x5c0] sm:$0xff]
        %v564 = vld [vmem:[%s307 + $0x5c8] sm:$0xff]
        %v565 = vld [vmem:[%s307 + $0x5d0] sm:$0xff]
        %v566 = vld [vmem:[%s307 + $0x5d8] sm:$0xff]
        %v567 = vld [vmem:[%s307 + $0x5e0] sm:$0xff]
        %v568 = vld [vmem:[%s307 + $0x5e8] sm:$0xff]
        %v569 = vld [vmem:[%s307 + $0x5f0] sm:$0xff]
        %v570 = vld [vmem:[%s307 + $0x5f8] sm:$0xff]
        %v571 = vld [vmem:[%s316] sm:$0x3]
        %v572 = vld [vmem:[%s325] sm:$0xff]
        %v573 = vld [vmem:[%s325 + $0x8] sm:$0xff]
        %v574 = vld [vmem:[%s325 + $0x10] sm:$0xff]
        %v575 = vld [vmem:[%s325 + $0x18] sm:$0xff]
        %v576 = vld [vmem:[%s325 + $0x20] sm:$0xff]
        %v577 = vld [vmem:[%s325 + $0x28] sm:$0xff]
        %v578 = vld [vmem:[%s325 + $0x30] sm:$0xff]
        %v579 = vld [vmem:[%s325 + $0x38] sm:$0xff]
        %v580 = vld [vmem:[%s325 + $0x40] sm:$0xff]
        %v581 = vld [vmem:[%s325 + $0x48] sm:$0xff]
        %v582 = vld [vmem:[%s325 + $0x50] sm:$0xff]
        %v583 = vld [vmem:[%s325 + $0x58] sm:$0xff]
        %v584 = vld [vmem:[%s325 + $0x60] sm:$0xff]
        %v585 = vld [vmem:[%s325 + $0x68] sm:$0xff]
        %v586 = vld [vmem:[%s325 + $0x70] sm:$0xff]
        %v587 = vld [vmem:[%s325 + $0x78] sm:$0xff]
        %v588 = vld [vmem:[%s325 + $0x80] sm:$0xff]
        %v589 = vld [vmem:[%s325 + $0x88] sm:$0xff]
        %v590 = vld [vmem:[%s325 + $0x90] sm:$0xff]
        %v591 = vld [vmem:[%s325 + $0x98] sm:$0xff]
        %v592 = vld [vmem:[%s325 + $0xa0] sm:$0xff]
        %v593 = vld [vmem:[%s325 + $0xa8] sm:$0xff]
        %v594 = vld [vmem:[%s325 + $0xb0] sm:$0xff]
        %v595 = vld [vmem:[%s325 + $0xb8] sm:$0xff]
        %v596 = vld [vmem:[%s325 + $0xc0] sm:$0xff]
        %v597 = vld [vmem:[%s325 + $0xc8] sm:$0xff]
        %v598 = vld [vmem:[%s325 + $0xd0] sm:$0xff]
        %v599 = vld [vmem:[%s325 + $0xd8] sm:$0xff]
        %v600 = vld [vmem:[%s325 + $0xe0] sm:$0xff]
        %v601 = vld [vmem:[%s325 + $0xe8] sm:$0xff]
        %v602 = vld [vmem:[%s325 + $0xf0] sm:$0xff]
        %v603 = vld [vmem:[%s325 + $0xf8] sm:$0xff]
        %v604 = vld [vmem:[#allocation2] sm:$0xf]
        %s605 = scalar_select %p373, 7, 0
        %s606 = smul.u32 %s605, 6
        %s607 = smul.addr %s606, 2
        %s608 = scalar_lea.vmem %s298, %s607 [#allocation3]
        %v609 = vld [vmem:[%s608] sm:$0xff]
        %v610 = vld [vmem:[%s608 + $0x8] sm:$0xf]
        %v613 = vunpack.c.l.s4 1983009808
        %v614 = vunpack.c.0.s8 %v613
        %v615 = vlaneseq
        %v616 = vshrl.u32 %v615, 7
        %v617 = vsub.s32 %v614, %v616
        %v618 = vrot.slane %v604, %v617
        %v619 = vcombine.high %v618, %v618
        %622 = vmatprep.subr.mxu0 %v380
        %623 = vmatpush1.msra.mxu0 %v379
        %624 = vmatprep.subr.mxu0 %v386
        %625 = vmatpush1.msra.mxu0 %v385
        %626 = vmatprep.subr.mxu0 %v392
        %627 = vmatpush1.msra.mxu0 %v391
        %628 = vmatprep.subr.mxu0 %v398
        %629 = vmatpush1.msra.mxu0 %v397
        %630 = vmatprep.subr.mxu0 %v404
        %631 = vmatpush1.msra.mxu0 %v403
        %632 = vmatprep.subr.mxu0 %v410
        %633 = vmatpush1.msra.mxu0 %v409
        %634 = vmatprep.subr.mxu0 %v416
        %635 = vmatpush1.msra.mxu0 %v415
        %636 = vmatprep.subr.mxu0 %v422
        %637 = vmatpush1.msra.mxu0 %v421
        %638 = vmatprep.subr.mxu0 %v428
        %639 = vmatpush1.msra.mxu0 %v427
        %640 = vmatprep.subr.mxu0 %v434
        %641 = vmatpush1.msra.mxu0 %v433
        %642 = vmatprep.subr.mxu0 %v440
        %643 = vmatpush1.msra.mxu0 %v439
        %644 = vmatprep.subr.mxu0 %v446
        %645 = vmatpush1.msra.mxu0 %v445
        %646 = vmatprep.subr.mxu0 %v452
        %647 = vmatpush1.msra.mxu0 %v451
        %648 = vmatprep.subr.mxu0 %v458
        %649 = vmatpush1.msra.mxu0 %v457
        %650 = vmatprep.subr.mxu0 %v464
        %651 = vmatpush1.msra.mxu0 %v463
        %652 = vmatprep.subr.mxu0 %v470
        %653 = vmatpush1.msra.mxu0 %v469
        %654 = vmatprep.subr.mxu0 %v476
        %655 = vmatpush1.msra.mxu0 %v475
        %656 = vmatprep.subr.mxu0 %v482
        %657 = vmatpush1.msra.mxu0 %v481
        %658 = vmatprep.subr.mxu0 %v488
        %659 = vmatpush1.msra.mxu0 %v487
        %660 = vmatprep.subr.mxu0 %v494
        %661 = vmatpush1.msra.mxu0 %v493
        %662 = vmatprep.subr.mxu0 %v500
        %663 = vmatpush1.msra.mxu0 %v499
        %664 = vmatprep.subr.mxu0 %v506
        %665 = vmatpush1.msra.mxu0 %v505
        %666 = vmatprep.subr.mxu0 %v512
        %667 = vmatpush1.msra.mxu0 %v511
        %668 = vmatprep.subr.mxu0 %v518
        %669 = vmatpush1.msra.mxu0 %v517
        %670 = vmatprep.subr.mxu0 %v524
        %671 = vmatpush1.msra.mxu0 %v523
        %672 = vmatprep.subr.mxu0 %v530
        %673 = vmatpush1.msra.mxu0 %v529
        %674 = vmatprep.subr.mxu0 %v536
        %675 = vmatpush1.msra.mxu0 %v535
        %676 = vmatprep.subr.mxu0 %v542
        %677 = vmatpush1.msra.mxu0 %v541
        %678 = vmatprep.subr.mxu0 %v548
        %679 = vmatpush1.msra.mxu0 %v547
        %680 = vmatprep.subr.mxu0 %v554
        %681 = vmatpush1.msra.mxu0 %v553
        %682 = vmatprep.subr.mxu0 %v560
        %683 = vmatpush1.msra.mxu0 %v559
        %684 = vmatprep.subr.mxu0 %v566
        %685 = vmatpush1.msra.mxu0 %v565
        %686 = vmatprep.mubr.f32.mxu0 %v619
        %687 = vmatmul.mubr.f32.gmra.mrb[0].mxu0 %v618
        %v688 = vpop.f32.mrb[0].mxu0
        %v689 = vadd.f32 0.0, %v688
        %v690 = vpop.f32.mrb[0].mxu0
        %v691 = vadd.f32 0.0, %v690
        %692 = vdwg.mxu0
        %693 = vmatprep.subr.mxu0 %v382
        %694 = vmatpush1.msra.mxu0 %v381
        %695 = vmatprep.subr.mxu0 %v388
        %696 = vmatpush1.msra.mxu0 %v387
        %697 = vmatprep.subr.mxu0 %v394
        %698 = vmatpush1.msra.mxu0 %v393
        %699 = vmatprep.subr.mxu0 %v400
        %700 = vmatpush1.msra.mxu0 %v399
        %701 = vmatprep.subr.mxu0 %v406
        %702 = vmatpush1.msra.mxu0 %v405
        %703 = vmatprep.subr.mxu0 %v412
        %704 = vmatpush1.msra.mxu0 %v411
        %705 = vmatprep.subr.mxu0 %v418
        %706 = vmatpush1.msra.mxu0 %v417
        %707 = vmatprep.subr.mxu0 %v424
        %708 = vmatpush1.msra.mxu0 %v423
        %709 = vmatprep.subr.mxu0 %v430
        %710 = vmatpush1.msra.mxu0 %v429
        %711 = vmatprep.subr.mxu0 %v436
        %712 = vmatpush1.msra.mxu0 %v435
        %713 = vmatprep.subr.mxu0 %v442
        %714 = vmatpush1.msra.mxu0 %v441
        %715 = vmatprep.subr.mxu0 %v448
        %716 = vmatpush1.msra.mxu0 %v447
        %717 = vmatprep.subr.mxu0 %v454
        %718 = vmatpush1.msra.mxu0 %v453
        %719 = vmatprep.subr.mxu0 %v460
        %720 = vmatpush1.msra.mxu0 %v459
        %721 = vmatprep.subr.mxu0 %v466
        %722 = vmatpush1.msra.mxu0 %v465
        %723 = vmatprep.subr.mxu0 %v472
        %724 = vmatpush1.msra.mxu0 %v471
        %725 = vmatprep.subr.mxu0 %v478
        %726 = vmatpush1.msra.mxu0 %v477
        %727 = vmatprep.subr.mxu0 %v484
        %728 = vmatpush1.msra.mxu0 %v483
        %729 = vmatprep.subr.mxu0 %v490
        %730 = vmatpush1.msra.mxu0 %v489
        %731 = vmatprep.subr.mxu0 %v496
        %732 = vmatpush1.msra.mxu0 %v495
        %733 = vmatprep.subr.mxu0 %v502
        %734 = vmatpush1.msra.mxu0 %v501
        %735 = vmatprep.subr.mxu0 %v508
        %736 = vmatpush1.msra.mxu0 %v507
        %737 = vmatprep.subr.mxu0 %v514
        %738 = vmatpush1.msra.mxu0 %v513
        %739 = vmatprep.subr.mxu0 %v520
        %740 = vmatpush1.msra.mxu0 %v519
        %741 = vmatprep.subr.mxu0 %v526
        %742 = vmatpush1.msra.mxu0 %v525
        %743 = vmatprep.subr.mxu0 %v532
        %744 = vmatpush1.msra.mxu0 %v531
        %745 = vmatprep.subr.mxu0 %v538
        %746 = vmatpush1.msra.mxu0 %v537
        %747 = vmatprep.subr.mxu0 %v544
        %748 = vmatpush1.msra.mxu0 %v543
        %749 = vmatprep.subr.mxu0 %v550
        %750 = vmatpush1.msra.mxu0 %v549
        %751 = vmatprep.subr.mxu0 %v556
        %752 = vmatpush1.msra.mxu0 %v555
        %753 = vmatprep.subr.mxu0 %v562
        %754 = vmatpush1.msra.mxu0 %v561
        %755 = vmatprep.subr.mxu0 %v568
        %756 = vmatpush1.msra.mxu0 %v567
        %757 = vmatprep.mubr.f32.mxu0 %v619
        %758 = vmatmul.mubr.f32.gmra.mrb[0].mxu0 %v618
        %v759 = vpop.f32.mrb[0].mxu0
        %v760 = vadd.f32 0.0, %v759
        %v761 = vpop.f32.mrb[0].mxu0
        %v762 = vadd.f32 0.0, %v761
        %763 = vdwg.mxu0
        %764 = vmatprep.subr.mxu0 %v384
        %765 = vmatpush1.msra.mxu0 %v383
        %766 = vmatprep.subr.mxu0 %v390
        %767 = vmatpush1.msra.mxu0 %v389
        %768 = vmatprep.subr.mxu0 %v396
        %769 = vmatpush1.msra.mxu0 %v395
        %770 = vmatprep.subr.mxu0 %v402
        %771 = vmatpush1.msra.mxu0 %v401
        %772 = vmatprep.subr.mxu0 %v408
        %773 = vmatpush1.msra.mxu0 %v407
        %774 = vmatprep.subr.mxu0 %v414
        %775 = vmatpush1.msra.mxu0 %v413
        %776 = vmatprep.subr.mxu0 %v420
        %777 = vmatpush1.msra.mxu0 %v419
        %778 = vmatprep.subr.mxu0 %v426
        %779 = vmatpush1.msra.mxu0 %v425
        %780 = vmatprep.subr.mxu0 %v432
        %781 = vmatpush1.msra.mxu0 %v431
        %782 = vmatprep.subr.mxu0 %v438
        %783 = vmatpush1.msra.mxu0 %v437
        %784 = vmatprep.subr.mxu0 %v444
        %785 = vmatpush1.msra.mxu0 %v443
        %786 = vmatprep.subr.mxu0 %v450
        %787 = vmatpush1.msra.mxu0 %v449
        %788 = vmatprep.subr.mxu0 %v456
        %789 = vmatpush1.msra.mxu0 %v455
        %790 = vmatprep.subr.mxu0 %v462
        %791 = vmatpush1.msra.mxu0 %v461
        %792 = vmatprep.subr.mxu0 %v468
        %793 = vmatpush1.msra.mxu0 %v467
        %794 = vmatprep.subr.mxu0 %v474
        %795 = vmatpush1.msra.mxu0 %v473
        %796 = vmatprep.subr.mxu0 %v480
        %797 = vmatpush1.msra.mxu0 %v479
        %798 = vmatprep.subr.mxu0 %v486
        %799 = vmatpush1.msra.mxu0 %v485
        %800 = vmatprep.subr.mxu0 %v492
        %801 = vmatpush1.msra.mxu0 %v491
        %802 = vmatprep.subr.mxu0 %v498
        %803 = vmatpush1.msra.mxu0 %v497
        %804 = vmatprep.subr.mxu0 %v504
        %805 = vmatpush1.msra.mxu0 %v503
        %806 = vmatprep.subr.mxu0 %v510
        %807 = vmatpush1.msra.mxu0 %v509
        %808 = vmatprep.subr.mxu0 %v516
        %809 = vmatpush1.msra.mxu0 %v515
        %810 = vmatprep.subr.mxu0 %v522
        %811 = vmatpush1.msra.mxu0 %v521
        %812 = vmatprep.subr.mxu0 %v528
        %813 = vmatpush1.msra.mxu0 %v527
        %814 = vmatprep.subr.mxu0 %v534
        %815 = vmatpush1.msra.mxu0 %v533
        %816 = vmatprep.subr.mxu0 %v540
        %817 = vmatpush1.msra.mxu0 %v539
        %818 = vmatprep.subr.mxu0 %v546
        %819 = vmatpush1.msra.mxu0 %v545
        %820 = vmatprep.subr.mxu0 %v552
        %821 = vmatpush1.msra.mxu0 %v551
        %822 = vmatprep.subr.mxu0 %v558
        %823 = vmatpush1.msra.mxu0 %v557
        %824 = vmatprep.subr.mxu0 %v564
        %825 = vmatpush1.msra.mxu0 %v563
        %826 = vmatprep.subr.mxu0 %v570
        %827 = vmatpush1.msra.mxu0 %v569
        %828 = vmatprep.mubr.f32.mxu0 %v619
        %829 = vmatmul.mubr.f32.gmra.mrb[0].mxu0 %v618
        %v830 = vpop.f32.mrb[0].mxu0
        %v831 = vadd.f32 0.0, %v830
        %v832 = vpop.f32.mrb[0].mxu0
        %v833 = vadd.f32 0.0, %v832
        %834 = vdwg.mxu0
        %v837 = vcombine.low %v689, %v691
        %v839 = vunpack.c.l.s4 1983009808
        %v840 = vunpack.c.0.s8 %v839
        %v841 = vlaneseq
        %v842 = vshrl.u32 %v841, 7
        %v843 = vsub.s32 %v840, %v842
        %v844 = vrot.slane %v837, %v843
        %v846 = vadd.f32 %v609, %v844
        %v847 = vxor.u32 %v846, 2147483648
        %v848 = vmul.f32 %v847, 1.442695
        %v849 = vpow.pop %v848
        %v850 = vadd.f32 %v849, 1.0
        %v851 = vrcp.pop %v850
        %v852 = vmul.f32 1.0, %v851
        %v854 = vrot.slane %v609, 4
        %v858 = vcombine.low %v760, %v762
        %v860 = vunpack.c.l.s4 1983009808
        %v861 = vunpack.c.0.s8 %v860
        %v862 = vlaneseq
        %v863 = vshrl.u32 %v862, 7
        %v864 = vsub.s32 %v861, %v863
        %v865 = vrot.slane %v858, %v864
        %v867 = vadd.f32 %v854, %v865
        %v868 = vxor.u32 %v867, 2147483648
        %v869 = vmul.f32 %v868, 1.442695
        %v870 = vpow.pop %v869
        %v871 = vadd.f32 %v870, 1.0
        %v872 = vrcp.pop %v871
        %v873 = vmul.f32 1.0, %v872
        %v875 = vlaneseq
        %v876 = vshrl.u32 %v875, 7
        %v877 = vsub.s32 0, %v876
        %v878 = vrot.slane %v571, %v877
        %v879 = vlaneseq
        %v880 = vshrl.u32 %v879, 7
        %v881 = vsub.s32 1, %v880
        %v882 = vrot.slane %v571, %v881
        %v885 = vadd.f32 %v831, %v878
        %v886 = vadd.f32 %v833, %v882
        %v889 = vcombine.low %v885, %v886
        %v891 = vunpack.c.l.s4 1983009808
        %v892 = vunpack.c.0.s8 %v891
        %v893 = vlaneseq
        %v894 = vshrl.u32 %v893, 7
        %v895 = vsub.s32 %v892, %v894
        %v896 = vrot.slane %v889, %v895
        %v898 = vmul.f32 %v852, %v896
        %v899 = vadd.f32 %v610, %v898
        %v900 = vtanh.pop %v899
        %v901 = vsub.f32 1.0, %v873
        %v902 = vmul.f32 %v901, %v900
        %v903 = vmul.f32 %v873, %v604
        %v904 = vadd.f32 %v902, %v903
        %v907 = vunpack.c.l.s4 1983009808
        %v908 = vunpack.c.0.s8 %v907
        %v909 = vlaneseq
        %v910 = vshrl.u32 %v909, 7
        %v911 = vsub.s32 %v908, %v910
        %v912 = vrot.slane %v904, %v911
        %v913 = vcombine.high %v912, %v912
        %916 = vmatprep.subr.mxu0 0.0
        %917 = vmatpush1.msra.mxu0 %v572
        %918 = vmatprep.subr.mxu0 0.0
        %919 = vmatpush1.msra.mxu0 %v573
        %920 = vmatprep.subr.mxu0 0.0
        %921 = vmatpush1.msra.mxu0 %v574
        %922 = vmatprep.subr.mxu0 0.0
        %923 = vmatpush1.msra.mxu0 %v575
        %924 = vmatprep.subr.mxu0 0.0
        %925 = vmatpush1.msra.mxu0 %v576
        %926 = vmatprep.subr.mxu0 0.0
        %927 = vmatpush1.msra.mxu0 %v577
        %928 = vmatprep.subr.mxu0 0.0
        %929 = vmatpush1.msra.mxu0 %v578
        %930 = vmatprep.subr.mxu0 0.0
        %931 = vmatpush1.msra.mxu0 %v579
        %932 = vmatprep.subr.mxu0 0.0
        %933 = vmatpush1.msra.mxu0 %v580
        %934 = vmatprep.subr.mxu0 0.0
        %935 = vmatpush1.msra.mxu0 %v581
        %936 = vmatprep.subr.mxu0 0.0
        %937 = vmatpush1.msra.mxu0 %v582
        %938 = vmatprep.subr.mxu0 0.0
        %939 = vmatpush1.msra.mxu0 %v583
        %940 = vmatprep.subr.mxu0 0.0
        %941 = vmatpush1.msra.mxu0 %v584
        %942 = vmatprep.subr.mxu0 0.0
        %943 = vmatpush1.msra.mxu0 %v585
        %944 = vmatprep.subr.mxu0 0.0
        %945 = vmatpush1.msra.mxu0 %v586
        %946 = vmatprep.subr.mxu0 0.0
        %947 = vmatpush1.msra.mxu0 %v587
        %948 = vmatprep.subr.mxu0 0.0
        %949 = vmatpush1.msra.mxu0 %v588
        %950 = vmatprep.subr.mxu0 0.0
        %951 = vmatpush1.msra.mxu0 %v589
        %952 = vmatprep.subr.mxu0 0.0
        %953 = vmatpush1.msra.mxu0 %v590
        %954 = vmatprep.subr.mxu0 0.0
        %955 = vmatpush1.msra.mxu0 %v591
        %956 = vmatprep.subr.mxu0 0.0
        %957 = vmatpush1.msra.mxu0 %v592
        %958 = vmatprep.subr.mxu0 0.0
        %959 = vmatpush1.msra.mxu0 %v593
        %960 = vmatprep.subr.mxu0 0.0
        %961 = vmatpush1.msra.mxu0 %v594
        %962 = vmatprep.subr.mxu0 0.0
        %963 = vmatpush1.msra.mxu0 %v595
        %964 = vmatprep.subr.mxu0 0.0
        %965 = vmatpush1.msra.mxu0 %v596
        %966 = vmatprep.subr.mxu0 0.0
        %967 = vmatpush1.msra.mxu0 %v597
        %968 = vmatprep.subr.mxu0 0.0
        %969 = vmatpush1.msra.mxu0 %v598
        %970 = vmatprep.subr.mxu0 0.0
        %971 = vmatpush1.msra.mxu0 %v599
        %972 = vmatprep.subr.mxu0 0.0
        %973 = vmatpush1.msra.mxu0 %v600
        %974 = vmatprep.subr.mxu0 0.0
        %975 = vmatpush1.msra.mxu0 %v601
        %976 = vmatprep.subr.mxu0 0.0
        %977 = vmatpush1.msra.mxu0 %v602
        %978 = vmatprep.subr.mxu0 0.0
        %979 = vmatpush1.msra.mxu0 %v603
        %980 = vmatprep.mubr.f32.mxu0 %v913
        %981 = vmatmul.mubr.f32.gmra.mrb[0].mxu0 %v912
        %v982 = vpop.f32.mrb[0].mxu0
        %v983 = vadd.f32 0.0, %v982
        %v984 = vpop.f32.mrb[0].mxu0
        %985 = vdwg.mxu0
        %s986 = smul.u32 %s605, 2
        %s987 = scalar_lea.vmem %s364, %s986 [#allocation11]
        %988 = vst [vmem:[%s987] sm:$0x3] %v983
        %s989 = scalar_select %p373, 6, 1
        %s990 = smul.u32 %s989, 6
        %s991 = smul.addr %s990, 2
        %s992 = scalar_lea.vmem %s298, %s991 [#allocation3]
        %v993 = vld [vmem:[%s992] sm:$0xff]
        %v994 = vld [vmem:[%s992 + $0x8] sm:$0xf]
        %995 = vmatprep.subr.mxu0 %v380
        %996 = vmatpush1.msra.mxu0 %v379
        %997 = vmatprep.subr.mxu0 %v386
        %998 = vmatpush1.msra.mxu0 %v385
        %999 = vmatprep.subr.mxu0 %v392
        %1000 = vmatpush1.msra.mxu0 %v391
        %1001 = vmatprep.subr.mxu0 %v398
        %1002 = vmatpush1.msra.mxu0 %v397
        %1003 = vmatprep.subr.mxu0 %v404
        %1004 = vmatpush1.msra.mxu0 %v403
        %1005 = vmatprep.subr.mxu0 %v410
        %1006 = vmatpush1.msra.mxu0 %v409
        %1007 = vmatprep.subr.mxu0 %v416
        %1008 = vmatpush1.msra.mxu0 %v415
        %1009 = vmatprep.subr.mxu0 %v422
        %1010 = vmatpush1.msra.mxu0 %v421
        %1011 = vmatprep.subr.mxu0 %v428
        %1012 = vmatpush1.msra.mxu0 %v427
        %1013 = vmatprep.subr.mxu0 %v434
        %1014 = vmatpush1.msra.mxu0 %v433
        %1015 = vmatprep.subr.mxu0 %v440
        %1016 = vmatpush1.msra.mxu0 %v439
        %1017 = vmatprep.subr.mxu0 %v446
        %1018 = vmatpush1.msra.mxu0 %v445
        %1019 = vmatprep.subr.mxu0 %v452
        %1020 = vmatpush1.msra.mxu0 %v451
        %1021 = vmatprep.subr.mxu0 %v458
        %1022 = vmatpush1.msra.mxu0 %v457
        %1023 = vmatprep.subr.mxu0 %v464
        %1024 = vmatpush1.msra.mxu0 %v463
        %1025 = vmatprep.subr.mxu0 %v470
        %1026 = vmatpush1.msra.mxu0 %v469
        %1027 = vmatprep.subr.mxu0 %v476
        %1028 = vmatpush1.msra.mxu0 %v475
        %1029 = vmatprep.subr.mxu0 %v482
        %1030 = vmatpush1.msra.mxu0 %v481
        %1031 = vmatprep.subr.mxu0 %v488
        %1032 = vmatpush1.msra.mxu0 %v487
        %1033 = vmatprep.subr.mxu0 %v494
        %1034 = vmatpush1.msra.mxu0 %v493
        %1035 = vmatprep.subr.mxu0 %v500
        %1036 = vmatpush1.msra.mxu0 %v499
        %1037 = vmatprep.subr.mxu0 %v506
        %1038 = vmatpush1.msra.mxu0 %v505
        %1039 = vmatprep.subr.mxu0 %v512
        %1040 = vmatpush1.msra.mxu0 %v511
        %1041 = vmatprep.subr.mxu0 %v518
        %1042 = vmatpush1.msra.mxu0 %v517
        %1043 = vmatprep.subr.mxu0 %v524
        %1044 = vmatpush1.msra.mxu0 %v523
        %1045 = vmatprep.subr.mxu0 %v530
        %1046 = vmatpush1.msra.mxu0 %v529
        %1047 = vmatprep.subr.mxu0 %v536
        %1048 = vmatpush1.msra.mxu0 %v535
        %1049 = vmatprep.subr.mxu0 %v542
        %1050 = vmatpush1.msra.mxu0 %v541
        %1051 = vmatprep.subr.mxu0 %v548
        %1052 = vmatpush1.msra.mxu0 %v547
        %1053 = vmatprep.subr.mxu0 %v554
        %1054 = vmatpush1.msra.mxu0 %v553
        %1055 = vmatprep.subr.mxu0 %v560
        %1056 = vmatpush1.msra.mxu0 %v559
        %1057 = vmatprep.subr.mxu0 %v566
        %1058 = vmatpush1.msra.mxu0 %v565
        %1059 = vmatprep.mubr.f32.mxu0 %v913
        %1060 = vmatmul.mubr.f32.gmra.mrb[0].mxu0 %v912
        %v1061 = vpop.f32.mrb[0].mxu0
        %v1062 = vadd.f32 0.0, %v1061
        %v1063 = vpop.f32.mrb[0].mxu0
        %v1064 = vadd.f32 0.0, %v1063
        %1065 = vdwg.mxu0
        %1066 = vmatprep.subr.mxu0 %v382
        %1067 = vmatpush1.msra.mxu0 %v381
        %1068 = vmatprep.subr.mxu0 %v388
        %1069 = vmatpush1.msra.mxu0 %v387
        %1070 = vmatprep.subr.mxu0 %v394
        %1071 = vmatpush1.msra.mxu0 %v393
        %1072 = vmatprep.subr.mxu0 %v400
        %1073 = vmatpush1.msra.mxu0 %v399
        %1074 = vmatprep.subr.mxu0 %v406
        %1075 = vmatpush1.msra.mxu0 %v405
        %1076 = vmatprep.subr.mxu0 %v412
        %1077 = vmatpush1.msra.mxu0 %v411
        %1078 = vmatprep.subr.mxu0 %v418
        %1079 = vmatpush1.msra.mxu0 %v417
        %1080 = vmatprep.subr.mxu0 %v424
        %1081 = vmatpush1.msra.mxu0 %v423
        %1082 = vmatprep.subr.mxu0 %v430
        %1083 = vmatpush1.msra.mxu0 %v429
        %1084 = vmatprep.subr.mxu0 %v436
        %1085 = vmatpush1.msra.mxu0 %v435
        %1086 = vmatprep.subr.mxu0 %v442
        %1087 = vmatpush1.msra.mxu0 %v441
        %1088 = vmatprep.subr.mxu0 %v448
        %1089 = vmatpush1.msra.mxu0 %v447
        %1090 = vmatprep.subr.mxu0 %v454
        %1091 = vmatpush1.msra.mxu0 %v453
        %1092 = vmatprep.subr.mxu0 %v460
        %1093 = vmatpush1.msra.mxu0 %v459
        %1094 = vmatprep.subr.mxu0 %v466
        %1095 = vmatpush1.msra.mxu0 %v465
        %1096 = vmatprep.subr.mxu0 %v472
        %1097 = vmatpush1.msra.mxu0 %v471
        %1098 = vmatprep.subr.mxu0 %v478
        %1099 = vmatpush1.msra.mxu0 %v477
        %1100 = vmatprep.subr.mxu0 %v484
        %1101 = vmatpush1.msra.mxu0 %v483
        %1102 = vmatprep.subr.mxu0 %v490
        %1103 = vmatpush1.msra.mxu0 %v489
        %1104 = vmatprep.subr.mxu0 %v496
        %1105 = vmatpush1.msra.mxu0 %v495
        %1106 = vmatprep.subr.mxu0 %v502
        %1107 = vmatpush1.msra.mxu0 %v501
        %1108 = vmatprep.subr.mxu0 %v508
        %1109 = vmatpush1.msra.mxu0 %v507
        %1110 = vmatprep.subr.mxu0 %v514
        %1111 = vmatpush1.msra.mxu0 %v513
        %1112 = vmatprep.subr.mxu0 %v520
        %1113 = vmatpush1.msra.mxu0 %v519
        %1114 = vmatprep.subr.mxu0 %v526
        %1115 = vmatpush1.msra.mxu0 %v525
        %1116 = vmatprep.subr.mxu0 %v532
        %1117 = vmatpush1.msra.mxu0 %v531
        %1118 = vmatprep.subr.mxu0 %v538
        %1119 = vmatpush1.msra.mxu0 %v537
        %1120 = vmatprep.subr.mxu0 %v544
        %1121 = vmatpush1.msra.mxu0 %v543
        %1122 = vmatprep.subr.mxu0 %v550
        %1123 = vmatpush1.msra.mxu0 %v549
        %1124 = vmatprep.subr.mxu0 %v556
        %1125 = vmatpush1.msra.mxu0 %v555
        %1126 = vmatprep.subr.mxu0 %v562
        %1127 = vmatpush1.msra.mxu0 %v561
        %1128 = vmatprep.subr.mxu0 %v568
        %1129 = vmatpush1.msra.mxu0 %v567
        %1130 = vmatprep.mubr.f32.mxu0 %v913
        %1131 = vmatmul.mubr.f32.gmra.mrb[0].mxu0 %v912
        %v1132 = vpop.f32.mrb[0].mxu0
        %v1133 = vadd.f32 0.0, %v1132
        %v1134 = vpop.f32.mrb[0].mxu0
        %v1135 = vadd.f32 0.0, %v1134
        %1136 = vdwg.mxu0
        %1137 = vmatprep.subr.mxu0 %v384
        %1138 = vmatpush1.msra.mxu0 %v383
        %1139 = vmatprep.subr.mxu0 %v390
        %1140 = vmatpush1.msra.mxu0 %v389
        %1141 = vmatprep.subr.mxu0 %v396
        %1142 = vmatpush1.msra.mxu0 %v395
        %1143 = vmatprep.subr.mxu0 %v402
        %1144 = vmatpush1.msra.mxu0 %v401
        %1145 = vmatprep.subr.mxu0 %v408
        %1146 = vmatpush1.msra.mxu0 %v407
        %1147 = vmatprep.subr.mxu0 %v414
        %1148 = vmatpush1.msra.mxu0 %v413
        %1149 = vmatprep.subr.mxu0 %v420
        %1150 = vmatpush1.msra.mxu0 %v419
        %1151 = vmatprep.subr.mxu0 %v426
        %1152 = vmatpush1.msra.mxu0 %v425
        %1153 = vmatprep.subr.mxu0 %v432
        %1154 = vmatpush1.msra.mxu0 %v431
        %1155 = vmatprep.subr.mxu0 %v438
        %1156 = vmatpush1.msra.mxu0 %v437
        %1157 = vmatprep.subr.mxu0 %v444
        %1158 = vmatpush1.msra.mxu0 %v443
        %1159 = vmatprep.subr.mxu0 %v450
        %1160 = vmatpush1.msra.mxu0 %v449
        %1161 = vmatprep.subr.mxu0 %v456
        %1162 = vmatpush1.msra.mxu0 %v455
        %1163 = vmatprep.subr.mxu0 %v462
        %1164 = vmatpush1.msra.mxu0 %v461
        %1165 = vmatprep.subr.mxu0 %v468
        %1166 = vmatpush1.msra.mxu0 %v467
        %1167 = vmatprep.subr.mxu0 %v474
        %1168 = vmatpush1.msra.mxu0 %v473
        %1169 = vmatprep.subr.mxu0 %v480
        %1170 = vmatpush1.msra.mxu0 %v479
        %1171 = vmatprep.subr.mxu0 %v486
        %1172 = vmatpush1.msra.mxu0 %v485
        %1173 = vmatprep.subr.mxu0 %v492
        %1174 = vmatpush1.msra.mxu0 %v491
        %1175 = vmatprep.subr.mxu0 %v498
        %1176 = vmatpush1.msra.mxu0 %v497
        %1177 = vmatprep.subr.mxu0 %v504
        %1178 = vmatpush1.msra.mxu0 %v503
        %1179 = vmatprep.subr.mxu0 %v510
        %1180 = vmatpush1.msra.mxu0 %v509
        %1181 = vmatprep.subr.mxu0 %v516
        %1182 = vmatpush1.msra.mxu0 %v515
        %1183 = vmatprep.subr.mxu0 %v522
        %1184 = vmatpush1.msra.mxu0 %v521
        %1185 = vmatprep.subr.mxu0 %v528
        %1186 = vmatpush1.msra.mxu0 %v527
        %1187 = vmatprep.subr.mxu0 %v534
        %1188 = vmatpush1.msra.mxu0 %v533
        %1189 = vmatprep.subr.mxu0 %v540
        %1190 = vmatpush1.msra.mxu0 %v539
        %1191 = vmatprep.subr.mxu0 %v546
        %1192 = vmatpush1.msra.mxu0 %v545
        %1193 = vmatprep.subr.mxu0 %v552
        %1194 = vmatpush1.msra.mxu0 %v551
        %1195 = vmatprep.subr.mxu0 %v558
        %1196 = vmatpush1.msra.mxu0 %v557
        %1197 = vmatprep.subr.mxu0 %v564
        %1198 = vmatpush1.msra.mxu0 %v563
        %1199 = vmatprep.subr.mxu0 %v570
        %1200 = vmatpush1.msra.mxu0 %v569
        %1201 = vmatprep.mubr.f32.mxu0 %v913
        %1202 = vmatmul.mubr.f32.gmra.mrb[0].mxu0 %v912
        %v1203 = vpop.f32.mrb[0].mxu0
        %v1204 = vadd.f32 0.0, %v1203
        %v1205 = vpop.f32.mrb[0].mxu0
        %v1206 = vadd.f32 0.0, %v1205
        %1207 = vdwg.mxu0
        %v1210 = vcombine.low %v1062, %v1064
        %v1212 = vunpack.c.l.s4 1983009808
        %v1213 = vunpack.c.0.s8 %v1212
        %v1214 = vlaneseq
        %v1215 = vshrl.u32 %v1214, 7
        %v1216 = vsub.s32 %v1213, %v1215
        %v1217 = vrot.slane %v1210, %v1216
        %v1219 = vadd.f32 %v993, %v1217
        %v1220 = vxor.u32 %v1219, 2147483648
        %v1221 = vmul.f32 %v1220, 1.442695
        %v1222 = vpow.pop %v1221
        %v1223 = vadd.f32 %v1222, 1.0
        %v1224 = vrcp.pop %v1223
        %v1225 = vmul.f32 1.0, %v1224
        %v1227 = vrot.slane %v993, 4
        %v1231 = vcombine.low %v1133, %v1135
        %v1233 = vunpack.c.l.s4 1983009808
        %v1234 = vunpack.c.0.s8 %v1233
        %v1235 = vlaneseq
        %v1236 = vshrl.u32 %v1235, 7
        %v1237 = vsub.s32 %v1234, %v1236
        %v1238 = vrot.slane %v1231, %v1237
        %v1240 = vadd.f32 %v1227, %v1238
        %v1241 = vxor.u32 %v1240, 2147483648
        %v1242 = vmul.f32 %v1241, 1.442695
        %v1243 = vpow.pop %v1242
        %v1244 = vadd.f32 %v1243, 1.0
        %v1245 = vrcp.pop %v1244
        %v1246 = vmul.f32 1.0, %v1245
        %v1247 = vadd.f32 %v1204, %v878
        %v1248 = vadd.f32 %v1206, %v882
        %v1251 = vcombine.low %v1247, %v1248
        %v1253 = vunpack.c.l.s4 1983009808
        %v1254 = vunpack.c.0.s8 %v1253
        %v1255 = vlaneseq
        %v1256 = vshrl.u32 %v1255, 7
        %v1257 = vsub.s32 %v1254, %v1256
        %v1258 = vrot.slane %v1251, %v1257
        %v1260 = vmul.f32 %v1225, %v1258
        %v1261 = vadd.f32 %v994, %v1260
        %v1262 = vtanh.pop %v1261
        %v1263 = vsub.f32 1.0, %v1246
        %v1264 = vmul.f32 %v1263, %v1262
        %v1265 = vmul.f32 %v1246, %v904
        %v1266 = vadd.f32 %v1264, %v1265
        %v1269 = vunpack.c.l.s4 1983009808
        %v1270 = vunpack.c.0.s8 %v1269
        %v1271 = vlaneseq
        %v1272 = vshrl.u32 %v1271, 7
        %v1273 = vsub.s32 %v1270, %v1272
        %v1274 = vrot.slane %v1266, %v1273
        %v1275 = vcombine.high %v1274, %v1274
        %1278 = vmatprep.subr.mxu0 0.0
        %1279 = vmatpush1.msra.mxu0 %v572
        %1280 = vmatprep.subr.mxu0 0.0
        %1281 = vmatpush1.msra.mxu0 %v573
        %1282 = vmatprep.subr.mxu0 0.0
        %1283 = vmatpush1.msra.mxu0 %v574
        %1284 = vmatprep.subr.mxu0 0.0
        %1285 = vmatpush1.msra.mxu0 %v575
        %1286 = vmatprep.subr.mxu0 0.0
        %1287 = vmatpush1.msra.mxu0 %v576
        %1288 = vmatprep.subr.mxu0 0.0
        %1289 = vmatpush1.msra.mxu0 %v577
        %1290 = vmatprep.subr.mxu0 0.0
        %1291 = vmatpush1.msra.mxu0 %v578
        %1292 = vmatprep.subr.mxu0 0.0
        %1293 = vmatpush1.msra.mxu0 %v579
        %1294 = vmatprep.subr.mxu0 0.0
        %1295 = vmatpush1.msra.mxu0 %v580
        %1296 = vmatprep.subr.mxu0 0.0
        %1297 = vmatpush1.msra.mxu0 %v581
        %1298 = vmatprep.subr.mxu0 0.0
        %1299 = vmatpush1.msra.mxu0 %v582
        %1300 = vmatprep.subr.mxu0 0.0
        %1301 = vmatpush1.msra.mxu0 %v583
        %1302 = vmatprep.subr.mxu0 0.0
        %1303 = vmatpush1.msra.mxu0 %v584
        %1304 = vmatprep.subr.mxu0 0.0
        %1305 = vmatpush1.msra.mxu0 %v585
        %1306 = vmatprep.subr.mxu0 0.0
        %1307 = vmatpush1.msra.mxu0 %v586
        %1308 = vmatprep.subr.mxu0 0.0
        %1309 = vmatpush1.msra.mxu0 %v587
        %1310 = vmatprep.subr.mxu0 0.0
        %1311 = vmatpush1.msra.mxu0 %v588
        %1312 = vmatprep.subr.mxu0 0.0
        %1313 = vmatpush1.msra.mxu0 %v589
        %1314 = vmatprep.subr.mxu0 0.0
        %1315 = vmatpush1.msra.mxu0 %v590
        %1316 = vmatprep.subr.mxu0 0.0
        %1317 = vmatpush1.msra.mxu0 %v591
        %1318 = vmatprep.subr.mxu0 0.0
        %1319 = vmatpush1.msra.mxu0 %v592
        %1320 = vmatprep.subr.mxu0 0.0
        %1321 = vmatpush1.msra.mxu0 %v593
        %1322 = vmatprep.subr.mxu0 0.0
        %1323 = vmatpush1.msra.mxu0 %v594
        %1324 = vmatprep.subr.mxu0 0.0
        %1325 = vmatpush1.msra.mxu0 %v595
        %1326 = vmatprep.subr.mxu0 0.0
        %1327 = vmatpush1.msra.mxu0 %v596
        %1328 = vmatprep.subr.mxu0 0.0
        %1329 = vmatpush1.msra.mxu0 %v597
        %1330 = vmatprep.subr.mxu0 0.0
        %1331 = vmatpush1.msra.mxu0 %v598
        %1332 = vmatprep.subr.mxu0 0.0
        %1333 = vmatpush1.msra.mxu0 %v599
        %1334 = vmatprep.subr.mxu0 0.0
        %1335 = vmatpush1.msra.mxu0 %v600
        %1336 = vmatprep.subr.mxu0 0.0
        %1337 = vmatpush1.msra.mxu0 %v601
        %1338 = vmatprep.subr.mxu0 0.0
        %1339 = vmatpush1.msra.mxu0 %v602
        %1340 = vmatprep.subr.mxu0 0.0
        %1341 = vmatpush1.msra.mxu0 %v603
        %1342 = vmatprep.mubr.f32.mxu0 %v1275
        %1343 = vmatmul.mubr.f32.gmra.mrb[0].mxu0 %v1274
        %v1344 = vpop.f32.mrb[0].mxu0
        %v1345 = vadd.f32 0.0, %v1344
        %v1346 = vpop.f32.mrb[0].mxu0
        %1347 = vdwg.mxu0
        %s1348 = smul.u32 %s989, 2
        %s1349 = scalar_lea.vmem %s364, %s1348 [#allocation11]
        %1350 = vst [vmem:[%s1349] sm:$0x3] %v1345
        %s1351 = scalar_select %p373, 5, 2
        %s1352 = smul.u32 %s1351, 6
        %s1353 = smul.addr %s1352, 2
        %s1354 = scalar_lea.vmem %s298, %s1353 [#allocation3]
        %v1355 = vld [vmem:[%s1354] sm:$0xff]
        %v1356 = vld [vmem:[%s1354 + $0x8] sm:$0xf]
        %1357 = vmatprep.subr.mxu0 %v380
        %1358 = vmatpush1.msra.mxu0 %v379
        %1359 = vmatprep.subr.mxu0 %v386
        %1360 = vmatpush1.msra.mxu0 %v385
        %1361 = vmatprep.subr.mxu0 %v392
        %1362 = vmatpush1.msra.mxu0 %v391
        %1363 = vmatprep.subr.mxu0 %v398
        %1364 = vmatpush1.msra.mxu0 %v397
        %1365 = vmatprep.subr.mxu0 %v404
        %1366 = vmatpush1.msra.mxu0 %v403
        %1367 = vmatprep.subr.mxu0 %v410
        %1368 = vmatpush1.msra.mxu0 %v409
        %1369 = vmatprep.subr.mxu0 %v416
        %1370 = vmatpush1.msra.mxu0 %v415
        %1371 = vmatprep.subr.mxu0 %v422
        %1372 = vmatpush1.msra.mxu0 %v421
        %1373 = vmatprep.subr.mxu0 %v428
        %1374 = vmatpush1.msra.mxu0 %v427
        %1375 = vmatprep.subr.mxu0 %v434
        %1376 = vmatpush1.msra.mxu0 %v433
        %1377 = vmatprep.subr.mxu0 %v440
        %1378 = vmatpush1.msra.mxu0 %v439
        %1379 = vmatprep.subr.mxu0 %v446
        %1380 = vmatpush1.msra.mxu0 %v445
        %1381 = vmatprep.subr.mxu0 %v452
        %1382 = vmatpush1.msra.mxu0 %v451
        %1383 = vmatprep.subr.mxu0 %v458
        %1384 = vmatpush1.msra.mxu0 %v457
        %1385 = vmatprep.subr.mxu0 %v464
        %1386 = vmatpush1.msra.mxu0 %v463
        %1387 = vmatprep.subr.mxu0 %v470
        %1388 = vmatpush1.msra.mxu0 %v469
        %1389 = vmatprep.subr.mxu0 %v476
        %1390 = vmatpush1.msra.mxu0 %v475
        %1391 = vmatprep.subr.mxu0 %v482
        %1392 = vmatpush1.msra.mxu0 %v481
        %1393 = vmatprep.subr.mxu0 %v488
        %1394 = vmatpush1.msra.mxu0 %v487
        %1395 = vmatprep.subr.mxu0 %v494
        %1396 = vmatpush1.msra.mxu0 %v493
        %1397 = vmatprep.subr.mxu0 %v500
        %1398 = vmatpush1.msra.mxu0 %v499
        %1399 = vmatprep.subr.mxu0 %v506
        %1400 = vmatpush1.msra.mxu0 %v505
        %1401 = vmatprep.subr.mxu0 %v512
        %1402 = vmatpush1.msra.mxu0 %v511
        %1403 = vmatprep.subr.mxu0 %v518
        %1404 = vmatpush1.msra.mxu0 %v517
        %1405 = vmatprep.subr.mxu0 %v524
        %1406 = vmatpush1.msra.mxu0 %v523
        %1407 = vmatprep.subr.mxu0 %v530
        %1408 = vmatpush1.msra.mxu0 %v529
        %1409 = vmatprep.subr.mxu0 %v536
        %1410 = vmatpush1.msra.mxu0 %v535
        %1411 = vmatprep.subr.mxu0 %v542
        %1412 = vmatpush1.msra.mxu0 %v541
        %1413 = vmatprep.subr.mxu0 %v548
        %1414 = vmatpush1.msra.mxu0 %v547
        %1415 = vmatprep.subr.mxu0 %v554
        %1416 = vmatpush1.msra.mxu0 %v553
        %1417 = vmatprep.subr.mxu0 %v560
        %1418 = vmatpush1.msra.mxu0 %v559
        %1419 = vmatprep.subr.mxu0 %v566
        %1420 = vmatpush1.msra.mxu0 %v565
        %1421 = vmatprep.mubr.f32.mxu0 %v1275
        %1422 = vmatmul.mubr.f32.gmra.mrb[0].mxu0 %v1274
        %v1423 = vpop.f32.mrb[0].mxu0
        %v1424 = vadd.f32 0.0, %v1423
        %v1425 = vpop.f32.mrb[0].mxu0
        %v1426 = vadd.f32 0.0, %v1425
        %1427 = vdwg.mxu0
        %1428 = vmatprep.subr.mxu0 %v382
        %1429 = vmatpush1.msra.mxu0 %v381
        %1430 = vmatprep.subr.mxu0 %v388
        %1431 = vmatpush1.msra.mxu0 %v387
        %1432 = vmatprep.subr.mxu0 %v394
        %1433 = vmatpush1.msra.mxu0 %v393
        %1434 = vmatprep.subr.mxu0 %v400
        %1435 = vmatpush1.msra.mxu0 %v399
        %1436 = vmatprep.subr.mxu0 %v406
        %1437 = vmatpush1.msra.mxu0 %v405
        %1438 = vmatprep.subr.mxu0 %v412
        %1439 = vmatpush1.msra.mxu0 %v411
        %1440 = vmatprep.subr.mxu0 %v418
        %1441 = vmatpush1.msra.mxu0 %v417
        %1442 = vmatprep.subr.mxu0 %v424
        %1443 = vmatpush1.msra.mxu0 %v423
        %1444 = vmatprep.subr.mxu0 %v430
        %1445 = vmatpush1.msra.mxu0 %v429
        %1446 = vmatprep.subr.mxu0 %v436
        %1447 = vmatpush1.msra.mxu0 %v435
        %1448 = vmatprep.subr.mxu0 %v442
        %1449 = vmatpush1.msra.mxu0 %v441
        %1450 = vmatprep.subr.mxu0 %v448
        %1451 = vmatpush1.msra.mxu0 %v447
        %1452 = vmatprep.subr.mxu0 %v454
        %1453 = vmatpush1.msra.mxu0 %v453
        %1454 = vmatprep.subr.mxu0 %v460
        %1455 = vmatpush1.msra.mxu0 %v459
        %1456 = vmatprep.subr.mxu0 %v466
        %1457 = vmatpush1.msra.mxu0 %v465
        %1458 = vmatprep.subr.mxu0 %v472
        %1459 = vmatpush1.msra.mxu0 %v471
        %1460 = vmatprep.subr.mxu0 %v478
        %1461 = vmatpush1.msra.mxu0 %v477
        %1462 = vmatprep.subr.mxu0 %v484
        %1463 = vmatpush1.msra.mxu0 %v483
        %1464 = vmatprep.subr.mxu0 %v490
        %1465 = vmatpush1.msra.mxu0 %v489
        %1466 = vmatprep.subr.mxu0 %v496
        %1467 = vmatpush1.msra.mxu0 %v495
        %1468 = vmatprep.subr.mxu0 %v502
        %1469 = vmatpush1.msra.mxu0 %v501
        %1470 = vmatprep.subr.mxu0 %v508
        %1471 = vmatpush1.msra.mxu0 %v507
        %1472 = vmatprep.subr.mxu0 %v514
        %1473 = vmatpush1.msra.mxu0 %v513
        %1474 = vmatprep.subr.mxu0 %v520
        %1475 = vmatpush1.msra.mxu0 %v519
        %1476 = vmatprep.subr.mxu0 %v526
        %1477 = vmatpush1.msra.mxu0 %v525
        %1478 = vmatprep.subr.mxu0 %v532
        %1479 = vmatpush1.msra.mxu0 %v531
        %1480 = vmatprep.subr.mxu0 %v538
        %1481 = vmatpush1.msra.mxu0 %v537
        %1482 = vmatprep.subr.mxu0 %v544
        %1483 = vmatpush1.msra.mxu0 %v543
        %1484 = vmatprep.subr.mxu0 %v550
        %1485 = vmatpush1.msra.mxu0 %v549
        %1486 = vmatprep.subr.mxu0 %v556
        %1487 = vmatpush1.msra.mxu0 %v555
        %1488 = vmatprep.subr.mxu0 %v562
        %1489 = vmatpush1.msra.mxu0 %v561
        %1490 = vmatprep.subr.mxu0 %v568
        %1491 = vmatpush1.msra.mxu0 %v567
        %1492 = vmatprep.mubr.f32.mxu0 %v1275
        %1493 = vmatmul.mubr.f32.gmra.mrb[0].mxu0 %v1274
        %v1494 = vpop.f32.mrb[0].mxu0
        %v1495 = vadd.f32 0.0, %v1494
        %v1496 = vpop.f32.mrb[0].mxu0
        %v1497 = vadd.f32 0.0, %v1496
        %1498 = vdwg.mxu0
        %1499 = vmatprep.subr.mxu0 %v384
        %1500 = vmatpush1.msra.mxu0 %v383
        %1501 = vmatprep.subr.mxu0 %v390
        %1502 = vmatpush1.msra.mxu0 %v389
        %1503 = vmatprep.subr.mxu0 %v396
        %1504 = vmatpush1.msra.mxu0 %v395
        %1505 = vmatprep.subr.mxu0 %v402
        %1506 = vmatpush1.msra.mxu0 %v401
        %1507 = vmatprep.subr.mxu0 %v408
        %1508 = vmatpush1.msra.mxu0 %v407
        %1509 = vmatprep.subr.mxu0 %v414
        %1510 = vmatpush1.msra.mxu0 %v413
        %1511 = vmatprep.subr.mxu0 %v420
        %1512 = vmatpush1.msra.mxu0 %v419
        %1513 = vmatprep.subr.mxu0 %v426
        %1514 = vmatpush1.msra.mxu0 %v425
        %1515 = vmatprep.subr.mxu0 %v432
        %1516 = vmatpush1.msra.mxu0 %v431
        %1517 = vmatprep.subr.mxu0 %v438
        %1518 = vmatpush1.msra.mxu0 %v437
        %1519 = vmatprep.subr.mxu0 %v444
        %1520 = vmatpush1.msra.mxu0 %v443
        %1521 = vmatprep.subr.mxu0 %v450
        %1522 = vmatpush1.msra.mxu0 %v449
        %1523 = vmatprep.subr.mxu0 %v456
        %1524 = vmatpush1.msra.mxu0 %v455
        %1525 = vmatprep.subr.mxu0 %v462
        %1526 = vmatpush1.msra.mxu0 %v461
        %1527 = vmatprep.subr.mxu0 %v468
        %1528 = vmatpush1.msra.mxu0 %v467
        %1529 = vmatprep.subr.mxu0 %v474
        %1530 = vmatpush1.msra.mxu0 %v473
        %1531 = vmatprep.subr.mxu0 %v480
        %1532 = vmatpush1.msra.mxu0 %v479
        %1533 = vmatprep.subr.mxu0 %v486
        %1534 = vmatpush1.msra.mxu0 %v485
        %1535 = vmatprep.subr.mxu0 %v492
        %1536 = vmatpush1.msra.mxu0 %v491
        %1537 = vmatprep.subr.mxu0 %v498
        %1538 = vmatpush1.msra.mxu0 %v497
        %1539 = vmatprep.subr.mxu0 %v504
        %1540 = vmatpush1.msra.mxu0 %v503
        %1541 = vmatprep.subr.mxu0 %v510
        %1542 = vmatpush1.msra.mxu0 %v509
        %1543 = vmatprep.subr.mxu0 %v516
        %1544 = vmatpush1.msra.mxu0 %v515
        %1545 = vmatprep.subr.mxu0 %v522
        %1546 = vmatpush1.msra.mxu0 %v521
        %1547 = vmatprep.subr.mxu0 %v528
        %1548 = vmatpush1.msra.mxu0 %v527
        %1549 = vmatprep.subr.mxu0 %v534
        %1550 = vmatpush1.msra.mxu0 %v533
        %1551 = vmatprep.subr.mxu0 %v540
        %1552 = vmatpush1.msra.mxu0 %v539
        %1553 = vmatprep.subr.mxu0 %v546
        %1554 = vmatpush1.msra.mxu0 %v545
        %1555 = vmatprep.subr.mxu0 %v552
        %1556 = vmatpush1.msra.mxu0 %v551
        %1557 = vmatprep.subr.mxu0 %v558
        %1558 = vmatpush1.msra.mxu0 %v557
        %1559 = vmatprep.subr.mxu0 %v564
        %1560 = vmatpush1.msra.mxu0 %v563
        %1561 = vmatprep.subr.mxu0 %v570
        %1562 = vmatpush1.msra.mxu0 %v569
        %1563 = vmatprep.mubr.f32.mxu0 %v1275
        %1564 = vmatmul.mubr.f32.gmra.mrb[0].mxu0 %v1274
        %v1565 = vpop.f32.mrb[0].mxu0
        %v1566 = vadd.f32 0.0, %v1565
        %v1567 = vpop.f32.mrb[0].mxu0
        %v1568 = vadd.f32 0.0, %v1567
        %1569 = vdwg.mxu0
        %v1572 = vcombine.low %v1424, %v1426
        %v1574 = vunpack.c.l.s4 1983009808
        %v1575 = vunpack.c.0.s8 %v1574
        %v1576 = vlaneseq
        %v1577 = vshrl.u32 %v1576, 7
        %v1578 = vsub.s32 %v1575, %v1577
        %v1579 = vrot.slane %v1572, %v1578
        %v1581 = vadd.f32 %v1355, %v1579
        %v1582 = vxor.u32 %v1581, 2147483648
        %v1583 = vmul.f32 %v1582, 1.442695
        %v1584 = vpow.pop %v1583
        %v1585 = vadd.f32 %v1584, 1.0
        %v1586 = vrcp.pop %v1585
        %v1587 = vmul.f32 1.0, %v1586
        %v1589 = vrot.slane %v1355, 4
        %v1593 = vcombine.low %v1495, %v1497
        %v1595 = vunpack.c.l.s4 1983009808
        %v1596 = vunpack.c.0.s8 %v1595
        %v1597 = vlaneseq
        %v1598 = vshrl.u32 %v1597, 7
        %v1599 = vsub.s32 %v1596, %v1598
        %v1600 = vrot.slane %v1593, %v1599
        %v1602 = vadd.f32 %v1589, %v1600
        %v1603 = vxor.u32 %v1602, 2147483648
        %v1604 = vmul.f32 %v1603, 1.442695
        %v1605 = vpow.pop %v1604
        %v1606 = vadd.f32 %v1605, 1.0
        %v1607 = vrcp.pop %v1606
        %v1608 = vmul.f32 1.0, %v1607
        %v1609 = vadd.f32 %v1566, %v878
        %v1610 = vadd.f32 %v1568, %v882
        %v1613 = vcombine.low %v1609, %v1610
        %v1615 = vunpack.c.l.s4 1983009808
        %v1616 = vunpack.c.0.s8 %v1615
        %v1617 = vlaneseq
        %v1618 = vshrl.u32 %v1617, 7
        %v1619 = vsub.s32 %v1616, %v1618
        %v1620 = vrot.slane %v1613, %v1619
        %v1622 = vmul.f32 %v1587, %v1620
        %v1623 = vadd.f32 %v1356, %v1622
        %v1624 = vtanh.pop %v1623
        %v1625 = vsub.f32 1.0, %v1608
        %v1626 = vmul.f32 %v1625, %v1624
        %v1627 = vmul.f32 %v1608, %v1266
        %v1628 = vadd.f32 %v1626, %v1627
        %v1631 = vunpack.c.l.s4 1983009808
        %v1632 = vunpack.c.0.s8 %v1631
        %v1633 = vlaneseq
        %v1634 = vshrl.u32 %v1633, 7
        %v1635 = vsub.s32 %v1632, %v1634
        %v1636 = vrot.slane %v1628, %v1635
        %v1637 = vcombine.high %v1636, %v1636
        %1640 = vmatprep.subr.mxu0 0.0
        %1641 = vmatpush1.msra.mxu0 %v572
        %1642 = vmatprep.subr.mxu0 0.0
        %1643 = vmatpush1.msra.mxu0 %v573
        %1644 = vmatprep.subr.mxu0 0.0
        %1645 = vmatpush1.msra.mxu0 %v574
        %1646 = vmatprep.subr.mxu0 0.0
        %1647 = vmatpush1.msra.mxu0 %v575
        %1648 = vmatprep.subr.mxu0 0.0
        %1649 = vmatpush1.msra.mxu0 %v576
        %1650 = vmatprep.subr.mxu0 0.0
        %1651 = vmatpush1.msra.mxu0 %v577
        %1652 = vmatprep.subr.mxu0 0.0
        %1653 = vmatpush1.msra.mxu0 %v578
        %1654 = vmatprep.subr.mxu0 0.0
        %1655 = vmatpush1.msra.mxu0 %v579
        %1656 = vmatprep.subr.mxu0 0.0
        %1657 = vmatpush1.msra.mxu0 %v580
        %1658 = vmatprep.subr.mxu0 0.0
        %1659 = vmatpush1.msra.mxu0 %v581
        %1660 = vmatprep.subr.mxu0 0.0
        %1661 = vmatpush1.msra.mxu0 %v582
        %1662 = vmatprep.subr.mxu0 0.0
        %1663 = vmatpush1.msra.mxu0 %v583
        %1664 = vmatprep.subr.mxu0 0.0
        %1665 = vmatpush1.msra.mxu0 %v584
        %1666 = vmatprep.subr.mxu0 0.0
        %1667 = vmatpush1.msra.mxu0 %v585
        %1668 = vmatprep.subr.mxu0 0.0
        %1669 = vmatpush1.msra.mxu0 %v586
        %1670 = vmatprep.subr.mxu0 0.0
        %1671 = vmatpush1.msra.mxu0 %v587
        %1672 = vmatprep.subr.mxu0 0.0
        %1673 = vmatpush1.msra.mxu0 %v588
        %1674 = vmatprep.subr.mxu0 0.0
        %1675 = vmatpush1.msra.mxu0 %v589
        %1676 = vmatprep.subr.mxu0 0.0
        %1677 = vmatpush1.msra.mxu0 %v590
        %1678 = vmatprep.subr.mxu0 0.0
        %1679 = vmatpush1.msra.mxu0 %v591
        %1680 = vmatprep.subr.mxu0 0.0
        %1681 = vmatpush1.msra.mxu0 %v592
        %1682 = vmatprep.subr.mxu0 0.0
        %1683 = vmatpush1.msra.mxu0 %v593
        %1684 = vmatprep.subr.mxu0 0.0
        %1685 = vmatpush1.msra.mxu0 %v594
        %1686 = vmatprep.subr.mxu0 0.0
        %1687 = vmatpush1.msra.mxu0 %v595
        %1688 = vmatprep.subr.mxu0 0.0
        %1689 = vmatpush1.msra.mxu0 %v596
        %1690 = vmatprep.subr.mxu0 0.0
        %1691 = vmatpush1.msra.mxu0 %v597
        %1692 = vmatprep.subr.mxu0 0.0
        %1693 = vmatpush1.msra.mxu0 %v598
        %1694 = vmatprep.subr.mxu0 0.0
        %1695 = vmatpush1.msra.mxu0 %v599
        %1696 = vmatprep.subr.mxu0 0.0
        %1697 = vmatpush1.msra.mxu0 %v600
        %1698 = vmatprep.subr.mxu0 0.0
        %1699 = vmatpush1.msra.mxu0 %v601
        %1700 = vmatprep.subr.mxu0 0.0
        %1701 = vmatpush1.msra.mxu0 %v602
        %1702 = vmatprep.subr.mxu0 0.0
        %1703 = vmatpush1.msra.mxu0 %v603
        %1704 = vmatprep.mubr.f32.mxu0 %v1637
        %1705 = vmatmul.mubr.f32.gmra.mrb[0].mxu0 %v1636
        %v1706 = vpop.f32.mrb[0].mxu0
        %v1707 = vadd.f32 0.0, %v1706
        %v1708 = vpop.f32.mrb[0].mxu0
        %1709 = vdwg.mxu0
        %s1710 = smul.u32 %s1351, 2
        %s1711 = scalar_lea.vmem %s364, %s1710 [#allocation11]
        %1712 = vst [vmem:[%s1711] sm:$0x3] %v1707
        %s1713 = scalar_select %p373, 4, 3
        %s1714 = smul.u32 %s1713, 6
        %s1715 = smul.addr %s1714, 2
        %s1716 = scalar_lea.vmem %s298, %s1715 [#allocation3]
        %v1717 = vld [vmem:[%s1716] sm:$0xff]
        %v1718 = vld [vmem:[%s1716 + $0x8] sm:$0xf]
        %1719 = vmatprep.subr.mxu0 %v380
        %1720 = vmatpush1.msra.mxu0 %v379
        %1721 = vmatprep.subr.mxu0 %v386
        %1722 = vmatpush1.msra.mxu0 %v385
        %1723 = vmatprep.subr.mxu0 %v392
        %1724 = vmatpush1.msra.mxu0 %v391
        %1725 = vmatprep.subr.mxu0 %v398
        %1726 = vmatpush1.msra.mxu0 %v397
        %1727 = vmatprep.subr.mxu0 %v404
        %1728 = vmatpush1.msra.mxu0 %v403
        %1729 = vmatprep.subr.mxu0 %v410
        %1730 = vmatpush1.msra.mxu0 %v409
        %1731 = vmatprep.subr.mxu0 %v416
        %1732 = vmatpush1.msra.mxu0 %v415
        %1733 = vmatprep.subr.mxu0 %v422
        %1734 = vmatpush1.msra.mxu0 %v421
        %1735 = vmatprep.subr.mxu0 %v428
        %1736 = vmatpush1.msra.mxu0 %v427
        %1737 = vmatprep.subr.mxu0 %v434
        %1738 = vmatpush1.msra.mxu0 %v433
        %1739 = vmatprep.subr.mxu0 %v440
        %1740 = vmatpush1.msra.mxu0 %v439
        %1741 = vmatprep.subr.mxu0 %v446
        %1742 = vmatpush1.msra.mxu0 %v445
        %1743 = vmatprep.subr.mxu0 %v452
        %1744 = vmatpush1.msra.mxu0 %v451
        %1745 = vmatprep.subr.mxu0 %v458
        %1746 = vmatpush1.msra.mxu0 %v457
        %1747 = vmatprep.subr.mxu0 %v464
        %1748 = vmatpush1.msra.mxu0 %v463
        %1749 = vmatprep.subr.mxu0 %v470
        %1750 = vmatpush1.msra.mxu0 %v469
        %1751 = vmatprep.subr.mxu0 %v476
        %1752 = vmatpush1.msra.mxu0 %v475
        %1753 = vmatprep.subr.mxu0 %v482
        %1754 = vmatpush1.msra.mxu0 %v481
        %1755 = vmatprep.subr.mxu0 %v488
        %1756 = vmatpush1.msra.mxu0 %v487
        %1757 = vmatprep.subr.mxu0 %v494
        %1758 = vmatpush1.msra.mxu0 %v493
        %1759 = vmatprep.subr.mxu0 %v500
        %1760 = vmatpush1.msra.mxu0 %v499
        %1761 = vmatprep.subr.mxu0 %v506
        %1762 = vmatpush1.msra.mxu0 %v505
        %1763 = vmatprep.subr.mxu0 %v512
        %1764 = vmatpush1.msra.mxu0 %v511
        %1765 = vmatprep.subr.mxu0 %v518
        %1766 = vmatpush1.msra.mxu0 %v517
        %1767 = vmatprep.subr.mxu0 %v524
        %1768 = vmatpush1.msra.mxu0 %v523
        %1769 = vmatprep.subr.mxu0 %v530
        %1770 = vmatpush1.msra.mxu0 %v529
        %1771 = vmatprep.subr.mxu0 %v536
        %1772 = vmatpush1.msra.mxu0 %v535
        %1773 = vmatprep.subr.mxu0 %v542
        %1774 = vmatpush1.msra.mxu0 %v541
        %1775 = vmatprep.subr.mxu0 %v548
        %1776 = vmatpush1.msra.mxu0 %v547
        %1777 = vmatprep.subr.mxu0 %v554
        %1778 = vmatpush1.msra.mxu0 %v553
        %1779 = vmatprep.subr.mxu0 %v560
        %1780 = vmatpush1.msra.mxu0 %v559
        %1781 = vmatprep.subr.mxu0 %v566
        %1782 = vmatpush1.msra.mxu0 %v565
        %1783 = vmatprep.mubr.f32.mxu0 %v1637
        %1784 = vmatmul.mubr.f32.gmra.mrb[0].mxu0 %v1636
        %v1785 = vpop.f32.mrb[0].mxu0
        %v1786 = vadd.f32 0.0, %v1785
        %v1787 = vpop.f32.mrb[0].mxu0
        %v1788 = vadd.f32 0.0, %v1787
        %1789 = vdwg.mxu0
        %1790 = vmatprep.subr.mxu0 %v382
        %1791 = vmatpush1.msra.mxu0 %v381
        %1792 = vmatprep.subr.mxu0 %v388
        %1793 = vmatpush1.msra.mxu0 %v387
        %1794 = vmatprep.subr.mxu0 %v394
        %1795 = vmatpush1.msra.mxu0 %v393
        %1796 = vmatprep.subr.mxu0 %v400
        %1797 = vmatpush1.msra.mxu0 %v399
        %1798 = vmatprep.subr.mxu0 %v406
        %1799 = vmatpush1.msra.mxu0 %v405
        %1800 = vmatprep.subr.mxu0 %v412
        %1801 = vmatpush1.msra.mxu0 %v411
        %1802 = vmatprep.subr.mxu0 %v418
        %1803 = vmatpush1.msra.mxu0 %v417
        %1804 = vmatprep.subr.mxu0 %v424
        %1805 = vmatpush1.msra.mxu0 %v423
        %1806 = vmatprep.subr.mxu0 %v430
        %1807 = vmatpush1.msra.mxu0 %v429
        %1808 = vmatprep.subr.mxu0 %v436
        %1809 = vmatpush1.msra.mxu0 %v435
        %1810 = vmatprep.subr.mxu0 %v442
        %1811 = vmatpush1.msra.mxu0 %v441
        %1812 = vmatprep.subr.mxu0 %v448
        %1813 = vmatpush1.msra.mxu0 %v447
        %1814 = vmatprep.subr.mxu0 %v454
        %1815 = vmatpush1.msra.mxu0 %v453
        %1816 = vmatprep.subr.mxu0 %v460
        %1817 = vmatpush1.msra.mxu0 %v459
        %1818 = vmatprep.subr.mxu0 %v466
        %1819 = vmatpush1.msra.mxu0 %v465
        %1820 = vmatprep.subr.mxu0 %v472
        %1821 = vmatpush1.msra.mxu0 %v471
        %1822 = vmatprep.subr.mxu0 %v478
        %1823 = vmatpush1.msra.mxu0 %v477
        %1824 = vmatprep.subr.mxu0 %v484
        %1825 = vmatpush1.msra.mxu0 %v483
        %1826 = vmatprep.subr.mxu0 %v490
        %1827 = vmatpush1.msra.mxu0 %v489
        %1828 = vmatprep.subr.mxu0 %v496
        %1829 = vmatpush1.msra.mxu0 %v495
        %1830 = vmatprep.subr.mxu0 %v502
        %1831 = vmatpush1.msra.mxu0 %v501
        %1832 = vmatprep.subr.mxu0 %v508
        %1833 = vmatpush1.msra.mxu0 %v507
        %1834 = vmatprep.subr.mxu0 %v514
        %1835 = vmatpush1.msra.mxu0 %v513
        %1836 = vmatprep.subr.mxu0 %v520
        %1837 = vmatpush1.msra.mxu0 %v519
        %1838 = vmatprep.subr.mxu0 %v526
        %1839 = vmatpush1.msra.mxu0 %v525
        %1840 = vmatprep.subr.mxu0 %v532
        %1841 = vmatpush1.msra.mxu0 %v531
        %1842 = vmatprep.subr.mxu0 %v538
        %1843 = vmatpush1.msra.mxu0 %v537
        %1844 = vmatprep.subr.mxu0 %v544
        %1845 = vmatpush1.msra.mxu0 %v543
        %1846 = vmatprep.subr.mxu0 %v550
        %1847 = vmatpush1.msra.mxu0 %v549
        %1848 = vmatprep.subr.mxu0 %v556
        %1849 = vmatpush1.msra.mxu0 %v555
        %1850 = vmatprep.subr.mxu0 %v562
        %1851 = vmatpush1.msra.mxu0 %v561
        %1852 = vmatprep.subr.mxu0 %v568
        %1853 = vmatpush1.msra.mxu0 %v567
        %1854 = vmatprep.mubr.f32.mxu0 %v1637
        %1855 = vmatmul.mubr.f32.gmra.mrb[0].mxu0 %v1636
        %v1856 = vpop.f32.mrb[0].mxu0
        %v1857 = vadd.f32 0.0, %v1856
        %v1858 = vpop.f32.mrb[0].mxu0
        %v1859 = vadd.f32 0.0, %v1858
        %1860 = vdwg.mxu0
        %1861 = vmatprep.subr.mxu0 %v384
        %1862 = vmatpush1.msra.mxu0 %v383
        %1863 = vmatprep.subr.mxu0 %v390
        %1864 = vmatpush1.msra.mxu0 %v389
        %1865 = vmatprep.subr.mxu0 %v396
        %1866 = vmatpush1.msra.mxu0 %v395
        %1867 = vmatprep.subr.mxu0 %v402
        %1868 = vmatpush1.msra.mxu0 %v401
        %1869 = vmatprep.subr.mxu0 %v408
        %1870 = vmatpush1.msra.mxu0 %v407
        %1871 = vmatprep.subr.mxu0 %v414
        %1872 = vmatpush1.msra.mxu0 %v413
        %1873 = vmatprep.subr.mxu0 %v420
        %1874 = vmatpush1.msra.mxu0 %v419
        %1875 = vmatprep.subr.mxu0 %v426
        %1876 = vmatpush1.msra.mxu0 %v425
        %1877 = vmatprep.subr.mxu0 %v432
        %1878 = vmatpush1.msra.mxu0 %v431
        %1879 = vmatprep.subr.mxu0 %v438
        %1880 = vmatpush1.msra.mxu0 %v437
        %1881 = vmatprep.subr.mxu0 %v444
        %1882 = vmatpush1.msra.mxu0 %v443
        %1883 = vmatprep.subr.mxu0 %v450
        %1884 = vmatpush1.msra.mxu0 %v449
        %1885 = vmatprep.subr.mxu0 %v456
        %1886 = vmatpush1.msra.mxu0 %v455
        %1887 = vmatprep.subr.mxu0 %v462
        %1888 = vmatpush1.msra.mxu0 %v461
        %1889 = vmatprep.subr.mxu0 %v468
        %1890 = vmatpush1.msra.mxu0 %v467
        %1891 = vmatprep.subr.mxu0 %v474
        %1892 = vmatpush1.msra.mxu0 %v473
        %1893 = vmatprep.subr.mxu0 %v480
        %1894 = vmatpush1.msra.mxu0 %v479
        %1895 = vmatprep.subr.mxu0 %v486
        %1896 = vmatpush1.msra.mxu0 %v485
        %1897 = vmatprep.subr.mxu0 %v492
        %1898 = vmatpush1.msra.mxu0 %v491
        %1899 = vmatprep.subr.mxu0 %v498
        %1900 = vmatpush1.msra.mxu0 %v497
        %1901 = vmatprep.subr.mxu0 %v504
        %1902 = vmatpush1.msra.mxu0 %v503
        %1903 = vmatprep.subr.mxu0 %v510
        %1904 = vmatpush1.msra.mxu0 %v509
        %1905 = vmatprep.subr.mxu0 %v516
        %1906 = vmatpush1.msra.mxu0 %v515
        %1907 = vmatprep.subr.mxu0 %v522
        %1908 = vmatpush1.msra.mxu0 %v521
        %1909 = vmatprep.subr.mxu0 %v528
        %1910 = vmatpush1.msra.mxu0 %v527
        %1911 = vmatprep.subr.mxu0 %v534
        %1912 = vmatpush1.msra.mxu0 %v533
        %1913 = vmatprep.subr.mxu0 %v540
        %1914 = vmatpush1.msra.mxu0 %v539
        %1915 = vmatprep.subr.mxu0 %v546
        %1916 = vmatpush1.msra.mxu0 %v545
        %1917 = vmatprep.subr.mxu0 %v552
        %1918 = vmatpush1.msra.mxu0 %v551
        %1919 = vmatprep.subr.mxu0 %v558
        %1920 = vmatpush1.msra.mxu0 %v557
        %1921 = vmatprep.subr.mxu0 %v564
        %1922 = vmatpush1.msra.mxu0 %v563
        %1923 = vmatprep.subr.mxu0 %v570
        %1924 = vmatpush1.msra.mxu0 %v569
        %1925 = vmatprep.mubr.f32.mxu0 %v1637
        %1926 = vmatmul.mubr.f32.gmra.mrb[0].mxu0 %v1636
        %v1927 = vpop.f32.mrb[0].mxu0
        %v1928 = vadd.f32 0.0, %v1927
        %v1929 = vpop.f32.mrb[0].mxu0
        %v1930 = vadd.f32 0.0, %v1929
        %1931 = vdwg.mxu0
        %v1934 = vcombine.low %v1786, %v1788
        %v1936 = vunpack.c.l.s4 1983009808
        %v1937 = vunpack.c.0.s8 %v1936
        %v1938 = vlaneseq
        %v1939 = vshrl.u32 %v1938, 7
        %v1940 = vsub.s32 %v1937, %v1939
        %v1941 = vrot.slane %v1934, %v1940
        %v1943 = vadd.f32 %v1717, %v1941
        %v1944 = vxor.u32 %v1943, 2147483648
        %v1945 = vmul.f32 %v1944, 1.442695
        %v1946 = vpow.pop %v1945
        %v1947 = vadd.f32 %v1946, 1.0
        %v1948 = vrcp.pop %v1947
        %v1949 = vmul.f32 1.0, %v1948
        %v1951 = vrot.slane %v1717, 4
        %v1955 = vcombine.low %v1857, %v1859
        %v1957 = vunpack.c.l.s4 1983009808
        %v1958 = vunpack.c.0.s8 %v1957
        %v1959 = vlaneseq
        %v1960 = vshrl.u32 %v1959, 7
        %v1961 = vsub.s32 %v1958, %v1960
        %v1962 = vrot.slane %v1955, %v1961
        %v1964 = vadd.f32 %v1951, %v1962
        %v1965 = vxor.u32 %v1964, 2147483648
        %v1966 = vmul.f32 %v1965, 1.442695
        %v1967 = vpow.pop %v1966
        %v1968 = vadd.f32 %v1967, 1.0
        %v1969 = vrcp.pop %v1968
        %v1970 = vmul.f32 1.0, %v1969
        %v1971 = vadd.f32 %v1928, %v878
        %v1972 = vadd.f32 %v1930, %v882
        %v1975 = vcombine.low %v1971, %v1972
        %v1977 = vunpack.c.l.s4 1983009808
        %v1978 = vunpack.c.0.s8 %v1977
        %v1979 = vlaneseq
        %v1980 = vshrl.u32 %v1979, 7
        %v1981 = vsub.s32 %v1978, %v1980
        %v1982 = vrot.slane %v1975, %v1981
        %v1984 = vmul.f32 %v1949, %v1982
        %v1985 = vadd.f32 %v1718, %v1984
        %v1986 = vtanh.pop %v1985
        %v1987 = vsub.f32 1.0, %v1970
        %v1988 = vmul.f32 %v1987, %v1986
        %v1989 = vmul.f32 %v1970, %v1628
        %v1990 = vadd.f32 %v1988, %v1989
        %v1993 = vunpack.c.l.s4 1983009808
        %v1994 = vunpack.c.0.s8 %v1993
        %v1995 = vlaneseq
        %v1996 = vshrl.u32 %v1995, 7
        %v1997 = vsub.s32 %v1994, %v1996
        %v1998 = vrot.slane %v1990, %v1997
        %v1999 = vcombine.high %v1998, %v1998
        %2002 = vmatprep.subr.mxu0 0.0
        %2003 = vmatpush1.msra.mxu0 %v572
        %2004 = vmatprep.subr.mxu0 0.0
        %2005 = vmatpush1.msra.mxu0 %v573
        %2006 = vmatprep.subr.mxu0 0.0
        %2007 = vmatpush1.msra.mxu0 %v574
        %2008 = vmatprep.subr.mxu0 0.0
        %2009 = vmatpush1.msra.mxu0 %v575
        %2010 = vmatprep.subr.mxu0 0.0
        %2011 = vmatpush1.msra.mxu0 %v576
        %2012 = vmatprep.subr.mxu0 0.0
        %2013 = vmatpush1.msra.mxu0 %v577
        %2014 = vmatprep.subr.mxu0 0.0
        %2015 = vmatpush1.msra.mxu0 %v578
        %2016 = vmatprep.subr.mxu0 0.0
        %2017 = vmatpush1.msra.mxu0 %v579
        %2018 = vmatprep.subr.mxu0 0.0
        %2019 = vmatpush1.msra.mxu0 %v580
        %2020 = vmatprep.subr.mxu0 0.0
        %2021 = vmatpush1.msra.mxu0 %v581
        %2022 = vmatprep.subr.mxu0 0.0
        %2023 = vmatpush1.msra.mxu0 %v582
        %2024 = vmatprep.subr.mxu0 0.0
        %2025 = vmatpush1.msra.mxu0 %v583
        %2026 = vmatprep.subr.mxu0 0.0
        %2027 = vmatpush1.msra.mxu0 %v584
        %2028 = vmatprep.subr.mxu0 0.0
        %2029 = vmatpush1.msra.mxu0 %v585
        %2030 = vmatprep.subr.mxu0 0.0
        %2031 = vmatpush1.msra.mxu0 %v586
        %2032 = vmatprep.subr.mxu0 0.0
        %2033 = vmatpush1.msra.mxu0 %v587
        %2034 = vmatprep.subr.mxu0 0.0
        %2035 = vmatpush1.msra.mxu0 %v588
        %2036 = vmatprep.subr.mxu0 0.0
        %2037 = vmatpush1.msra.mxu0 %v589
        %2038 = vmatprep.subr.mxu0 0.0
        %2039 = vmatpush1.msra.mxu0 %v590
        %2040 = vmatprep.subr.mxu0 0.0
        %2041 = vmatpush1.msra.mxu0 %v591
        %2042 = vmatprep.subr.mxu0 0.0
        %2043 = vmatpush1.msra.mxu0 %v592
        %2044 = vmatprep.subr.mxu0 0.0
        %2045 = vmatpush1.msra.mxu0 %v593
        %2046 = vmatprep.subr.mxu0 0.0
        %2047 = vmatpush1.msra.mxu0 %v594
        %2048 = vmatprep.subr.mxu0 0.0
        %2049 = vmatpush1.msra.mxu0 %v595
        %2050 = vmatprep.subr.mxu0 0.0
        %2051 = vmatpush1.msra.mxu0 %v596
        %2052 = vmatprep.subr.mxu0 0.0
        %2053 = vmatpush1.msra.mxu0 %v597
        %2054 = vmatprep.subr.mxu0 0.0
        %2055 = vmatpush1.msra.mxu0 %v598
        %2056 = vmatprep.subr.mxu0 0.0
        %2057 = vmatpush1.msra.mxu0 %v599
        %2058 = vmatprep.subr.mxu0 0.0
        %2059 = vmatpush1.msra.mxu0 %v600
        %2060 = vmatprep.subr.mxu0 0.0
        %2061 = vmatpush1.msra.mxu0 %v601
        %2062 = vmatprep.subr.mxu0 0.0
        %2063 = vmatpush1.msra.mxu0 %v602
        %2064 = vmatprep.subr.mxu0 0.0
        %2065 = vmatpush1.msra.mxu0 %v603
        %2066 = vmatprep.mubr.f32.mxu0 %v1999
        %2067 = vmatmul.mubr.f32.gmra.mrb[0].mxu0 %v1998
        %v2068 = vpop.f32.mrb[0].mxu0
        %v2069 = vadd.f32 0.0, %v2068
        %v2070 = vpop.f32.mrb[0].mxu0
        %2071 = vdwg.mxu0
        %s2072 = smul.u32 %s1713, 2
        %s2073 = scalar_lea.vmem %s364, %s2072 [#allocation11]
        %2074 = vst [vmem:[%s2073] sm:$0x3] %v2069
        %s2075 = scalar_select %p373, 3, 4
        %s2076 = smul.u32 %s2075, 6
        %s2077 = smul.addr %s2076, 2
        %s2078 = scalar_lea.vmem %s298, %s2077 [#allocation3]
        %v2079 = vld [vmem:[%s2078] sm:$0xff]
        %v2080 = vld [vmem:[%s2078 + $0x8] sm:$0xf]
        %2081 = vmatprep.subr.mxu0 %v380
        %2082 = vmatpush1.msra.mxu0 %v379
        %2083 = vmatprep.subr.mxu0 %v386
        %2084 = vmatpush1.msra.mxu0 %v385
        %2085 = vmatprep.subr.mxu0 %v392
        %2086 = vmatpush1.msra.mxu0 %v391
        %2087 = vmatprep.subr.mxu0 %v398
        %2088 = vmatpush1.msra.mxu0 %v397
        %2089 = vmatprep.subr.mxu0 %v404
        %2090 = vmatpush1.msra.mxu0 %v403
        %2091 = vmatprep.subr.mxu0 %v410
        %2092 = vmatpush1.msra.mxu0 %v409
        %2093 = vmatprep.subr.mxu0 %v416
        %2094 = vmatpush1.msra.mxu0 %v415
        %2095 = vmatprep.subr.mxu0 %v422
        %2096 = vmatpush1.msra.mxu0 %v421
        %2097 = vmatprep.subr.mxu0 %v428
        %2098 = vmatpush1.msra.mxu0 %v427
        %2099 = vmatprep.subr.mxu0 %v434
        %2100 = vmatpush1.msra.mxu0 %v433
        %2101 = vmatprep.subr.mxu0 %v440
        %2102 = vmatpush1.msra.mxu0 %v439
        %2103 = vmatprep.subr.mxu0 %v446
        %2104 = vmatpush1.msra.mxu0 %v445
        %2105 = vmatprep.subr.mxu0 %v452
        %2106 = vmatpush1.msra.mxu0 %v451
        %2107 = vmatprep.subr.mxu0 %v458
        %2108 = vmatpush1.msra.mxu0 %v457
        %2109 = vmatprep.subr.mxu0 %v464
        %2110 = vmatpush1.msra.mxu0 %v463
        %2111 = vmatprep.subr.mxu0 %v470
        %2112 = vmatpush1.msra.mxu0 %v469
        %2113 = vmatprep.subr.mxu0 %v476
        %2114 = vmatpush1.msra.mxu0 %v475
        %2115 = vmatprep.subr.mxu0 %v482
        %2116 = vmatpush1.msra.mxu0 %v481
        %2117 = vmatprep.subr.mxu0 %v488
        %2118 = vmatpush1.msra.mxu0 %v487
        %2119 = vmatprep.subr.mxu0 %v494
        %2120 = vmatpush1.msra.mxu0 %v493
        %2121 = vmatprep.subr.mxu0 %v500
        %2122 = vmatpush1.msra.mxu0 %v499
        %2123 = vmatprep.subr.mxu0 %v506
        %2124 = vmatpush1.msra.mxu0 %v505
        %2125 = vmatprep.subr.mxu0 %v512
        %2126 = vmatpush1.msra.mxu0 %v511
        %2127 = vmatprep.subr.mxu0 %v518
        %2128 = vmatpush1.msra.mxu0 %v517
        %2129 = vmatprep.subr.mxu0 %v524
        %2130 = vmatpush1.msra.mxu0 %v523
        %2131 = vmatprep.subr.mxu0 %v530
        %2132 = vmatpush1.msra.mxu0 %v529
        %2133 = vmatprep.subr.mxu0 %v536
        %2134 = vmatpush1.msra.mxu0 %v535
        %2135 = vmatprep.subr.mxu0 %v542
        %2136 = vmatpush1.msra.mxu0 %v541
        %2137 = vmatprep.subr.mxu0 %v548
        %2138 = vmatpush1.msra.mxu0 %v547
        %2139 = vmatprep.subr.mxu0 %v554
        %2140 = vmatpush1.msra.mxu0 %v553
        %2141 = vmatprep.subr.mxu0 %v560
        %2142 = vmatpush1.msra.mxu0 %v559
        %2143 = vmatprep.subr.mxu0 %v566
        %2144 = vmatpush1.msra.mxu0 %v565
        %2145 = vmatprep.mubr.f32.mxu0 %v1999
        %2146 = vmatmul.mubr.f32.gmra.mrb[0].mxu0 %v1998
        %v2147 = vpop.f32.mrb[0].mxu0
        %v2148 = vadd.f32 0.0, %v2147
        %v2149 = vpop.f32.mrb[0].mxu0
        %v2150 = vadd.f32 0.0, %v2149
        %2151 = vdwg.mxu0
        %2152 = vmatprep.subr.mxu0 %v382
        %2153 = vmatpush1.msra.mxu0 %v381
        %2154 = vmatprep.subr.mxu0 %v388
        %2155 = vmatpush1.msra.mxu0 %v387
        %2156 = vmatprep.subr.mxu0 %v394
        %2157 = vmatpush1.msra.mxu0 %v393
        %2158 = vmatprep.subr.mxu0 %v400
        %2159 = vmatpush1.msra.mxu0 %v399
        %2160 = vmatprep.subr.mxu0 %v406
        %2161 = vmatpush1.msra.mxu0 %v405
        %2162 = vmatprep.subr.mxu0 %v412
        %2163 = vmatpush1.msra.mxu0 %v411
        %2164 = vmatprep.subr.mxu0 %v418
        %2165 = vmatpush1.msra.mxu0 %v417
        %2166 = vmatprep.subr.mxu0 %v424
        %2167 = vmatpush1.msra.mxu0 %v423
        %2168 = vmatprep.subr.mxu0 %v430
        %2169 = vmatpush1.msra.mxu0 %v429
        %2170 = vmatprep.subr.mxu0 %v436
        %2171 = vmatpush1.msra.mxu0 %v435
        %2172 = vmatprep.subr.mxu0 %v442
        %2173 = vmatpush1.msra.mxu0 %v441
        %2174 = vmatprep.subr.mxu0 %v448
        %2175 = vmatpush1.msra.mxu0 %v447
        %2176 = vmatprep.subr.mxu0 %v454
        %2177 = vmatpush1.msra.mxu0 %v453
        %2178 = vmatprep.subr.mxu0 %v460
        %2179 = vmatpush1.msra.mxu0 %v459
        %2180 = vmatprep.subr.mxu0 %v466
        %2181 = vmatpush1.msra.mxu0 %v465
        %2182 = vmatprep.subr.mxu0 %v472
        %2183 = vmatpush1.msra.mxu0 %v471
        %2184 = vmatprep.subr.mxu0 %v478
        %2185 = vmatpush1.msra.mxu0 %v477
        %2186 = vmatprep.subr.mxu0 %v484
        %2187 = vmatpush1.msra.mxu0 %v483
        %2188 = vmatprep.subr.mxu0 %v490
        %2189 = vmatpush1.msra.mxu0 %v489
        %2190 = vmatprep.subr.mxu0 %v496
        %2191 = vmatpush1.msra.mxu0 %v495
        %2192 = vmatprep.subr.mxu0 %v502
        %2193 = vmatpush1.msra.mxu0 %v501
        %2194 = vmatprep.subr.mxu0 %v508
        %2195 = vmatpush1.msra.mxu0 %v507
        %2196 = vmatprep.subr.mxu0 %v514
        %2197 = vmatpush1.msra.mxu0 %v513
        %2198 = vmatprep.subr.mxu0 %v520
        %2199 = vmatpush1.msra.mxu0 %v519
        %2200 = vmatprep.subr.mxu0 %v526
        %2201 = vmatpush1.msra.mxu0 %v525
        %2202 = vmatprep.subr.mxu0 %v532
        %2203 = vmatpush1.msra.mxu0 %v531
        %2204 = vmatprep.subr.mxu0 %v538
        %2205 = vmatpush1.msra.mxu0 %v537
        %2206 = vmatprep.subr.mxu0 %v544
        %2207 = vmatpush1.msra.mxu0 %v543
        %2208 = vmatprep.subr.mxu0 %v550
        %2209 = vmatpush1.msra.mxu0 %v549
        %2210 = vmatprep.subr.mxu0 %v556
        %2211 = vmatpush1.msra.mxu0 %v555
        %2212 = vmatprep.subr.mxu0 %v562
        %2213 = vmatpush1.msra.mxu0 %v561
        %2214 = vmatprep.subr.mxu0 %v568
        %2215 = vmatpush1.msra.mxu0 %v567
        %2216 = vmatprep.mubr.f32.mxu0 %v1999
        %2217 = vmatmul.mubr.f32.gmra.mrb[0].mxu0 %v1998
        %v2218 = vpop.f32.mrb[0].mxu0
        %v2219 = vadd.f32 0.0, %v2218
        %v2220 = vpop.f32.mrb[0].mxu0
        %v2221 = vadd.f32 0.0, %v2220
        %2222 = vdwg.mxu0
        %2223 = vmatprep.subr.mxu0 %v384
        %2224 = vmatpush1.msra.mxu0 %v383
        %2225 = vmatprep.subr.mxu0 %v390
        %2226 = vmatpush1.msra.mxu0 %v389
        %2227 = vmatprep.subr.mxu0 %v396
        %2228 = vmatpush1.msra.mxu0 %v395
        %2229 = vmatprep.subr.mxu0 %v402
        %2230 = vmatpush1.msra.mxu0 %v401
        %2231 = vmatprep.subr.mxu0 %v408
        %2232 = vmatpush1.msra.mxu0 %v407
        %2233 = vmatprep.subr.mxu0 %v414
        %2234 = vmatpush1.msra.mxu0 %v413
        %2235 = vmatprep.subr.mxu0 %v420
        %2236 = vmatpush1.msra.mxu0 %v419
        %2237 = vmatprep.subr.mxu0 %v426
        %2238 = vmatpush1.msra.mxu0 %v425
        %2239 = vmatprep.subr.mxu0 %v432
        %2240 = vmatpush1.msra.mxu0 %v431
        %2241 = vmatprep.subr.mxu0 %v438
        %2242 = vmatpush1.msra.mxu0 %v437
        %2243 = vmatprep.subr.mxu0 %v444
        %2244 = vmatpush1.msra.mxu0 %v443
        %2245 = vmatprep.subr.mxu0 %v450
        %2246 = vmatpush1.msra.mxu0 %v449
        %2247 = vmatprep.subr.mxu0 %v456
        %2248 = vmatpush1.msra.mxu0 %v455
        %2249 = vmatprep.subr.mxu0 %v462
        %2250 = vmatpush1.msra.mxu0 %v461
        %2251 = vmatprep.subr.mxu0 %v468
        %2252 = vmatpush1.msra.mxu0 %v467
        %2253 = vmatprep.subr.mxu0 %v474
        %2254 = vmatpush1.msra.mxu0 %v473
        %2255 = vmatprep.subr.mxu0 %v480
        %2256 = vmatpush1.msra.mxu0 %v479
        %2257 = vmatprep.subr.mxu0 %v486
        %2258 = vmatpush1.msra.mxu0 %v485
        %2259 = vmatprep.subr.mxu0 %v492
        %2260 = vmatpush1.msra.mxu0 %v491
        %2261 = vmatprep.subr.mxu0 %v498
        %2262 = vmatpush1.msra.mxu0 %v497
        %2263 = vmatprep.subr.mxu0 %v504
        %2264 = vmatpush1.msra.mxu0 %v503
        %2265 = vmatprep.subr.mxu0 %v510
        %2266 = vmatpush1.msra.mxu0 %v509
        %2267 = vmatprep.subr.mxu0 %v516
        %2268 = vmatpush1.msra.mxu0 %v515
        %2269 = vmatprep.subr.mxu0 %v522
        %2270 = vmatpush1.msra.mxu0 %v521
        %2271 = vmatprep.subr.mxu0 %v528
        %2272 = vmatpush1.msra.mxu0 %v527
        %2273 = vmatprep.subr.mxu0 %v534
        %2274 = vmatpush1.msra.mxu0 %v533
        %2275 = vmatprep.subr.mxu0 %v540
        %2276 = vmatpush1.msra.mxu0 %v539
        %2277 = vmatprep.subr.mxu0 %v546
        %2278 = vmatpush1.msra.mxu0 %v545
        %2279 = vmatprep.subr.mxu0 %v552
        %2280 = vmatpush1.msra.mxu0 %v551
        %2281 = vmatprep.subr.mxu0 %v558
        %2282 = vmatpush1.msra.mxu0 %v557
        %2283 = vmatprep.subr.mxu0 %v564
        %2284 = vmatpush1.msra.mxu0 %v563
        %2285 = vmatprep.subr.mxu0 %v570
        %2286 = vmatpush1.msra.mxu0 %v569
        %2287 = vmatprep.mubr.f32.mxu0 %v1999
        %2288 = vmatmul.mubr.f32.gmra.mrb[0].mxu0 %v1998
        %v2289 = vpop.f32.mrb[0].mxu0
        %v2290 = vadd.f32 0.0, %v2289
        %v2291 = vpop.f32.mrb[0].mxu0
        %v2292 = vadd.f32 0.0, %v2291
        %2293 = vdwg.mxu0
        %v2296 = vcombine.low %v2148, %v2150
        %v2298 = vunpack.c.l.s4 1983009808
        %v2299 = vunpack.c.0.s8 %v2298
        %v2300 = vlaneseq
        %v2301 = vshrl.u32 %v2300, 7
        %v2302 = vsub.s32 %v2299, %v2301
        %v2303 = vrot.slane %v2296, %v2302
        %v2305 = vadd.f32 %v2079, %v2303
        %v2306 = vxor.u32 %v2305, 2147483648
        %v2307 = vmul.f32 %v2306, 1.442695
        %v2308 = vpow.pop %v2307
        %v2309 = vadd.f32 %v2308, 1.0
        %v2310 = vrcp.pop %v2309
        %v2311 = vmul.f32 1.0, %v2310
        %v2313 = vrot.slane %v2079, 4
        %v2317 = vcombine.low %v2219, %v2221
        %v2319 = vunpack.c.l.s4 1983009808
        %v2320 = vunpack.c.0.s8 %v2319
        %v2321 = vlaneseq
        %v2322 = vshrl.u32 %v2321, 7
        %v2323 = vsub.s32 %v2320, %v2322
        %v2324 = vrot.slane %v2317, %v2323
        %v2326 = vadd.f32 %v2313, %v2324
        %v2327 = vxor.u32 %v2326, 2147483648
        %v2328 = vmul.f32 %v2327, 1.442695
        %v2329 = vpow.pop %v2328
        %v2330 = vadd.f32 %v2329, 1.0
        %v2331 = vrcp.pop %v2330
        %v2332 = vmul.f32 1.0, %v2331
        %v2333 = vadd.f32 %v2290, %v878
        %v2334 = vadd.f32 %v2292, %v882
        %v2337 = vcombine.low %v2333, %v2334
        %v2339 = vunpack.c.l.s4 1983009808
        %v2340 = vunpack.c.0.s8 %v2339
        %v2341 = vlaneseq
        %v2342 = vshrl.u32 %v2341, 7
        %v2343 = vsub.s32 %v2340, %v2342
        %v2344 = vrot.slane %v2337, %v2343
        %v2346 = vmul.f32 %v2311, %v2344
        %v2347 = vadd.f32 %v2080, %v2346
        %v2348 = vtanh.pop %v2347
        %v2349 = vsub.f32 1.0, %v2332
        %v2350 = vmul.f32 %v2349, %v2348
        %v2351 = vmul.f32 %v2332, %v1990
        %v2352 = vadd.f32 %v2350, %v2351
        %v2355 = vunpack.c.l.s4 1983009808
        %v2356 = vunpack.c.0.s8 %v2355
        %v2357 = vlaneseq
        %v2358 = vshrl.u32 %v2357, 7
        %v2359 = vsub.s32 %v2356, %v2358
        %v2360 = vrot.slane %v2352, %v2359
        %v2361 = vcombine.high %v2360, %v2360
        %2364 = vmatprep.subr.mxu0 0.0
        %2365 = vmatpush1.msra.mxu0 %v572
        %2366 = vmatprep.subr.mxu0 0.0
        %2367 = vmatpush1.msra.mxu0 %v573
        %2368 = vmatprep.subr.mxu0 0.0
        %2369 = vmatpush1.msra.mxu0 %v574
        %2370 = vmatprep.subr.mxu0 0.0
        %2371 = vmatpush1.msra.mxu0 %v575
        %2372 = vmatprep.subr.mxu0 0.0
        %2373 = vmatpush1.msra.mxu0 %v576
        %2374 = vmatprep.subr.mxu0 0.0
        %2375 = vmatpush1.msra.mxu0 %v577
        %2376 = vmatprep.subr.mxu0 0.0
        %2377 = vmatpush1.msra.mxu0 %v578
        %2378 = vmatprep.subr.mxu0 0.0
        %2379 = vmatpush1.msra.mxu0 %v579
        %2380 = vmatprep.subr.mxu0 0.0
        %2381 = vmatpush1.msra.mxu0 %v580
        %2382 = vmatprep.subr.mxu0 0.0
        %2383 = vmatpush1.msra.mxu0 %v581
        %2384 = vmatprep.subr.mxu0 0.0
        %2385 = vmatpush1.msra.mxu0 %v582
        %2386 = vmatprep.subr.mxu0 0.0
        %2387 = vmatpush1.msra.mxu0 %v583
        %2388 = vmatprep.subr.mxu0 0.0
        %2389 = vmatpush1.msra.mxu0 %v584
        %2390 = vmatprep.subr.mxu0 0.0
        %2391 = vmatpush1.msra.mxu0 %v585
        %2392 = vmatprep.subr.mxu0 0.0
        %2393 = vmatpush1.msra.mxu0 %v586
        %2394 = vmatprep.subr.mxu0 0.0
        %2395 = vmatpush1.msra.mxu0 %v587
        %2396 = vmatprep.subr.mxu0 0.0
        %2397 = vmatpush1.msra.mxu0 %v588
        %2398 = vmatprep.subr.mxu0 0.0
        %2399 = vmatpush1.msra.mxu0 %v589
        %2400 = vmatprep.subr.mxu0 0.0
        %2401 = vmatpush1.msra.mxu0 %v590
        %2402 = vmatprep.subr.mxu0 0.0
        %2403 = vmatpush1.msra.mxu0 %v591
        %2404 = vmatprep.subr.mxu0 0.0
        %2405 = vmatpush1.msra.mxu0 %v592
        %2406 = vmatprep.subr.mxu0 0.0
        %2407 = vmatpush1.msra.mxu0 %v593
        %2408 = vmatprep.subr.mxu0 0.0
        %2409 = vmatpush1.msra.mxu0 %v594
        %2410 = vmatprep.subr.mxu0 0.0
        %2411 = vmatpush1.msra.mxu0 %v595
        %2412 = vmatprep.subr.mxu0 0.0
        %2413 = vmatpush1.msra.mxu0 %v596
        %2414 = vmatprep.subr.mxu0 0.0
        %2415 = vmatpush1.msra.mxu0 %v597
        %2416 = vmatprep.subr.mxu0 0.0
        %2417 = vmatpush1.msra.mxu0 %v598
        %2418 = vmatprep.subr.mxu0 0.0
        %2419 = vmatpush1.msra.mxu0 %v599
        %2420 = vmatprep.subr.mxu0 0.0
        %2421 = vmatpush1.msra.mxu0 %v600
        %2422 = vmatprep.subr.mxu0 0.0
        %2423 = vmatpush1.msra.mxu0 %v601
        %2424 = vmatprep.subr.mxu0 0.0
        %2425 = vmatpush1.msra.mxu0 %v602
        %2426 = vmatprep.subr.mxu0 0.0
        %2427 = vmatpush1.msra.mxu0 %v603
        %2428 = vmatprep.mubr.f32.mxu0 %v2361
        %2429 = vmatmul.mubr.f32.gmra.mrb[0].mxu0 %v2360
        %v2430 = vpop.f32.mrb[0].mxu0
        %v2431 = vadd.f32 0.0, %v2430
        %v2432 = vpop.f32.mrb[0].mxu0
        %2433 = vdwg.mxu0
        %s2434 = smul.u32 %s2075, 2
        %s2435 = scalar_lea.vmem %s364, %s2434 [#allocation11]
        %2436 = vst [vmem:[%s2435] sm:$0x3] %v2431
        %s2437 = scalar_select %p373, 2, 5
        %s2438 = smul.u32 %s2437, 6
        %s2439 = smul.addr %s2438, 2
        %s2440 = scalar_lea.vmem %s298, %s2439 [#allocation3]
        %v2441 = vld [vmem:[%s2440] sm:$0xff]
        %v2442 = vld [vmem:[%s2440 + $0x8] sm:$0xf]
        %2443 = vmatprep.subr.mxu0 %v380
        %2444 = vmatpush1.msra.mxu0 %v379
        %2445 = vmatprep.subr.mxu0 %v386
        %2446 = vmatpush1.msra.mxu0 %v385
        %2447 = vmatprep.subr.mxu0 %v392
        %2448 = vmatpush1.msra.mxu0 %v391
        %2449 = vmatprep.subr.mxu0 %v398
        %2450 = vmatpush1.msra.mxu0 %v397
        %2451 = vmatprep.subr.mxu0 %v404
        %2452 = vmatpush1.msra.mxu0 %v403
        %2453 = vmatprep.subr.mxu0 %v410
        %2454 = vmatpush1.msra.mxu0 %v409
        %2455 = vmatprep.subr.mxu0 %v416
        %2456 = vmatpush1.msra.mxu0 %v415
        %2457 = vmatprep.subr.mxu0 %v422
        %2458 = vmatpush1.msra.mxu0 %v421
        %2459 = vmatprep.subr.mxu0 %v428
        %2460 = vmatpush1.msra.mxu0 %v427
        %2461 = vmatprep.subr.mxu0 %v434
        %2462 = vmatpush1.msra.mxu0 %v433
        %2463 = vmatprep.subr.mxu0 %v440
        %2464 = vmatpush1.msra.mxu0 %v439
        %2465 = vmatprep.subr.mxu0 %v446
        %2466 = vmatpush1.msra.mxu0 %v445
        %2467 = vmatprep.subr.mxu0 %v452
        %2468 = vmatpush1.msra.mxu0 %v451
        %2469 = vmatprep.subr.mxu0 %v458
        %2470 = vmatpush1.msra.mxu0 %v457
        %2471 = vmatprep.subr.mxu0 %v464
        %2472 = vmatpush1.msra.mxu0 %v463
        %2473 = vmatprep.subr.mxu0 %v470
        %2474 = vmatpush1.msra.mxu0 %v469
        %2475 = vmatprep.subr.mxu0 %v476
        %2476 = vmatpush1.msra.mxu0 %v475
        %2477 = vmatprep.subr.mxu0 %v482
        %2478 = vmatpush1.msra.mxu0 %v481
        %2479 = vmatprep.subr.mxu0 %v488
        %2480 = vmatpush1.msra.mxu0 %v487
        %2481 = vmatprep.subr.mxu0 %v494
        %2482 = vmatpush1.msra.mxu0 %v493
        %2483 = vmatprep.subr.mxu0 %v500
        %2484 = vmatpush1.msra.mxu0 %v499
        %2485 = vmatprep.subr.mxu0 %v506
        %2486 = vmatpush1.msra.mxu0 %v505
        %2487 = vmatprep.subr.mxu0 %v512
        %2488 = vmatpush1.msra.mxu0 %v511
        %2489 = vmatprep.subr.mxu0 %v518
        %2490 = vmatpush1.msra.mxu0 %v517
        %2491 = vmatprep.subr.mxu0 %v524
        %2492 = vmatpush1.msra.mxu0 %v523
        %2493 = vmatprep.subr.mxu0 %v530
        %2494 = vmatpush1.msra.mxu0 %v529
        %2495 = vmatprep.subr.mxu0 %v536
        %2496 = vmatpush1.msra.mxu0 %v535
        %2497 = vmatprep.subr.mxu0 %v542
        %2498 = vmatpush1.msra.mxu0 %v541
        %2499 = vmatprep.subr.mxu0 %v548
        %2500 = vmatpush1.msra.mxu0 %v547
        %2501 = vmatprep.subr.mxu0 %v554
        %2502 = vmatpush1.msra.mxu0 %v553
        %2503 = vmatprep.subr.mxu0 %v560
        %2504 = vmatpush1.msra.mxu0 %v559
        %2505 = vmatprep.subr.mxu0 %v566
        %2506 = vmatpush1.msra.mxu0 %v565
        %2507 = vmatprep.mubr.f32.mxu0 %v2361
        %2508 = vmatmul.mubr.f32.gmra.mrb[0].mxu0 %v2360
        %v2509 = vpop.f32.mrb[0].mxu0
        %v2510 = vadd.f32 0.0, %v2509
        %v2511 = vpop.f32.mrb[0].mxu0
        %v2512 = vadd.f32 0.0, %v2511
        %2513 = vdwg.mxu0
        %2514 = vmatprep.subr.mxu0 %v382
        %2515 = vmatpush1.msra.mxu0 %v381
        %2516 = vmatprep.subr.mxu0 %v388
        %2517 = vmatpush1.msra.mxu0 %v387
        %2518 = vmatprep.subr.mxu0 %v394
        %2519 = vmatpush1.msra.mxu0 %v393
        %2520 = vmatprep.subr.mxu0 %v400
        %2521 = vmatpush1.msra.mxu0 %v399
        %2522 = vmatprep.subr.mxu0 %v406
        %2523 = vmatpush1.msra.mxu0 %v405
        %2524 = vmatprep.subr.mxu0 %v412
        %2525 = vmatpush1.msra.mxu0 %v411
        %2526 = vmatprep.subr.mxu0 %v418
        %2527 = vmatpush1.msra.mxu0 %v417
        %2528 = vmatprep.subr.mxu0 %v424
        %2529 = vmatpush1.msra.mxu0 %v423
        %2530 = vmatprep.subr.mxu0 %v430
        %2531 = vmatpush1.msra.mxu0 %v429
        %2532 = vmatprep.subr.mxu0 %v436
        %2533 = vmatpush1.msra.mxu0 %v435
        %2534 = vmatprep.subr.mxu0 %v442
        %2535 = vmatpush1.msra.mxu0 %v441
        %2536 = vmatprep.subr.mxu0 %v448
        %2537 = vmatpush1.msra.mxu0 %v447
        %2538 = vmatprep.subr.mxu0 %v454
        %2539 = vmatpush1.msra.mxu0 %v453
        %2540 = vmatprep.subr.mxu0 %v460
        %2541 = vmatpush1.msra.mxu0 %v459
        %2542 = vmatprep.subr.mxu0 %v466
        %2543 = vmatpush1.msra.mxu0 %v465
        %2544 = vmatprep.subr.mxu0 %v472
        %2545 = vmatpush1.msra.mxu0 %v471
        %2546 = vmatprep.subr.mxu0 %v478
        %2547 = vmatpush1.msra.mxu0 %v477
        %2548 = vmatprep.subr.mxu0 %v484
        %2549 = vmatpush1.msra.mxu0 %v483
        %2550 = vmatprep.subr.mxu0 %v490
        %2551 = vmatpush1.msra.mxu0 %v489
        %2552 = vmatprep.subr.mxu0 %v496
        %2553 = vmatpush1.msra.mxu0 %v495
        %2554 = vmatprep.subr.mxu0 %v502
        %2555 = vmatpush1.msra.mxu0 %v501
        %2556 = vmatprep.subr.mxu0 %v508
        %2557 = vmatpush1.msra.mxu0 %v507
        %2558 = vmatprep.subr.mxu0 %v514
        %2559 = vmatpush1.msra.mxu0 %v513
        %2560 = vmatprep.subr.mxu0 %v520
        %2561 = vmatpush1.msra.mxu0 %v519
        %2562 = vmatprep.subr.mxu0 %v526
        %2563 = vmatpush1.msra.mxu0 %v525
        %2564 = vmatprep.subr.mxu0 %v532
        %2565 = vmatpush1.msra.mxu0 %v531
        %2566 = vmatprep.subr.mxu0 %v538
        %2567 = vmatpush1.msra.mxu0 %v537
        %2568 = vmatprep.subr.mxu0 %v544
        %2569 = vmatpush1.msra.mxu0 %v543
        %2570 = vmatprep.subr.mxu0 %v550
        %2571 = vmatpush1.msra.mxu0 %v549
        %2572 = vmatprep.subr.mxu0 %v556
        %2573 = vmatpush1.msra.mxu0 %v555
        %2574 = vmatprep.subr.mxu0 %v562
        %2575 = vmatpush1.msra.mxu0 %v561
        %2576 = vmatprep.subr.mxu0 %v568
        %2577 = vmatpush1.msra.mxu0 %v567
        %2578 = vmatprep.mubr.f32.mxu0 %v2361
        %2579 = vmatmul.mubr.f32.gmra.mrb[0].mxu0 %v2360
        %v2580 = vpop.f32.mrb[0].mxu0
        %v2581 = vadd.f32 0.0, %v2580
        %v2582 = vpop.f32.mrb[0].mxu0
        %v2583 = vadd.f32 0.0, %v2582
        %2584 = vdwg.mxu0
        %2585 = vmatprep.subr.mxu0 %v384
        %2586 = vmatpush1.msra.mxu0 %v383
        %2587 = vmatprep.subr.mxu0 %v390
        %2588 = vmatpush1.msra.mxu0 %v389
        %2589 = vmatprep.subr.mxu0 %v396
        %2590 = vmatpush1.msra.mxu0 %v395
        %2591 = vmatprep.subr.mxu0 %v402
        %2592 = vmatpush1.msra.mxu0 %v401
        %2593 = vmatprep.subr.mxu0 %v408
        %2594 = vmatpush1.msra.mxu0 %v407
        %2595 = vmatprep.subr.mxu0 %v414
        %2596 = vmatpush1.msra.mxu0 %v413
        %2597 = vmatprep.subr.mxu0 %v420
        %2598 = vmatpush1.msra.mxu0 %v419
        %2599 = vmatprep.subr.mxu0 %v426
        %2600 = vmatpush1.msra.mxu0 %v425
        %2601 = vmatprep.subr.mxu0 %v432
        %2602 = vmatpush1.msra.mxu0 %v431
        %2603 = vmatprep.subr.mxu0 %v438
        %2604 = vmatpush1.msra.mxu0 %v437
        %2605 = vmatprep.subr.mxu0 %v444
        %2606 = vmatpush1.msra.mxu0 %v443
        %2607 = vmatprep.subr.mxu0 %v450
        %2608 = vmatpush1.msra.mxu0 %v449
        %2609 = vmatprep.subr.mxu0 %v456
        %2610 = vmatpush1.msra.mxu0 %v455
        %2611 = vmatprep.subr.mxu0 %v462
        %2612 = vmatpush1.msra.mxu0 %v461
        %2613 = vmatprep.subr.mxu0 %v468
        %2614 = vmatpush1.msra.mxu0 %v467
        %2615 = vmatprep.subr.mxu0 %v474
        %2616 = vmatpush1.msra.mxu0 %v473
        %2617 = vmatprep.subr.mxu0 %v480
        %2618 = vmatpush1.msra.mxu0 %v479
        %2619 = vmatprep.subr.mxu0 %v486
        %2620 = vmatpush1.msra.mxu0 %v485
        %2621 = vmatprep.subr.mxu0 %v492
        %2622 = vmatpush1.msra.mxu0 %v491
        %2623 = vmatprep.subr.mxu0 %v498
        %2624 = vmatpush1.msra.mxu0 %v497
        %2625 = vmatprep.subr.mxu0 %v504
        %2626 = vmatpush1.msra.mxu0 %v503
        %2627 = vmatprep.subr.mxu0 %v510
        %2628 = vmatpush1.msra.mxu0 %v509
        %2629 = vmatprep.subr.mxu0 %v516
        %2630 = vmatpush1.msra.mxu0 %v515
        %2631 = vmatprep.subr.mxu0 %v522
        %2632 = vmatpush1.msra.mxu0 %v521
        %2633 = vmatprep.subr.mxu0 %v528
        %2634 = vmatpush1.msra.mxu0 %v527
        %2635 = vmatprep.subr.mxu0 %v534
        %2636 = vmatpush1.msra.mxu0 %v533
        %2637 = vmatprep.subr.mxu0 %v540
        %2638 = vmatpush1.msra.mxu0 %v539
        %2639 = vmatprep.subr.mxu0 %v546
        %2640 = vmatpush1.msra.mxu0 %v545
        %2641 = vmatprep.subr.mxu0 %v552
        %2642 = vmatpush1.msra.mxu0 %v551
        %2643 = vmatprep.subr.mxu0 %v558
        %2644 = vmatpush1.msra.mxu0 %v557
        %2645 = vmatprep.subr.mxu0 %v564
        %2646 = vmatpush1.msra.mxu0 %v563
        %2647 = vmatprep.subr.mxu0 %v570
        %2648 = vmatpush1.msra.mxu0 %v569
        %2649 = vmatprep.mubr.f32.mxu0 %v2361
        %2650 = vmatmul.mubr.f32.gmra.mrb[0].mxu0 %v2360
        %v2651 = vpop.f32.mrb[0].mxu0
        %v2652 = vadd.f32 0.0, %v2651
        %v2653 = vpop.f32.mrb[0].mxu0
        %v2654 = vadd.f32 0.0, %v2653
        %2655 = vdwg.mxu0
        %v2658 = vcombine.low %v2510, %v2512
        %v2660 = vunpack.c.l.s4 1983009808
        %v2661 = vunpack.c.0.s8 %v2660
        %v2662 = vlaneseq
        %v2663 = vshrl.u32 %v2662, 7
        %v2664 = vsub.s32 %v2661, %v2663
        %v2665 = vrot.slane %v2658, %v2664
        %v2667 = vadd.f32 %v2441, %v2665
        %v2668 = vxor.u32 %v2667, 2147483648
        %v2669 = vmul.f32 %v2668, 1.442695
        %v2670 = vpow.pop %v2669
        %v2671 = vadd.f32 %v2670, 1.0
        %v2672 = vrcp.pop %v2671
        %v2673 = vmul.f32 1.0, %v2672
        %v2675 = vrot.slane %v2441, 4
        %v2679 = vcombine.low %v2581, %v2583
        %v2681 = vunpack.c.l.s4 1983009808
        %v2682 = vunpack.c.0.s8 %v2681
        %v2683 = vlaneseq
        %v2684 = vshrl.u32 %v2683, 7
        %v2685 = vsub.s32 %v2682, %v2684
        %v2686 = vrot.slane %v2679, %v2685
        %v2688 = vadd.f32 %v2675, %v2686
        %v2689 = vxor.u32 %v2688, 2147483648
        %v2690 = vmul.f32 %v2689, 1.442695
        %v2691 = vpow.pop %v2690
        %v2692 = vadd.f32 %v2691, 1.0
        %v2693 = vrcp.pop %v2692
        %v2694 = vmul.f32 1.0, %v2693
        %v2695 = vadd.f32 %v2652, %v878
        %v2696 = vadd.f32 %v2654, %v882
        %v2699 = vcombine.low %v2695, %v2696
        %v2701 = vunpack.c.l.s4 1983009808
        %v2702 = vunpack.c.0.s8 %v2701
        %v2703 = vlaneseq
        %v2704 = vshrl.u32 %v2703, 7
        %v2705 = vsub.s32 %v2702, %v2704
        %v2706 = vrot.slane %v2699, %v2705
        %v2708 = vmul.f32 %v2673, %v2706
        %v2709 = vadd.f32 %v2442, %v2708
        %v2710 = vtanh.pop %v2709
        %v2711 = vsub.f32 1.0, %v2694
        %v2712 = vmul.f32 %v2711, %v2710
        %v2713 = vmul.f32 %v2694, %v2352
        %v2714 = vadd.f32 %v2712, %v2713
        %v2717 = vunpack.c.l.s4 1983009808
        %v2718 = vunpack.c.0.s8 %v2717
        %v2719 = vlaneseq
        %v2720 = vshrl.u32 %v2719, 7
        %v2721 = vsub.s32 %v2718, %v2720
        %v2722 = vrot.slane %v2714, %v2721
        %v2723 = vcombine.high %v2722, %v2722
        %2726 = vmatprep.subr.mxu0 0.0
        %2727 = vmatpush1.msra.mxu0 %v572
        %2728 = vmatprep.subr.mxu0 0.0
        %2729 = vmatpush1.msra.mxu0 %v573
        %2730 = vmatprep.subr.mxu0 0.0
        %2731 = vmatpush1.msra.mxu0 %v574
        %2732 = vmatprep.subr.mxu0 0.0
        %2733 = vmatpush1.msra.mxu0 %v575
        %2734 = vmatprep.subr.mxu0 0.0
        %2735 = vmatpush1.msra.mxu0 %v576
        %2736 = vmatprep.subr.mxu0 0.0
        %2737 = vmatpush1.msra.mxu0 %v577
        %2738 = vmatprep.subr.mxu0 0.0
        %2739 = vmatpush1.msra.mxu0 %v578
        %2740 = vmatprep.subr.mxu0 0.0
        %2741 = vmatpush1.msra.mxu0 %v579
        %2742 = vmatprep.subr.mxu0 0.0
        %2743 = vmatpush1.msra.mxu0 %v580
        %2744 = vmatprep.subr.mxu0 0.0
        %2745 = vmatpush1.msra.mxu0 %v581
        %2746 = vmatprep.subr.mxu0 0.0
        %2747 = vmatpush1.msra.mxu0 %v582
        %2748 = vmatprep.subr.mxu0 0.0
        %2749 = vmatpush1.msra.mxu0 %v583
        %2750 = vmatprep.subr.mxu0 0.0
        %2751 = vmatpush1.msra.mxu0 %v584
        %2752 = vmatprep.subr.mxu0 0.0
        %2753 = vmatpush1.msra.mxu0 %v585
        %2754 = vmatprep.subr.mxu0 0.0
        %2755 = vmatpush1.msra.mxu0 %v586
        %2756 = vmatprep.subr.mxu0 0.0
        %2757 = vmatpush1.msra.mxu0 %v587
        %2758 = vmatprep.subr.mxu0 0.0
        %2759 = vmatpush1.msra.mxu0 %v588
        %2760 = vmatprep.subr.mxu0 0.0
        %2761 = vmatpush1.msra.mxu0 %v589
        %2762 = vmatprep.subr.mxu0 0.0
        %2763 = vmatpush1.msra.mxu0 %v590
        %2764 = vmatprep.subr.mxu0 0.0
        %2765 = vmatpush1.msra.mxu0 %v591
        %2766 = vmatprep.subr.mxu0 0.0
        %2767 = vmatpush1.msra.mxu0 %v592
        %2768 = vmatprep.subr.mxu0 0.0
        %2769 = vmatpush1.msra.mxu0 %v593
        %2770 = vmatprep.subr.mxu0 0.0
        %2771 = vmatpush1.msra.mxu0 %v594
        %2772 = vmatprep.subr.mxu0 0.0
        %2773 = vmatpush1.msra.mxu0 %v595
        %2774 = vmatprep.subr.mxu0 0.0
        %2775 = vmatpush1.msra.mxu0 %v596
        %2776 = vmatprep.subr.mxu0 0.0
        %2777 = vmatpush1.msra.mxu0 %v597
        %2778 = vmatprep.subr.mxu0 0.0
        %2779 = vmatpush1.msra.mxu0 %v598
        %2780 = vmatprep.subr.mxu0 0.0
        %2781 = vmatpush1.msra.mxu0 %v599
        %2782 = vmatprep.subr.mxu0 0.0
        %2783 = vmatpush1.msra.mxu0 %v600
        %2784 = vmatprep.subr.mxu0 0.0
        %2785 = vmatpush1.msra.mxu0 %v601
        %2786 = vmatprep.subr.mxu0 0.0
        %2787 = vmatpush1.msra.mxu0 %v602
        %2788 = vmatprep.subr.mxu0 0.0
        %2789 = vmatpush1.msra.mxu0 %v603
        %2790 = vmatprep.mubr.f32.mxu0 %v2723
        %2791 = vmatmul.mubr.f32.gmra.mrb[0].mxu0 %v2722
        %v2792 = vpop.f32.mrb[0].mxu0
        %v2793 = vadd.f32 0.0, %v2792
        %v2794 = vpop.f32.mrb[0].mxu0
        %2795 = vdwg.mxu0
        %s2796 = smul.u32 %s2437, 2
        %s2797 = scalar_lea.vmem %s364, %s2796 [#allocation11]
        %2798 = vst [vmem:[%s2797] sm:$0x3] %v2793
        %s2799 = scalar_select %p373, 1, 6
        %s2800 = smul.u32 %s2799, 6
        %s2801 = smul.addr %s2800, 2
        %s2802 = scalar_lea.vmem %s298, %s2801 [#allocation3]
        %v2803 = vld [vmem:[%s2802] sm:$0xff]
        %v2804 = vld [vmem:[%s2802 + $0x8] sm:$0xf]
        %2805 = vmatprep.subr.mxu0 %v380
        %2806 = vmatpush1.msra.mxu0 %v379
        %2807 = vmatprep.subr.mxu0 %v386
        %2808 = vmatpush1.msra.mxu0 %v385
        %2809 = vmatprep.subr.mxu0 %v392
        %2810 = vmatpush1.msra.mxu0 %v391
        %2811 = vmatprep.subr.mxu0 %v398
        %2812 = vmatpush1.msra.mxu0 %v397
        %2813 = vmatprep.subr.mxu0 %v404
        %2814 = vmatpush1.msra.mxu0 %v403
        %2815 = vmatprep.subr.mxu0 %v410
        %2816 = vmatpush1.msra.mxu0 %v409
        %2817 = vmatprep.subr.mxu0 %v416
        %2818 = vmatpush1.msra.mxu0 %v415
        %2819 = vmatprep.subr.mxu0 %v422
        %2820 = vmatpush1.msra.mxu0 %v421
        %2821 = vmatprep.subr.mxu0 %v428
        %2822 = vmatpush1.msra.mxu0 %v427
        %2823 = vmatprep.subr.mxu0 %v434
        %2824 = vmatpush1.msra.mxu0 %v433
        %2825 = vmatprep.subr.mxu0 %v440
        %2826 = vmatpush1.msra.mxu0 %v439
        %2827 = vmatprep.subr.mxu0 %v446
        %2828 = vmatpush1.msra.mxu0 %v445
        %2829 = vmatprep.subr.mxu0 %v452
        %2830 = vmatpush1.msra.mxu0 %v451
        %2831 = vmatprep.subr.mxu0 %v458
        %2832 = vmatpush1.msra.mxu0 %v457
        %2833 = vmatprep.subr.mxu0 %v464
        %2834 = vmatpush1.msra.mxu0 %v463
        %2835 = vmatprep.subr.mxu0 %v470
        %2836 = vmatpush1.msra.mxu0 %v469
        %2837 = vmatprep.subr.mxu0 %v476
        %2838 = vmatpush1.msra.mxu0 %v475
        %2839 = vmatprep.subr.mxu0 %v482
        %2840 = vmatpush1.msra.mxu0 %v481
        %2841 = vmatprep.subr.mxu0 %v488
        %2842 = vmatpush1.msra.mxu0 %v487
        %2843 = vmatprep.subr.mxu0 %v494
        %2844 = vmatpush1.msra.mxu0 %v493
        %2845 = vmatprep.subr.mxu0 %v500
        %2846 = vmatpush1.msra.mxu0 %v499
        %2847 = vmatprep.subr.mxu0 %v506
        %2848 = vmatpush1.msra.mxu0 %v505
        %2849 = vmatprep.subr.mxu0 %v512
        %2850 = vmatpush1.msra.mxu0 %v511
        %2851 = vmatprep.subr.mxu0 %v518
        %2852 = vmatpush1.msra.mxu0 %v517
        %2853 = vmatprep.subr.mxu0 %v524
        %2854 = vmatpush1.msra.mxu0 %v523
        %2855 = vmatprep.subr.mxu0 %v530
        %2856 = vmatpush1.msra.mxu0 %v529
        %2857 = vmatprep.subr.mxu0 %v536
        %2858 = vmatpush1.msra.mxu0 %v535
        %2859 = vmatprep.subr.mxu0 %v542
        %2860 = vmatpush1.msra.mxu0 %v541
        %2861 = vmatprep.subr.mxu0 %v548
        %2862 = vmatpush1.msra.mxu0 %v547
        %2863 = vmatprep.subr.mxu0 %v554
        %2864 = vmatpush1.msra.mxu0 %v553
        %2865 = vmatprep.subr.mxu0 %v560
        %2866 = vmatpush1.msra.mxu0 %v559
        %2867 = vmatprep.subr.mxu0 %v566
        %2868 = vmatpush1.msra.mxu0 %v565
        %2869 = vmatprep.mubr.f32.mxu0 %v2723
        %2870 = vmatmul.mubr.f32.gmra.mrb[0].mxu0 %v2722
        %v2871 = vpop.f32.mrb[0].mxu0
        %v2872 = vadd.f32 0.0, %v2871
        %v2873 = vpop.f32.mrb[0].mxu0
        %v2874 = vadd.f32 0.0, %v2873
        %2875 = vdwg.mxu0
        %2876 = vmatprep.subr.mxu0 %v382
        %2877 = vmatpush1.msra.mxu0 %v381
        %2878 = vmatprep.subr.mxu0 %v388
        %2879 = vmatpush1.msra.mxu0 %v387
        %2880 = vmatprep.subr.mxu0 %v394
        %2881 = vmatpush1.msra.mxu0 %v393
        %2882 = vmatprep.subr.mxu0 %v400
        %2883 = vmatpush1.msra.mxu0 %v399
        %2884 = vmatprep.subr.mxu0 %v406
        %2885 = vmatpush1.msra.mxu0 %v405
        %2886 = vmatprep.subr.mxu0 %v412
        %2887 = vmatpush1.msra.mxu0 %v411
        %2888 = vmatprep.subr.mxu0 %v418
        %2889 = vmatpush1.msra.mxu0 %v417
        %2890 = vmatprep.subr.mxu0 %v424
        %2891 = vmatpush1.msra.mxu0 %v423
        %2892 = vmatprep.subr.mxu0 %v430
        %2893 = vmatpush1.msra.mxu0 %v429
        %2894 = vmatprep.subr.mxu0 %v436
        %2895 = vmatpush1.msra.mxu0 %v435
        %2896 = vmatprep.subr.mxu0 %v442
        %2897 = vmatpush1.msra.mxu0 %v441
        %2898 = vmatprep.subr.mxu0 %v448
        %2899 = vmatpush1.msra.mxu0 %v447
        %2900 = vmatprep.subr.mxu0 %v454
        %2901 = vmatpush1.msra.mxu0 %v453
        %2902 = vmatprep.subr.mxu0 %v460
        %2903 = vmatpush1.msra.mxu0 %v459
        %2904 = vmatprep.subr.mxu0 %v466
        %2905 = vmatpush1.msra.mxu0 %v465
        %2906 = vmatprep.subr.mxu0 %v472
        %2907 = vmatpush1.msra.mxu0 %v471
        %2908 = vmatprep.subr.mxu0 %v478
        %2909 = vmatpush1.msra.mxu0 %v477
        %2910 = vmatprep.subr.mxu0 %v484
        %2911 = vmatpush1.msra.mxu0 %v483
        %2912 = vmatprep.subr.mxu0 %v490
        %2913 = vmatpush1.msra.mxu0 %v489
        %2914 = vmatprep.subr.mxu0 %v496
        %2915 = vmatpush1.msra.mxu0 %v495
        %2916 = vmatprep.subr.mxu0 %v502
        %2917 = vmatpush1.msra.mxu0 %v501
        %2918 = vmatprep.subr.mxu0 %v508
        %2919 = vmatpush1.msra.mxu0 %v507
        %2920 = vmatprep.subr.mxu0 %v514
        %2921 = vmatpush1.msra.mxu0 %v513
        %2922 = vmatprep.subr.mxu0 %v520
        %2923 = vmatpush1.msra.mxu0 %v519
        %2924 = vmatprep.subr.mxu0 %v526
        %2925 = vmatpush1.msra.mxu0 %v525
        %2926 = vmatprep.subr.mxu0 %v532
        %2927 = vmatpush1.msra.mxu0 %v531
        %2928 = vmatprep.subr.mxu0 %v538
        %2929 = vmatpush1.msra.mxu0 %v537
        %2930 = vmatprep.subr.mxu0 %v544
        %2931 = vmatpush1.msra.mxu0 %v543
        %2932 = vmatprep.subr.mxu0 %v550
        %2933 = vmatpush1.msra.mxu0 %v549
        %2934 = vmatprep.subr.mxu0 %v556
        %2935 = vmatpush1.msra.mxu0 %v555
        %2936 = vmatprep.subr.mxu0 %v562
        %2937 = vmatpush1.msra.mxu0 %v561
        %2938 = vmatprep.subr.mxu0 %v568
        %2939 = vmatpush1.msra.mxu0 %v567
        %2940 = vmatprep.mubr.f32.mxu0 %v2723
        %2941 = vmatmul.mubr.f32.gmra.mrb[0].mxu0 %v2722
        %v2942 = vpop.f32.mrb[0].mxu0
        %v2943 = vadd.f32 0.0, %v2942
        %v2944 = vpop.f32.mrb[0].mxu0
        %v2945 = vadd.f32 0.0, %v2944
        %2946 = vdwg.mxu0
        %2947 = vmatprep.subr.mxu0 %v384
        %2948 = vmatpush1.msra.mxu0 %v383
        %2949 = vmatprep.subr.mxu0 %v390
        %2950 = vmatpush1.msra.mxu0 %v389
        %2951 = vmatprep.subr.mxu0 %v396
        %2952 = vmatpush1.msra.mxu0 %v395
        %2953 = vmatprep.subr.mxu0 %v402
        %2954 = vmatpush1.msra.mxu0 %v401
        %2955 = vmatprep.subr.mxu0 %v408
        %2956 = vmatpush1.msra.mxu0 %v407
        %2957 = vmatprep.subr.mxu0 %v414
        %2958 = vmatpush1.msra.mxu0 %v413
        %2959 = vmatprep.subr.mxu0 %v420
        %2960 = vmatpush1.msra.mxu0 %v419
        %2961 = vmatprep.subr.mxu0 %v426
        %2962 = vmatpush1.msra.mxu0 %v425
        %2963 = vmatprep.subr.mxu0 %v432
        %2964 = vmatpush1.msra.mxu0 %v431
        %2965 = vmatprep.subr.mxu0 %v438
        %2966 = vmatpush1.msra.mxu0 %v437
        %2967 = vmatprep.subr.mxu0 %v444
        %2968 = vmatpush1.msra.mxu0 %v443
        %2969 = vmatprep.subr.mxu0 %v450
        %2970 = vmatpush1.msra.mxu0 %v449
        %2971 = vmatprep.subr.mxu0 %v456
        %2972 = vmatpush1.msra.mxu0 %v455
        %2973 = vmatprep.subr.mxu0 %v462
        %2974 = vmatpush1.msra.mxu0 %v461
        %2975 = vmatprep.subr.mxu0 %v468
        %2976 = vmatpush1.msra.mxu0 %v467
        %2977 = vmatprep.subr.mxu0 %v474
        %2978 = vmatpush1.msra.mxu0 %v473
        %2979 = vmatprep.subr.mxu0 %v480
        %2980 = vmatpush1.msra.mxu0 %v479
        %2981 = vmatprep.subr.mxu0 %v486
        %2982 = vmatpush1.msra.mxu0 %v485
        %2983 = vmatprep.subr.mxu0 %v492
        %2984 = vmatpush1.msra.mxu0 %v491
        %2985 = vmatprep.subr.mxu0 %v498
        %2986 = vmatpush1.msra.mxu0 %v497
        %2987 = vmatprep.subr.mxu0 %v504
        %2988 = vmatpush1.msra.mxu0 %v503
        %2989 = vmatprep.subr.mxu0 %v510
        %2990 = vmatpush1.msra.mxu0 %v509
        %2991 = vmatprep.subr.mxu0 %v516
        %2992 = vmatpush1.msra.mxu0 %v515
        %2993 = vmatprep.subr.mxu0 %v522
        %2994 = vmatpush1.msra.mxu0 %v521
        %2995 = vmatprep.subr.mxu0 %v528
        %2996 = vmatpush1.msra.mxu0 %v527
        %2997 = vmatprep.subr.mxu0 %v534
        %2998 = vmatpush1.msra.mxu0 %v533
        %2999 = vmatprep.subr.mxu0 %v540
        %3000 = vmatpush1.msra.mxu0 %v539
        %3001 = vmatprep.subr.mxu0 %v546
        %3002 = vmatpush1.msra.mxu0 %v545
        %3003 = vmatprep.subr.mxu0 %v552
        %3004 = vmatpush1.msra.mxu0 %v551
        %3005 = vmatprep.subr.mxu0 %v558
        %3006 = vmatpush1.msra.mxu0 %v557
        %3007 = vmatprep.subr.mxu0 %v564
        %3008 = vmatpush1.msra.mxu0 %v563
        %3009 = vmatprep.subr.mxu0 %v570
        %3010 = vmatpush1.msra.mxu0 %v569
        %3011 = vmatprep.mubr.f32.mxu0 %v2723
        %3012 = vmatmul.mubr.f32.gmra.mrb[0].mxu0 %v2722
        %v3013 = vpop.f32.mrb[0].mxu0
        %v3014 = vadd.f32 0.0, %v3013
        %v3015 = vpop.f32.mrb[0].mxu0
        %v3016 = vadd.f32 0.0, %v3015
        %3017 = vdwg.mxu0
        %v3020 = vcombine.low %v2872, %v2874
        %v3022 = vunpack.c.l.s4 1983009808
        %v3023 = vunpack.c.0.s8 %v3022
        %v3024 = vlaneseq
        %v3025 = vshrl.u32 %v3024, 7
        %v3026 = vsub.s32 %v3023, %v3025
        %v3027 = vrot.slane %v3020, %v3026
        %v3029 = vadd.f32 %v2803, %v3027
        %v3030 = vxor.u32 %v3029, 2147483648
        %v3031 = vmul.f32 %v3030, 1.442695
        %v3032 = vpow.pop %v3031
        %v3033 = vadd.f32 %v3032, 1.0
        %v3034 = vrcp.pop %v3033
        %v3035 = vmul.f32 1.0, %v3034
        %v3037 = vrot.slane %v2803, 4
        %v3041 = vcombine.low %v2943, %v2945
        %v3043 = vunpack.c.l.s4 1983009808
        %v3044 = vunpack.c.0.s8 %v3043
        %v3045 = vlaneseq
        %v3046 = vshrl.u32 %v3045, 7
        %v3047 = vsub.s32 %v3044, %v3046
        %v3048 = vrot.slane %v3041, %v3047
        %v3050 = vadd.f32 %v3037, %v3048
        %v3051 = vxor.u32 %v3050, 2147483648
        %v3052 = vmul.f32 %v3051, 1.442695
        %v3053 = vpow.pop %v3052
        %v3054 = vadd.f32 %v3053, 1.0
        %v3055 = vrcp.pop %v3054
        %v3056 = vmul.f32 1.0, %v3055
        %v3057 = vadd.f32 %v3014, %v878
        %v3058 = vadd.f32 %v3016, %v882
        %v3061 = vcombine.low %v3057, %v3058
        %v3063 = vunpack.c.l.s4 1983009808
        %v3064 = vunpack.c.0.s8 %v3063
        %v3065 = vlaneseq
        %v3066 = vshrl.u32 %v3065, 7
        %v3067 = vsub.s32 %v3064, %v3066
        %v3068 = vrot.slane %v3061, %v3067
        %v3070 = vmul.f32 %v3035, %v3068
        %v3071 = vadd.f32 %v2804, %v3070
        %v3072 = vtanh.pop %v3071
        %v3073 = vsub.f32 1.0, %v3056
        %v3074 = vmul.f32 %v3073, %v3072
        %v3075 = vmul.f32 %v3056, %v2714
        %v3076 = vadd.f32 %v3074, %v3075
        %v3079 = vunpack.c.l.s4 1983009808
        %v3080 = vunpack.c.0.s8 %v3079
        %v3081 = vlaneseq
        %v3082 = vshrl.u32 %v3081, 7
        %v3083 = vsub.s32 %v3080, %v3082
        %v3084 = vrot.slane %v3076, %v3083
        %v3085 = vcombine.high %v3084, %v3084
        %3088 = vmatprep.subr.mxu0 0.0
        %3089 = vmatpush1.msra.mxu0 %v572
        %3090 = vmatprep.subr.mxu0 0.0
        %3091 = vmatpush1.msra.mxu0 %v573
        %3092 = vmatprep.subr.mxu0 0.0
        %3093 = vmatpush1.msra.mxu0 %v574
        %3094 = vmatprep.subr.mxu0 0.0
        %3095 = vmatpush1.msra.mxu0 %v575
        %3096 = vmatprep.subr.mxu0 0.0
        %3097 = vmatpush1.msra.mxu0 %v576
        %3098 = vmatprep.subr.mxu0 0.0
        %3099 = vmatpush1.msra.mxu0 %v577
        %3100 = vmatprep.subr.mxu0 0.0
        %3101 = vmatpush1.msra.mxu0 %v578
        %3102 = vmatprep.subr.mxu0 0.0
        %3103 = vmatpush1.msra.mxu0 %v579
        %3104 = vmatprep.subr.mxu0 0.0
        %3105 = vmatpush1.msra.mxu0 %v580
        %3106 = vmatprep.subr.mxu0 0.0
        %3107 = vmatpush1.msra.mxu0 %v581
        %3108 = vmatprep.subr.mxu0 0.0
        %3109 = vmatpush1.msra.mxu0 %v582
        %3110 = vmatprep.subr.mxu0 0.0
        %3111 = vmatpush1.msra.mxu0 %v583
        %3112 = vmatprep.subr.mxu0 0.0
        %3113 = vmatpush1.msra.mxu0 %v584
        %3114 = vmatprep.subr.mxu0 0.0
        %3115 = vmatpush1.msra.mxu0 %v585
        %3116 = vmatprep.subr.mxu0 0.0
        %3117 = vmatpush1.msra.mxu0 %v586
        %3118 = vmatprep.subr.mxu0 0.0
        %3119 = vmatpush1.msra.mxu0 %v587
        %3120 = vmatprep.subr.mxu0 0.0
        %3121 = vmatpush1.msra.mxu0 %v588
        %3122 = vmatprep.subr.mxu0 0.0
        %3123 = vmatpush1.msra.mxu0 %v589
        %3124 = vmatprep.subr.mxu0 0.0
        %3125 = vmatpush1.msra.mxu0 %v590
        %3126 = vmatprep.subr.mxu0 0.0
        %3127 = vmatpush1.msra.mxu0 %v591
        %3128 = vmatprep.subr.mxu0 0.0
        %3129 = vmatpush1.msra.mxu0 %v592
        %3130 = vmatprep.subr.mxu0 0.0
        %3131 = vmatpush1.msra.mxu0 %v593
        %3132 = vmatprep.subr.mxu0 0.0
        %3133 = vmatpush1.msra.mxu0 %v594
        %3134 = vmatprep.subr.mxu0 0.0
        %3135 = vmatpush1.msra.mxu0 %v595
        %3136 = vmatprep.subr.mxu0 0.0
        %3137 = vmatpush1.msra.mxu0 %v596
        %3138 = vmatprep.subr.mxu0 0.0
        %3139 = vmatpush1.msra.mxu0 %v597
        %3140 = vmatprep.subr.mxu0 0.0
        %3141 = vmatpush1.msra.mxu0 %v598
        %3142 = vmatprep.subr.mxu0 0.0
        %3143 = vmatpush1.msra.mxu0 %v599
        %3144 = vmatprep.subr.mxu0 0.0
        %3145 = vmatpush1.msra.mxu0 %v600
        %3146 = vmatprep.subr.mxu0 0.0
        %3147 = vmatpush1.msra.mxu0 %v601
        %3148 = vmatprep.subr.mxu0 0.0
        %3149 = vmatpush1.msra.mxu0 %v602
        %3150 = vmatprep.subr.mxu0 0.0
        %3151 = vmatpush1.msra.mxu0 %v603
        %3152 = vmatprep.mubr.f32.mxu0 %v3085
        %3153 = vmatmul.mubr.f32.gmra.mrb[0].mxu0 %v3084
        %v3154 = vpop.f32.mrb[0].mxu0
        %v3155 = vadd.f32 0.0, %v3154
        %v3156 = vpop.f32.mrb[0].mxu0
        %3157 = vdwg.mxu0
        %s3158 = smul.u32 %s2799, 2
        %s3159 = scalar_lea.vmem %s364, %s3158 [#allocation11]
        %3160 = vst [vmem:[%s3159] sm:$0x3] %v3155
        %s3161 = scalar_select %p373, 0, 7
        %s3162 = smul.u32 %s3161, 6
        %s3163 = smul.addr %s3162, 2
        %s3164 = scalar_lea.vmem %s298, %s3163 [#allocation3]
        %v3165 = vld [vmem:[%s3164] sm:$0xff]
        %v3166 = vld [vmem:[%s3164 + $0x8] sm:$0xf]
        %3167 = vmatprep.subr.mxu0 %v380
        %3168 = vmatpush1.msra.mxu0 %v379
        %3169 = vmatprep.subr.mxu0 %v386
        %3170 = vmatpush1.msra.mxu0 %v385
        %3171 = vmatprep.subr.mxu0 %v392
        %3172 = vmatpush1.msra.mxu0 %v391
        %3173 = vmatprep.subr.mxu0 %v398
        %3174 = vmatpush1.msra.mxu0 %v397
        %3175 = vmatprep.subr.mxu0 %v404
        %3176 = vmatpush1.msra.mxu0 %v403
        %3177 = vmatprep.subr.mxu0 %v410
        %3178 = vmatpush1.msra.mxu0 %v409
        %3179 = vmatprep.subr.mxu0 %v416
        %3180 = vmatpush1.msra.mxu0 %v415
        %3181 = vmatprep.subr.mxu0 %v422
        %3182 = vmatpush1.msra.mxu0 %v421
        %3183 = vmatprep.subr.mxu0 %v428
        %3184 = vmatpush1.msra.mxu0 %v427
        %3185 = vmatprep.subr.mxu0 %v434
        %3186 = vmatpush1.msra.mxu0 %v433
        %3187 = vmatprep.subr.mxu0 %v440
        %3188 = vmatpush1.msra.mxu0 %v439
        %3189 = vmatprep.subr.mxu0 %v446
        %3190 = vmatpush1.msra.mxu0 %v445
        %3191 = vmatprep.subr.mxu0 %v452
        %3192 = vmatpush1.msra.mxu0 %v451
        %3193 = vmatprep.subr.mxu0 %v458
        %3194 = vmatpush1.msra.mxu0 %v457
        %3195 = vmatprep.subr.mxu0 %v464
        %3196 = vmatpush1.msra.mxu0 %v463
        %3197 = vmatprep.subr.mxu0 %v470
        %3198 = vmatpush1.msra.mxu0 %v469
        %3199 = vmatprep.subr.mxu0 %v476
        %3200 = vmatpush1.msra.mxu0 %v475
        %3201 = vmatprep.subr.mxu0 %v482
        %3202 = vmatpush1.msra.mxu0 %v481
        %3203 = vmatprep.subr.mxu0 %v488
        %3204 = vmatpush1.msra.mxu0 %v487
        %3205 = vmatprep.subr.mxu0 %v494
        %3206 = vmatpush1.msra.mxu0 %v493
        %3207 = vmatprep.subr.mxu0 %v500
        %3208 = vmatpush1.msra.mxu0 %v499
        %3209 = vmatprep.subr.mxu0 %v506
        %3210 = vmatpush1.msra.mxu0 %v505
        %3211 = vmatprep.subr.mxu0 %v512
        %3212 = vmatpush1.msra.mxu0 %v511
        %3213 = vmatprep.subr.mxu0 %v518
        %3214 = vmatpush1.msra.mxu0 %v517
        %3215 = vmatprep.subr.mxu0 %v524
        %3216 = vmatpush1.msra.mxu0 %v523
        %3217 = vmatprep.subr.mxu0 %v530
        %3218 = vmatpush1.msra.mxu0 %v529
        %3219 = vmatprep.subr.mxu0 %v536
        %3220 = vmatpush1.msra.mxu0 %v535
        %3221 = vmatprep.subr.mxu0 %v542
        %3222 = vmatpush1.msra.mxu0 %v541
        %3223 = vmatprep.subr.mxu0 %v548
        %3224 = vmatpush1.msra.mxu0 %v547
        %3225 = vmatprep.subr.mxu0 %v554
        %3226 = vmatpush1.msra.mxu0 %v553
        %3227 = vmatprep.subr.mxu0 %v560
        %3228 = vmatpush1.msra.mxu0 %v559
        %3229 = vmatprep.subr.mxu0 %v566
        %3230 = vmatpush1.msra.mxu0 %v565
        %3231 = vmatprep.mubr.f32.mxu0 %v3085
        %3232 = vmatmul.mubr.f32.gmra.mrb[0].mxu0 %v3084
        %v3233 = vpop.f32.mrb[0].mxu0
        %v3234 = vadd.f32 0.0, %v3233
        %v3235 = vpop.f32.mrb[0].mxu0
        %v3236 = vadd.f32 0.0, %v3235
        %3237 = vdwg.mxu0
        %3238 = vmatprep.subr.mxu0 %v382
        %3239 = vmatpush1.msra.mxu0 %v381
        %3240 = vmatprep.subr.mxu0 %v388
        %3241 = vmatpush1.msra.mxu0 %v387
        %3242 = vmatprep.subr.mxu0 %v394
        %3243 = vmatpush1.msra.mxu0 %v393
        %3244 = vmatprep.subr.mxu0 %v400
        %3245 = vmatpush1.msra.mxu0 %v399
        %3246 = vmatprep.subr.mxu0 %v406
        %3247 = vmatpush1.msra.mxu0 %v405
        %3248 = vmatprep.subr.mxu0 %v412
        %3249 = vmatpush1.msra.mxu0 %v411
        %3250 = vmatprep.subr.mxu0 %v418
        %3251 = vmatpush1.msra.mxu0 %v417
        %3252 = vmatprep.subr.mxu0 %v424
        %3253 = vmatpush1.msra.mxu0 %v423
        %3254 = vmatprep.subr.mxu0 %v430
        %3255 = vmatpush1.msra.mxu0 %v429
        %3256 = vmatprep.subr.mxu0 %v436
        %3257 = vmatpush1.msra.mxu0 %v435
        %3258 = vmatprep.subr.mxu0 %v442
        %3259 = vmatpush1.msra.mxu0 %v441
        %3260 = vmatprep.subr.mxu0 %v448
        %3261 = vmatpush1.msra.mxu0 %v447
        %3262 = vmatprep.subr.mxu0 %v454
        %3263 = vmatpush1.msra.mxu0 %v453
        %3264 = vmatprep.subr.mxu0 %v460
        %3265 = vmatpush1.msra.mxu0 %v459
        %3266 = vmatprep.subr.mxu0 %v466
        %3267 = vmatpush1.msra.mxu0 %v465
        %3268 = vmatprep.subr.mxu0 %v472
        %3269 = vmatpush1.msra.mxu0 %v471
        %3270 = vmatprep.subr.mxu0 %v478
        %3271 = vmatpush1.msra.mxu0 %v477
        %3272 = vmatprep.subr.mxu0 %v484
        %3273 = vmatpush1.msra.mxu0 %v483
        %3274 = vmatprep.subr.mxu0 %v490
        %3275 = vmatpush1.msra.mxu0 %v489
        %3276 = vmatprep.subr.mxu0 %v496
        %3277 = vmatpush1.msra.mxu0 %v495
        %3278 = vmatprep.subr.mxu0 %v502
        %3279 = vmatpush1.msra.mxu0 %v501
        %3280 = vmatprep.subr.mxu0 %v508
        %3281 = vmatpush1.msra.mxu0 %v507
        %3282 = vmatprep.subr.mxu0 %v514
        %3283 = vmatpush1.msra.mxu0 %v513
        %3284 = vmatprep.subr.mxu0 %v520
        %3285 = vmatpush1.msra.mxu0 %v519
        %3286 = vmatprep.subr.mxu0 %v526
        %3287 = vmatpush1.msra.mxu0 %v525
        %3288 = vmatprep.subr.mxu0 %v532
        %3289 = vmatpush1.msra.mxu0 %v531
        %3290 = vmatprep.subr.mxu0 %v538
        %3291 = vmatpush1.msra.mxu0 %v537
        %3292 = vmatprep.subr.mxu0 %v544
        %3293 = vmatpush1.msra.mxu0 %v543
        %3294 = vmatprep.subr.mxu0 %v550
        %3295 = vmatpush1.msra.mxu0 %v549
        %3296 = vmatprep.subr.mxu0 %v556
        %3297 = vmatpush1.msra.mxu0 %v555
        %3298 = vmatprep.subr.mxu0 %v562
        %3299 = vmatpush1.msra.mxu0 %v561
        %3300 = vmatprep.subr.mxu0 %v568
        %3301 = vmatpush1.msra.mxu0 %v567
        %3302 = vmatprep.mubr.f32.mxu0 %v3085
        %3303 = vmatmul.mubr.f32.gmra.mrb[0].mxu0 %v3084
        %v3304 = vpop.f32.mrb[0].mxu0
        %v3305 = vadd.f32 0.0, %v3304
        %v3306 = vpop.f32.mrb[0].mxu0
        %v3307 = vadd.f32 0.0, %v3306
        %3308 = vdwg.mxu0
        %3309 = vmatprep.subr.mxu0 %v384
        %3310 = vmatpush1.msra.mxu0 %v383
        %3311 = vmatprep.subr.mxu0 %v390
        %3312 = vmatpush1.msra.mxu0 %v389
        %3313 = vmatprep.subr.mxu0 %v396
        %3314 = vmatpush1.msra.mxu0 %v395
        %3315 = vmatprep.subr.mxu0 %v402
        %3316 = vmatpush1.msra.mxu0 %v401
        %3317 = vmatprep.subr.mxu0 %v408
        %3318 = vmatpush1.msra.mxu0 %v407
        %3319 = vmatprep.subr.mxu0 %v414
        %3320 = vmatpush1.msra.mxu0 %v413
        %3321 = vmatprep.subr.mxu0 %v420
        %3322 = vmatpush1.msra.mxu0 %v419
        %3323 = vmatprep.subr.mxu0 %v426
        %3324 = vmatpush1.msra.mxu0 %v425
        %3325 = vmatprep.subr.mxu0 %v432
        %3326 = vmatpush1.msra.mxu0 %v431
        %3327 = vmatprep.subr.mxu0 %v438
        %3328 = vmatpush1.msra.mxu0 %v437
        %3329 = vmatprep.subr.mxu0 %v444
        %3330 = vmatpush1.msra.mxu0 %v443
        %3331 = vmatprep.subr.mxu0 %v450
        %3332 = vmatpush1.msra.mxu0 %v449
        %3333 = vmatprep.subr.mxu0 %v456
        %3334 = vmatpush1.msra.mxu0 %v455
        %3335 = vmatprep.subr.mxu0 %v462
        %3336 = vmatpush1.msra.mxu0 %v461
        %3337 = vmatprep.subr.mxu0 %v468
        %3338 = vmatpush1.msra.mxu0 %v467
        %3339 = vmatprep.subr.mxu0 %v474
        %3340 = vmatpush1.msra.mxu0 %v473
        %3341 = vmatprep.subr.mxu0 %v480
        %3342 = vmatpush1.msra.mxu0 %v479
        %3343 = vmatprep.subr.mxu0 %v486
        %3344 = vmatpush1.msra.mxu0 %v485
        %3345 = vmatprep.subr.mxu0 %v492
        %3346 = vmatpush1.msra.mxu0 %v491
        %3347 = vmatprep.subr.mxu0 %v498
        %3348 = vmatpush1.msra.mxu0 %v497
        %3349 = vmatprep.subr.mxu0 %v504
        %3350 = vmatpush1.msra.mxu0 %v503
        %3351 = vmatprep.subr.mxu0 %v510
        %3352 = vmatpush1.msra.mxu0 %v509
        %3353 = vmatprep.subr.mxu0 %v516
        %3354 = vmatpush1.msra.mxu0 %v515
        %3355 = vmatprep.subr.mxu0 %v522
        %3356 = vmatpush1.msra.mxu0 %v521
        %3357 = vmatprep.subr.mxu0 %v528
        %3358 = vmatpush1.msra.mxu0 %v527
        %3359 = vmatprep.subr.mxu0 %v534
        %3360 = vmatpush1.msra.mxu0 %v533
        %3361 = vmatprep.subr.mxu0 %v540
        %3362 = vmatpush1.msra.mxu0 %v539
        %3363 = vmatprep.subr.mxu0 %v546
        %3364 = vmatpush1.msra.mxu0 %v545
        %3365 = vmatprep.subr.mxu0 %v552
        %3366 = vmatpush1.msra.mxu0 %v551
        %3367 = vmatprep.subr.mxu0 %v558
        %3368 = vmatpush1.msra.mxu0 %v557
        %3369 = vmatprep.subr.mxu0 %v564
        %3370 = vmatpush1.msra.mxu0 %v563
        %3371 = vmatprep.subr.mxu0 %v570
        %3372 = vmatpush1.msra.mxu0 %v569
        %3373 = vmatprep.mubr.f32.mxu0 %v3085
        %3374 = vmatmul.mubr.f32.gmra.mrb[0].mxu0 %v3084
        %v3375 = vpop.f32.mrb[0].mxu0
        %v3376 = vadd.f32 0.0, %v3375
        %v3377 = vpop.f32.mrb[0].mxu0
        %v3378 = vadd.f32 0.0, %v3377
        %3379 = vdwg.mxu0
        %v3382 = vcombine.low %v3234, %v3236
        %v3384 = vunpack.c.l.s4 1983009808
        %v3385 = vunpack.c.0.s8 %v3384
        %v3386 = vlaneseq
        %v3387 = vshrl.u32 %v3386, 7
        %v3388 = vsub.s32 %v3385, %v3387
        %v3389 = vrot.slane %v3382, %v3388
        %v3391 = vadd.f32 %v3165, %v3389
        %v3392 = vxor.u32 %v3391, 2147483648
        %v3393 = vmul.f32 %v3392, 1.442695
        %v3394 = vpow.pop %v3393
        %v3395 = vadd.f32 %v3394, 1.0
        %v3396 = vrcp.pop %v3395
        %v3397 = vmul.f32 1.0, %v3396
        %v3399 = vrot.slane %v3165, 4
        %v3403 = vcombine.low %v3305, %v3307
        %v3405 = vunpack.c.l.s4 1983009808
        %v3406 = vunpack.c.0.s8 %v3405
        %v3407 = vlaneseq
        %v3408 = vshrl.u32 %v3407, 7
        %v3409 = vsub.s32 %v3406, %v3408
        %v3410 = vrot.slane %v3403, %v3409
        %v3412 = vadd.f32 %v3399, %v3410
        %v3413 = vxor.u32 %v3412, 2147483648
        %v3414 = vmul.f32 %v3413, 1.442695
        %v3415 = vpow.pop %v3414
        %v3416 = vadd.f32 %v3415, 1.0
        %v3417 = vrcp.pop %v3416
        %v3418 = vmul.f32 1.0, %v3417
        %v3419 = vadd.f32 %v3376, %v878
        %v3420 = vadd.f32 %v3378, %v882
        %v3423 = vcombine.low %v3419, %v3420
        %v3425 = vunpack.c.l.s4 1983009808
        %v3426 = vunpack.c.0.s8 %v3425
        %v3427 = vlaneseq
        %v3428 = vshrl.u32 %v3427, 7
        %v3429 = vsub.s32 %v3426, %v3428
        %v3430 = vrot.slane %v3423, %v3429
        %v3432 = vmul.f32 %v3397, %v3430
        %v3433 = vadd.f32 %v3166, %v3432
        %v3434 = vtanh.pop %v3433
        %v3435 = vsub.f32 1.0, %v3418
        %v3436 = vmul.f32 %v3435, %v3434
        %v3437 = vmul.f32 %v3418, %v3076
        %v3438 = vadd.f32 %v3436, %v3437
        %v3441 = vunpack.c.l.s4 1983009808
        %v3442 = vunpack.c.0.s8 %v3441
        %v3443 = vlaneseq
        %v3444 = vshrl.u32 %v3443, 7
        %v3445 = vsub.s32 %v3442, %v3444
        %v3446 = vrot.slane %v3438, %v3445
        %v3447 = vcombine.high %v3446, %v3446
        %3450 = vmatprep.subr.mxu0 0.0
        %3451 = vmatpush1.msra.mxu0 %v572
        %3452 = vmatprep.subr.mxu0 0.0
        %3453 = vmatpush1.msra.mxu0 %v573
        %3454 = vmatprep.subr.mxu0 0.0
        %3455 = vmatpush1.msra.mxu0 %v574
        %3456 = vmatprep.subr.mxu0 0.0
        %3457 = vmatpush1.msra.mxu0 %v575
        %3458 = vmatprep.subr.mxu0 0.0
        %3459 = vmatpush1.msra.mxu0 %v576
        %3460 = vmatprep.subr.mxu0 0.0
        %3461 = vmatpush1.msra.mxu0 %v577
        %3462 = vmatprep.subr.mxu0 0.0
        %3463 = vmatpush1.msra.mxu0 %v578
        %3464 = vmatprep.subr.mxu0 0.0
        %3465 = vmatpush1.msra.mxu0 %v579
        %3466 = vmatprep.subr.mxu0 0.0
        %3467 = vmatpush1.msra.mxu0 %v580
        %3468 = vmatprep.subr.mxu0 0.0
        %3469 = vmatpush1.msra.mxu0 %v581
        %3470 = vmatprep.subr.mxu0 0.0
        %3471 = vmatpush1.msra.mxu0 %v582
        %3472 = vmatprep.subr.mxu0 0.0
        %3473 = vmatpush1.msra.mxu0 %v583
        %3474 = vmatprep.subr.mxu0 0.0
        %3475 = vmatpush1.msra.mxu0 %v584
        %3476 = vmatprep.subr.mxu0 0.0
        %3477 = vmatpush1.msra.mxu0 %v585
        %3478 = vmatprep.subr.mxu0 0.0
        %3479 = vmatpush1.msra.mxu0 %v586
        %3480 = vmatprep.subr.mxu0 0.0
        %3481 = vmatpush1.msra.mxu0 %v587
        %3482 = vmatprep.subr.mxu0 0.0
        %3483 = vmatpush1.msra.mxu0 %v588
        %3484 = vmatprep.subr.mxu0 0.0
        %3485 = vmatpush1.msra.mxu0 %v589
        %3486 = vmatprep.subr.mxu0 0.0
        %3487 = vmatpush1.msra.mxu0 %v590
        %3488 = vmatprep.subr.mxu0 0.0
        %3489 = vmatpush1.msra.mxu0 %v591
        %3490 = vmatprep.subr.mxu0 0.0
        %3491 = vmatpush1.msra.mxu0 %v592
        %3492 = vmatprep.subr.mxu0 0.0
        %3493 = vmatpush1.msra.mxu0 %v593
        %3494 = vmatprep.subr.mxu0 0.0
        %3495 = vmatpush1.msra.mxu0 %v594
        %3496 = vmatprep.subr.mxu0 0.0
        %3497 = vmatpush1.msra.mxu0 %v595
        %3498 = vmatprep.subr.mxu0 0.0
        %3499 = vmatpush1.msra.mxu0 %v596
        %3500 = vmatprep.subr.mxu0 0.0
        %3501 = vmatpush1.msra.mxu0 %v597
        %3502 = vmatprep.subr.mxu0 0.0
        %3503 = vmatpush1.msra.mxu0 %v598
        %3504 = vmatprep.subr.mxu0 0.0
        %3505 = vmatpush1.msra.mxu0 %v599
        %3506 = vmatprep.subr.mxu0 0.0
        %3507 = vmatpush1.msra.mxu0 %v600
        %3508 = vmatprep.subr.mxu0 0.0
        %3509 = vmatpush1.msra.mxu0 %v601
        %3510 = vmatprep.subr.mxu0 0.0
        %3511 = vmatpush1.msra.mxu0 %v602
        %3512 = vmatprep.subr.mxu0 0.0
        %3513 = vmatpush1.msra.mxu0 %v603
        %3514 = vmatprep.mubr.f32.mxu0 %v3447
        %3515 = vmatmul.mubr.f32.gmra.mrb[0].mxu0 %v3446
        %v3516 = vpop.f32.mrb[0].mxu0
        %v3517 = vadd.f32 0.0, %v3516
        %v3518 = vpop.f32.mrb[0].mxu0
        %3519 = vdwg.mxu0
        %s3520 = smul.u32 %s3161, 2
        %s3521 = scalar_lea.vmem %s364, %s3520 [#allocation11]
        %3522 = vst [vmem:[%s3521] sm:$0x3] %v3517
        %3523 = vst [vmem:[#allocation2] sm:$0xf] %v3438
        %s3524 = sand.u32 %s167, 1
        %s3525 = scalar_lea.sflag [#allocation5], %s3524
        %s3526 = sand.u32 %s167, 1
        %s3527 = smul.addr %s3526, 16
        %s3528 = scalar_lea.vmem [#allocation11], %s3527
        // Predicated region
        $region57: #{crnn_forward.8} parent=35 // pred_check
          %p3529 = pneg %p177
        $region58: #{crnn_forward.8} parent=35 // pred_check_branch
          %3531 = sbr.rel (%p3529) target = $region60
        $region59: #{crnn_forward.8} parent=35 // pred_region
          %s3532 = smul.u32 %s31, 2
          %s3533 = ssub.s32 1, %s3532
          %s3534 = smul.u32 %s3533, %s32
          %s3535 = smul.u32 8, %s3534
          %s3537 = ssub.s32 256, 256
          %3538 = vsyncadd %s3525, %s3537
          %s3539 = smul.addr %s31, 8
          %s3540 = sadd.s32 %s3535, %s3539
          %s3541 = smul.addr %s3540, 32
          %s3542 = scalar_lea.hbm %s4, %s3541
          %s3543 = sshll.u32 %s3528, 4
          %s3544 = int_to_ptr.vmem [resolvable:$true] %s3543
          %3549 = dma.vmem_to_hbm [thread:$0]  %s3544, 256, %s3542, %s3525, 32, 32, 2
        $region60: #{crnn_forward.8} parent=35 // pred_fallthru
          _
      $region36: #{crnn_forward.8} parent=5 // pred_fallthru
        _
      %p3550 = scmp.le.s32.totalorder 2, %s22
      // Predicated region
      $region61: #{crnn_forward.8} parent=5 // pred_check
        %p3551 = pneg %p3550
      $region62: #{crnn_forward.8} parent=5 // pred_check_branch
        %3553 = sbr.rel (%p3551) target = $region64
      $region63: #{crnn_forward.8} parent=5 // pred_region
        %s3554 = ssub.s32 %s22, 2
        // Predicated region
        $region65: #{crnn_forward.8} parent=63 // pred_check
          %p3555 = pneg %p183
        $region66: #{crnn_forward.8} parent=63 // pred_check_branch
          %3557 = sbr.rel (%p3555) target = $region68
        $region67: #{crnn_forward.8} parent=63 // pred_region
          %s3558 = sand.u32 %s168, 1
          %s3559 = scalar_lea.sflag [#allocation5], %s3558
          %s3560 = sand.u32 %s168, 1
          %s3561 = smul.addr %s3560, 16
          %s3562 = scalar_lea.vmem [#allocation11], %s3561
          %3563 = dma.done %s3559, 256
        $region68: #{crnn_forward.8} parent=63 // pred_fallthru
          _
      $region64: #{crnn_forward.8} parent=5 // pred_fallthru
        _
    $region6: #{crnn_forward.8} parent=1 // loop_footer
      %s26 = sadd.s32 1, %s22
    $region7: #{crnn_forward.8} parent=1 // loop_footer_branch
      %21 = sbr.rel target = $region3
    $region8: #{crnn_forward.8} parent=1 // loop_exit
      _
    %3564 = vsyncpa [#allocation4], 1
    %s3565 = scalar_lea.sflag [#allocation4], 1
    %3566 = vsyncpa %s3565, 1
    %3567 = vsyncpa [#allocation7], 1
    %s3568 = scalar_lea.sflag [#allocation7], 1
    %3569 = vsyncpa %s3568, 1
    %3570 = vsyncpa [#allocation10], 1
    %s3571 = scalar_lea.sflag [#allocation10], 1
    %3572 = vsyncpa %s3571, 1
    %3573 = vsyncpa [#allocation5], 1
    %s3574 = scalar_lea.sflag [#allocation5], 1
    %3575 = vsyncpa %s3574, 1

</llo_original>
